<compile_context>
chip_gen: v6e
topology: v6e:2x2x1
jax: 0.10.0
libtpu: 0.0.40
codegen_flags: <defaults>
</compile_context>

<pallas_src>
import functools

import jax
import jax.numpy as jnp
from jax.experimental import pallas as pl
from jax.experimental.pallas import tpu as pltpu


# ---------------------------------------------------------------------------
# small helpers
# ---------------------------------------------------------------------------
def _round_up(n, m):
    return (n + m - 1) // m * m


def _pad_gate_cols(w, H, Hp):
    """(..., 3H) -> (..., 3Hp): gate g's real cols land at [g*Hp, g*Hp+H)."""
    parts = []
    for g in range(3):
        blk = w[..., g * H:(g + 1) * H]
        pad = [(0, 0)] * (w.ndim - 1) + [(0, Hp - H)]
        parts.append(jnp.pad(blk, pad))
    return jnp.concatenate(parts, axis=-1)


def _pad_rows(w, Hp):
    """(F, G) -> (Hp, G) zero-padding rows (F <= Hp)."""
    return jnp.pad(w, ((0, Hp - w.shape[0]), (0, 0)))


@functools.lru_cache(maxsize=None)
def _vmem_limit_bytes():
    """Generation-aware VMEM limit: ~75% of per-core capacity, capped at 100MiB
    (v7x: 64 MiB/TC -> 48 MiB; v5e/v6e: 128 MiB -> 96 MiB)."""
    cap = 64 * 1024 * 1024
    try:
        info_cap = int(pltpu.get_tpu_info().vmem_capacity_bytes)
        if info_cap > 0:
            cap = info_cap
    except Exception:
        pass
    return min((cap * 3) // 4, 100 * 1024 * 1024)


_VMEM_SPEC = pl.BlockSpec(memory_space=pltpu.MemorySpace.VMEM)


# ---------------------------------------------------------------------------
# Pallas kernels
# ---------------------------------------------------------------------------
def _make_bigru_layer_kernel(first_layer, need_seq, needs_mask, *,
                             Tc, C, Bp, Hp, L, compute_dtype):
    """Fused bidirectional GRU layer.  Grid = (time_chunk,); fwd/bwd chains
    are interleaved inside one serial loop (two independent carries)."""
    n_x = 2 if first_layer else 4
    n_out = 3 if need_seq else 1
    use_bf16 = (compute_dtype == jnp.bfloat16)

    if use_bf16:
        # one EUP op (tanh) instead of exp + reciprocal on the serial chain;
        # gate math itself stays f32 (v5e EUP has no bf16 path).
        def _sigmoid(v):
            return jnp.tanh(v * 0.5) * 0.5 + 0.5
    else:
        _sigmoid = jax.nn.sigmoid

    def kernel(*refs):
        x_refs = refs[:n_x]
        wih_ref, whh_ref, bgi_ref, bhn_ref = refs[n_x:n_x + 4]
        out_refs = refs[n_x + 4:n_x + 4 + n_out]
        if need_seq:
            seqf_ref, seqb_ref, h_ref = out_refs
        else:
            (h_ref,) = out_refs
        gif_scr, gib_scr, hf_scr, hb_scr = refs[n_x + 4 + n_out:]

        c = pl.program_id(0)                 # time-chunk index (arbitrary axis)

        # ---- phase 1: hoisted input projections for both direction chunks --
        if first_layer:
            xf_ref, xb_ref = x_refs
            gi_f = jnp.dot(xf_ref[...], wih_ref[0],
                           preferred_element_type=jnp.float32)
            gi_b = jnp.dot(xb_ref[...], wih_ref[1],
                           preferred_element_type=jnp.float32)
        else:
            # previous layer's (seq_fwd, seq_bwd); W_ih split per half -> no concat
            pff_ref, pbf_ref, pfb_ref, pbb_ref = x_refs
            gi_f = (jnp.dot(pff_ref[...], wih_ref[0, 0],
                            preferred_element_type=jnp.float32)
                    + jnp.dot(pbf_ref[...], wih_ref[0, 1],
                              preferred_element_type=jnp.float32))
            gi_b = (jnp.dot(pfb_ref[...], wih_ref[1, 0],
                            preferred_element_type=jnp.float32)
                    + jnp.dot(pbb_ref[...], wih_ref[1, 1],
                              preferred_element_type=jnp.float32))
        gif_scr[...] = (gi_f + bgi_ref[0]).astype(gif_scr.dtype)  # bias pre-folded
        gib_scr[...] = (gi_b + bgi_ref[1]).astype(gib_scr.dtype)

        # ---- phase 2: interleaved serial recurrence over the chunk ---------
        @pl.when(c == 0)
        def _():
            hf_scr[...] = jnp.zeros_like(hf_scr)
            hb_scr[...] = jnp.zeros_like(hb_scr)

        whh_f = whh_ref[0]                   # (Hp, 3Hp) hoisted, VMEM-resident
        whh_b = whh_ref[1]
        bhn_f = bhn_ref[0]                   # (1, Hp)
        bhn_b = bhn_ref[1]

        def cell(gi_t, gh, b_hn, h_prev):
            r = _sigmoid(gi_t[:, 0:Hp] + gh[:, 0:Hp])
            z = _sigmoid(gi_t[:, Hp:2 * Hp] + gh[:, Hp:2 * Hp])
            n = jnp.tanh(gi_t[:, 2 * Hp:] + r * (gh[:, 2 * Hp:] + b_hn))
            return (1.0 - z) * n + z * h_prev

        def step(i, carry):
            hf, hb = carry
            # forward chain: local index i inside chunk c
            row_f = pl.multiple_of(i * Bp, Bp)
            gh_f = jnp.dot(hf.astype(compute_dtype), whh_f,
                           preferred_element_type=jnp.float32)
            hf_new = cell(gif_scr[pl.ds(row_f, Bp), :], gh_f, bhn_f, hf)
            # backward chain: mirrored local index inside mirrored chunk C-1-c
            row_b = pl.multiple_of((Tc - 1 - i) * Bp, Bp)
            gh_b = jnp.dot(hb.astype(compute_dtype), whh_b,
                           preferred_element_type=jnp.float32)
            hb_new = cell(gib_scr[pl.ds(row_b, Bp), :], gh_b, bhn_b, hb)
            if needs_mask:
                # freeze the carry on zero-padded timesteps (global t >= L)
                t_f = c * Tc + i
                t_b = (C - 1 - c) * Tc + (Tc - 1 - i)
                hf_new = jnp.where(t_f < L, hf_new, hf)
                hb_new = jnp.where(t_b < L, hb_new, hb)
            if need_seq:
                seqf_ref[pl.ds(row_f, Bp), :] = hf_new.astype(seqf_ref.dtype)
                seqb_ref[pl.ds(row_b, Bp), :] = hb_new.astype(seqb_ref.dtype)
            return hf_new, hb_new

        hf_fin, hb_fin = jax.lax.fori_loop(
            0, Tc, step, (hf_scr[...], hb_scr[...]), unroll=min(Tc, 8))
        hf_scr[...] = hf_fin
        hb_scr[...] = hb_fin

        # the h block is revisited across chunks -> write it only once
        @pl.when(c == C - 1)
        def _():
            h_ref[0] = hf_fin
            h_ref[1] = hb_fin

    return kernel


def _linear_kernel(h_ref, wl_ref, b_ref, o_ref):
    """y = cat(h_fwd, h_bwd) @ W.T + b, done as split matmuls (no concat)."""
    o_ref[...] = (jnp.dot(h_ref[0], wl_ref[0], preferred_element_type=jnp.float32)
                  + jnp.dot(h_ref[1], wl_ref[1], preferred_element_type=jnp.float32)
                  + b_ref[...])


# ---------------------------------------------------------------------------
# Layer wrapper
# ---------------------------------------------------------------------------
def _bigru_layer(x_args, wih, whh, bgi, bhn, *, first_layer, need_seq,
                 L, Lp, Tc, Bp, Hp, compute_dtype):
    C = Lp // Tc
    needs_mask = (Lp != L)

    fwd_map = lambda c: (c, 0)               # chunk c (forward time order)
    bwd_map = lambda c: (C - 1 - c, 0)       # mirrored chunk (backward order)

    if first_layer:
        (x2d,) = x_args
        Fin = x2d.shape[-1]
        data_specs = [pl.BlockSpec((Tc * Bp, Fin), fwd_map),
                      pl.BlockSpec((Tc * Bp, Fin), bwd_map)]
        data_args = [x2d, x2d]
    else:
        seq_f, seq_b = x_args
        blk = (Tc * Bp, Hp)
        data_specs = [pl.BlockSpec(blk, fwd_map),   # prev fwd @ c     (this fwd)
                      pl.BlockSpec(blk, fwd_map),   # prev bwd @ c
                      pl.BlockSpec(blk, bwd_map),   # prev fwd @ C-1-c (this bwd)
                      pl.BlockSpec(blk, bwd_map)]   # prev bwd @ C-1-c
        data_args = [seq_f, seq_b, seq_f, seq_b]

    # weights / biases: whole-array VMEM residents -> single-buffered,
    # no per-chunk DMA and no double-buffer duplication of W_hh / W_ih.
    in_specs = data_specs + [_VMEM_SPEC] * 4

    h_shape = jax.ShapeDtypeStruct((2, Bp, Hp), jnp.float32)
    h_spec = pl.BlockSpec((2, Bp, Hp), lambda c: (0, 0, 0))
    if need_seq:
        seq_shape = jax.ShapeDtypeStruct((Lp * Bp, Hp), compute_dtype)
        out_shape = (seq_shape, seq_shape, h_shape)
        out_specs = (pl.BlockSpec((Tc * Bp, Hp), fwd_map),
                     pl.BlockSpec((Tc * Bp, Hp), bwd_map),
                     h_spec)
    else:
        out_shape = h_shape
        out_specs = h_spec

    kernel = _make_bigru_layer_kernel(
        first_layer, need_seq, needs_mask,
        Tc=Tc, C=C, Bp=Bp, Hp=Hp, L=L, compute_dtype=compute_dtype)

    return pl.pallas_call(
        kernel,
        grid=(C,),
        in_specs=in_specs,
        out_specs=out_specs,
        out_shape=out_shape,
        scratch_shapes=[pltpu.VMEM((Tc * Bp, 3 * Hp), compute_dtype),  # GI fwd
                        pltpu.VMEM((Tc * Bp, 3 * Hp), compute_dtype),  # GI bwd
                        pltpu.VMEM((Bp, Hp), jnp.float32),             # h fwd carry
                        pltpu.VMEM((Bp, Hp), jnp.float32)],            # h bwd carry
        compiler_params=pltpu.CompilerParams(
            dimension_semantics=("arbitrary",),
            vmem_limit_bytes=_vmem_limit_bytes()),
    )(*data_args, wih, whh, bgi, bhn)


# ---------------------------------------------------------------------------
# Forward pass
# ---------------------------------------------------------------------------
def video_encoder_forward(x, params, *, time_chunk=64):
    """x: (B, L, input_size) -> (B, 2*hidden_size)."""
    B, L, I = x.shape
    H, Hp = params['H'], params['Hp']
    compute_dtype = params['layers'][0]['whh'].dtype
    use_bf16 = (compute_dtype == jnp.bfloat16)

    # bf16 packs 16 rows/sublane-tile: keep batch pad tile-aligned so the
    # per-step dynamic sublane slices/stores stay on packed-tile boundaries.
    Bp = _round_up(B, 16 if use_bf16 else 8)
    Tc = max(1, min(time_chunk, L))
    Lp = _round_up(L, Tc)                     # padded steps are masked in-kernel

    # TODO(synk): fold this transpose/pad of x into the first layer's
    # pallas_call (3-D BlockSpec over (B, L, I)) to save one HBM pass over x.
    x_tm = jnp.transpose(x, (1, 0, 2))                                # (L, B, I)
    x_tm = jnp.pad(x_tm, ((0, Lp - L), (0, Bp - B), (0, 0)))          # (Lp, Bp, I)
    layer_x = (x_tm.reshape(Lp * Bp, I).astype(compute_dtype),)

    num_layers = len(params['layers'])
    h_last = None
    for li, lp in enumerate(params['layers']):
        need_seq = li < num_layers - 1
        outs = _bigru_layer(layer_x, lp['wih'], lp['whh'], lp['bgi'], lp['bhn'],
                            first_layer=(li == 0), need_seq=need_seq,
                            L=L, Lp=Lp, Tc=Tc, Bp=Bp, Hp=Hp,
                            compute_dtype=compute_dtype)
        if need_seq:
            seq_f, seq_b, h_last = outs       # (Lp*Bp, Hp) x2, (2, Bp, Hp)
            layer_x = (seq_f, seq_b)
        else:
            h_last = outs
        # TODO(synk): inter-layer dropout omitted (train-only; identity in eval).

    # Final Linear on cat(h_n[-2], h_n[-1]) = (fwd, bwd) of the last layer.
    y = pl.pallas_call(
        _linear_kernel,
        out_shape=jax.ShapeDtypeStruct((Bp, 2 * H), jnp.float32),
        in_specs=[_VMEM_SPEC] * 3,
        out_specs=_VMEM_SPEC,
    )(h_last, params['wl'], params['bl'])
    return y[:B]


# ---------------------------------------------------------------------------
# Parameter packing (pad H->multiple of 128, fold biases, stack directions)
# ---------------------------------------------------------------------------
def pack_params(raw, hidden_size, param_dtype=jnp.float32):
    """param_dtype=jnp.bfloat16 stores the matmul weights MXU-native; biases,
    the final Linear and the recurrent carry stay f32."""
    H = hidden_size
    Hp = _round_up(H, 128)
    packed = {'H': H, 'Hp': Hp, 'layers': []}
    for li, layer in enumerate(raw['gru']):
        wih_d, whh_d, bgi_d, bhn_d = [], [], [], []
        for dname in ('fwd', 'bwd'):
            wih_t, whh_t, bih, bhh = layer[dname]
            if li == 0:
                wih_p = _pad_gate_cols(wih_t, H, Hp)                 # (I, 3Hp)
            else:
                wih_p = jnp.stack([                                  # (2, Hp, 3Hp)
                    _pad_gate_cols(_pad_rows(wih_t[:H], Hp), H, Hp),
                    _pad_gate_cols(_pad_rows(wih_t[H:], Hp), H, Hp)])
            whh_p = _pad_gate_cols(_pad_rows(whh_t, Hp), H, Hp)      # (Hp, 3Hp)
            # fold b_ih + b_hh for r,z into the (hoisted) input-projection bias;
            # keep b_hh(n) separate (it is multiplied by r inside the cell).
            bgi = bih + jnp.concatenate([bhh[:2 * H],
                                         jnp.zeros((H,), bhh.dtype)])
            bgi_p = _pad_gate_cols(bgi[None, :], H, Hp)              # (1, 3Hp)
            bhn_p = jnp.pad(bhh[2 * H:][None, :], ((0, 0), (0, Hp - H)))
            wih_d.append(wih_p.astype(param_dtype))
            whh_d.append(whh_p.astype(param_dtype))
            bgi_d.append(bgi_p)
            bhn_d.append(bhn_p)
        packed['layers'].append({
            'wih': jnp.stack(wih_d),      # (2, I, 3Hp) or (2, 2, Hp, 3Hp)
            'whh': jnp.stack(whh_d),      # (2, Hp, 3Hp)
            'bgi': jnp.stack(bgi_d),      # (2, 1, 3Hp)  f32
            'bhn': jnp.stack(bhn_d),      # (2, 1, Hp)   f32
        })
    wlt = raw['linear_w_t']               # (2H, 2H) = W.T
    packed['wl'] = jnp.stack([_pad_rows(wlt[:H], Hp),
                              _pad_rows(wlt[H:], Hp)])               # (2, Hp, 2H)
    packed['bl'] = raw['linear_b'][None, :]                          # (1, 2H)
    return packed


# ---------------------------------------------------------------------------
# Pure-JAX reference (for correctness check) — operates on raw params
# ---------------------------------------------------------------------------
def _gru_dir_ref(x_tm, wih_t, whh_t, bih, bhh):
    H = whh_t.shape[0]

    def step(h, x_t):
        gi = x_t @ wih_t + bih
        gh = h @ whh_t + bhh
        r = jax.nn.sigmoid(gi[:, 0:H] + gh[:, 0:H])
        z = jax.nn.sigmoid(gi[:, H:2 * H] + gh[:, H:2 * H])
        n = jnp.tanh(gi[:, 2 * H:] + r * gh[:, 2 * H:])
        h_new = (1.0 - z) * n + z * h
        return h_new, h_new

    h0 = jnp.zeros((x_tm.shape[1], H), jnp.float32)
    hN, seq = jax.lax.scan(step, h0, x_tm)
    return seq, hN


def video_encoder_ref(x, raw):
    layer_in = jnp.transpose(x, (1, 0, 2))
    h_f = h_b = None
    for layer in raw['gru']:
        seq_f, h_f = _gru_dir_ref(layer_in, *layer['fwd'])
        seq_b_rev, h_b = _gru_dir_ref(jnp.flip(layer_in, 0), *layer['bwd'])
        layer_in = jnp.concatenate([seq_f, jnp.flip(seq_b_rev, 0)], axis=-1)
    h = jnp.concatenate([h_f, h_b], axis=1)
    return h @ raw['linear_w_t'] + raw['linear_b']


# ---------------------------------------------------------------------------
# Deterministic parameter initialization (synthetic weights, PyTorch layout^T)
# ---------------------------------------------------------------------------
def init_params(key, input_size, hidden_size, num_layers):
    k = 1.0 / jnp.sqrt(hidden_size)
    params = {'gru': []}

    def u(key, shape):
        return jax.random.uniform(key, shape, jnp.float32, minval=-k, maxval=k)

    for layer in range(num_layers):
        in_sz = input_size if layer == 0 else 2 * hidden_size
        layer_p = {}
        for dname in ('fwd', 'bwd'):
            key, k1, k2, k3, k4 = jax.random.split(key, 5)
            layer_p[dname] = (
                u(k1, (in_sz, 3 * hidden_size)),        # W_ih^T (gate order r,z,n)
                u(k2, (hidden_size, 3 * hidden_size)),  # W_hh^T
                u(k3, (3 * hidden_size,)),              # b_ih
                u(k4, (3 * hidden_size,)),              # b_hh
            )
        params['gru'].append(layer_p)

    key, k1, k2 = jax.random.split(key, 3)
    kl = 1.0 / jnp.sqrt(2 * hidden_size)
    params['linear_w_t'] = jax.random.uniform(
        k1, (2 * hidden_size, 2 * hidden_size), jnp.float32, minval=-kl, maxval=kl)
    params['linear_b'] = jax.random.uniform(
        k2, (2 * hidden_size,), jnp.float32, minval=-kl, maxval=kl)
    return params


# ---------------------------------------------------------------------------
if __name__ == "__main__":
    B, L = 2, 8
    INPUT_SIZE, HIDDEN_SIZE, NUM_LAYERS = 16, 32, 2   # dropout=0, bidirectional

    root = jax.random.PRNGKey(0)
    kx, kp = jax.random.split(root)
    x = jax.random.normal(kx, (B, L, INPUT_SIZE), jnp.float32)
    raw = init_params(kp, INPUT_SIZE, HIDDEN_SIZE, NUM_LAYERS)
    ref = video_encoder_ref(x, raw)

    # ---- f32 path: exact-divisor chunking and padded/masked chunking -------
    packed_f32 = pack_params(raw, HIDDEN_SIZE, param_dtype=jnp.float32)
    for tc in (8, 3):          # tc=3 -> L padded 8->9, masked padded steps
        fwd = jax.jit(functools.partial(video_encoder_forward,
                                        params=packed_f32, time_chunk=tc))
        out = jax.block_until_ready(fwd(x))
        assert out.shape == (B, 2 * HIDDEN_SIZE), out.shape
        err = jnp.max(jnp.abs(out - ref))
        assert jnp.allclose(out, ref, rtol=1e-4, atol=1e-4), \
            f"time_chunk={tc}: max abs err {err}"

    # ---- bf16 path (MXU-native weights, bf16 inter-layer / gate-input) -----
    packed_bf16 = pack_params(raw, HIDDEN_SIZE, param_dtype=jnp.bfloat16)
    fwd16 = jax.jit(functools.partial(video_encoder_forward,
                                      params=packed_bf16, time_chunk=4))
    out16 = jax.block_until_ready(fwd16(x))
    assert out16.shape == (B, 2 * HIDDEN_SIZE), out16.shape
    assert bool(jnp.all(jnp.isfinite(out16)))
    err16 = float(jnp.max(jnp.abs(out16 - ref)))
    assert err16 < 0.25, f"bf16 path max abs err {err16}"   # loose bf16 tolerance

    print("KERNEL_OK")
</pallas_src>

<mosaic_0001>
module attributes {stable_mosaic.version = 11 : i64} {
  func.func @kernel(%arg0: i32, %arg1: memref<64x128xf32, #tpu.memory_space<vmem>>, %arg2: memref<64x128xf32, #tpu.memory_space<vmem>>, %arg3: memref<64x128xf32, #tpu.memory_space<vmem>>, %arg4: memref<64x128xf32, #tpu.memory_space<vmem>>, %arg5: memref<2x2x128x384xf32, #tpu.memory_space<vmem>>, %arg6: memref<2x128x384xf32, #tpu.memory_space<vmem>>, %arg7: memref<2x1x384xf32, #tpu.memory_space<vmem>>, %arg8: memref<2x1x128xf32, #tpu.memory_space<vmem>>, %arg9: memref<2x8x128xf32, #tpu.memory_space<vmem>>, %arg10: memref<64x384xf32, #tpu.memory_space<vmem>>, %arg11: memref<64x384xf32, #tpu.memory_space<vmem>>, %arg12: memref<8x128xf32, #tpu.memory_space<vmem>>, %arg13: memref<8x128xf32, #tpu.memory_space<vmem>>) attributes {dimension_semantics = [#tpu.dimension_semantics<arbitrary>], iteration_bounds = array<i64: 1>, scalar_prefetch = 0 : i64, scratch_operands = 4 : i64, tpu.core_type = #tpu.core_type<tc>, window_params = [{transform_indices = @transform_0, window_bounds = array<i64: 64, 128>}, {transform_indices = @transform_1, window_bounds = array<i64: 64, 128>}, {transform_indices = @transform_2, window_bounds = array<i64: 64, 128>}, {transform_indices = @transform_3, window_bounds = array<i64: 64, 128>}, {pipeline_mode = #tpu.pipeline_mode<synchronous>, transform_indices = @transform_4, window_bounds = array<i64: 2, 2, 128, 384>}, {pipeline_mode = #tpu.pipeline_mode<synchronous>, transform_indices = @transform_5, window_bounds = array<i64: 2, 128, 384>}, {pipeline_mode = #tpu.pipeline_mode<synchronous>, transform_indices = @transform_6, window_bounds = array<i64: 2, 1, 384>}, {pipeline_mode = #tpu.pipeline_mode<synchronous>, transform_indices = @transform_7, window_bounds = array<i64: 2, 1, 128>}, {pipeline_mode = #tpu.pipeline_mode<synchronous>, transform_indices = @transform_8, window_bounds = array<i64: 2, 8, 128>}]} {
    %c0 = arith.constant 0 : index
    %c0_0 = arith.constant 0 : index
    %0 = vector.load %arg1[%c0, %c0_0] : memref<64x128xf32, #tpu.memory_space<vmem>>, vector<64x128xf32>
    %c0_1 = arith.constant 0 : index
    %c0_2 = arith.constant 0 : index
    %c0_3 = arith.constant 0 : index
    %c0_4 = arith.constant 0 : index
    %1 = vector.load %arg5[%c0_1, %c0_2, %c0_3, %c0_4] : memref<2x2x128x384xf32, #tpu.memory_space<vmem>>, vector<1x1x128x384xf32>
    %2 = vector.shape_cast %1 : vector<1x1x128x384xf32> to vector<128x384xf32>
    %cst = arith.constant dense<0.000000e+00> : vector<64x384xf32>
    %3 = tpu.matmul %0, %2, %cst {dimension_numbers = #tpu.dot_dimension_numbers<[1], [0], [0], [1], [0, 0, 1, 1], [], []>} : vector<64x128xf32>, vector<128x384xf32>, vector<64x384xf32> -> vector<64x384xf32>
    %c0_5 = arith.constant 0 : index
    %c0_6 = arith.constant 0 : index
    %4 = vector.load %arg2[%c0_5, %c0_6] : memref<64x128xf32, #tpu.memory_space<vmem>>, vector<64x128xf32>
    %c0_7 = arith.constant 0 : index
    %c1 = arith.constant 1 : index
    %c0_8 = arith.constant 0 : index
    %c0_9 = arith.constant 0 : index
    %5 = vector.load %arg5[%c0_7, %c1, %c0_8, %c0_9] : memref<2x2x128x384xf32, #tpu.memory_space<vmem>>, vector<1x1x128x384xf32>
    %6 = vector.shape_cast %5 : vector<1x1x128x384xf32> to vector<128x384xf32>
    %cst_10 = arith.constant dense<0.000000e+00> : vector<64x384xf32>
    %7 = tpu.matmul %4, %6, %cst_10 {dimension_numbers = #tpu.dot_dimension_numbers<[1], [0], [0], [1], [0, 0, 1, 1], [], []>} : vector<64x128xf32>, vector<128x384xf32>, vector<64x384xf32> -> vector<64x384xf32>
    %8 = arith.addf %3, %7 : vector<64x384xf32>
    %c0_11 = arith.constant 0 : index
    %c0_12 = arith.constant 0 : index
    %9 = vector.load %arg3[%c0_11, %c0_12] : memref<64x128xf32, #tpu.memory_space<vmem>>, vector<64x128xf32>
    %c1_13 = arith.constant 1 : index
    %c0_14 = arith.constant 0 : index
    %c0_15 = arith.constant 0 : index
    %c0_16 = arith.constant 0 : index
    %10 = vector.load %arg5[%c1_13, %c0_14, %c0_15, %c0_16] : memref<2x2x128x384xf32, #tpu.memory_space<vmem>>, vector<1x1x128x384xf32>
    %11 = vector.shape_cast %10 : vector<1x1x128x384xf32> to vector<128x384xf32>
    %cst_17 = arith.constant dense<0.000000e+00> : vector<64x384xf32>
    %12 = tpu.matmul %9, %11, %cst_17 {dimension_numbers = #tpu.dot_dimension_numbers<[1], [0], [0], [1], [0, 0, 1, 1], [], []>} : vector<64x128xf32>, vector<128x384xf32>, vector<64x384xf32> -> vector<64x384xf32>
    %c0_18 = arith.constant 0 : index
    %c0_19 = arith.constant 0 : index
    %13 = vector.load %arg4[%c0_18, %c0_19] : memref<64x128xf32, #tpu.memory_space<vmem>>, vector<64x128xf32>
    %c1_20 = arith.constant 1 : index
    %c1_21 = arith.constant 1 : index
    %c0_22 = arith.constant 0 : index
    %c0_23 = arith.constant 0 : index
    %14 = vector.load %arg5[%c1_20, %c1_21, %c0_22, %c0_23] : memref<2x2x128x384xf32, #tpu.memory_space<vmem>>, vector<1x1x128x384xf32>
    %15 = vector.shape_cast %14 : vector<1x1x128x384xf32> to vector<128x384xf32>
    %cst_24 = arith.constant dense<0.000000e+00> : vector<64x384xf32>
    %16 = tpu.matmul %13, %15, %cst_24 {dimension_numbers = #tpu.dot_dimension_numbers<[1], [0], [0], [1], [0, 0, 1, 1], [], []>} : vector<64x128xf32>, vector<128x384xf32>, vector<64x384xf32> -> vector<64x384xf32>
    %17 = arith.addf %12, %16 : vector<64x384xf32>
    %c0_25 = arith.constant 0 : index
    %c0_26 = arith.constant 0 : index
    %c0_27 = arith.constant 0 : index
    %18 = vector.load %arg7[%c0_25, %c0_26, %c0_27] : memref<2x1x384xf32, #tpu.memory_space<vmem>>, vector<1x1x384xf32>
    %19 = vector.shape_cast %18 : vector<1x1x384xf32> to vector<1x384xf32>
    %20 = vector.broadcast %19 : vector<1x384xf32> to vector<64x384xf32>
    %21 = arith.addf %8, %20 : vector<64x384xf32>
    %c0_28 = arith.constant 0 : index
    %c0_29 = arith.constant 0 : index
    %22 = vector.load %arg10[%c0_28, %c0_29] : memref<64x384xf32, #tpu.memory_space<vmem>>, vector<64x384xf32>
    tpu.vector_store %arg10[%c0_28, %c0_29], %21 {strides = array<i32>} : memref<64x384xf32, #tpu.memory_space<vmem>>, vector<64x384xf32>,
    %c1_30 = arith.constant 1 : index
    %c0_31 = arith.constant 0 : index
    %c0_32 = arith.constant 0 : index
    %23 = vector.load %arg7[%c1_30, %c0_31, %c0_32] : memref<2x1x384xf32, #tpu.memory_space<vmem>>, vector<1x1x384xf32>
    %24 = vector.shape_cast %23 : vector<1x1x384xf32> to vector<1x384xf32>
    %25 = vector.broadcast %24 : vector<1x384xf32> to vector<64x384xf32>
    %26 = arith.addf %17, %25 : vector<64x384xf32>
    %c0_33 = arith.constant 0 : index
    %c0_34 = arith.constant 0 : index
    %27 = vector.load %arg11[%c0_33, %c0_34] : memref<64x384xf32, #tpu.memory_space<vmem>>, vector<64x384xf32>
    tpu.vector_store %arg11[%c0_33, %c0_34], %26 {strides = array<i32>} : memref<64x384xf32, #tpu.memory_space<vmem>>, vector<64x384xf32>,
    %c0_i32 = arith.constant 0 : i32
    %28 = arith.cmpi eq, %arg0, %c0_i32 : i32
    %29 = arith.extui %28 : i1 to i32
    %c0_i32_35 = arith.constant 0 : i32
    %30 = arith.cmpi ne, %29, %c0_i32_35 : i32
    scf.if %30 {
      %cst_163 = arith.constant 0.000000e+00 : f32
      %582 = vector.broadcast %cst_163 : f32 to vector<8x128xf32>
      %c0_164 = arith.constant 0 : index
      %c0_165 = arith.constant 0 : index
      %583 = vector.load %arg12[%c0_164, %c0_165] : memref<8x128xf32, #tpu.memory_space<vmem>>, vector<8x128xf32>
      tpu.vector_store %arg12[%c0_164, %c0_165], %582 {strides = array<i32>} : memref<8x128xf32, #tpu.memory_space<vmem>>, vector<8x128xf32>,
      %cst_166 = arith.constant 0.000000e+00 : f32
      %584 = vector.broadcast %cst_166 : f32 to vector<8x128xf32>
      %c0_167 = arith.constant 0 : index
      %c0_168 = arith.constant 0 : index
      %585 = vector.load %arg13[%c0_167, %c0_168] : memref<8x128xf32, #tpu.memory_space<vmem>>, vector<8x128xf32>
      tpu.vector_store %arg13[%c0_167, %c0_168], %584 {strides = array<i32>} : memref<8x128xf32, #tpu.memory_space<vmem>>, vector<8x128xf32>,
    } else {
    }
    %c0_36 = arith.constant 0 : index
    %c0_37 = arith.constant 0 : index
    %c0_38 = arith.constant 0 : index
    %31 = vector.load %arg6[%c0_36, %c0_37, %c0_38] : memref<2x128x384xf32, #tpu.memory_space<vmem>>, vector<1x128x384xf32>
    %32 = vector.shape_cast %31 : vector<1x128x384xf32> to vector<128x384xf32>
    %c1_39 = arith.constant 1 : index
    %c0_40 = arith.constant 0 : index
    %c0_41 = arith.constant 0 : index
    %33 = vector.load %arg6[%c1_39, %c0_40, %c0_41] : memref<2x128x384xf32, #tpu.memory_space<vmem>>, vector<1x128x384xf32>
    %34 = vector.shape_cast %33 : vector<1x128x384xf32> to vector<128x384xf32>
    %c0_42 = arith.constant 0 : index
    %c0_43 = arith.constant 0 : index
    %c0_44 = arith.constant 0 : index
    %35 = vector.load %arg8[%c0_42, %c0_43, %c0_44] : memref<2x1x128xf32, #tpu.memory_space<vmem>>, vector<1x1x128xf32>
    %36 = vector.shape_cast %35 : vector<1x1x128xf32> to vector<1x128xf32>
    %c1_45 = arith.constant 1 : index
    %c0_46 = arith.constant 0 : index
    %c0_47 = arith.constant 0 : index
    %37 = vector.load %arg8[%c1_45, %c0_46, %c0_47] : memref<2x1x128xf32, #tpu.memory_space<vmem>>, vector<1x1x128xf32>
    %38 = vector.shape_cast %37 : vector<1x1x128xf32> to vector<1x128xf32>
    %c0_48 = arith.constant 0 : index
    %c0_49 = arith.constant 0 : index
    %39 = vector.load %arg12[%c0_48, %c0_49] : memref<8x128xf32, #tpu.memory_space<vmem>>, vector<8x128xf32>
    %c0_50 = arith.constant 0 : index
    %c0_51 = arith.constant 0 : index
    %40 = vector.load %arg13[%c0_50, %c0_51] : memref<8x128xf32, #tpu.memory_space<vmem>>, vector<8x128xf32>
    %c0_i32_52 = arith.constant 0 : i32
    %c8_i32 = arith.constant 8 : i32
    %41 = arith.muli %c0_i32_52, %c8_i32 : i32
    %42 = tpu.assume_multiple %41, 8 : i32
    %cst_53 = arith.constant dense<0.000000e+00> : vector<8x384xf32>
    %43 = tpu.matmul %39, %32, %cst_53 {dimension_numbers = #tpu.dot_dimension_numbers<[1], [0], [0], [1], [0, 0, 1, 1], [], []>} : vector<8x128xf32>, vector<128x384xf32>, vector<8x384xf32> -> vector<8x384xf32>
    %44 = arith.index_cast %42 : i32 to index
    %c0_54 = arith.constant 0 : index
    %45 = vector.load %arg10[%44, %c0_54] : memref<64x384xf32, #tpu.memory_space<vmem>>, vector<8x384xf32>
    %46 = vector.extract_strided_slice %45 {offsets = [0, 0], sizes = [8, 128], strides = [1, 1]} : vector<8x384xf32> to vector<8x128xf32>
    %47 = vector.extract_strided_slice %43 {offsets = [0, 0], sizes = [8, 128], strides = [1, 1]} : vector<8x384xf32> to vector<8x128xf32>
    %48 = arith.addf %46, %47 : vector<8x128xf32>
    %49 = arith.negf %48 : vector<8x128xf32>
    %50 = math.exp %49 : vector<8x128xf32>
    %cst_55 = arith.constant 1.000000e+00 : f32
    %51 = vector.broadcast %cst_55 : f32 to vector<8x128xf32>
    %52 = arith.addf %51, %50 : vector<8x128xf32>
    %53 = arith.divf %51, %52 : vector<8x128xf32>
    %54 = vector.extract_strided_slice %45 {offsets = [0, 128], sizes = [8, 128], strides = [1, 1]} : vector<8x384xf32> to vector<8x128xf32>
    %55 = vector.extract_strided_slice %43 {offsets = [0, 128], sizes = [8, 128], strides = [1, 1]} : vector<8x384xf32> to vector<8x128xf32>
    %56 = arith.addf %54, %55 : vector<8x128xf32>
    %57 = arith.negf %56 : vector<8x128xf32>
    %58 = math.exp %57 : vector<8x128xf32>
    %cst_56 = arith.constant 1.000000e+00 : f32
    %59 = vector.broadcast %cst_56 : f32 to vector<8x128xf32>
    %60 = arith.addf %59, %58 : vector<8x128xf32>
    %61 = arith.divf %59, %60 : vector<8x128xf32>
    %62 = vector.extract_strided_slice %45 {offsets = [0, 256], sizes = [8, 128], strides = [1, 1]} : vector<8x384xf32> to vector<8x128xf32>
    %63 = vector.extract_strided_slice %43 {offsets = [0, 256], sizes = [8, 128], strides = [1, 1]} : vector<8x384xf32> to vector<8x128xf32>
    %64 = vector.broadcast %36 : vector<1x128xf32> to vector<8x128xf32>
    %65 = arith.addf %63, %64 : vector<8x128xf32>
    %66 = arith.mulf %53, %65 : vector<8x128xf32>
    %67 = arith.addf %62, %66 : vector<8x128xf32>
    %68 = math.tanh %67 : vector<8x128xf32>
    %cst_57 = arith.constant 1.000000e+00 : f32
    %69 = vector.broadcast %cst_57 : f32 to vector<8x128xf32>
    %70 = arith.subf %69, %61 : vector<8x128xf32>
    %71 = arith.mulf %70, %68 : vector<8x128xf32>
    %72 = arith.mulf %61, %39 : vector<8x128xf32>
    %73 = arith.addf %71, %72 : vector<8x128xf32>
    %c7_i32 = arith.constant 7 : i32
    %74 = arith.subi %c7_i32, %c0_i32_52 : i32
    %c8_i32_58 = arith.constant 8 : i32
    %75 = arith.muli %74, %c8_i32_58 : i32
    %76 = tpu.assume_multiple %75, 8 : i32
    %cst_59 = arith.constant dense<0.000000e+00> : vector<8x384xf32>
    %77 = tpu.matmul %40, %34, %cst_59 {dimension_numbers = #tpu.dot_dimension_numbers<[1], [0], [0], [1], [0, 0, 1, 1], [], []>} : vector<8x128xf32>, vector<128x384xf32>, vector<8x384xf32> -> vector<8x384xf32>
    %78 = arith.index_cast %76 : i32 to index
    %c0_60 = arith.constant 0 : index
    %79 = vector.load %arg11[%78, %c0_60] : memref<64x384xf32, #tpu.memory_space<vmem>>, vector<8x384xf32>
    %80 = vector.extract_strided_slice %79 {offsets = [0, 0], sizes = [8, 128], strides = [1, 1]} : vector<8x384xf32> to vector<8x128xf32>
    %81 = vector.extract_strided_slice %77 {offsets = [0, 0], sizes = [8, 128], strides = [1, 1]} : vector<8x384xf32> to vector<8x128xf32>
    %82 = arith.addf %80, %81 : vector<8x128xf32>
    %83 = arith.negf %82 : vector<8x128xf32>
    %84 = math.exp %83 : vector<8x128xf32>
    %cst_61 = arith.constant 1.000000e+00 : f32
    %85 = vector.broadcast %cst_61 : f32 to vector<8x128xf32>
    %86 = arith.addf %85, %84 : vector<8x128xf32>
    %87 = arith.divf %85, %86 : vector<8x128xf32>
    %88 = vector.extract_strided_slice %79 {offsets = [0, 128], sizes = [8, 128], strides = [1, 1]} : vector<8x384xf32> to vector<8x128xf32>
    %89 = vector.extract_strided_slice %77 {offsets = [0, 128], sizes = [8, 128], strides = [1, 1]} : vector<8x384xf32> to vector<8x128xf32>
    %90 = arith.addf %88, %89 : vector<8x128xf32>
    %91 = arith.negf %90 : vector<8x128xf32>
    %92 = math.exp %91 : vector<8x128xf32>
    %cst_62 = arith.constant 1.000000e+00 : f32
    %93 = vector.broadcast %cst_62 : f32 to vector<8x128xf32>
    %94 = arith.addf %93, %92 : vector<8x128xf32>
    %95 = arith.divf %93, %94 : vector<8x128xf32>
    %96 = vector.extract_strided_slice %79 {offsets = [0, 256], sizes = [8, 128], strides = [1, 1]} : vector<8x384xf32> to vector<8x128xf32>
    %97 = vector.extract_strided_slice %77 {offsets = [0, 256], sizes = [8, 128], strides = [1, 1]} : vector<8x384xf32> to vector<8x128xf32>
    %98 = vector.broadcast %38 : vector<1x128xf32> to vector<8x128xf32>
    %99 = arith.addf %97, %98 : vector<8x128xf32>
    %100 = arith.mulf %87, %99 : vector<8x128xf32>
    %101 = arith.addf %96, %100 : vector<8x128xf32>
    %102 = math.tanh %101 : vector<8x128xf32>
    %cst_63 = arith.constant 1.000000e+00 : f32
    %103 = vector.broadcast %cst_63 : f32 to vector<8x128xf32>
    %104 = arith.subf %103, %95 : vector<8x128xf32>
    %105 = arith.mulf %104, %102 : vector<8x128xf32>
    %106 = arith.mulf %95, %40 : vector<8x128xf32>
    %107 = arith.addf %105, %106 : vector<8x128xf32>
    %c1_i32 = arith.constant 1 : i32
    %c8_i32_64 = arith.constant 8 : i32
    %108 = arith.muli %c1_i32, %c8_i32_64 : i32
    %109 = tpu.assume_multiple %108, 8 : i32
    %cst_65 = arith.constant dense<0.000000e+00> : vector<8x384xf32>
    %110 = tpu.matmul %73, %32, %cst_65 {dimension_numbers = #tpu.dot_dimension_numbers<[1], [0], [0], [1], [0, 0, 1, 1], [], []>} : vector<8x128xf32>, vector<128x384xf32>, vector<8x384xf32> -> vector<8x384xf32>
    %111 = arith.index_cast %109 : i32 to index
    %c0_66 = arith.constant 0 : index
    %112 = vector.load %arg10[%111, %c0_66] : memref<64x384xf32, #tpu.memory_space<vmem>>, vector<8x384xf32>
    %113 = vector.extract_strided_slice %112 {offsets = [0, 0], sizes = [8, 128], strides = [1, 1]} : vector<8x384xf32> to vector<8x128xf32>
    %114 = vector.extract_strided_slice %110 {offsets = [0, 0], sizes = [8, 128], strides = [1, 1]} : vector<8x384xf32> to vector<8x128xf32>
    %115 = arith.addf %113, %114 : vector<8x128xf32>
    %116 = arith.negf %115 : vector<8x128xf32>
    %117 = math.exp %116 : vector<8x128xf32>
    %cst_67 = arith.constant 1.000000e+00 : f32
    %118 = vector.broadcast %cst_67 : f32 to vector<8x128xf32>
    %119 = arith.addf %118, %117 : vector<8x128xf32>
    %120 = arith.divf %118, %119 : vector<8x128xf32>
    %121 = vector.extract_strided_slice %112 {offsets = [0, 128], sizes = [8, 128], strides = [1, 1]} : vector<8x384xf32> to vector<8x128xf32>
    %122 = vector.extract_strided_slice %110 {offsets = [0, 128], sizes = [8, 128], strides = [1, 1]} : vector<8x384xf32> to vector<8x128xf32>
    %123 = arith.addf %121, %122 : vector<8x128xf32>
    %124 = arith.negf %123 : vector<8x128xf32>
    %125 = math.exp %124 : vector<8x128xf32>
    %cst_68 = arith.constant 1.000000e+00 : f32
    %126 = vector.broadcast %cst_68 : f32 to vector<8x128xf32>
    %127 = arith.addf %126, %125 : vector<8x128xf32>
    %128 = arith.divf %126, %127 : vector<8x128xf32>
    %129 = vector.extract_strided_slice %112 {offsets = [0, 256], sizes = [8, 128], strides = [1, 1]} : vector<8x384xf32> to vector<8x128xf32>
    %130 = vector.extract_strided_slice %110 {offsets = [0, 256], sizes = [8, 128], strides = [1, 1]} : vector<8x384xf32> to vector<8x128xf32>
    %131 = vector.broadcast %36 : vector<1x128xf32> to vector<8x128xf32>
    %132 = arith.addf %130, %131 : vector<8x128xf32>
    %133 = arith.mulf %120, %132 : vector<8x128xf32>
    %134 = arith.addf %129, %133 : vector<8x128xf32>
    %135 = math.tanh %134 : vector<8x128xf32>
    %cst_69 = arith.constant 1.000000e+00 : f32
    %136 = vector.broadcast %cst_69 : f32 to vector<8x128xf32>
    %137 = arith.subf %136, %128 : vector<8x128xf32>
    %138 = arith.mulf %137, %135 : vector<8x128xf32>
    %139 = arith.mulf %128, %73 : vector<8x128xf32>
    %140 = arith.addf %138, %139 : vector<8x128xf32>
    %c7_i32_70 = arith.constant 7 : i32
    %141 = arith.subi %c7_i32_70, %c1_i32 : i32
    %c8_i32_71 = arith.constant 8 : i32
    %142 = arith.muli %141, %c8_i32_71 : i32
    %143 = tpu.assume_multiple %142, 8 : i32
    %cst_72 = arith.constant dense<0.000000e+00> : vector<8x384xf32>
    %144 = tpu.matmul %107, %34, %cst_72 {dimension_numbers = #tpu.dot_dimension_numbers<[1], [0], [0], [1], [0, 0, 1, 1], [], []>} : vector<8x128xf32>, vector<128x384xf32>, vector<8x384xf32> -> vector<8x384xf32>
    %145 = arith.index_cast %143 : i32 to index
    %c0_73 = arith.constant 0 : index
    %146 = vector.load %arg11[%145, %c0_73] : memref<64x384xf32, #tpu.memory_space<vmem>>, vector<8x384xf32>
    %147 = vector.extract_strided_slice %146 {offsets = [0, 0], sizes = [8, 128], strides = [1, 1]} : vector<8x384xf32> to vector<8x128xf32>
    %148 = vector.extract_strided_slice %144 {offsets = [0, 0], sizes = [8, 128], strides = [1, 1]} : vector<8x384xf32> to vector<8x128xf32>
    %149 = arith.addf %147, %148 : vector<8x128xf32>
    %150 = arith.negf %149 : vector<8x128xf32>
    %151 = math.exp %150 : vector<8x128xf32>
    %cst_74 = arith.constant 1.000000e+00 : f32
    %152 = vector.broadcast %cst_74 : f32 to vector<8x128xf32>
    %153 = arith.addf %152, %151 : vector<8x128xf32>
    %154 = arith.divf %152, %153 : vector<8x128xf32>
    %155 = vector.extract_strided_slice %146 {offsets = [0, 128], sizes = [8, 128], strides = [1, 1]} : vector<8x384xf32> to vector<8x128xf32>
    %156 = vector.extract_strided_slice %144 {offsets = [0, 128], sizes = [8, 128], strides = [1, 1]} : vector<8x384xf32> to vector<8x128xf32>
    %157 = arith.addf %155, %156 : vector<8x128xf32>
    %158 = arith.negf %157 : vector<8x128xf32>
    %159 = math.exp %158 : vector<8x128xf32>
    %cst_75 = arith.constant 1.000000e+00 : f32
    %160 = vector.broadcast %cst_75 : f32 to vector<8x128xf32>
    %161 = arith.addf %160, %159 : vector<8x128xf32>
    %162 = arith.divf %160, %161 : vector<8x128xf32>
    %163 = vector.extract_strided_slice %146 {offsets = [0, 256], sizes = [8, 128], strides = [1, 1]} : vector<8x384xf32> to vector<8x128xf32>
    %164 = vector.extract_strided_slice %144 {offsets = [0, 256], sizes = [8, 128], strides = [1, 1]} : vector<8x384xf32> to vector<8x128xf32>
    %165 = vector.broadcast %38 : vector<1x128xf32> to vector<8x128xf32>
    %166 = arith.addf %164, %165 : vector<8x128xf32>
    %167 = arith.mulf %154, %166 : vector<8x128xf32>
    %168 = arith.addf %163, %167 : vector<8x128xf32>
    %169 = math.tanh %168 : vector<8x128xf32>
    %cst_76 = arith.constant 1.000000e+00 : f32
    %170 = vector.broadcast %cst_76 : f32 to vector<8x128xf32>
    %171 = arith.subf %170, %162 : vector<8x128xf32>
    %172 = arith.mulf %171, %169 : vector<8x128xf32>
    %173 = arith.mulf %162, %107 : vector<8x128xf32>
    %174 = arith.addf %172, %173 : vector<8x128xf32>
    %c2_i32 = arith.constant 2 : i32
    %c8_i32_77 = arith.constant 8 : i32
    %175 = arith.muli %c2_i32, %c8_i32_77 : i32
    %176 = tpu.assume_multiple %175, 8 : i32
    %cst_78 = arith.constant dense<0.000000e+00> : vector<8x384xf32>
    %177 = tpu.matmul %140, %32, %cst_78 {dimension_numbers = #tpu.dot_dimension_numbers<[1], [0], [0], [1], [0, 0, 1, 1], [], []>} : vector<8x128xf32>, vector<128x384xf32>, vector<8x384xf32> -> vector<8x384xf32>
    %178 = arith.index_cast %176 : i32 to index
    %c0_79 = arith.constant 0 : index
    %179 = vector.load %arg10[%178, %c0_79] : memref<64x384xf32, #tpu.memory_space<vmem>>, vector<8x384xf32>
    %180 = vector.extract_strided_slice %179 {offsets = [0, 0], sizes = [8, 128], strides = [1, 1]} : vector<8x384xf32> to vector<8x128xf32>
    %181 = vector.extract_strided_slice %177 {offsets = [0, 0], sizes = [8, 128], strides = [1, 1]} : vector<8x384xf32> to vector<8x128xf32>
    %182 = arith.addf %180, %181 : vector<8x128xf32>
    %183 = arith.negf %182 : vector<8x128xf32>
    %184 = math.exp %183 : vector<8x128xf32>
    %cst_80 = arith.constant 1.000000e+00 : f32
    %185 = vector.broadcast %cst_80 : f32 to vector<8x128xf32>
    %186 = arith.addf %185, %184 : vector<8x128xf32>
    %187 = arith.divf %185, %186 : vector<8x128xf32>
    %188 = vector.extract_strided_slice %179 {offsets = [0, 128], sizes = [8, 128], strides = [1, 1]} : vector<8x384xf32> to vector<8x128xf32>
    %189 = vector.extract_strided_slice %177 {offsets = [0, 128], sizes = [8, 128], strides = [1, 1]} : vector<8x384xf32> to vector<8x128xf32>
    %190 = arith.addf %188, %189 : vector<8x128xf32>
    %191 = arith.negf %190 : vector<8x128xf32>
    %192 = math.exp %191 : vector<8x128xf32>
    %cst_81 = arith.constant 1.000000e+00 : f32
    %193 = vector.broadcast %cst_81 : f32 to vector<8x128xf32>
    %194 = arith.addf %193, %192 : vector<8x128xf32>
    %195 = arith.divf %193, %194 : vector<8x128xf32>
    %196 = vector.extract_strided_slice %179 {offsets = [0, 256], sizes = [8, 128], strides = [1, 1]} : vector<8x384xf32> to vector<8x128xf32>
    %197 = vector.extract_strided_slice %177 {offsets = [0, 256], sizes = [8, 128], strides = [1, 1]} : vector<8x384xf32> to vector<8x128xf32>
    %198 = vector.broadcast %36 : vector<1x128xf32> to vector<8x128xf32>
    %199 = arith.addf %197, %198 : vector<8x128xf32>
    %200 = arith.mulf %187, %199 : vector<8x128xf32>
    %201 = arith.addf %196, %200 : vector<8x128xf32>
    %202 = math.tanh %201 : vector<8x128xf32>
    %cst_82 = arith.constant 1.000000e+00 : f32
    %203 = vector.broadcast %cst_82 : f32 to vector<8x128xf32>
    %204 = arith.subf %203, %195 : vector<8x128xf32>
    %205 = arith.mulf %204, %202 : vector<8x128xf32>
    %206 = arith.mulf %195, %140 : vector<8x128xf32>
    %207 = arith.addf %205, %206 : vector<8x128xf32>
    %c7_i32_83 = arith.constant 7 : i32
    %208 = arith.subi %c7_i32_83, %c2_i32 : i32
    %c8_i32_84 = arith.constant 8 : i32
    %209 = arith.muli %208, %c8_i32_84 : i32
    %210 = tpu.assume_multiple %209, 8 : i32
    %cst_85 = arith.constant dense<0.000000e+00> : vector<8x384xf32>
    %211 = tpu.matmul %174, %34, %cst_85 {dimension_numbers = #tpu.dot_dimension_numbers<[1], [0], [0], [1], [0, 0, 1, 1], [], []>} : vector<8x128xf32>, vector<128x384xf32>, vector<8x384xf32> -> vector<8x384xf32>
    %212 = arith.index_cast %210 : i32 to index
    %c0_86 = arith.constant 0 : index
    %213 = vector.load %arg11[%212, %c0_86] : memref<64x384xf32, #tpu.memory_space<vmem>>, vector<8x384xf32>
    %214 = vector.extract_strided_slice %213 {offsets = [0, 0], sizes = [8, 128], strides = [1, 1]} : vector<8x384xf32> to vector<8x128xf32>
    %215 = vector.extract_strided_slice %211 {offsets = [0, 0], sizes = [8, 128], strides = [1, 1]} : vector<8x384xf32> to vector<8x128xf32>
    %216 = arith.addf %214, %215 : vector<8x128xf32>
    %217 = arith.negf %216 : vector<8x128xf32>
    %218 = math.exp %217 : vector<8x128xf32>
    %cst_87 = arith.constant 1.000000e+00 : f32
    %219 = vector.broadcast %cst_87 : f32 to vector<8x128xf32>
    %220 = arith.addf %219, %218 : vector<8x128xf32>
    %221 = arith.divf %219, %220 : vector<8x128xf32>
    %222 = vector.extract_strided_slice %213 {offsets = [0, 128], sizes = [8, 128], strides = [1, 1]} : vector<8x384xf32> to vector<8x128xf32>
    %223 = vector.extract_strided_slice %211 {offsets = [0, 128], sizes = [8, 128], strides = [1, 1]} : vector<8x384xf32> to vector<8x128xf32>
    %224 = arith.addf %222, %223 : vector<8x128xf32>
    %225 = arith.negf %224 : vector<8x128xf32>
    %226 = math.exp %225 : vector<8x128xf32>
    %cst_88 = arith.constant 1.000000e+00 : f32
    %227 = vector.broadcast %cst_88 : f32 to vector<8x128xf32>
    %228 = arith.addf %227, %226 : vector<8x128xf32>
    %229 = arith.divf %227, %228 : vector<8x128xf32>
    %230 = vector.extract_strided_slice %213 {offsets = [0, 256], sizes = [8, 128], strides = [1, 1]} : vector<8x384xf32> to vector<8x128xf32>
    %231 = vector.extract_strided_slice %211 {offsets = [0, 256], sizes = [8, 128], strides = [1, 1]} : vector<8x384xf32> to vector<8x128xf32>
    %232 = vector.broadcast %38 : vector<1x128xf32> to vector<8x128xf32>
    %233 = arith.addf %231, %232 : vector<8x128xf32>
    %234 = arith.mulf %221, %233 : vector<8x128xf32>
    %235 = arith.addf %230, %234 : vector<8x128xf32>
    %236 = math.tanh %235 : vector<8x128xf32>
    %cst_89 = arith.constant 1.000000e+00 : f32
    %237 = vector.broadcast %cst_89 : f32 to vector<8x128xf32>
    %238 = arith.subf %237, %229 : vector<8x128xf32>
    %239 = arith.mulf %238, %236 : vector<8x128xf32>
    %240 = arith.mulf %229, %174 : vector<8x128xf32>
    %241 = arith.addf %239, %240 : vector<8x128xf32>
    %c3_i32 = arith.constant 3 : i32
    %c8_i32_90 = arith.constant 8 : i32
    %242 = arith.muli %c3_i32, %c8_i32_90 : i32
    %243 = tpu.assume_multiple %242, 8 : i32
    %cst_91 = arith.constant dense<0.000000e+00> : vector<8x384xf32>
    %244 = tpu.matmul %207, %32, %cst_91 {dimension_numbers = #tpu.dot_dimension_numbers<[1], [0], [0], [1], [0, 0, 1, 1], [], []>} : vector<8x128xf32>, vector<128x384xf32>, vector<8x384xf32> -> vector<8x384xf32>
    %245 = arith.index_cast %243 : i32 to index
    %c0_92 = arith.constant 0 : index
    %246 = vector.load %arg10[%245, %c0_92] : memref<64x384xf32, #tpu.memory_space<vmem>>, vector<8x384xf32>
    %247 = vector.extract_strided_slice %246 {offsets = [0, 0], sizes = [8, 128], strides = [1, 1]} : vector<8x384xf32> to vector<8x128xf32>
    %248 = vector.extract_strided_slice %244 {offsets = [0, 0], sizes = [8, 128], strides = [1, 1]} : vector<8x384xf32> to vector<8x128xf32>
    %249 = arith.addf %247, %248 : vector<8x128xf32>
    %250 = arith.negf %249 : vector<8x128xf32>
    %251 = math.exp %250 : vector<8x128xf32>
    %cst_93 = arith.constant 1.000000e+00 : f32
    %252 = vector.broadcast %cst_93 : f32 to vector<8x128xf32>
    %253 = arith.addf %252, %251 : vector<8x128xf32>
    %254 = arith.divf %252, %253 : vector<8x128xf32>
    %255 = vector.extract_strided_slice %246 {offsets = [0, 128], sizes = [8, 128], strides = [1, 1]} : vector<8x384xf32> to vector<8x128xf32>
    %256 = vector.extract_strided_slice %244 {offsets = [0, 128], sizes = [8, 128], strides = [1, 1]} : vector<8x384xf32> to vector<8x128xf32>
    %257 = arith.addf %255, %256 : vector<8x128xf32>
    %258 = arith.negf %257 : vector<8x128xf32>
    %259 = math.exp %258 : vector<8x128xf32>
    %cst_94 = arith.constant 1.000000e+00 : f32
    %260 = vector.broadcast %cst_94 : f32 to vector<8x128xf32>
    %261 = arith.addf %260, %259 : vector<8x128xf32>
    %262 = arith.divf %260, %261 : vector<8x128xf32>
    %263 = vector.extract_strided_slice %246 {offsets = [0, 256], sizes = [8, 128], strides = [1, 1]} : vector<8x384xf32> to vector<8x128xf32>
    %264 = vector.extract_strided_slice %244 {offsets = [0, 256], sizes = [8, 128], strides = [1, 1]} : vector<8x384xf32> to vector<8x128xf32>
    %265 = vector.broadcast %36 : vector<1x128xf32> to vector<8x128xf32>
    %266 = arith.addf %264, %265 : vector<8x128xf32>
    %267 = arith.mulf %254, %266 : vector<8x128xf32>
    %268 = arith.addf %263, %267 : vector<8x128xf32>
    %269 = math.tanh %268 : vector<8x128xf32>
    %cst_95 = arith.constant 1.000000e+00 : f32
    %270 = vector.broadcast %cst_95 : f32 to vector<8x128xf32>
    %271 = arith.subf %270, %262 : vector<8x128xf32>
    %272 = arith.mulf %271, %269 : vector<8x128xf32>
    %273 = arith.mulf %262, %207 : vector<8x128xf32>
    %274 = arith.addf %272, %273 : vector<8x128xf32>
    %c7_i32_96 = arith.constant 7 : i32
    %275 = arith.subi %c7_i32_96, %c3_i32 : i32
    %c8_i32_97 = arith.constant 8 : i32
    %276 = arith.muli %275, %c8_i32_97 : i32
    %277 = tpu.assume_multiple %276, 8 : i32
    %cst_98 = arith.constant dense<0.000000e+00> : vector<8x384xf32>
    %278 = tpu.matmul %241, %34, %cst_98 {dimension_numbers = #tpu.dot_dimension_numbers<[1], [0], [0], [1], [0, 0, 1, 1], [], []>} : vector<8x128xf32>, vector<128x384xf32>, vector<8x384xf32> -> vector<8x384xf32>
    %279 = arith.index_cast %277 : i32 to index
    %c0_99 = arith.constant 0 : index
    %280 = vector.load %arg11[%279, %c0_99] : memref<64x384xf32, #tpu.memory_space<vmem>>, vector<8x384xf32>
    %281 = vector.extract_strided_slice %280 {offsets = [0, 0], sizes = [8, 128], strides = [1, 1]} : vector<8x384xf32> to vector<8x128xf32>
    %282 = vector.extract_strided_slice %278 {offsets = [0, 0], sizes = [8, 128], strides = [1, 1]} : vector<8x384xf32> to vector<8x128xf32>
    %283 = arith.addf %281, %282 : vector<8x128xf32>
    %284 = arith.negf %283 : vector<8x128xf32>
    %285 = math.exp %284 : vector<8x128xf32>
    %cst_100 = arith.constant 1.000000e+00 : f32
    %286 = vector.broadcast %cst_100 : f32 to vector<8x128xf32>
    %287 = arith.addf %286, %285 : vector<8x128xf32>
    %288 = arith.divf %286, %287 : vector<8x128xf32>
    %289 = vector.extract_strided_slice %280 {offsets = [0, 128], sizes = [8, 128], strides = [1, 1]} : vector<8x384xf32> to vector<8x128xf32>
    %290 = vector.extract_strided_slice %278 {offsets = [0, 128], sizes = [8, 128], strides = [1, 1]} : vector<8x384xf32> to vector<8x128xf32>
    %291 = arith.addf %289, %290 : vector<8x128xf32>
    %292 = arith.negf %291 : vector<8x128xf32>
    %293 = math.exp %292 : vector<8x128xf32>
    %cst_101 = arith.constant 1.000000e+00 : f32
    %294 = vector.broadcast %cst_101 : f32 to vector<8x128xf32>
    %295 = arith.addf %294, %293 : vector<8x128xf32>
    %296 = arith.divf %294, %295 : vector<8x128xf32>
    %297 = vector.extract_strided_slice %280 {offsets = [0, 256], sizes = [8, 128], strides = [1, 1]} : vector<8x384xf32> to vector<8x128xf32>
    %298 = vector.extract_strided_slice %278 {offsets = [0, 256], sizes = [8, 128], strides = [1, 1]} : vector<8x384xf32> to vector<8x128xf32>
    %299 = vector.broadcast %38 : vector<1x128xf32> to vector<8x128xf32>
    %300 = arith.addf %298, %299 : vector<8x128xf32>
    %301 = arith.mulf %288, %300 : vector<8x128xf32>
    %302 = arith.addf %297, %301 : vector<8x128xf32>
    %303 = math.tanh %302 : vector<8x128xf32>
    %cst_102 = arith.constant 1.000000e+00 : f32
    %304 = vector.broadcast %cst_102 : f32 to vector<8x128xf32>
    %305 = arith.subf %304, %296 : vector<8x128xf32>
    %306 = arith.mulf %305, %303 : vector<8x128xf32>
    %307 = arith.mulf %296, %241 : vector<8x128xf32>
    %308 = arith.addf %306, %307 : vector<8x128xf32>
    %c4_i32 = arith.constant 4 : i32
    %c8_i32_103 = arith.constant 8 : i32
    %309 = arith.muli %c4_i32, %c8_i32_103 : i32
    %310 = tpu.assume_multiple %309, 8 : i32
    %cst_104 = arith.constant dense<0.000000e+00> : vector<8x384xf32>
    %311 = tpu.matmul %274, %32, %cst_104 {dimension_numbers = #tpu.dot_dimension_numbers<[1], [0], [0], [1], [0, 0, 1, 1], [], []>} : vector<8x128xf32>, vector<128x384xf32>, vector<8x384xf32> -> vector<8x384xf32>
    %312 = arith.index_cast %310 : i32 to index
    %c0_105 = arith.constant 0 : index
    %313 = vector.load %arg10[%312, %c0_105] : memref<64x384xf32, #tpu.memory_space<vmem>>, vector<8x384xf32>
    %314 = vector.extract_strided_slice %313 {offsets = [0, 0], sizes = [8, 128], strides = [1, 1]} : vector<8x384xf32> to vector<8x128xf32>
    %315 = vector.extract_strided_slice %311 {offsets = [0, 0], sizes = [8, 128], strides = [1, 1]} : vector<8x384xf32> to vector<8x128xf32>
    %316 = arith.addf %314, %315 : vector<8x128xf32>
    %317 = arith.negf %316 : vector<8x128xf32>
    %318 = math.exp %317 : vector<8x128xf32>
    %cst_106 = arith.constant 1.000000e+00 : f32
    %319 = vector.broadcast %cst_106 : f32 to vector<8x128xf32>
    %320 = arith.addf %319, %318 : vector<8x128xf32>
    %321 = arith.divf %319, %320 : vector<8x128xf32>
    %322 = vector.extract_strided_slice %313 {offsets = [0, 128], sizes = [8, 128], strides = [1, 1]} : vector<8x384xf32> to vector<8x128xf32>
    %323 = vector.extract_strided_slice %311 {offsets = [0, 128], sizes = [8, 128], strides = [1, 1]} : vector<8x384xf32> to vector<8x128xf32>
    %324 = arith.addf %322, %323 : vector<8x128xf32>
    %325 = arith.negf %324 : vector<8x128xf32>
    %326 = math.exp %325 : vector<8x128xf32>
    %cst_107 = arith.constant 1.000000e+00 : f32
    %327 = vector.broadcast %cst_107 : f32 to vector<8x128xf32>
    %328 = arith.addf %327, %326 : vector<8x128xf32>
    %329 = arith.divf %327, %328 : vector<8x128xf32>
    %330 = vector.extract_strided_slice %313 {offsets = [0, 256], sizes = [8, 128], strides = [1, 1]} : vector<8x384xf32> to vector<8x128xf32>
    %331 = vector.extract_strided_slice %311 {offsets = [0, 256], sizes = [8, 128], strides = [1, 1]} : vector<8x384xf32> to vector<8x128xf32>
    %332 = vector.broadcast %36 : vector<1x128xf32> to vector<8x128xf32>
    %333 = arith.addf %331, %332 : vector<8x128xf32>
    %334 = arith.mulf %321, %333 : vector<8x128xf32>
    %335 = arith.addf %330, %334 : vector<8x128xf32>
    %336 = math.tanh %335 : vector<8x128xf32>
    %cst_108 = arith.constant 1.000000e+00 : f32
    %337 = vector.broadcast %cst_108 : f32 to vector<8x128xf32>
    %338 = arith.subf %337, %329 : vector<8x128xf32>
    %339 = arith.mulf %338, %336 : vector<8x128xf32>
    %340 = arith.mulf %329, %274 : vector<8x128xf32>
    %341 = arith.addf %339, %340 : vector<8x128xf32>
    %c7_i32_109 = arith.constant 7 : i32
    %342 = arith.subi %c7_i32_109, %c4_i32 : i32
    %c8_i32_110 = arith.constant 8 : i32
    %343 = arith.muli %342, %c8_i32_110 : i32
    %344 = tpu.assume_multiple %343, 8 : i32
    %cst_111 = arith.constant dense<0.000000e+00> : vector<8x384xf32>
    %345 = tpu.matmul %308, %34, %cst_111 {dimension_numbers = #tpu.dot_dimension_numbers<[1], [0], [0], [1], [0, 0, 1, 1], [], []>} : vector<8x128xf32>, vector<128x384xf32>, vector<8x384xf32> -> vector<8x384xf32>
    %346 = arith.index_cast %344 : i32 to index
    %c0_112 = arith.constant 0 : index
    %347 = vector.load %arg11[%346, %c0_112] : memref<64x384xf32, #tpu.memory_space<vmem>>, vector<8x384xf32>
    %348 = vector.extract_strided_slice %347 {offsets = [0, 0], sizes = [8, 128], strides = [1, 1]} : vector<8x384xf32> to vector<8x128xf32>
    %349 = vector.extract_strided_slice %345 {offsets = [0, 0], sizes = [8, 128], strides = [1, 1]} : vector<8x384xf32> to vector<8x128xf32>
    %350 = arith.addf %348, %349 : vector<8x128xf32>
    %351 = arith.negf %350 : vector<8x128xf32>
    %352 = math.exp %351 : vector<8x128xf32>
    %cst_113 = arith.constant 1.000000e+00 : f32
    %353 = vector.broadcast %cst_113 : f32 to vector<8x128xf32>
    %354 = arith.addf %353, %352 : vector<8x128xf32>
    %355 = arith.divf %353, %354 : vector<8x128xf32>
    %356 = vector.extract_strided_slice %347 {offsets = [0, 128], sizes = [8, 128], strides = [1, 1]} : vector<8x384xf32> to vector<8x128xf32>
    %357 = vector.extract_strided_slice %345 {offsets = [0, 128], sizes = [8, 128], strides = [1, 1]} : vector<8x384xf32> to vector<8x128xf32>
    %358 = arith.addf %356, %357 : vector<8x128xf32>
    %359 = arith.negf %358 : vector<8x128xf32>
    %360 = math.exp %359 : vector<8x128xf32>
    %cst_114 = arith.constant 1.000000e+00 : f32
    %361 = vector.broadcast %cst_114 : f32 to vector<8x128xf32>
    %362 = arith.addf %361, %360 : vector<8x128xf32>
    %363 = arith.divf %361, %362 : vector<8x128xf32>
    %364 = vector.extract_strided_slice %347 {offsets = [0, 256], sizes = [8, 128], strides = [1, 1]} : vector<8x384xf32> to vector<8x128xf32>
    %365 = vector.extract_strided_slice %345 {offsets = [0, 256], sizes = [8, 128], strides = [1, 1]} : vector<8x384xf32> to vector<8x128xf32>
    %366 = vector.broadcast %38 : vector<1x128xf32> to vector<8x128xf32>
    %367 = arith.addf %365, %366 : vector<8x128xf32>
    %368 = arith.mulf %355, %367 : vector<8x128xf32>
    %369 = arith.addf %364, %368 : vector<8x128xf32>
    %370 = math.tanh %369 : vector<8x128xf32>
    %cst_115 = arith.constant 1.000000e+00 : f32
    %371 = vector.broadcast %cst_115 : f32 to vector<8x128xf32>
    %372 = arith.subf %371, %363 : vector<8x128xf32>
    %373 = arith.mulf %372, %370 : vector<8x128xf32>
    %374 = arith.mulf %363, %308 : vector<8x128xf32>
    %375 = arith.addf %373, %374 : vector<8x128xf32>
    %c5_i32 = arith.constant 5 : i32
    %c8_i32_116 = arith.constant 8 : i32
    %376 = arith.muli %c5_i32, %c8_i32_116 : i32
    %377 = tpu.assume_multiple %376, 8 : i32
    %cst_117 = arith.constant dense<0.000000e+00> : vector<8x384xf32>
    %378 = tpu.matmul %341, %32, %cst_117 {dimension_numbers = #tpu.dot_dimension_numbers<[1], [0], [0], [1], [0, 0, 1, 1], [], []>} : vector<8x128xf32>, vector<128x384xf32>, vector<8x384xf32> -> vector<8x384xf32>
    %379 = arith.index_cast %377 : i32 to index
    %c0_118 = arith.constant 0 : index
    %380 = vector.load %arg10[%379, %c0_118] : memref<64x384xf32, #tpu.memory_space<vmem>>, vector<8x384xf32>
    %381 = vector.extract_strided_slice %380 {offsets = [0, 0], sizes = [8, 128], strides = [1, 1]} : vector<8x384xf32> to vector<8x128xf32>
    %382 = vector.extract_strided_slice %378 {offsets = [0, 0], sizes = [8, 128], strides = [1, 1]} : vector<8x384xf32> to vector<8x128xf32>
    %383 = arith.addf %381, %382 : vector<8x128xf32>
    %384 = arith.negf %383 : vector<8x128xf32>
    %385 = math.exp %384 : vector<8x128xf32>
    %cst_119 = arith.constant 1.000000e+00 : f32
    %386 = vector.broadcast %cst_119 : f32 to vector<8x128xf32>
    %387 = arith.addf %386, %385 : vector<8x128xf32>
    %388 = arith.divf %386, %387 : vector<8x128xf32>
    %389 = vector.extract_strided_slice %380 {offsets = [0, 128], sizes = [8, 128], strides = [1, 1]} : vector<8x384xf32> to vector<8x128xf32>
    %390 = vector.extract_strided_slice %378 {offsets = [0, 128], sizes = [8, 128], strides = [1, 1]} : vector<8x384xf32> to vector<8x128xf32>
    %391 = arith.addf %389, %390 : vector<8x128xf32>
    %392 = arith.negf %391 : vector<8x128xf32>
    %393 = math.exp %392 : vector<8x128xf32>
    %cst_120 = arith.constant 1.000000e+00 : f32
    %394 = vector.broadcast %cst_120 : f32 to vector<8x128xf32>
    %395 = arith.addf %394, %393 : vector<8x128xf32>
    %396 = arith.divf %394, %395 : vector<8x128xf32>
    %397 = vector.extract_strided_slice %380 {offsets = [0, 256], sizes = [8, 128], strides = [1, 1]} : vector<8x384xf32> to vector<8x128xf32>
    %398 = vector.extract_strided_slice %378 {offsets = [0, 256], sizes = [8, 128], strides = [1, 1]} : vector<8x384xf32> to vector<8x128xf32>
    %399 = vector.broadcast %36 : vector<1x128xf32> to vector<8x128xf32>
    %400 = arith.addf %398, %399 : vector<8x128xf32>
    %401 = arith.mulf %388, %400 : vector<8x128xf32>
    %402 = arith.addf %397, %401 : vector<8x128xf32>
    %403 = math.tanh %402 : vector<8x128xf32>
    %cst_121 = arith.constant 1.000000e+00 : f32
    %404 = vector.broadcast %cst_121 : f32 to vector<8x128xf32>
    %405 = arith.subf %404, %396 : vector<8x128xf32>
    %406 = arith.mulf %405, %403 : vector<8x128xf32>
    %407 = arith.mulf %396, %341 : vector<8x128xf32>
    %408 = arith.addf %406, %407 : vector<8x128xf32>
    %c7_i32_122 = arith.constant 7 : i32
    %409 = arith.subi %c7_i32_122, %c5_i32 : i32
    %c8_i32_123 = arith.constant 8 : i32
    %410 = arith.muli %409, %c8_i32_123 : i32
    %411 = tpu.assume_multiple %410, 8 : i32
    %cst_124 = arith.constant dense<0.000000e+00> : vector<8x384xf32>
    %412 = tpu.matmul %375, %34, %cst_124 {dimension_numbers = #tpu.dot_dimension_numbers<[1], [0], [0], [1], [0, 0, 1, 1], [], []>} : vector<8x128xf32>, vector<128x384xf32>, vector<8x384xf32> -> vector<8x384xf32>
    %413 = arith.index_cast %411 : i32 to index
    %c0_125 = arith.constant 0 : index
    %414 = vector.load %arg11[%413, %c0_125] : memref<64x384xf32, #tpu.memory_space<vmem>>, vector<8x384xf32>
    %415 = vector.extract_strided_slice %414 {offsets = [0, 0], sizes = [8, 128], strides = [1, 1]} : vector<8x384xf32> to vector<8x128xf32>
    %416 = vector.extract_strided_slice %412 {offsets = [0, 0], sizes = [8, 128], strides = [1, 1]} : vector<8x384xf32> to vector<8x128xf32>
    %417 = arith.addf %415, %416 : vector<8x128xf32>
    %418 = arith.negf %417 : vector<8x128xf32>
    %419 = math.exp %418 : vector<8x128xf32>
    %cst_126 = arith.constant 1.000000e+00 : f32
    %420 = vector.broadcast %cst_126 : f32 to vector<8x128xf32>
    %421 = arith.addf %420, %419 : vector<8x128xf32>
    %422 = arith.divf %420, %421 : vector<8x128xf32>
    %423 = vector.extract_strided_slice %414 {offsets = [0, 128], sizes = [8, 128], strides = [1, 1]} : vector<8x384xf32> to vector<8x128xf32>
    %424 = vector.extract_strided_slice %412 {offsets = [0, 128], sizes = [8, 128], strides = [1, 1]} : vector<8x384xf32> to vector<8x128xf32>
    %425 = arith.addf %423, %424 : vector<8x128xf32>
    %426 = arith.negf %425 : vector<8x128xf32>
    %427 = math.exp %426 : vector<8x128xf32>
    %cst_127 = arith.constant 1.000000e+00 : f32
    %428 = vector.broadcast %cst_127 : f32 to vector<8x128xf32>
    %429 = arith.addf %428, %427 : vector<8x128xf32>
    %430 = arith.divf %428, %429 : vector<8x128xf32>
    %431 = vector.extract_strided_slice %414 {offsets = [0, 256], sizes = [8, 128], strides = [1, 1]} : vector<8x384xf32> to vector<8x128xf32>
    %432 = vector.extract_strided_slice %412 {offsets = [0, 256], sizes = [8, 128], strides = [1, 1]} : vector<8x384xf32> to vector<8x128xf32>
    %433 = vector.broadcast %38 : vector<1x128xf32> to vector<8x128xf32>
    %434 = arith.addf %432, %433 : vector<8x128xf32>
    %435 = arith.mulf %422, %434 : vector<8x128xf32>
    %436 = arith.addf %431, %435 : vector<8x128xf32>
    %437 = math.tanh %436 : vector<8x128xf32>
    %cst_128 = arith.constant 1.000000e+00 : f32
    %438 = vector.broadcast %cst_128 : f32 to vector<8x128xf32>
    %439 = arith.subf %438, %430 : vector<8x128xf32>
    %440 = arith.mulf %439, %437 : vector<8x128xf32>
    %441 = arith.mulf %430, %375 : vector<8x128xf32>
    %442 = arith.addf %440, %441 : vector<8x128xf32>
    %c6_i32 = arith.constant 6 : i32
    %c8_i32_129 = arith.constant 8 : i32
    %443 = arith.muli %c6_i32, %c8_i32_129 : i32
    %444 = tpu.assume_multiple %443, 8 : i32
    %cst_130 = arith.constant dense<0.000000e+00> : vector<8x384xf32>
    %445 = tpu.matmul %408, %32, %cst_130 {dimension_numbers = #tpu.dot_dimension_numbers<[1], [0], [0], [1], [0, 0, 1, 1], [], []>} : vector<8x128xf32>, vector<128x384xf32>, vector<8x384xf32> -> vector<8x384xf32>
    %446 = arith.index_cast %444 : i32 to index
    %c0_131 = arith.constant 0 : index
    %447 = vector.load %arg10[%446, %c0_131] : memref<64x384xf32, #tpu.memory_space<vmem>>, vector<8x384xf32>
    %448 = vector.extract_strided_slice %447 {offsets = [0, 0], sizes = [8, 128], strides = [1, 1]} : vector<8x384xf32> to vector<8x128xf32>
    %449 = vector.extract_strided_slice %445 {offsets = [0, 0], sizes = [8, 128], strides = [1, 1]} : vector<8x384xf32> to vector<8x128xf32>
    %450 = arith.addf %448, %449 : vector<8x128xf32>
    %451 = arith.negf %450 : vector<8x128xf32>
    %452 = math.exp %451 : vector<8x128xf32>
    %cst_132 = arith.constant 1.000000e+00 : f32
    %453 = vector.broadcast %cst_132 : f32 to vector<8x128xf32>
    %454 = arith.addf %453, %452 : vector<8x128xf32>
    %455 = arith.divf %453, %454 : vector<8x128xf32>
    %456 = vector.extract_strided_slice %447 {offsets = [0, 128], sizes = [8, 128], strides = [1, 1]} : vector<8x384xf32> to vector<8x128xf32>
    %457 = vector.extract_strided_slice %445 {offsets = [0, 128], sizes = [8, 128], strides = [1, 1]} : vector<8x384xf32> to vector<8x128xf32>
    %458 = arith.addf %456, %457 : vector<8x128xf32>
    %459 = arith.negf %458 : vector<8x128xf32>
    %460 = math.exp %459 : vector<8x128xf32>
    %cst_133 = arith.constant 1.000000e+00 : f32
    %461 = vector.broadcast %cst_133 : f32 to vector<8x128xf32>
    %462 = arith.addf %461, %460 : vector<8x128xf32>
    %463 = arith.divf %461, %462 : vector<8x128xf32>
    %464 = vector.extract_strided_slice %447 {offsets = [0, 256], sizes = [8, 128], strides = [1, 1]} : vector<8x384xf32> to vector<8x128xf32>
    %465 = vector.extract_strided_slice %445 {offsets = [0, 256], sizes = [8, 128], strides = [1, 1]} : vector<8x384xf32> to vector<8x128xf32>
    %466 = vector.broadcast %36 : vector<1x128xf32> to vector<8x128xf32>
    %467 = arith.addf %465, %466 : vector<8x128xf32>
    %468 = arith.mulf %455, %467 : vector<8x128xf32>
    %469 = arith.addf %464, %468 : vector<8x128xf32>
    %470 = math.tanh %469 : vector<8x128xf32>
    %cst_134 = arith.constant 1.000000e+00 : f32
    %471 = vector.broadcast %cst_134 : f32 to vector<8x128xf32>
    %472 = arith.subf %471, %463 : vector<8x128xf32>
    %473 = arith.mulf %472, %470 : vector<8x128xf32>
    %474 = arith.mulf %463, %408 : vector<8x128xf32>
    %475 = arith.addf %473, %474 : vector<8x128xf32>
    %c7_i32_135 = arith.constant 7 : i32
    %476 = arith.subi %c7_i32_135, %c6_i32 : i32
    %c8_i32_136 = arith.constant 8 : i32
    %477 = arith.muli %476, %c8_i32_136 : i32
    %478 = tpu.assume_multiple %477, 8 : i32
    %cst_137 = arith.constant dense<0.000000e+00> : vector<8x384xf32>
    %479 = tpu.matmul %442, %34, %cst_137 {dimension_numbers = #tpu.dot_dimension_numbers<[1], [0], [0], [1], [0, 0, 1, 1], [], []>} : vector<8x128xf32>, vector<128x384xf32>, vector<8x384xf32> -> vector<8x384xf32>
    %480 = arith.index_cast %478 : i32 to index
    %c0_138 = arith.constant 0 : index
    %481 = vector.load %arg11[%480, %c0_138] : memref<64x384xf32, #tpu.memory_space<vmem>>, vector<8x384xf32>
    %482 = vector.extract_strided_slice %481 {offsets = [0, 0], sizes = [8, 128], strides = [1, 1]} : vector<8x384xf32> to vector<8x128xf32>
    %483 = vector.extract_strided_slice %479 {offsets = [0, 0], sizes = [8, 128], strides = [1, 1]} : vector<8x384xf32> to vector<8x128xf32>
    %484 = arith.addf %482, %483 : vector<8x128xf32>
    %485 = arith.negf %484 : vector<8x128xf32>
    %486 = math.exp %485 : vector<8x128xf32>
    %cst_139 = arith.constant 1.000000e+00 : f32
    %487 = vector.broadcast %cst_139 : f32 to vector<8x128xf32>
    %488 = arith.addf %487, %486 : vector<8x128xf32>
    %489 = arith.divf %487, %488 : vector<8x128xf32>
    %490 = vector.extract_strided_slice %481 {offsets = [0, 128], sizes = [8, 128], strides = [1, 1]} : vector<8x384xf32> to vector<8x128xf32>
    %491 = vector.extract_strided_slice %479 {offsets = [0, 128], sizes = [8, 128], strides = [1, 1]} : vector<8x384xf32> to vector<8x128xf32>
    %492 = arith.addf %490, %491 : vector<8x128xf32>
    %493 = arith.negf %492 : vector<8x128xf32>
    %494 = math.exp %493 : vector<8x128xf32>
    %cst_140 = arith.constant 1.000000e+00 : f32
    %495 = vector.broadcast %cst_140 : f32 to vector<8x128xf32>
    %496 = arith.addf %495, %494 : vector<8x128xf32>
    %497 = arith.divf %495, %496 : vector<8x128xf32>
    %498 = vector.extract_strided_slice %481 {offsets = [0, 256], sizes = [8, 128], strides = [1, 1]} : vector<8x384xf32> to vector<8x128xf32>
    %499 = vector.extract_strided_slice %479 {offsets = [0, 256], sizes = [8, 128], strides = [1, 1]} : vector<8x384xf32> to vector<8x128xf32>
    %500 = vector.broadcast %38 : vector<1x128xf32> to vector<8x128xf32>
    %501 = arith.addf %499, %500 : vector<8x128xf32>
    %502 = arith.mulf %489, %501 : vector<8x128xf32>
    %503 = arith.addf %498, %502 : vector<8x128xf32>
    %504 = math.tanh %503 : vector<8x128xf32>
    %cst_141 = arith.constant 1.000000e+00 : f32
    %505 = vector.broadcast %cst_141 : f32 to vector<8x128xf32>
    %506 = arith.subf %505, %497 : vector<8x128xf32>
    %507 = arith.mulf %506, %504 : vector<8x128xf32>
    %508 = arith.mulf %497, %442 : vector<8x128xf32>
    %509 = arith.addf %507, %508 : vector<8x128xf32>
    %c7_i32_142 = arith.constant 7 : i32
    %c8_i32_143 = arith.constant 8 : i32
    %510 = arith.muli %c7_i32_142, %c8_i32_143 : i32
    %511 = tpu.assume_multiple %510, 8 : i32
    %cst_144 = arith.constant dense<0.000000e+00> : vector<8x384xf32>
    %512 = tpu.matmul %475, %32, %cst_144 {dimension_numbers = #tpu.dot_dimension_numbers<[1], [0], [0], [1], [0, 0, 1, 1], [], []>} : vector<8x128xf32>, vector<128x384xf32>, vector<8x384xf32> -> vector<8x384xf32>
    %513 = arith.index_cast %511 : i32 to index
    %c0_145 = arith.constant 0 : index
    %514 = vector.load %arg10[%513, %c0_145] : memref<64x384xf32, #tpu.memory_space<vmem>>, vector<8x384xf32>
    %515 = vector.extract_strided_slice %514 {offsets = [0, 0], sizes = [8, 128], strides = [1, 1]} : vector<8x384xf32> to vector<8x128xf32>
    %516 = vector.extract_strided_slice %512 {offsets = [0, 0], sizes = [8, 128], strides = [1, 1]} : vector<8x384xf32> to vector<8x128xf32>
    %517 = arith.addf %515, %516 : vector<8x128xf32>
    %518 = arith.negf %517 : vector<8x128xf32>
    %519 = math.exp %518 : vector<8x128xf32>
    %cst_146 = arith.constant 1.000000e+00 : f32
    %520 = vector.broadcast %cst_146 : f32 to vector<8x128xf32>
    %521 = arith.addf %520, %519 : vector<8x128xf32>
    %522 = arith.divf %520, %521 : vector<8x128xf32>
    %523 = vector.extract_strided_slice %514 {offsets = [0, 128], sizes = [8, 128], strides = [1, 1]} : vector<8x384xf32> to vector<8x128xf32>
    %524 = vector.extract_strided_slice %512 {offsets = [0, 128], sizes = [8, 128], strides = [1, 1]} : vector<8x384xf32> to vector<8x128xf32>
    %525 = arith.addf %523, %524 : vector<8x128xf32>
    %526 = arith.negf %525 : vector<8x128xf32>
    %527 = math.exp %526 : vector<8x128xf32>
    %cst_147 = arith.constant 1.000000e+00 : f32
    %528 = vector.broadcast %cst_147 : f32 to vector<8x128xf32>
    %529 = arith.addf %528, %527 : vector<8x128xf32>
    %530 = arith.divf %528, %529 : vector<8x128xf32>
    %531 = vector.extract_strided_slice %514 {offsets = [0, 256], sizes = [8, 128], strides = [1, 1]} : vector<8x384xf32> to vector<8x128xf32>
    %532 = vector.extract_strided_slice %512 {offsets = [0, 256], sizes = [8, 128], strides = [1, 1]} : vector<8x384xf32> to vector<8x128xf32>
    %533 = vector.broadcast %36 : vector<1x128xf32> to vector<8x128xf32>
    %534 = arith.addf %532, %533 : vector<8x128xf32>
    %535 = arith.mulf %522, %534 : vector<8x128xf32>
    %536 = arith.addf %531, %535 : vector<8x128xf32>
    %537 = math.tanh %536 : vector<8x128xf32>
    %cst_148 = arith.constant 1.000000e+00 : f32
    %538 = vector.broadcast %cst_148 : f32 to vector<8x128xf32>
    %539 = arith.subf %538, %530 : vector<8x128xf32>
    %540 = arith.mulf %539, %537 : vector<8x128xf32>
    %541 = arith.mulf %530, %475 : vector<8x128xf32>
    %542 = arith.addf %540, %541 : vector<8x128xf32>
    %c7_i32_149 = arith.constant 7 : i32
    %543 = arith.subi %c7_i32_149, %c7_i32_142 : i32
    %c8_i32_150 = arith.constant 8 : i32
    %544 = arith.muli %543, %c8_i32_150 : i32
    %545 = tpu.assume_multiple %544, 8 : i32
    %cst_151 = arith.constant dense<0.000000e+00> : vector<8x384xf32>
    %546 = tpu.matmul %509, %34, %cst_151 {dimension_numbers = #tpu.dot_dimension_numbers<[1], [0], [0], [1], [0, 0, 1, 1], [], []>} : vector<8x128xf32>, vector<128x384xf32>, vector<8x384xf32> -> vector<8x384xf32>
    %547 = arith.index_cast %545 : i32 to index
    %c0_152 = arith.constant 0 : index
    %548 = vector.load %arg11[%547, %c0_152] : memref<64x384xf32, #tpu.memory_space<vmem>>, vector<8x384xf32>
    %549 = vector.extract_strided_slice %548 {offsets = [0, 0], sizes = [8, 128], strides = [1, 1]} : vector<8x384xf32> to vector<8x128xf32>
    %550 = vector.extract_strided_slice %546 {offsets = [0, 0], sizes = [8, 128], strides = [1, 1]} : vector<8x384xf32> to vector<8x128xf32>
    %551 = arith.addf %549, %550 : vector<8x128xf32>
    %552 = arith.negf %551 : vector<8x128xf32>
    %553 = math.exp %552 : vector<8x128xf32>
    %cst_153 = arith.constant 1.000000e+00 : f32
    %554 = vector.broadcast %cst_153 : f32 to vector<8x128xf32>
    %555 = arith.addf %554, %553 : vector<8x128xf32>
    %556 = arith.divf %554, %555 : vector<8x128xf32>
    %557 = vector.extract_strided_slice %548 {offsets = [0, 128], sizes = [8, 128], strides = [1, 1]} : vector<8x384xf32> to vector<8x128xf32>
    %558 = vector.extract_strided_slice %546 {offsets = [0, 128], sizes = [8, 128], strides = [1, 1]} : vector<8x384xf32> to vector<8x128xf32>
    %559 = arith.addf %557, %558 : vector<8x128xf32>
    %560 = arith.negf %559 : vector<8x128xf32>
    %561 = math.exp %560 : vector<8x128xf32>
    %cst_154 = arith.constant 1.000000e+00 : f32
    %562 = vector.broadcast %cst_154 : f32 to vector<8x128xf32>
    %563 = arith.addf %562, %561 : vector<8x128xf32>
    %564 = arith.divf %562, %563 : vector<8x128xf32>
    %565 = vector.extract_strided_slice %548 {offsets = [0, 256], sizes = [8, 128], strides = [1, 1]} : vector<8x384xf32> to vector<8x128xf32>
    %566 = vector.extract_strided_slice %546 {offsets = [0, 256], sizes = [8, 128], strides = [1, 1]} : vector<8x384xf32> to vector<8x128xf32>
    %567 = vector.broadcast %38 : vector<1x128xf32> to vector<8x128xf32>
    %568 = arith.addf %566, %567 : vector<8x128xf32>
    %569 = arith.mulf %556, %568 : vector<8x128xf32>
    %570 = arith.addf %565, %569 : vector<8x128xf32>
    %571 = math.tanh %570 : vector<8x128xf32>
    %cst_155 = arith.constant 1.000000e+00 : f32
    %572 = vector.broadcast %cst_155 : f32 to vector<8x128xf32>
    %573 = arith.subf %572, %564 : vector<8x128xf32>
    %574 = arith.mulf %573, %571 : vector<8x128xf32>
    %575 = arith.mulf %564, %509 : vector<8x128xf32>
    %576 = arith.addf %574, %575 : vector<8x128xf32>
    %c8_i32_156 = arith.constant 8 : i32
    %c0_157 = arith.constant 0 : index
    %c0_158 = arith.constant 0 : index
    %577 = vector.load %arg12[%c0_157, %c0_158] : memref<8x128xf32, #tpu.memory_space<vmem>>, vector<8x128xf32>
    tpu.vector_store %arg12[%c0_157, %c0_158], %542 {strides = array<i32>} : memref<8x128xf32, #tpu.memory_space<vmem>>, vector<8x128xf32>,
    %c0_159 = arith.constant 0 : index
    %c0_160 = arith.constant 0 : index
    %578 = vector.load %arg13[%c0_159, %c0_160] : memref<8x128xf32, #tpu.memory_space<vmem>>, vector<8x128xf32>
    tpu.vector_store %arg13[%c0_159, %c0_160], %576 {strides = array<i32>} : memref<8x128xf32, #tpu.memory_space<vmem>>, vector<8x128xf32>,
    %c0_i32_161 = arith.constant 0 : i32
    %579 = arith.cmpi eq, %arg0, %c0_i32_161 : i32
    %580 = arith.extui %579 : i1 to i32
    %c0_i32_162 = arith.constant 0 : i32
    %581 = arith.cmpi ne, %580, %c0_i32_162 : i32
    scf.if %581 {
      %c0_163 = arith.constant 0 : index
      %c0_164 = arith.constant 0 : index
      %c0_165 = arith.constant 0 : index
      %582 = vector.load %arg9[%c0_163, %c0_164, %c0_165] : memref<2x8x128xf32, #tpu.memory_space<vmem>>, vector<1x8x128xf32>
      %583 = vector.shape_cast %582 : vector<1x8x128xf32> to vector<8x128xf32>
      %584 = vector.shape_cast %542 : vector<8x128xf32> to vector<1x8x128xf32>
      tpu.vector_store %arg9[%c0_163, %c0_164, %c0_165], %584 {strides = array<i32>} : memref<2x8x128xf32, #tpu.memory_space<vmem>>, vector<1x8x128xf32>,
      %c1_166 = arith.constant 1 : index
      %c0_167 = arith.constant 0 : index
      %c0_168 = arith.constant 0 : index
      %585 = vector.load %arg9[%c1_166, %c0_167, %c0_168] : memref<2x8x128xf32, #tpu.memory_space<vmem>>, vector<1x8x128xf32>
      %586 = vector.shape_cast %585 : vector<1x8x128xf32> to vector<8x128xf32>
      %587 = vector.shape_cast %576 : vector<8x128xf32> to vector<1x8x128xf32>
      tpu.vector_store %arg9[%c1_166, %c0_167, %c0_168], %587 {strides = array<i32>} : memref<2x8x128xf32, #tpu.memory_space<vmem>>, vector<1x8x128xf32>,
    } else {
    }
    return
  }
  func.func @transform_0(%arg0: i32) -> (i32, i32) {
    %c0_i32 = arith.constant 0 : i32
    %c0_i32_0 = arith.constant 0 : i32
    return %arg0, %c0_i32 : i32, i32
  }
  func.func @transform_1(%arg0: i32) -> (i32, i32) {
    %c0_i32 = arith.constant 0 : i32
    %c0_i32_0 = arith.constant 0 : i32
    return %arg0, %c0_i32 : i32, i32
  }
  func.func @transform_2(%arg0: i32) -> (i32, i32) {
    %c0_i32 = arith.constant 0 : i32
    %0 = arith.subi %c0_i32, %arg0 : i32
    %c0_i32_0 = arith.constant 0 : i32
    %c0_i32_1 = arith.constant 0 : i32
    return %0, %c0_i32_0 : i32, i32
  }
  func.func @transform_3(%arg0: i32) -> (i32, i32) {
    %c0_i32 = arith.constant 0 : i32
    %0 = arith.subi %c0_i32, %arg0 : i32
    %c0_i32_0 = arith.constant 0 : i32
    %c0_i32_1 = arith.constant 0 : i32
    return %0, %c0_i32_0 : i32, i32
  }
  func.func @transform_4(%arg0: i32) -> (i32, i32, i32, i32) {
    %c0_i32 = arith.constant 0 : i32
    %c0_i32_0 = arith.constant 0 : i32
    %c0_i32_1 = arith.constant 0 : i32
    %c0_i32_2 = arith.constant 0 : i32
    %c0_i32_3 = arith.constant 0 : i32
    return %c0_i32, %c0_i32_0, %c0_i32_1, %c0_i32_2 : i32, i32, i32, i32
  }
  func.func @transform_5(%arg0: i32) -> (i32, i32, i32) {
    %c0_i32 = arith.constant 0 : i32
    %c0_i32_0 = arith.constant 0 : i32
    %c0_i32_1 = arith.constant 0 : i32
    %c0_i32_2 = arith.constant 0 : i32
    return %c0_i32, %c0_i32_0, %c0_i32_1 : i32, i32, i32
  }
  func.func @transform_6(%arg0: i32) -> (i32, i32, i32) {
    %c0_i32 = arith.constant 0 : i32
    %c0_i32_0 = arith.constant 0 : i32
    %c0_i32_1 = arith.constant 0 : i32
    %c0_i32_2 = arith.constant 0 : i32
    return %c0_i32, %c0_i32_0, %c0_i32_1 : i32, i32, i32
  }
  func.func @transform_7(%arg0: i32) -> (i32, i32, i32) {
    %c0_i32 = arith.constant 0 : i32
    %c0_i32_0 = arith.constant 0 : i32
    %c0_i32_1 = arith.constant 0 : i32
    %c0_i32_2 = arith.constant 0 : i32
    return %c0_i32, %c0_i32_0, %c0_i32_1 : i32, i32, i32
  }
  func.func @transform_8(%arg0: i32) -> (i32, i32, i32) {
    %c0_i32 = arith.constant 0 : i32
    %c0_i32_0 = arith.constant 0 : i32
    %c0_i32_1 = arith.constant 0 : i32
    %c0_i32_2 = arith.constant 0 : i32
    return %c0_i32, %c0_i32_0, %c0_i32_1 : i32, i32, i32
  }
}

module attributes {stable_mosaic.version = 11 : i64} {
  func.func @kernel(%arg0: i32, %arg1: memref<64x16xf32, #tpu.memory_space<vmem>>, %arg2: memref<64x16xf32, #tpu.memory_space<vmem>>, %arg3: memref<2x16x384xf32, #tpu.memory_space<vmem>>, %arg4: memref<2x128x384xf32, #tpu.memory_space<vmem>>, %arg5: memref<2x1x384xf32, #tpu.memory_space<vmem>>, %arg6: memref<2x1x128xf32, #tpu.memory_space<vmem>>, %arg7: memref<64x128xf32, #tpu.memory_space<vmem>>, %arg8: memref<64x128xf32, #tpu.memory_space<vmem>>, %arg9: memref<2x8x128xf32, #tpu.memory_space<vmem>>, %arg10: memref<64x384xf32, #tpu.memory_space<vmem>>, %arg11: memref<64x384xf32, #tpu.memory_space<vmem>>, %arg12: memref<8x128xf32, #tpu.memory_space<vmem>>, %arg13: memref<8x128xf32, #tpu.memory_space<vmem>>) attributes {dimension_semantics = [#tpu.dimension_semantics<arbitrary>], iteration_bounds = array<i64: 1>, scalar_prefetch = 0 : i64, scratch_operands = 4 : i64, tpu.core_type = #tpu.core_type<tc>, window_params = [{transform_indices = @transform_0, window_bounds = array<i64: 64, 16>}, {transform_indices = @transform_1, window_bounds = array<i64: 64, 16>}, {pipeline_mode = #tpu.pipeline_mode<synchronous>, transform_indices = @transform_2, window_bounds = array<i64: 2, 16, 384>}, {pipeline_mode = #tpu.pipeline_mode<synchronous>, transform_indices = @transform_3, window_bounds = array<i64: 2, 128, 384>}, {pipeline_mode = #tpu.pipeline_mode<synchronous>, transform_indices = @transform_4, window_bounds = array<i64: 2, 1, 384>}, {pipeline_mode = #tpu.pipeline_mode<synchronous>, transform_indices = @transform_5, window_bounds = array<i64: 2, 1, 128>}, {transform_indices = @transform_6, window_bounds = array<i64: 64, 128>}, {transform_indices = @transform_7, window_bounds = array<i64: 64, 128>}, {pipeline_mode = #tpu.pipeline_mode<synchronous>, transform_indices = @transform_8, window_bounds = array<i64: 2, 8, 128>}]} {
    %c0 = arith.constant 0 : index
    %c0_0 = arith.constant 0 : index
    %0 = vector.load %arg1[%c0, %c0_0] : memref<64x16xf32, #tpu.memory_space<vmem>>, vector<64x16xf32>
    %c0_1 = arith.constant 0 : index
    %c0_2 = arith.constant 0 : index
    %c0_3 = arith.constant 0 : index
    %1 = vector.load %arg3[%c0_1, %c0_2, %c0_3] : memref<2x16x384xf32, #tpu.memory_space<vmem>>, vector<1x16x384xf32>
    %2 = vector.shape_cast %1 : vector<1x16x384xf32> to vector<16x384xf32>
    %cst = arith.constant dense<0.000000e+00> : vector<64x384xf32>
    %3 = tpu.matmul %0, %2, %cst {dimension_numbers = #tpu.dot_dimension_numbers<[1], [0], [0], [1], [0, 0, 1, 1], [], []>} : vector<64x16xf32>, vector<16x384xf32>, vector<64x384xf32> -> vector<64x384xf32>
    %c0_4 = arith.constant 0 : index
    %c0_5 = arith.constant 0 : index
    %4 = vector.load %arg2[%c0_4, %c0_5] : memref<64x16xf32, #tpu.memory_space<vmem>>, vector<64x16xf32>
    %c1 = arith.constant 1 : index
    %c0_6 = arith.constant 0 : index
    %c0_7 = arith.constant 0 : index
    %5 = vector.load %arg3[%c1, %c0_6, %c0_7] : memref<2x16x384xf32, #tpu.memory_space<vmem>>, vector<1x16x384xf32>
    %6 = vector.shape_cast %5 : vector<1x16x384xf32> to vector<16x384xf32>
    %cst_8 = arith.constant dense<0.000000e+00> : vector<64x384xf32>
    %7 = tpu.matmul %4, %6, %cst_8 {dimension_numbers = #tpu.dot_dimension_numbers<[1], [0], [0], [1], [0, 0, 1, 1], [], []>} : vector<64x16xf32>, vector<16x384xf32>, vector<64x384xf32> -> vector<64x384xf32>
    %c0_9 = arith.constant 0 : index
    %c0_10 = arith.constant 0 : index
    %c0_11 = arith.constant 0 : index
    %8 = vector.load %arg5[%c0_9, %c0_10, %c0_11] : memref<2x1x384xf32, #tpu.memory_space<vmem>>, vector<1x1x384xf32>
    %9 = vector.shape_cast %8 : vector<1x1x384xf32> to vector<1x384xf32>
    %10 = vector.broadcast %9 : vector<1x384xf32> to vector<64x384xf32>
    %11 = arith.addf %3, %10 : vector<64x384xf32>
    %c0_12 = arith.constant 0 : index
    %c0_13 = arith.constant 0 : index
    %12 = vector.load %arg10[%c0_12, %c0_13] : memref<64x384xf32, #tpu.memory_space<vmem>>, vector<64x384xf32>
    tpu.vector_store %arg10[%c0_12, %c0_13], %11 {strides = array<i32>} : memref<64x384xf32, #tpu.memory_space<vmem>>, vector<64x384xf32>,
    %c1_14 = arith.constant 1 : index
    %c0_15 = arith.constant 0 : index
    %c0_16 = arith.constant 0 : index
    %13 = vector.load %arg5[%c1_14, %c0_15, %c0_16] : memref<2x1x384xf32, #tpu.memory_space<vmem>>, vector<1x1x384xf32>
    %14 = vector.shape_cast %13 : vector<1x1x384xf32> to vector<1x384xf32>
    %15 = vector.broadcast %14 : vector<1x384xf32> to vector<64x384xf32>
    %16 = arith.addf %7, %15 : vector<64x384xf32>
    %c0_17 = arith.constant 0 : index
    %c0_18 = arith.constant 0 : index
    %17 = vector.load %arg11[%c0_17, %c0_18] : memref<64x384xf32, #tpu.memory_space<vmem>>, vector<64x384xf32>
    tpu.vector_store %arg11[%c0_17, %c0_18], %16 {strides = array<i32>} : memref<64x384xf32, #tpu.memory_space<vmem>>, vector<64x384xf32>,
    %c0_i32 = arith.constant 0 : i32
    %18 = arith.cmpi eq, %arg0, %c0_i32 : i32
    %19 = arith.extui %18 : i1 to i32
    %c0_i32_19 = arith.constant 0 : i32
    %20 = arith.cmpi ne, %19, %c0_i32_19 : i32
    scf.if %20 {
      %cst_163 = arith.constant 0.000000e+00 : f32
      %604 = vector.broadcast %cst_163 : f32 to vector<8x128xf32>
      %c0_164 = arith.constant 0 : index
      %c0_165 = arith.constant 0 : index
      %605 = vector.load %arg12[%c0_164, %c0_165] : memref<8x128xf32, #tpu.memory_space<vmem>>, vector<8x128xf32>
      tpu.vector_store %arg12[%c0_164, %c0_165], %604 {strides = array<i32>} : memref<8x128xf32, #tpu.memory_space<vmem>>, vector<8x128xf32>,
      %cst_166 = arith.constant 0.000000e+00 : f32
      %606 = vector.broadcast %cst_166 : f32 to vector<8x128xf32>
      %c0_167 = arith.constant 0 : index
      %c0_168 = arith.constant 0 : index
      %607 = vector.load %arg13[%c0_167, %c0_168] : memref<8x128xf32, #tpu.memory_space<vmem>>, vector<8x128xf32>
      tpu.vector_store %arg13[%c0_167, %c0_168], %606 {strides = array<i32>} : memref<8x128xf32, #tpu.memory_space<vmem>>, vector<8x128xf32>,
    } else {
    }
    %c0_20 = arith.constant 0 : index
    %c0_21 = arith.constant 0 : index
    %c0_22 = arith.constant 0 : index
    %21 = vector.load %arg4[%c0_20, %c0_21, %c0_22] : memref<2x128x384xf32, #tpu.memory_space<vmem>>, vector<1x128x384xf32>
    %22 = vector.shape_cast %21 : vector<1x128x384xf32> to vector<128x384xf32>
    %c1_23 = arith.constant 1 : index
    %c0_24 = arith.constant 0 : index
    %c0_25 = arith.constant 0 : index
    %23 = vector.load %arg4[%c1_23, %c0_24, %c0_25] : memref<2x128x384xf32, #tpu.memory_space<vmem>>, vector<1x128x384xf32>
    %24 = vector.shape_cast %23 : vector<1x128x384xf32> to vector<128x384xf32>
    %c0_26 = arith.constant 0 : index
    %c0_27 = arith.constant 0 : index
    %c0_28 = arith.constant 0 : index
    %25 = vector.load %arg6[%c0_26, %c0_27, %c0_28] : memref<2x1x128xf32, #tpu.memory_space<vmem>>, vector<1x1x128xf32>
    %26 = vector.shape_cast %25 : vector<1x1x128xf32> to vector<1x128xf32>
    %c1_29 = arith.constant 1 : index
    %c0_30 = arith.constant 0 : index
    %c0_31 = arith.constant 0 : index
    %27 = vector.load %arg6[%c1_29, %c0_30, %c0_31] : memref<2x1x128xf32, #tpu.memory_space<vmem>>, vector<1x1x128xf32>
    %28 = vector.shape_cast %27 : vector<1x1x128xf32> to vector<1x128xf32>
    %c0_32 = arith.constant 0 : index
    %c0_33 = arith.constant 0 : index
    %29 = vector.load %arg12[%c0_32, %c0_33] : memref<8x128xf32, #tpu.memory_space<vmem>>, vector<8x128xf32>
    %c0_34 = arith.constant 0 : index
    %c0_35 = arith.constant 0 : index
    %30 = vector.load %arg13[%c0_34, %c0_35] : memref<8x128xf32, #tpu.memory_space<vmem>>, vector<8x128xf32>
    %c0_i32_36 = arith.constant 0 : i32
    %c8_i32 = arith.constant 8 : i32
    %31 = arith.muli %c0_i32_36, %c8_i32 : i32
    %32 = tpu.assume_multiple %31, 8 : i32
    %cst_37 = arith.constant dense<0.000000e+00> : vector<8x384xf32>
    %33 = tpu.matmul %29, %22, %cst_37 {dimension_numbers = #tpu.dot_dimension_numbers<[1], [0], [0], [1], [0, 0, 1, 1], [], []>} : vector<8x128xf32>, vector<128x384xf32>, vector<8x384xf32> -> vector<8x384xf32>
    %34 = arith.index_cast %32 : i32 to index
    %c0_38 = arith.constant 0 : index
    %35 = vector.load %arg10[%34, %c0_38] : memref<64x384xf32, #tpu.memory_space<vmem>>, vector<8x384xf32>
    %36 = vector.extract_strided_slice %35 {offsets = [0, 0], sizes = [8, 128], strides = [1, 1]} : vector<8x384xf32> to vector<8x128xf32>
    %37 = vector.extract_strided_slice %33 {offsets = [0, 0], sizes = [8, 128], strides = [1, 1]} : vector<8x384xf32> to vector<8x128xf32>
    %38 = arith.addf %36, %37 : vector<8x128xf32>
    %39 = arith.negf %38 : vector<8x128xf32>
    %40 = math.exp %39 : vector<8x128xf32>
    %cst_39 = arith.constant 1.000000e+00 : f32
    %41 = vector.broadcast %cst_39 : f32 to vector<8x128xf32>
    %42 = arith.addf %41, %40 : vector<8x128xf32>
    %43 = arith.divf %41, %42 : vector<8x128xf32>
    %44 = vector.extract_strided_slice %35 {offsets = [0, 128], sizes = [8, 128], strides = [1, 1]} : vector<8x384xf32> to vector<8x128xf32>
    %45 = vector.extract_strided_slice %33 {offsets = [0, 128], sizes = [8, 128], strides = [1, 1]} : vector<8x384xf32> to vector<8x128xf32>
    %46 = arith.addf %44, %45 : vector<8x128xf32>
    %47 = arith.negf %46 : vector<8x128xf32>
    %48 = math.exp %47 : vector<8x128xf32>
    %cst_40 = arith.constant 1.000000e+00 : f32
    %49 = vector.broadcast %cst_40 : f32 to vector<8x128xf32>
    %50 = arith.addf %49, %48 : vector<8x128xf32>
    %51 = arith.divf %49, %50 : vector<8x128xf32>
    %52 = vector.extract_strided_slice %35 {offsets = [0, 256], sizes = [8, 128], strides = [1, 1]} : vector<8x384xf32> to vector<8x128xf32>
    %53 = vector.extract_strided_slice %33 {offsets = [0, 256], sizes = [8, 128], strides = [1, 1]} : vector<8x384xf32> to vector<8x128xf32>
    %54 = vector.broadcast %26 : vector<1x128xf32> to vector<8x128xf32>
    %55 = arith.addf %53, %54 : vector<8x128xf32>
    %56 = arith.mulf %43, %55 : vector<8x128xf32>
    %57 = arith.addf %52, %56 : vector<8x128xf32>
    %58 = math.tanh %57 : vector<8x128xf32>
    %cst_41 = arith.constant 1.000000e+00 : f32
    %59 = vector.broadcast %cst_41 : f32 to vector<8x128xf32>
    %60 = arith.subf %59, %51 : vector<8x128xf32>
    %61 = arith.mulf %60, %58 : vector<8x128xf32>
    %62 = arith.mulf %51, %29 : vector<8x128xf32>
    %63 = arith.addf %61, %62 : vector<8x128xf32>
    %c7_i32 = arith.constant 7 : i32
    %64 = arith.subi %c7_i32, %c0_i32_36 : i32
    %c8_i32_42 = arith.constant 8 : i32
    %65 = arith.muli %64, %c8_i32_42 : i32
    %66 = tpu.assume_multiple %65, 8 : i32
    %cst_43 = arith.constant dense<0.000000e+00> : vector<8x384xf32>
    %67 = tpu.matmul %30, %24, %cst_43 {dimension_numbers = #tpu.dot_dimension_numbers<[1], [0], [0], [1], [0, 0, 1, 1], [], []>} : vector<8x128xf32>, vector<128x384xf32>, vector<8x384xf32> -> vector<8x384xf32>
    %68 = arith.index_cast %66 : i32 to index
    %c0_44 = arith.constant 0 : index
    %69 = vector.load %arg11[%68, %c0_44] : memref<64x384xf32, #tpu.memory_space<vmem>>, vector<8x384xf32>
    %70 = vector.extract_strided_slice %69 {offsets = [0, 0], sizes = [8, 128], strides = [1, 1]} : vector<8x384xf32> to vector<8x128xf32>
    %71 = vector.extract_strided_slice %67 {offsets = [0, 0], sizes = [8, 128], strides = [1, 1]} : vector<8x384xf32> to vector<8x128xf32>
    %72 = arith.addf %70, %71 : vector<8x128xf32>
    %73 = arith.negf %72 : vector<8x128xf32>
    %74 = math.exp %73 : vector<8x128xf32>
    %cst_45 = arith.constant 1.000000e+00 : f32
    %75 = vector.broadcast %cst_45 : f32 to vector<8x128xf32>
    %76 = arith.addf %75, %74 : vector<8x128xf32>
    %77 = arith.divf %75, %76 : vector<8x128xf32>
    %78 = vector.extract_strided_slice %69 {offsets = [0, 128], sizes = [8, 128], strides = [1, 1]} : vector<8x384xf32> to vector<8x128xf32>
    %79 = vector.extract_strided_slice %67 {offsets = [0, 128], sizes = [8, 128], strides = [1, 1]} : vector<8x384xf32> to vector<8x128xf32>
    %80 = arith.addf %78, %79 : vector<8x128xf32>
    %81 = arith.negf %80 : vector<8x128xf32>
    %82 = math.exp %81 : vector<8x128xf32>
    %cst_46 = arith.constant 1.000000e+00 : f32
    %83 = vector.broadcast %cst_46 : f32 to vector<8x128xf32>
    %84 = arith.addf %83, %82 : vector<8x128xf32>
    %85 = arith.divf %83, %84 : vector<8x128xf32>
    %86 = vector.extract_strided_slice %69 {offsets = [0, 256], sizes = [8, 128], strides = [1, 1]} : vector<8x384xf32> to vector<8x128xf32>
    %87 = vector.extract_strided_slice %67 {offsets = [0, 256], sizes = [8, 128], strides = [1, 1]} : vector<8x384xf32> to vector<8x128xf32>
    %88 = vector.broadcast %28 : vector<1x128xf32> to vector<8x128xf32>
    %89 = arith.addf %87, %88 : vector<8x128xf32>
    %90 = arith.mulf %77, %89 : vector<8x128xf32>
    %91 = arith.addf %86, %90 : vector<8x128xf32>
    %92 = math.tanh %91 : vector<8x128xf32>
    %cst_47 = arith.constant 1.000000e+00 : f32
    %93 = vector.broadcast %cst_47 : f32 to vector<8x128xf32>
    %94 = arith.subf %93, %85 : vector<8x128xf32>
    %95 = arith.mulf %94, %92 : vector<8x128xf32>
    %96 = arith.mulf %85, %30 : vector<8x128xf32>
    %97 = arith.addf %95, %96 : vector<8x128xf32>
    %98 = arith.index_cast %32 : i32 to index
    %c0_48 = arith.constant 0 : index
    %99 = vector.load %arg7[%98, %c0_48] : memref<64x128xf32, #tpu.memory_space<vmem>>, vector<8x128xf32>
    tpu.vector_store %arg7[%98, %c0_48], %63 {strides = array<i32>} : memref<64x128xf32, #tpu.memory_space<vmem>>, vector<8x128xf32>,
    %100 = arith.index_cast %66 : i32 to index
    %c0_49 = arith.constant 0 : index
    %101 = vector.load %arg8[%100, %c0_49] : memref<64x128xf32, #tpu.memory_space<vmem>>, vector<8x128xf32>
    tpu.vector_store %arg8[%100, %c0_49], %97 {strides = array<i32>} : memref<64x128xf32, #tpu.memory_space<vmem>>, vector<8x128xf32>,
    %c1_i32 = arith.constant 1 : i32
    %c8_i32_50 = arith.constant 8 : i32
    %102 = arith.muli %c1_i32, %c8_i32_50 : i32
    %103 = tpu.assume_multiple %102, 8 : i32
    %cst_51 = arith.constant dense<0.000000e+00> : vector<8x384xf32>
    %104 = tpu.matmul %63, %22, %cst_51 {dimension_numbers = #tpu.dot_dimension_numbers<[1], [0], [0], [1], [0, 0, 1, 1], [], []>} : vector<8x128xf32>, vector<128x384xf32>, vector<8x384xf32> -> vector<8x384xf32>
    %105 = arith.index_cast %103 : i32 to index
    %c0_52 = arith.constant 0 : index
    %106 = vector.load %arg10[%105, %c0_52] : memref<64x384xf32, #tpu.memory_space<vmem>>, vector<8x384xf32>
    %107 = vector.extract_strided_slice %106 {offsets = [0, 0], sizes = [8, 128], strides = [1, 1]} : vector<8x384xf32> to vector<8x128xf32>
    %108 = vector.extract_strided_slice %104 {offsets = [0, 0], sizes = [8, 128], strides = [1, 1]} : vector<8x384xf32> to vector<8x128xf32>
    %109 = arith.addf %107, %108 : vector<8x128xf32>
    %110 = arith.negf %109 : vector<8x128xf32>
    %111 = math.exp %110 : vector<8x128xf32>
    %cst_53 = arith.constant 1.000000e+00 : f32
    %112 = vector.broadcast %cst_53 : f32 to vector<8x128xf32>
    %113 = arith.addf %112, %111 : vector<8x128xf32>
    %114 = arith.divf %112, %113 : vector<8x128xf32>
    %115 = vector.extract_strided_slice %106 {offsets = [0, 128], sizes = [8, 128], strides = [1, 1]} : vector<8x384xf32> to vector<8x128xf32>
    %116 = vector.extract_strided_slice %104 {offsets = [0, 128], sizes = [8, 128], strides = [1, 1]} : vector<8x384xf32> to vector<8x128xf32>
    %117 = arith.addf %115, %116 : vector<8x128xf32>
    %118 = arith.negf %117 : vector<8x128xf32>
    %119 = math.exp %118 : vector<8x128xf32>
    %cst_54 = arith.constant 1.000000e+00 : f32
    %120 = vector.broadcast %cst_54 : f32 to vector<8x128xf32>
    %121 = arith.addf %120, %119 : vector<8x128xf32>
    %122 = arith.divf %120, %121 : vector<8x128xf32>
    %123 = vector.extract_strided_slice %106 {offsets = [0, 256], sizes = [8, 128], strides = [1, 1]} : vector<8x384xf32> to vector<8x128xf32>
    %124 = vector.extract_strided_slice %104 {offsets = [0, 256], sizes = [8, 128], strides = [1, 1]} : vector<8x384xf32> to vector<8x128xf32>
    %125 = vector.broadcast %26 : vector<1x128xf32> to vector<8x128xf32>
    %126 = arith.addf %124, %125 : vector<8x128xf32>
    %127 = arith.mulf %114, %126 : vector<8x128xf32>
    %128 = arith.addf %123, %127 : vector<8x128xf32>
    %129 = math.tanh %128 : vector<8x128xf32>
    %cst_55 = arith.constant 1.000000e+00 : f32
    %130 = vector.broadcast %cst_55 : f32 to vector<8x128xf32>
    %131 = arith.subf %130, %122 : vector<8x128xf32>
    %132 = arith.mulf %131, %129 : vector<8x128xf32>
    %133 = arith.mulf %122, %63 : vector<8x128xf32>
    %134 = arith.addf %132, %133 : vector<8x128xf32>
    %c7_i32_56 = arith.constant 7 : i32
    %135 = arith.subi %c7_i32_56, %c1_i32 : i32
    %c8_i32_57 = arith.constant 8 : i32
    %136 = arith.muli %135, %c8_i32_57 : i32
    %137 = tpu.assume_multiple %136, 8 : i32
    %cst_58 = arith.constant dense<0.000000e+00> : vector<8x384xf32>
    %138 = tpu.matmul %97, %24, %cst_58 {dimension_numbers = #tpu.dot_dimension_numbers<[1], [0], [0], [1], [0, 0, 1, 1], [], []>} : vector<8x128xf32>, vector<128x384xf32>, vector<8x384xf32> -> vector<8x384xf32>
    %139 = arith.index_cast %137 : i32 to index
    %c0_59 = arith.constant 0 : index
    %140 = vector.load %arg11[%139, %c0_59] : memref<64x384xf32, #tpu.memory_space<vmem>>, vector<8x384xf32>
    %141 = vector.extract_strided_slice %140 {offsets = [0, 0], sizes = [8, 128], strides = [1, 1]} : vector<8x384xf32> to vector<8x128xf32>
    %142 = vector.extract_strided_slice %138 {offsets = [0, 0], sizes = [8, 128], strides = [1, 1]} : vector<8x384xf32> to vector<8x128xf32>
    %143 = arith.addf %141, %142 : vector<8x128xf32>
    %144 = arith.negf %143 : vector<8x128xf32>
    %145 = math.exp %144 : vector<8x128xf32>
    %cst_60 = arith.constant 1.000000e+00 : f32
    %146 = vector.broadcast %cst_60 : f32 to vector<8x128xf32>
    %147 = arith.addf %146, %145 : vector<8x128xf32>
    %148 = arith.divf %146, %147 : vector<8x128xf32>
    %149 = vector.extract_strided_slice %140 {offsets = [0, 128], sizes = [8, 128], strides = [1, 1]} : vector<8x384xf32> to vector<8x128xf32>
    %150 = vector.extract_strided_slice %138 {offsets = [0, 128], sizes = [8, 128], strides = [1, 1]} : vector<8x384xf32> to vector<8x128xf32>
    %151 = arith.addf %149, %150 : vector<8x128xf32>
    %152 = arith.negf %151 : vector<8x128xf32>
    %153 = math.exp %152 : vector<8x128xf32>
    %cst_61 = arith.constant 1.000000e+00 : f32
    %154 = vector.broadcast %cst_61 : f32 to vector<8x128xf32>
    %155 = arith.addf %154, %153 : vector<8x128xf32>
    %156 = arith.divf %154, %155 : vector<8x128xf32>
    %157 = vector.extract_strided_slice %140 {offsets = [0, 256], sizes = [8, 128], strides = [1, 1]} : vector<8x384xf32> to vector<8x128xf32>
    %158 = vector.extract_strided_slice %138 {offsets = [0, 256], sizes = [8, 128], strides = [1, 1]} : vector<8x384xf32> to vector<8x128xf32>
    %159 = vector.broadcast %28 : vector<1x128xf32> to vector<8x128xf32>
    %160 = arith.addf %158, %159 : vector<8x128xf32>
    %161 = arith.mulf %148, %160 : vector<8x128xf32>
    %162 = arith.addf %157, %161 : vector<8x128xf32>
    %163 = math.tanh %162 : vector<8x128xf32>
    %cst_62 = arith.constant 1.000000e+00 : f32
    %164 = vector.broadcast %cst_62 : f32 to vector<8x128xf32>
    %165 = arith.subf %164, %156 : vector<8x128xf32>
    %166 = arith.mulf %165, %163 : vector<8x128xf32>
    %167 = arith.mulf %156, %97 : vector<8x128xf32>
    %168 = arith.addf %166, %167 : vector<8x128xf32>
    %169 = arith.index_cast %103 : i32 to index
    %c0_63 = arith.constant 0 : index
    %170 = vector.load %arg7[%169, %c0_63] : memref<64x128xf32, #tpu.memory_space<vmem>>, vector<8x128xf32>
    tpu.vector_store %arg7[%169, %c0_63], %134 {strides = array<i32>} : memref<64x128xf32, #tpu.memory_space<vmem>>, vector<8x128xf32>,
    %171 = arith.index_cast %137 : i32 to index
    %c0_64 = arith.constant 0 : index
    %172 = vector.load %arg8[%171, %c0_64] : memref<64x128xf32, #tpu.memory_space<vmem>>, vector<8x128xf32>
    tpu.vector_store %arg8[%171, %c0_64], %168 {strides = array<i32>} : memref<64x128xf32, #tpu.memory_space<vmem>>, vector<8x128xf32>,
    %c2_i32 = arith.constant 2 : i32
    %c8_i32_65 = arith.constant 8 : i32
    %173 = arith.muli %c2_i32, %c8_i32_65 : i32
    %174 = tpu.assume_multiple %173, 8 : i32
    %cst_66 = arith.constant dense<0.000000e+00> : vector<8x384xf32>
    %175 = tpu.matmul %134, %22, %cst_66 {dimension_numbers = #tpu.dot_dimension_numbers<[1], [0], [0], [1], [0, 0, 1, 1], [], []>} : vector<8x128xf32>, vector<128x384xf32>, vector<8x384xf32> -> vector<8x384xf32>
    %176 = arith.index_cast %174 : i32 to index
    %c0_67 = arith.constant 0 : index
    %177 = vector.load %arg10[%176, %c0_67] : memref<64x384xf32, #tpu.memory_space<vmem>>, vector<8x384xf32>
    %178 = vector.extract_strided_slice %177 {offsets = [0, 0], sizes = [8, 128], strides = [1, 1]} : vector<8x384xf32> to vector<8x128xf32>
    %179 = vector.extract_strided_slice %175 {offsets = [0, 0], sizes = [8, 128], strides = [1, 1]} : vector<8x384xf32> to vector<8x128xf32>
    %180 = arith.addf %178, %179 : vector<8x128xf32>
    %181 = arith.negf %180 : vector<8x128xf32>
    %182 = math.exp %181 : vector<8x128xf32>
    %cst_68 = arith.constant 1.000000e+00 : f32
    %183 = vector.broadcast %cst_68 : f32 to vector<8x128xf32>
    %184 = arith.addf %183, %182 : vector<8x128xf32>
    %185 = arith.divf %183, %184 : vector<8x128xf32>
    %186 = vector.extract_strided_slice %177 {offsets = [0, 128], sizes = [8, 128], strides = [1, 1]} : vector<8x384xf32> to vector<8x128xf32>
    %187 = vector.extract_strided_slice %175 {offsets = [0, 128], sizes = [8, 128], strides = [1, 1]} : vector<8x384xf32> to vector<8x128xf32>
    %188 = arith.addf %186, %187 : vector<8x128xf32>
    %189 = arith.negf %188 : vector<8x128xf32>
    %190 = math.exp %189 : vector<8x128xf32>
    %cst_69 = arith.constant 1.000000e+00 : f32
    %191 = vector.broadcast %cst_69 : f32 to vector<8x128xf32>
    %192 = arith.addf %191, %190 : vector<8x128xf32>
    %193 = arith.divf %191, %192 : vector<8x128xf32>
    %194 = vector.extract_strided_slice %177 {offsets = [0, 256], sizes = [8, 128], strides = [1, 1]} : vector<8x384xf32> to vector<8x128xf32>
    %195 = vector.extract_strided_slice %175 {offsets = [0, 256], sizes = [8, 128], strides = [1, 1]} : vector<8x384xf32> to vector<8x128xf32>
    %196 = vector.broadcast %26 : vector<1x128xf32> to vector<8x128xf32>
    %197 = arith.addf %195, %196 : vector<8x128xf32>
    %198 = arith.mulf %185, %197 : vector<8x128xf32>
    %199 = arith.addf %194, %198 : vector<8x128xf32>
    %200 = math.tanh %199 : vector<8x128xf32>
    %cst_70 = arith.constant 1.000000e+00 : f32
    %201 = vector.broadcast %cst_70 : f32 to vector<8x128xf32>
    %202 = arith.subf %201, %193 : vector<8x128xf32>
    %203 = arith.mulf %202, %200 : vector<8x128xf32>
    %204 = arith.mulf %193, %134 : vector<8x128xf32>
    %205 = arith.addf %203, %204 : vector<8x128xf32>
    %c7_i32_71 = arith.constant 7 : i32
    %206 = arith.subi %c7_i32_71, %c2_i32 : i32
    %c8_i32_72 = arith.constant 8 : i32
    %207 = arith.muli %206, %c8_i32_72 : i32
    %208 = tpu.assume_multiple %207, 8 : i32
    %cst_73 = arith.constant dense<0.000000e+00> : vector<8x384xf32>
    %209 = tpu.matmul %168, %24, %cst_73 {dimension_numbers = #tpu.dot_dimension_numbers<[1], [0], [0], [1], [0, 0, 1, 1], [], []>} : vector<8x128xf32>, vector<128x384xf32>, vector<8x384xf32> -> vector<8x384xf32>
    %210 = arith.index_cast %208 : i32 to index
    %c0_74 = arith.constant 0 : index
    %211 = vector.load %arg11[%210, %c0_74] : memref<64x384xf32, #tpu.memory_space<vmem>>, vector<8x384xf32>
    %212 = vector.extract_strided_slice %211 {offsets = [0, 0], sizes = [8, 128], strides = [1, 1]} : vector<8x384xf32> to vector<8x128xf32>
    %213 = vector.extract_strided_slice %209 {offsets = [0, 0], sizes = [8, 128], strides = [1, 1]} : vector<8x384xf32> to vector<8x128xf32>
    %214 = arith.addf %212, %213 : vector<8x128xf32>
    %215 = arith.negf %214 : vector<8x128xf32>
    %216 = math.exp %215 : vector<8x128xf32>
    %cst_75 = arith.constant 1.000000e+00 : f32
    %217 = vector.broadcast %cst_75 : f32 to vector<8x128xf32>
    %218 = arith.addf %217, %216 : vector<8x128xf32>
    %219 = arith.divf %217, %218 : vector<8x128xf32>
    %220 = vector.extract_strided_slice %211 {offsets = [0, 128], sizes = [8, 128], strides = [1, 1]} : vector<8x384xf32> to vector<8x128xf32>
    %221 = vector.extract_strided_slice %209 {offsets = [0, 128], sizes = [8, 128], strides = [1, 1]} : vector<8x384xf32> to vector<8x128xf32>
    %222 = arith.addf %220, %221 : vector<8x128xf32>
    %223 = arith.negf %222 : vector<8x128xf32>
    %224 = math.exp %223 : vector<8x128xf32>
    %cst_76 = arith.constant 1.000000e+00 : f32
    %225 = vector.broadcast %cst_76 : f32 to vector<8x128xf32>
    %226 = arith.addf %225, %224 : vector<8x128xf32>
    %227 = arith.divf %225, %226 : vector<8x128xf32>
    %228 = vector.extract_strided_slice %211 {offsets = [0, 256], sizes = [8, 128], strides = [1, 1]} : vector<8x384xf32> to vector<8x128xf32>
    %229 = vector.extract_strided_slice %209 {offsets = [0, 256], sizes = [8, 128], strides = [1, 1]} : vector<8x384xf32> to vector<8x128xf32>
    %230 = vector.broadcast %28 : vector<1x128xf32> to vector<8x128xf32>
    %231 = arith.addf %229, %230 : vector<8x128xf32>
    %232 = arith.mulf %219, %231 : vector<8x128xf32>
    %233 = arith.addf %228, %232 : vector<8x128xf32>
    %234 = math.tanh %233 : vector<8x128xf32>
    %cst_77 = arith.constant 1.000000e+00 : f32
    %235 = vector.broadcast %cst_77 : f32 to vector<8x128xf32>
    %236 = arith.subf %235, %227 : vector<8x128xf32>
    %237 = arith.mulf %236, %234 : vector<8x128xf32>
    %238 = arith.mulf %227, %168 : vector<8x128xf32>
    %239 = arith.addf %237, %238 : vector<8x128xf32>
    %240 = arith.index_cast %174 : i32 to index
    %c0_78 = arith.constant 0 : index
    %241 = vector.load %arg7[%240, %c0_78] : memref<64x128xf32, #tpu.memory_space<vmem>>, vector<8x128xf32>
    tpu.vector_store %arg7[%240, %c0_78], %205 {strides = array<i32>} : memref<64x128xf32, #tpu.memory_space<vmem>>, vector<8x128xf32>,
    %242 = arith.index_cast %208 : i32 to index
    %c0_79 = arith.constant 0 : index
    %243 = vector.load %arg8[%242, %c0_79] : memref<64x128xf32, #tpu.memory_space<vmem>>, vector<8x128xf32>
    tpu.vector_store %arg8[%242, %c0_79], %239 {strides = array<i32>} : memref<64x128xf32, #tpu.memory_space<vmem>>, vector<8x128xf32>,
    %c3_i32 = arith.constant 3 : i32
    %c8_i32_80 = arith.constant 8 : i32
    %244 = arith.muli %c3_i32, %c8_i32_80 : i32
    %245 = tpu.assume_multiple %244, 8 : i32
    %cst_81 = arith.constant dense<0.000000e+00> : vector<8x384xf32>
    %246 = tpu.matmul %205, %22, %cst_81 {dimension_numbers = #tpu.dot_dimension_numbers<[1], [0], [0], [1], [0, 0, 1, 1], [], []>} : vector<8x128xf32>, vector<128x384xf32>, vector<8x384xf32> -> vector<8x384xf32>
    %247 = arith.index_cast %245 : i32 to index
    %c0_82 = arith.constant 0 : index
    %248 = vector.load %arg10[%247, %c0_82] : memref<64x384xf32, #tpu.memory_space<vmem>>, vector<8x384xf32>
    %249 = vector.extract_strided_slice %248 {offsets = [0, 0], sizes = [8, 128], strides = [1, 1]} : vector<8x384xf32> to vector<8x128xf32>
    %250 = vector.extract_strided_slice %246 {offsets = [0, 0], sizes = [8, 128], strides = [1, 1]} : vector<8x384xf32> to vector<8x128xf32>
    %251 = arith.addf %249, %250 : vector<8x128xf32>
    %252 = arith.negf %251 : vector<8x128xf32>
    %253 = math.exp %252 : vector<8x128xf32>
    %cst_83 = arith.constant 1.000000e+00 : f32
    %254 = vector.broadcast %cst_83 : f32 to vector<8x128xf32>
    %255 = arith.addf %254, %253 : vector<8x128xf32>
    %256 = arith.divf %254, %255 : vector<8x128xf32>
    %257 = vector.extract_strided_slice %248 {offsets = [0, 128], sizes = [8, 128], strides = [1, 1]} : vector<8x384xf32> to vector<8x128xf32>
    %258 = vector.extract_strided_slice %246 {offsets = [0, 128], sizes = [8, 128], strides = [1, 1]} : vector<8x384xf32> to vector<8x128xf32>
    %259 = arith.addf %257, %258 : vector<8x128xf32>
    %260 = arith.negf %259 : vector<8x128xf32>
    %261 = math.exp %260 : vector<8x128xf32>
    %cst_84 = arith.constant 1.000000e+00 : f32
    %262 = vector.broadcast %cst_84 : f32 to vector<8x128xf32>
    %263 = arith.addf %262, %261 : vector<8x128xf32>
    %264 = arith.divf %262, %263 : vector<8x128xf32>
    %265 = vector.extract_strided_slice %248 {offsets = [0, 256], sizes = [8, 128], strides = [1, 1]} : vector<8x384xf32> to vector<8x128xf32>
    %266 = vector.extract_strided_slice %246 {offsets = [0, 256], sizes = [8, 128], strides = [1, 1]} : vector<8x384xf32> to vector<8x128xf32>
    %267 = vector.broadcast %26 : vector<1x128xf32> to vector<8x128xf32>
    %268 = arith.addf %266, %267 : vector<8x128xf32>
    %269 = arith.mulf %256, %268 : vector<8x128xf32>
    %270 = arith.addf %265, %269 : vector<8x128xf32>
    %271 = math.tanh %270 : vector<8x128xf32>
    %cst_85 = arith.constant 1.000000e+00 : f32
    %272 = vector.broadcast %cst_85 : f32 to vector<8x128xf32>
    %273 = arith.subf %272, %264 : vector<8x128xf32>
    %274 = arith.mulf %273, %271 : vector<8x128xf32>
    %275 = arith.mulf %264, %205 : vector<8x128xf32>
    %276 = arith.addf %274, %275 : vector<8x128xf32>
    %c7_i32_86 = arith.constant 7 : i32
    %277 = arith.subi %c7_i32_86, %c3_i32 : i32
    %c8_i32_87 = arith.constant 8 : i32
    %278 = arith.muli %277, %c8_i32_87 : i32
    %279 = tpu.assume_multiple %278, 8 : i32
    %cst_88 = arith.constant dense<0.000000e+00> : vector<8x384xf32>
    %280 = tpu.matmul %239, %24, %cst_88 {dimension_numbers = #tpu.dot_dimension_numbers<[1], [0], [0], [1], [0, 0, 1, 1], [], []>} : vector<8x128xf32>, vector<128x384xf32>, vector<8x384xf32> -> vector<8x384xf32>
    %281 = arith.index_cast %279 : i32 to index
    %c0_89 = arith.constant 0 : index
    %282 = vector.load %arg11[%281, %c0_89] : memref<64x384xf32, #tpu.memory_space<vmem>>, vector<8x384xf32>
    %283 = vector.extract_strided_slice %282 {offsets = [0, 0], sizes = [8, 128], strides = [1, 1]} : vector<8x384xf32> to vector<8x128xf32>
    %284 = vector.extract_strided_slice %280 {offsets = [0, 0], sizes = [8, 128], strides = [1, 1]} : vector<8x384xf32> to vector<8x128xf32>
    %285 = arith.addf %283, %284 : vector<8x128xf32>
    %286 = arith.negf %285 : vector<8x128xf32>
    %287 = math.exp %286 : vector<8x128xf32>
    %cst_90 = arith.constant 1.000000e+00 : f32
    %288 = vector.broadcast %cst_90 : f32 to vector<8x128xf32>
    %289 = arith.addf %288, %287 : vector<8x128xf32>
    %290 = arith.divf %288, %289 : vector<8x128xf32>
    %291 = vector.extract_strided_slice %282 {offsets = [0, 128], sizes = [8, 128], strides = [1, 1]} : vector<8x384xf32> to vector<8x128xf32>
    %292 = vector.extract_strided_slice %280 {offsets = [0, 128], sizes = [8, 128], strides = [1, 1]} : vector<8x384xf32> to vector<8x128xf32>
    %293 = arith.addf %291, %292 : vector<8x128xf32>
    %294 = arith.negf %293 : vector<8x128xf32>
    %295 = math.exp %294 : vector<8x128xf32>
    %cst_91 = arith.constant 1.000000e+00 : f32
    %296 = vector.broadcast %cst_91 : f32 to vector<8x128xf32>
    %297 = arith.addf %296, %295 : vector<8x128xf32>
    %298 = arith.divf %296, %297 : vector<8x128xf32>
    %299 = vector.extract_strided_slice %282 {offsets = [0, 256], sizes = [8, 128], strides = [1, 1]} : vector<8x384xf32> to vector<8x128xf32>
    %300 = vector.extract_strided_slice %280 {offsets = [0, 256], sizes = [8, 128], strides = [1, 1]} : vector<8x384xf32> to vector<8x128xf32>
    %301 = vector.broadcast %28 : vector<1x128xf32> to vector<8x128xf32>
    %302 = arith.addf %300, %301 : vector<8x128xf32>
    %303 = arith.mulf %290, %302 : vector<8x128xf32>
    %304 = arith.addf %299, %303 : vector<8x128xf32>
    %305 = math.tanh %304 : vector<8x128xf32>
    %cst_92 = arith.constant 1.000000e+00 : f32
    %306 = vector.broadcast %cst_92 : f32 to vector<8x128xf32>
    %307 = arith.subf %306, %298 : vector<8x128xf32>
    %308 = arith.mulf %307, %305 : vector<8x128xf32>
    %309 = arith.mulf %298, %239 : vector<8x128xf32>
    %310 = arith.addf %308, %309 : vector<8x128xf32>
    %311 = arith.index_cast %245 : i32 to index
    %c0_93 = arith.constant 0 : index
    %312 = vector.load %arg7[%311, %c0_93] : memref<64x128xf32, #tpu.memory_space<vmem>>, vector<8x128xf32>
    tpu.vector_store %arg7[%311, %c0_93], %276 {strides = array<i32>} : memref<64x128xf32, #tpu.memory_space<vmem>>, vector<8x128xf32>,
    %313 = arith.index_cast %279 : i32 to index
    %c0_94 = arith.constant 0 : index
    %314 = vector.load %arg8[%313, %c0_94] : memref<64x128xf32, #tpu.memory_space<vmem>>, vector<8x128xf32>
    tpu.vector_store %arg8[%313, %c0_94], %310 {strides = array<i32>} : memref<64x128xf32, #tpu.memory_space<vmem>>, vector<8x128xf32>,
    %c4_i32 = arith.constant 4 : i32
    %c8_i32_95 = arith.constant 8 : i32
    %315 = arith.muli %c4_i32, %c8_i32_95 : i32
    %316 = tpu.assume_multiple %315, 8 : i32
    %cst_96 = arith.constant dense<0.000000e+00> : vector<8x384xf32>
    %317 = tpu.matmul %276, %22, %cst_96 {dimension_numbers = #tpu.dot_dimension_numbers<[1], [0], [0], [1], [0, 0, 1, 1], [], []>} : vector<8x128xf32>, vector<128x384xf32>, vector<8x384xf32> -> vector<8x384xf32>
    %318 = arith.index_cast %316 : i32 to index
    %c0_97 = arith.constant 0 : index
    %319 = vector.load %arg10[%318, %c0_97] : memref<64x384xf32, #tpu.memory_space<vmem>>, vector<8x384xf32>
    %320 = vector.extract_strided_slice %319 {offsets = [0, 0], sizes = [8, 128], strides = [1, 1]} : vector<8x384xf32> to vector<8x128xf32>
    %321 = vector.extract_strided_slice %317 {offsets = [0, 0], sizes = [8, 128], strides = [1, 1]} : vector<8x384xf32> to vector<8x128xf32>
    %322 = arith.addf %320, %321 : vector<8x128xf32>
    %323 = arith.negf %322 : vector<8x128xf32>
    %324 = math.exp %323 : vector<8x128xf32>
    %cst_98 = arith.constant 1.000000e+00 : f32
    %325 = vector.broadcast %cst_98 : f32 to vector<8x128xf32>
    %326 = arith.addf %325, %324 : vector<8x128xf32>
    %327 = arith.divf %325, %326 : vector<8x128xf32>
    %328 = vector.extract_strided_slice %319 {offsets = [0, 128], sizes = [8, 128], strides = [1, 1]} : vector<8x384xf32> to vector<8x128xf32>
    %329 = vector.extract_strided_slice %317 {offsets = [0, 128], sizes = [8, 128], strides = [1, 1]} : vector<8x384xf32> to vector<8x128xf32>
    %330 = arith.addf %328, %329 : vector<8x128xf32>
    %331 = arith.negf %330 : vector<8x128xf32>
    %332 = math.exp %331 : vector<8x128xf32>
    %cst_99 = arith.constant 1.000000e+00 : f32
    %333 = vector.broadcast %cst_99 : f32 to vector<8x128xf32>
    %334 = arith.addf %333, %332 : vector<8x128xf32>
    %335 = arith.divf %333, %334 : vector<8x128xf32>
    %336 = vector.extract_strided_slice %319 {offsets = [0, 256], sizes = [8, 128], strides = [1, 1]} : vector<8x384xf32> to vector<8x128xf32>
    %337 = vector.extract_strided_slice %317 {offsets = [0, 256], sizes = [8, 128], strides = [1, 1]} : vector<8x384xf32> to vector<8x128xf32>
    %338 = vector.broadcast %26 : vector<1x128xf32> to vector<8x128xf32>
    %339 = arith.addf %337, %338 : vector<8x128xf32>
    %340 = arith.mulf %327, %339 : vector<8x128xf32>
    %341 = arith.addf %336, %340 : vector<8x128xf32>
    %342 = math.tanh %341 : vector<8x128xf32>
    %cst_100 = arith.constant 1.000000e+00 : f32
    %343 = vector.broadcast %cst_100 : f32 to vector<8x128xf32>
    %344 = arith.subf %343, %335 : vector<8x128xf32>
    %345 = arith.mulf %344, %342 : vector<8x128xf32>
    %346 = arith.mulf %335, %276 : vector<8x128xf32>
    %347 = arith.addf %345, %346 : vector<8x128xf32>
    %c7_i32_101 = arith.constant 7 : i32
    %348 = arith.subi %c7_i32_101, %c4_i32 : i32
    %c8_i32_102 = arith.constant 8 : i32
    %349 = arith.muli %348, %c8_i32_102 : i32
    %350 = tpu.assume_multiple %349, 8 : i32
    %cst_103 = arith.constant dense<0.000000e+00> : vector<8x384xf32>
    %351 = tpu.matmul %310, %24, %cst_103 {dimension_numbers = #tpu.dot_dimension_numbers<[1], [0], [0], [1], [0, 0, 1, 1], [], []>} : vector<8x128xf32>, vector<128x384xf32>, vector<8x384xf32> -> vector<8x384xf32>
    %352 = arith.index_cast %350 : i32 to index
    %c0_104 = arith.constant 0 : index
    %353 = vector.load %arg11[%352, %c0_104] : memref<64x384xf32, #tpu.memory_space<vmem>>, vector<8x384xf32>
    %354 = vector.extract_strided_slice %353 {offsets = [0, 0], sizes = [8, 128], strides = [1, 1]} : vector<8x384xf32> to vector<8x128xf32>
    %355 = vector.extract_strided_slice %351 {offsets = [0, 0], sizes = [8, 128], strides = [1, 1]} : vector<8x384xf32> to vector<8x128xf32>
    %356 = arith.addf %354, %355 : vector<8x128xf32>
    %357 = arith.negf %356 : vector<8x128xf32>
    %358 = math.exp %357 : vector<8x128xf32>
    %cst_105 = arith.constant 1.000000e+00 : f32
    %359 = vector.broadcast %cst_105 : f32 to vector<8x128xf32>
    %360 = arith.addf %359, %358 : vector<8x128xf32>
    %361 = arith.divf %359, %360 : vector<8x128xf32>
    %362 = vector.extract_strided_slice %353 {offsets = [0, 128], sizes = [8, 128], strides = [1, 1]} : vector<8x384xf32> to vector<8x128xf32>
    %363 = vector.extract_strided_slice %351 {offsets = [0, 128], sizes = [8, 128], strides = [1, 1]} : vector<8x384xf32> to vector<8x128xf32>
    %364 = arith.addf %362, %363 : vector<8x128xf32>
    %365 = arith.negf %364 : vector<8x128xf32>
    %366 = math.exp %365 : vector<8x128xf32>
    %cst_106 = arith.constant 1.000000e+00 : f32
    %367 = vector.broadcast %cst_106 : f32 to vector<8x128xf32>
    %368 = arith.addf %367, %366 : vector<8x128xf32>
    %369 = arith.divf %367, %368 : vector<8x128xf32>
    %370 = vector.extract_strided_slice %353 {offsets = [0, 256], sizes = [8, 128], strides = [1, 1]} : vector<8x384xf32> to vector<8x128xf32>
    %371 = vector.extract_strided_slice %351 {offsets = [0, 256], sizes = [8, 128], strides = [1, 1]} : vector<8x384xf32> to vector<8x128xf32>
    %372 = vector.broadcast %28 : vector<1x128xf32> to vector<8x128xf32>
    %373 = arith.addf %371, %372 : vector<8x128xf32>
    %374 = arith.mulf %361, %373 : vector<8x128xf32>
    %375 = arith.addf %370, %374 : vector<8x128xf32>
    %376 = math.tanh %375 : vector<8x128xf32>
    %cst_107 = arith.constant 1.000000e+00 : f32
    %377 = vector.broadcast %cst_107 : f32 to vector<8x128xf32>
    %378 = arith.subf %377, %369 : vector<8x128xf32>
    %379 = arith.mulf %378, %376 : vector<8x128xf32>
    %380 = arith.mulf %369, %310 : vector<8x128xf32>
    %381 = arith.addf %379, %380 : vector<8x128xf32>
    %382 = arith.index_cast %316 : i32 to index
    %c0_108 = arith.constant 0 : index
    %383 = vector.load %arg7[%382, %c0_108] : memref<64x128xf32, #tpu.memory_space<vmem>>, vector<8x128xf32>
    tpu.vector_store %arg7[%382, %c0_108], %347 {strides = array<i32>} : memref<64x128xf32, #tpu.memory_space<vmem>>, vector<8x128xf32>,
    %384 = arith.index_cast %350 : i32 to index
    %c0_109 = arith.constant 0 : index
    %385 = vector.load %arg8[%384, %c0_109] : memref<64x128xf32, #tpu.memory_space<vmem>>, vector<8x128xf32>
    tpu.vector_store %arg8[%384, %c0_109], %381 {strides = array<i32>} : memref<64x128xf32, #tpu.memory_space<vmem>>, vector<8x128xf32>,
    %c5_i32 = arith.constant 5 : i32
    %c8_i32_110 = arith.constant 8 : i32
    %386 = arith.muli %c5_i32, %c8_i32_110 : i32
    %387 = tpu.assume_multiple %386, 8 : i32
    %cst_111 = arith.constant dense<0.000000e+00> : vector<8x384xf32>
    %388 = tpu.matmul %347, %22, %cst_111 {dimension_numbers = #tpu.dot_dimension_numbers<[1], [0], [0], [1], [0, 0, 1, 1], [], []>} : vector<8x128xf32>, vector<128x384xf32>, vector<8x384xf32> -> vector<8x384xf32>
    %389 = arith.index_cast %387 : i32 to index
    %c0_112 = arith.constant 0 : index
    %390 = vector.load %arg10[%389, %c0_112] : memref<64x384xf32, #tpu.memory_space<vmem>>, vector<8x384xf32>
    %391 = vector.extract_strided_slice %390 {offsets = [0, 0], sizes = [8, 128], strides = [1, 1]} : vector<8x384xf32> to vector<8x128xf32>
    %392 = vector.extract_strided_slice %388 {offsets = [0, 0], sizes = [8, 128], strides = [1, 1]} : vector<8x384xf32> to vector<8x128xf32>
    %393 = arith.addf %391, %392 : vector<8x128xf32>
    %394 = arith.negf %393 : vector<8x128xf32>
    %395 = math.exp %394 : vector<8x128xf32>
    %cst_113 = arith.constant 1.000000e+00 : f32
    %396 = vector.broadcast %cst_113 : f32 to vector<8x128xf32>
    %397 = arith.addf %396, %395 : vector<8x128xf32>
    %398 = arith.divf %396, %397 : vector<8x128xf32>
    %399 = vector.extract_strided_slice %390 {offsets = [0, 128], sizes = [8, 128], strides = [1, 1]} : vector<8x384xf32> to vector<8x128xf32>
    %400 = vector.extract_strided_slice %388 {offsets = [0, 128], sizes = [8, 128], strides = [1, 1]} : vector<8x384xf32> to vector<8x128xf32>
    %401 = arith.addf %399, %400 : vector<8x128xf32>
    %402 = arith.negf %401 : vector<8x128xf32>
    %403 = math.exp %402 : vector<8x128xf32>
    %cst_114 = arith.constant 1.000000e+00 : f32
    %404 = vector.broadcast %cst_114 : f32 to vector<8x128xf32>
    %405 = arith.addf %404, %403 : vector<8x128xf32>
    %406 = arith.divf %404, %405 : vector<8x128xf32>
    %407 = vector.extract_strided_slice %390 {offsets = [0, 256], sizes = [8, 128], strides = [1, 1]} : vector<8x384xf32> to vector<8x128xf32>
    %408 = vector.extract_strided_slice %388 {offsets = [0, 256], sizes = [8, 128], strides = [1, 1]} : vector<8x384xf32> to vector<8x128xf32>
    %409 = vector.broadcast %26 : vector<1x128xf32> to vector<8x128xf32>
    %410 = arith.addf %408, %409 : vector<8x128xf32>
    %411 = arith.mulf %398, %410 : vector<8x128xf32>
    %412 = arith.addf %407, %411 : vector<8x128xf32>
    %413 = math.tanh %412 : vector<8x128xf32>
    %cst_115 = arith.constant 1.000000e+00 : f32
    %414 = vector.broadcast %cst_115 : f32 to vector<8x128xf32>
    %415 = arith.subf %414, %406 : vector<8x128xf32>
    %416 = arith.mulf %415, %413 : vector<8x128xf32>
    %417 = arith.mulf %406, %347 : vector<8x128xf32>
    %418 = arith.addf %416, %417 : vector<8x128xf32>
    %c7_i32_116 = arith.constant 7 : i32
    %419 = arith.subi %c7_i32_116, %c5_i32 : i32
    %c8_i32_117 = arith.constant 8 : i32
    %420 = arith.muli %419, %c8_i32_117 : i32
    %421 = tpu.assume_multiple %420, 8 : i32
    %cst_118 = arith.constant dense<0.000000e+00> : vector<8x384xf32>
    %422 = tpu.matmul %381, %24, %cst_118 {dimension_numbers = #tpu.dot_dimension_numbers<[1], [0], [0], [1], [0, 0, 1, 1], [], []>} : vector<8x128xf32>, vector<128x384xf32>, vector<8x384xf32> -> vector<8x384xf32>
    %423 = arith.index_cast %421 : i32 to index
    %c0_119 = arith.constant 0 : index
    %424 = vector.load %arg11[%423, %c0_119] : memref<64x384xf32, #tpu.memory_space<vmem>>, vector<8x384xf32>
    %425 = vector.extract_strided_slice %424 {offsets = [0, 0], sizes = [8, 128], strides = [1, 1]} : vector<8x384xf32> to vector<8x128xf32>
    %426 = vector.extract_strided_slice %422 {offsets = [0, 0], sizes = [8, 128], strides = [1, 1]} : vector<8x384xf32> to vector<8x128xf32>
    %427 = arith.addf %425, %426 : vector<8x128xf32>
    %428 = arith.negf %427 : vector<8x128xf32>
    %429 = math.exp %428 : vector<8x128xf32>
    %cst_120 = arith.constant 1.000000e+00 : f32
    %430 = vector.broadcast %cst_120 : f32 to vector<8x128xf32>
    %431 = arith.addf %430, %429 : vector<8x128xf32>
    %432 = arith.divf %430, %431 : vector<8x128xf32>
    %433 = vector.extract_strided_slice %424 {offsets = [0, 128], sizes = [8, 128], strides = [1, 1]} : vector<8x384xf32> to vector<8x128xf32>
    %434 = vector.extract_strided_slice %422 {offsets = [0, 128], sizes = [8, 128], strides = [1, 1]} : vector<8x384xf32> to vector<8x128xf32>
    %435 = arith.addf %433, %434 : vector<8x128xf32>
    %436 = arith.negf %435 : vector<8x128xf32>
    %437 = math.exp %436 : vector<8x128xf32>
    %cst_121 = arith.constant 1.000000e+00 : f32
    %438 = vector.broadcast %cst_121 : f32 to vector<8x128xf32>
    %439 = arith.addf %438, %437 : vector<8x128xf32>
    %440 = arith.divf %438, %439 : vector<8x128xf32>
    %441 = vector.extract_strided_slice %424 {offsets = [0, 256], sizes = [8, 128], strides = [1, 1]} : vector<8x384xf32> to vector<8x128xf32>
    %442 = vector.extract_strided_slice %422 {offsets = [0, 256], sizes = [8, 128], strides = [1, 1]} : vector<8x384xf32> to vector<8x128xf32>
    %443 = vector.broadcast %28 : vector<1x128xf32> to vector<8x128xf32>
    %444 = arith.addf %442, %443 : vector<8x128xf32>
    %445 = arith.mulf %432, %444 : vector<8x128xf32>
    %446 = arith.addf %441, %445 : vector<8x128xf32>
    %447 = math.tanh %446 : vector<8x128xf32>
    %cst_122 = arith.constant 1.000000e+00 : f32
    %448 = vector.broadcast %cst_122 : f32 to vector<8x128xf32>
    %449 = arith.subf %448, %440 : vector<8x128xf32>
    %450 = arith.mulf %449, %447 : vector<8x128xf32>
    %451 = arith.mulf %440, %381 : vector<8x128xf32>
    %452 = arith.addf %450, %451 : vector<8x128xf32>
    %453 = arith.index_cast %387 : i32 to index
    %c0_123 = arith.constant 0 : index
    %454 = vector.load %arg7[%453, %c0_123] : memref<64x128xf32, #tpu.memory_space<vmem>>, vector<8x128xf32>
    tpu.vector_store %arg7[%453, %c0_123], %418 {strides = array<i32>} : memref<64x128xf32, #tpu.memory_space<vmem>>, vector<8x128xf32>,
    %455 = arith.index_cast %421 : i32 to index
    %c0_124 = arith.constant 0 : index
    %456 = vector.load %arg8[%455, %c0_124] : memref<64x128xf32, #tpu.memory_space<vmem>>, vector<8x128xf32>
    tpu.vector_store %arg8[%455, %c0_124], %452 {strides = array<i32>} : memref<64x128xf32, #tpu.memory_space<vmem>>, vector<8x128xf32>,
    %c6_i32 = arith.constant 6 : i32
    %c8_i32_125 = arith.constant 8 : i32
    %457 = arith.muli %c6_i32, %c8_i32_125 : i32
    %458 = tpu.assume_multiple %457, 8 : i32
    %cst_126 = arith.constant dense<0.000000e+00> : vector<8x384xf32>
    %459 = tpu.matmul %418, %22, %cst_126 {dimension_numbers = #tpu.dot_dimension_numbers<[1], [0], [0], [1], [0, 0, 1, 1], [], []>} : vector<8x128xf32>, vector<128x384xf32>, vector<8x384xf32> -> vector<8x384xf32>
    %460 = arith.index_cast %458 : i32 to index
    %c0_127 = arith.constant 0 : index
    %461 = vector.load %arg10[%460, %c0_127] : memref<64x384xf32, #tpu.memory_space<vmem>>, vector<8x384xf32>
    %462 = vector.extract_strided_slice %461 {offsets = [0, 0], sizes = [8, 128], strides = [1, 1]} : vector<8x384xf32> to vector<8x128xf32>
    %463 = vector.extract_strided_slice %459 {offsets = [0, 0], sizes = [8, 128], strides = [1, 1]} : vector<8x384xf32> to vector<8x128xf32>
    %464 = arith.addf %462, %463 : vector<8x128xf32>
    %465 = arith.negf %464 : vector<8x128xf32>
    %466 = math.exp %465 : vector<8x128xf32>
    %cst_128 = arith.constant 1.000000e+00 : f32
    %467 = vector.broadcast %cst_128 : f32 to vector<8x128xf32>
    %468 = arith.addf %467, %466 : vector<8x128xf32>
    %469 = arith.divf %467, %468 : vector<8x128xf32>
    %470 = vector.extract_strided_slice %461 {offsets = [0, 128], sizes = [8, 128], strides = [1, 1]} : vector<8x384xf32> to vector<8x128xf32>
    %471 = vector.extract_strided_slice %459 {offsets = [0, 128], sizes = [8, 128], strides = [1, 1]} : vector<8x384xf32> to vector<8x128xf32>
    %472 = arith.addf %470, %471 : vector<8x128xf32>
    %473 = arith.negf %472 : vector<8x128xf32>
    %474 = math.exp %473 : vector<8x128xf32>
    %cst_129 = arith.constant 1.000000e+00 : f32
    %475 = vector.broadcast %cst_129 : f32 to vector<8x128xf32>
    %476 = arith.addf %475, %474 : vector<8x128xf32>
    %477 = arith.divf %475, %476 : vector<8x128xf32>
    %478 = vector.extract_strided_slice %461 {offsets = [0, 256], sizes = [8, 128], strides = [1, 1]} : vector<8x384xf32> to vector<8x128xf32>
    %479 = vector.extract_strided_slice %459 {offsets = [0, 256], sizes = [8, 128], strides = [1, 1]} : vector<8x384xf32> to vector<8x128xf32>
    %480 = vector.broadcast %26 : vector<1x128xf32> to vector<8x128xf32>
    %481 = arith.addf %479, %480 : vector<8x128xf32>
    %482 = arith.mulf %469, %481 : vector<8x128xf32>
    %483 = arith.addf %478, %482 : vector<8x128xf32>
    %484 = math.tanh %483 : vector<8x128xf32>
    %cst_130 = arith.constant 1.000000e+00 : f32
    %485 = vector.broadcast %cst_130 : f32 to vector<8x128xf32>
    %486 = arith.subf %485, %477 : vector<8x128xf32>
    %487 = arith.mulf %486, %484 : vector<8x128xf32>
    %488 = arith.mulf %477, %418 : vector<8x128xf32>
    %489 = arith.addf %487, %488 : vector<8x128xf32>
    %c7_i32_131 = arith.constant 7 : i32
    %490 = arith.subi %c7_i32_131, %c6_i32 : i32
    %c8_i32_132 = arith.constant 8 : i32
    %491 = arith.muli %490, %c8_i32_132 : i32
    %492 = tpu.assume_multiple %491, 8 : i32
    %cst_133 = arith.constant dense<0.000000e+00> : vector<8x384xf32>
    %493 = tpu.matmul %452, %24, %cst_133 {dimension_numbers = #tpu.dot_dimension_numbers<[1], [0], [0], [1], [0, 0, 1, 1], [], []>} : vector<8x128xf32>, vector<128x384xf32>, vector<8x384xf32> -> vector<8x384xf32>
    %494 = arith.index_cast %492 : i32 to index
    %c0_134 = arith.constant 0 : index
    %495 = vector.load %arg11[%494, %c0_134] : memref<64x384xf32, #tpu.memory_space<vmem>>, vector<8x384xf32>
    %496 = vector.extract_strided_slice %495 {offsets = [0, 0], sizes = [8, 128], strides = [1, 1]} : vector<8x384xf32> to vector<8x128xf32>
    %497 = vector.extract_strided_slice %493 {offsets = [0, 0], sizes = [8, 128], strides = [1, 1]} : vector<8x384xf32> to vector<8x128xf32>
    %498 = arith.addf %496, %497 : vector<8x128xf32>
    %499 = arith.negf %498 : vector<8x128xf32>
    %500 = math.exp %499 : vector<8x128xf32>
    %cst_135 = arith.constant 1.000000e+00 : f32
    %501 = vector.broadcast %cst_135 : f32 to vector<8x128xf32>
    %502 = arith.addf %501, %500 : vector<8x128xf32>
    %503 = arith.divf %501, %502 : vector<8x128xf32>
    %504 = vector.extract_strided_slice %495 {offsets = [0, 128], sizes = [8, 128], strides = [1, 1]} : vector<8x384xf32> to vector<8x128xf32>
    %505 = vector.extract_strided_slice %493 {offsets = [0, 128], sizes = [8, 128], strides = [1, 1]} : vector<8x384xf32> to vector<8x128xf32>
    %506 = arith.addf %504, %505 : vector<8x128xf32>
    %507 = arith.negf %506 : vector<8x128xf32>
    %508 = math.exp %507 : vector<8x128xf32>
    %cst_136 = arith.constant 1.000000e+00 : f32
    %509 = vector.broadcast %cst_136 : f32 to vector<8x128xf32>
    %510 = arith.addf %509, %508 : vector<8x128xf32>
    %511 = arith.divf %509, %510 : vector<8x128xf32>
    %512 = vector.extract_strided_slice %495 {offsets = [0, 256], sizes = [8, 128], strides = [1, 1]} : vector<8x384xf32> to vector<8x128xf32>
    %513 = vector.extract_strided_slice %493 {offsets = [0, 256], sizes = [8, 128], strides = [1, 1]} : vector<8x384xf32> to vector<8x128xf32>
    %514 = vector.broadcast %28 : vector<1x128xf32> to vector<8x128xf32>
    %515 = arith.addf %513, %514 : vector<8x128xf32>
    %516 = arith.mulf %503, %515 : vector<8x128xf32>
    %517 = arith.addf %512, %516 : vector<8x128xf32>
    %518 = math.tanh %517 : vector<8x128xf32>
    %cst_137 = arith.constant 1.000000e+00 : f32
    %519 = vector.broadcast %cst_137 : f32 to vector<8x128xf32>
    %520 = arith.subf %519, %511 : vector<8x128xf32>
    %521 = arith.mulf %520, %518 : vector<8x128xf32>
    %522 = arith.mulf %511, %452 : vector<8x128xf32>
    %523 = arith.addf %521, %522 : vector<8x128xf32>
    %524 = arith.index_cast %458 : i32 to index
    %c0_138 = arith.constant 0 : index
    %525 = vector.load %arg7[%524, %c0_138] : memref<64x128xf32, #tpu.memory_space<vmem>>, vector<8x128xf32>
    tpu.vector_store %arg7[%524, %c0_138], %489 {strides = array<i32>} : memref<64x128xf32, #tpu.memory_space<vmem>>, vector<8x128xf32>,
    %526 = arith.index_cast %492 : i32 to index
    %c0_139 = arith.constant 0 : index
    %527 = vector.load %arg8[%526, %c0_139] : memref<64x128xf32, #tpu.memory_space<vmem>>, vector<8x128xf32>
    tpu.vector_store %arg8[%526, %c0_139], %523 {strides = array<i32>} : memref<64x128xf32, #tpu.memory_space<vmem>>, vector<8x128xf32>,
    %c7_i32_140 = arith.constant 7 : i32
    %c8_i32_141 = arith.constant 8 : i32
    %528 = arith.muli %c7_i32_140, %c8_i32_141 : i32
    %529 = tpu.assume_multiple %528, 8 : i32
    %cst_142 = arith.constant dense<0.000000e+00> : vector<8x384xf32>
    %530 = tpu.matmul %489, %22, %cst_142 {dimension_numbers = #tpu.dot_dimension_numbers<[1], [0], [0], [1], [0, 0, 1, 1], [], []>} : vector<8x128xf32>, vector<128x384xf32>, vector<8x384xf32> -> vector<8x384xf32>
    %531 = arith.index_cast %529 : i32 to index
    %c0_143 = arith.constant 0 : index
    %532 = vector.load %arg10[%531, %c0_143] : memref<64x384xf32, #tpu.memory_space<vmem>>, vector<8x384xf32>
    %533 = vector.extract_strided_slice %532 {offsets = [0, 0], sizes = [8, 128], strides = [1, 1]} : vector<8x384xf32> to vector<8x128xf32>
    %534 = vector.extract_strided_slice %530 {offsets = [0, 0], sizes = [8, 128], strides = [1, 1]} : vector<8x384xf32> to vector<8x128xf32>
    %535 = arith.addf %533, %534 : vector<8x128xf32>
    %536 = arith.negf %535 : vector<8x128xf32>
    %537 = math.exp %536 : vector<8x128xf32>
    %cst_144 = arith.constant 1.000000e+00 : f32
    %538 = vector.broadcast %cst_144 : f32 to vector<8x128xf32>
    %539 = arith.addf %538, %537 : vector<8x128xf32>
    %540 = arith.divf %538, %539 : vector<8x128xf32>
    %541 = vector.extract_strided_slice %532 {offsets = [0, 128], sizes = [8, 128], strides = [1, 1]} : vector<8x384xf32> to vector<8x128xf32>
    %542 = vector.extract_strided_slice %530 {offsets = [0, 128], sizes = [8, 128], strides = [1, 1]} : vector<8x384xf32> to vector<8x128xf32>
    %543 = arith.addf %541, %542 : vector<8x128xf32>
    %544 = arith.negf %543 : vector<8x128xf32>
    %545 = math.exp %544 : vector<8x128xf32>
    %cst_145 = arith.constant 1.000000e+00 : f32
    %546 = vector.broadcast %cst_145 : f32 to vector<8x128xf32>
    %547 = arith.addf %546, %545 : vector<8x128xf32>
    %548 = arith.divf %546, %547 : vector<8x128xf32>
    %549 = vector.extract_strided_slice %532 {offsets = [0, 256], sizes = [8, 128], strides = [1, 1]} : vector<8x384xf32> to vector<8x128xf32>
    %550 = vector.extract_strided_slice %530 {offsets = [0, 256], sizes = [8, 128], strides = [1, 1]} : vector<8x384xf32> to vector<8x128xf32>
    %551 = vector.broadcast %26 : vector<1x128xf32> to vector<8x128xf32>
    %552 = arith.addf %550, %551 : vector<8x128xf32>
    %553 = arith.mulf %540, %552 : vector<8x128xf32>
    %554 = arith.addf %549, %553 : vector<8x128xf32>
    %555 = math.tanh %554 : vector<8x128xf32>
    %cst_146 = arith.constant 1.000000e+00 : f32
    %556 = vector.broadcast %cst_146 : f32 to vector<8x128xf32>
    %557 = arith.subf %556, %548 : vector<8x128xf32>
    %558 = arith.mulf %557, %555 : vector<8x128xf32>
    %559 = arith.mulf %548, %489 : vector<8x128xf32>
    %560 = arith.addf %558, %559 : vector<8x128xf32>
    %c7_i32_147 = arith.constant 7 : i32
    %561 = arith.subi %c7_i32_147, %c7_i32_140 : i32
    %c8_i32_148 = arith.constant 8 : i32
    %562 = arith.muli %561, %c8_i32_148 : i32
    %563 = tpu.assume_multiple %562, 8 : i32
    %cst_149 = arith.constant dense<0.000000e+00> : vector<8x384xf32>
    %564 = tpu.matmul %523, %24, %cst_149 {dimension_numbers = #tpu.dot_dimension_numbers<[1], [0], [0], [1], [0, 0, 1, 1], [], []>} : vector<8x128xf32>, vector<128x384xf32>, vector<8x384xf32> -> vector<8x384xf32>
    %565 = arith.index_cast %563 : i32 to index
    %c0_150 = arith.constant 0 : index
    %566 = vector.load %arg11[%565, %c0_150] : memref<64x384xf32, #tpu.memory_space<vmem>>, vector<8x384xf32>
    %567 = vector.extract_strided_slice %566 {offsets = [0, 0], sizes = [8, 128], strides = [1, 1]} : vector<8x384xf32> to vector<8x128xf32>
    %568 = vector.extract_strided_slice %564 {offsets = [0, 0], sizes = [8, 128], strides = [1, 1]} : vector<8x384xf32> to vector<8x128xf32>
    %569 = arith.addf %567, %568 : vector<8x128xf32>
    %570 = arith.negf %569 : vector<8x128xf32>
    %571 = math.exp %570 : vector<8x128xf32>
    %cst_151 = arith.constant 1.000000e+00 : f32
    %572 = vector.broadcast %cst_151 : f32 to vector<8x128xf32>
    %573 = arith.addf %572, %571 : vector<8x128xf32>
    %574 = arith.divf %572, %573 : vector<8x128xf32>
    %575 = vector.extract_strided_slice %566 {offsets = [0, 128], sizes = [8, 128], strides = [1, 1]} : vector<8x384xf32> to vector<8x128xf32>
    %576 = vector.extract_strided_slice %564 {offsets = [0, 128], sizes = [8, 128], strides = [1, 1]} : vector<8x384xf32> to vector<8x128xf32>
    %577 = arith.addf %575, %576 : vector<8x128xf32>
    %578 = arith.negf %577 : vector<8x128xf32>
    %579 = math.exp %578 : vector<8x128xf32>
    %cst_152 = arith.constant 1.000000e+00 : f32
    %580 = vector.broadcast %cst_152 : f32 to vector<8x128xf32>
    %581 = arith.addf %580, %579 : vector<8x128xf32>
    %582 = arith.divf %580, %581 : vector<8x128xf32>
    %583 = vector.extract_strided_slice %566 {offsets = [0, 256], sizes = [8, 128], strides = [1, 1]} : vector<8x384xf32> to vector<8x128xf32>
    %584 = vector.extract_strided_slice %564 {offsets = [0, 256], sizes = [8, 128], strides = [1, 1]} : vector<8x384xf32> to vector<8x128xf32>
    %585 = vector.broadcast %28 : vector<1x128xf32> to vector<8x128xf32>
    %586 = arith.addf %584, %585 : vector<8x128xf32>
    %587 = arith.mulf %574, %586 : vector<8x128xf32>
    %588 = arith.addf %583, %587 : vector<8x128xf32>
    %589 = math.tanh %588 : vector<8x128xf32>
    %cst_153 = arith.constant 1.000000e+00 : f32
    %590 = vector.broadcast %cst_153 : f32 to vector<8x128xf32>
    %591 = arith.subf %590, %582 : vector<8x128xf32>
    %592 = arith.mulf %591, %589 : vector<8x128xf32>
    %593 = arith.mulf %582, %523 : vector<8x128xf32>
    %594 = arith.addf %592, %593 : vector<8x128xf32>
    %595 = arith.index_cast %529 : i32 to index
    %c0_154 = arith.constant 0 : index
    %596 = vector.load %arg7[%595, %c0_154] : memref<64x128xf32, #tpu.memory_space<vmem>>, vector<8x128xf32>
    tpu.vector_store %arg7[%595, %c0_154], %560 {strides = array<i32>} : memref<64x128xf32, #tpu.memory_space<vmem>>, vector<8x128xf32>,
    %597 = arith.index_cast %563 : i32 to index
    %c0_155 = arith.constant 0 : index
    %598 = vector.load %arg8[%597, %c0_155] : memref<64x128xf32, #tpu.memory_space<vmem>>, vector<8x128xf32>
    tpu.vector_store %arg8[%597, %c0_155], %594 {strides = array<i32>} : memref<64x128xf32, #tpu.memory_space<vmem>>, vector<8x128xf32>,
    %c8_i32_156 = arith.constant 8 : i32
    %c0_157 = arith.constant 0 : index
    %c0_158 = arith.constant 0 : index
    %599 = vector.load %arg12[%c0_157, %c0_158] : memref<8x128xf32, #tpu.memory_space<vmem>>, vector<8x128xf32>
    tpu.vector_store %arg12[%c0_157, %c0_158], %560 {strides = array<i32>} : memref<8x128xf32, #tpu.memory_space<vmem>>, vector<8x128xf32>,
    %c0_159 = arith.constant 0 : index
    %c0_160 = arith.constant 0 : index
    %600 = vector.load %arg13[%c0_159, %c0_160] : memref<8x128xf32, #tpu.memory_space<vmem>>, vector<8x128xf32>
    tpu.vector_store %arg13[%c0_159, %c0_160], %594 {strides = array<i32>} : memref<8x128xf32, #tpu.memory_space<vmem>>, vector<8x128xf32>,
    %c0_i32_161 = arith.constant 0 : i32
    %601 = arith.cmpi eq, %arg0, %c0_i32_161 : i32
    %602 = arith.extui %601 : i1 to i32
    %c0_i32_162 = arith.constant 0 : i32
    %603 = arith.cmpi ne, %602, %c0_i32_162 : i32
    scf.if %603 {
      %c0_163 = arith.constant 0 : index
      %c0_164 = arith.constant 0 : index
      %c0_165 = arith.constant 0 : index
      %604 = vector.load %arg9[%c0_163, %c0_164, %c0_165] : memref<2x8x128xf32, #tpu.memory_space<vmem>>, vector<1x8x128xf32>
      %605 = vector.shape_cast %604 : vector<1x8x128xf32> to vector<8x128xf32>
      %606 = vector.shape_cast %560 : vector<8x128xf32> to vector<1x8x128xf32>
      tpu.vector_store %arg9[%c0_163, %c0_164, %c0_165], %606 {strides = array<i32>} : memref<2x8x128xf32, #tpu.memory_space<vmem>>, vector<1x8x128xf32>,
      %c1_166 = arith.constant 1 : index
      %c0_167 = arith.constant 0 : index
      %c0_168 = arith.constant 0 : index
      %607 = vector.load %arg9[%c1_166, %c0_167, %c0_168] : memref<2x8x128xf32, #tpu.memory_space<vmem>>, vector<1x8x128xf32>
      %608 = vector.shape_cast %607 : vector<1x8x128xf32> to vector<8x128xf32>
      %609 = vector.shape_cast %594 : vector<8x128xf32> to vector<1x8x128xf32>
      tpu.vector_store %arg9[%c1_166, %c0_167, %c0_168], %609 {strides = array<i32>} : memref<2x8x128xf32, #tpu.memory_space<vmem>>, vector<1x8x128xf32>,
    } else {
    }
    return
  }
  func.func @transform_0(%arg0: i32) -> (i32, i32) {
    %c0_i32 = arith.constant 0 : i32
    %c0_i32_0 = arith.constant 0 : i32
    return %arg0, %c0_i32 : i32, i32
  }
  func.func @transform_1(%arg0: i32) -> (i32, i32) {
    %c0_i32 = arith.constant 0 : i32
    %0 = arith.subi %c0_i32, %arg0 : i32
    %c0_i32_0 = arith.constant 0 : i32
    %c0_i32_1 = arith.constant 0 : i32
    return %0, %c0_i32_0 : i32, i32
  }
  func.func @transform_2(%arg0: i32) -> (i32, i32, i32) {
    %c0_i32 = arith.constant 0 : i32
    %c0_i32_0 = arith.constant 0 : i32
    %c0_i32_1 = arith.constant 0 : i32
    %c0_i32_2 = arith.constant 0 : i32
    return %c0_i32, %c0_i32_0, %c0_i32_1 : i32, i32, i32
  }
  func.func @transform_3(%arg0: i32) -> (i32, i32, i32) {
    %c0_i32 = arith.constant 0 : i32
    %c0_i32_0 = arith.constant 0 : i32
    %c0_i32_1 = arith.constant 0 : i32
    %c0_i32_2 = arith.constant 0 : i32
    return %c0_i32, %c0_i32_0, %c0_i32_1 : i32, i32, i32
  }
  func.func @transform_4(%arg0: i32) -> (i32, i32, i32) {
    %c0_i32 = arith.constant 0 : i32
    %c0_i32_0 = arith.constant 0 : i32
    %c0_i32_1 = arith.constant 0 : i32
    %c0_i32_2 = arith.constant 0 : i32
    return %c0_i32, %c0_i32_0, %c0_i32_1 : i32, i32, i32
  }
  func.func @transform_5(%arg0: i32) -> (i32, i32, i32) {
    %c0_i32 = arith.constant 0 : i32
    %c0_i32_0 = arith.constant 0 : i32
    %c0_i32_1 = arith.constant 0 : i32
    %c0_i32_2 = arith.constant 0 : i32
    return %c0_i32, %c0_i32_0, %c0_i32_1 : i32, i32, i32
  }
  func.func @transform_6(%arg0: i32) -> (i32, i32) {
    %c0_i32 = arith.constant 0 : i32
    %c0_i32_0 = arith.constant 0 : i32
    return %arg0, %c0_i32 : i32, i32
  }
  func.func @transform_7(%arg0: i32) -> (i32, i32) {
    %c0_i32 = arith.constant 0 : i32
    %0 = arith.subi %c0_i32, %arg0 : i32
    %c0_i32_0 = arith.constant 0 : i32
    %c0_i32_1 = arith.constant 0 : i32
    return %0, %c0_i32_0 : i32, i32
  }
  func.func @transform_8(%arg0: i32) -> (i32, i32, i32) {
    %c0_i32 = arith.constant 0 : i32
    %c0_i32_0 = arith.constant 0 : i32
    %c0_i32_1 = arith.constant 0 : i32
    %c0_i32_2 = arith.constant 0 : i32
    return %c0_i32, %c0_i32_0, %c0_i32_1 : i32, i32, i32
  }
}

module attributes {stable_mosaic.version = 11 : i64} {
  func.func @_linear_kernel(%arg0: memref<2x8x128xf32, #tpu.memory_space<vmem>>, %arg1: memref<2x128x64xf32, #tpu.memory_space<vmem>>, %arg2: memref<1x64xf32, #tpu.memory_space<vmem>>, %arg3: memref<8x64xf32, #tpu.memory_space<vmem>>) attributes {dimension_semantics = [], scalar_prefetch = 0 : i64, scratch_operands = 0 : i64, tpu.core_type = #tpu.core_type<tc>} {
    %c0 = arith.constant 0 : index
    %c0_0 = arith.constant 0 : index
    %c0_1 = arith.constant 0 : index
    %0 = vector.load %arg0[%c0, %c0_0, %c0_1] : memref<2x8x128xf32, #tpu.memory_space<vmem>>, vector<1x8x128xf32>
    %1 = vector.shape_cast %0 : vector<1x8x128xf32> to vector<8x128xf32>
    %c0_2 = arith.constant 0 : index
    %c0_3 = arith.constant 0 : index
    %c0_4 = arith.constant 0 : index
    %2 = vector.load %arg1[%c0_2, %c0_3, %c0_4] : memref<2x128x64xf32, #tpu.memory_space<vmem>>, vector<1x128x64xf32>
    %3 = vector.shape_cast %2 : vector<1x128x64xf32> to vector<128x64xf32>
    %cst = arith.constant dense<0.000000e+00> : vector<8x64xf32>
    %4 = tpu.matmul %1, %3, %cst {dimension_numbers = #tpu.dot_dimension_numbers<[1], [0], [0], [1], [0, 0, 1, 1], [], []>} : vector<8x128xf32>, vector<128x64xf32>, vector<8x64xf32> -> vector<8x64xf32>
    %c1 = arith.constant 1 : index
    %c0_5 = arith.constant 0 : index
    %c0_6 = arith.constant 0 : index
    %5 = vector.load %arg0[%c1, %c0_5, %c0_6] : memref<2x8x128xf32, #tpu.memory_space<vmem>>, vector<1x8x128xf32>
    %6 = vector.shape_cast %5 : vector<1x8x128xf32> to vector<8x128xf32>
    %c1_7 = arith.constant 1 : index
    %c0_8 = arith.constant 0 : index
    %c0_9 = arith.constant 0 : index
    %7 = vector.load %arg1[%c1_7, %c0_8, %c0_9] : memref<2x128x64xf32, #tpu.memory_space<vmem>>, vector<1x128x64xf32>
    %8 = vector.shape_cast %7 : vector<1x128x64xf32> to vector<128x64xf32>
    %cst_10 = arith.constant dense<0.000000e+00> : vector<8x64xf32>
    %9 = tpu.matmul %6, %8, %cst_10 {dimension_numbers = #tpu.dot_dimension_numbers<[1], [0], [0], [1], [0, 0, 1, 1], [], []>} : vector<8x128xf32>, vector<128x64xf32>, vector<8x64xf32> -> vector<8x64xf32>
    %10 = arith.addf %4, %9 : vector<8x64xf32>
    %c0_11 = arith.constant 0 : index
    %c0_12 = arith.constant 0 : index
    %11 = vector.load %arg2[%c0_11, %c0_12] : memref<1x64xf32, #tpu.memory_space<vmem>>, vector<1x64xf32>
    %12 = vector.broadcast %11 : vector<1x64xf32> to vector<8x64xf32>
    %13 = arith.addf %10, %12 : vector<8x64xf32>
    %c0_13 = arith.constant 0 : index
    %c0_14 = arith.constant 0 : index
    %14 = vector.load %arg3[%c0_13, %c0_14] : memref<8x64xf32, #tpu.memory_space<vmem>>, vector<8x64xf32>
    tpu.vector_store %arg3[%c0_13, %c0_14], %13 {strides = array<i32>} : memref<8x64xf32, #tpu.memory_space<vmem>>, vector<8x64xf32>,
    return
  }
}

</mosaic_0001>

<llo_original>
// kernel: video_encoder_forward.5
$region0: #{video_encoder_forward.5}
  #allocation0 [shape = 'u32[]', space=smem, size = 0x4, offset = 0x4, fixed_abs, tag = 'smem constant byte address 0x4 - core index']
  #allocation1 [shape = 'u32[144,128]{1,0:T(1,128)}', space=vmem, size = 0x12000, scoped, tag = 'internal scratch']
  %s0 = inlined_call_operand.vmem [shape: f32[2,8,128], index: 0, kind: input, shape index: {}]
  %s1 = inlined_call_operand.vmem [shape: f32[2,128,64], index: 1, kind: input, shape index: {}]
  %s2 = inlined_call_operand.vmem [shape: f32[1,64], index: 2, kind: input, shape index: {}]
  %s3 = inlined_call_operand.vmem [shape: f32[8,64], index: 3, kind: output, shape index: {}]
  %s4 = sld [smem:[#allocation0]]
  $region22: #{video_encoder_forward.5} parent=0
    _
  %s6 = ssub.s32 1, %s4
  %s7 = scalar_select 0, %s6, %s4
  // Predicated region
  $region2: #{video_encoder_forward.5} parent=0 // pred_check
    _
  $region3: #{video_encoder_forward.5} parent=0 // pred_check_branch
    %9 = sbr.rel (0) target = $region5
  $region4: #{video_encoder_forward.5} parent=0 // pred_region
    _
  $region5: #{video_encoder_forward.5} parent=0 // pred_fallthru
    _
  // Predicated region
  $region6: #{video_encoder_forward.5} parent=0 // pred_check
    _
  $region7: #{video_encoder_forward.5} parent=0 // pred_check_branch
    %11 = sbr.rel (0) target = $region9
  $region8: #{video_encoder_forward.5} parent=0 // pred_region
    _
  $region9: #{video_encoder_forward.5} parent=0 // pred_fallthru
    _
  // Predicated region
  $region10: #{video_encoder_forward.5} parent=0 // pred_check
    _
  $region11: #{video_encoder_forward.5} parent=0 // pred_check_branch
    %13 = sbr.rel (0) target = $region13
  $region12: #{video_encoder_forward.5} parent=0 // pred_region
    _
  $region13: #{video_encoder_forward.5} parent=0 // pred_fallthru
    _
  %v14 = vld [vmem:[%s0] sm:$0xff]
  %v15 = vld [vmem:[%s1] sm:$0xff]
  %v16 = vld [vmem:[%s1 + $0x8] sm:$0xff]
  %v17 = vld [vmem:[%s1 + $0x10] sm:$0xff]
  %v18 = vld [vmem:[%s1 + $0x18] sm:$0xff]
  %v19 = vld [vmem:[%s1 + $0x20] sm:$0xff]
  %v20 = vld [vmem:[%s1 + $0x28] sm:$0xff]
  %v21 = vld [vmem:[%s1 + $0x30] sm:$0xff]
  %v22 = vld [vmem:[%s1 + $0x38] sm:$0xff]
  %v23 = vld [vmem:[%s1 + $0x40] sm:$0xff]
  %v24 = vld [vmem:[%s1 + $0x48] sm:$0xff]
  %v25 = vld [vmem:[%s1 + $0x50] sm:$0xff]
  %v26 = vld [vmem:[%s1 + $0x58] sm:$0xff]
  %v27 = vld [vmem:[%s1 + $0x60] sm:$0xff]
  %v28 = vld [vmem:[%s1 + $0x68] sm:$0xff]
  %v29 = vld [vmem:[%s1 + $0x70] sm:$0xff]
  %v30 = vld [vmem:[%s1 + $0x78] sm:$0xff]
  %s31 = scalar_lea.vmem %s0, 8
  %v32 = vld [vmem:[%s31] sm:$0xff]
  %s33 = scalar_lea.vmem %s1, 128
  %v34 = vld [vmem:[%s33] sm:$0xff]
  %v35 = vld [vmem:[%s33 + $0x8] sm:$0xff]
  %v36 = vld [vmem:[%s33 + $0x10] sm:$0xff]
  %v37 = vld [vmem:[%s33 + $0x18] sm:$0xff]
  %v38 = vld [vmem:[%s33 + $0x20] sm:$0xff]
  %v39 = vld [vmem:[%s33 + $0x28] sm:$0xff]
  %v40 = vld [vmem:[%s33 + $0x30] sm:$0xff]
  %v41 = vld [vmem:[%s33 + $0x38] sm:$0xff]
  %v42 = vld [vmem:[%s33 + $0x40] sm:$0xff]
  %v43 = vld [vmem:[%s33 + $0x48] sm:$0xff]
  %v44 = vld [vmem:[%s33 + $0x50] sm:$0xff]
  %v45 = vld [vmem:[%s33 + $0x58] sm:$0xff]
  %v46 = vld [vmem:[%s33 + $0x60] sm:$0xff]
  %v47 = vld [vmem:[%s33 + $0x68] sm:$0xff]
  %v48 = vld [vmem:[%s33 + $0x70] sm:$0xff]
  %v49 = vld [vmem:[%s33 + $0x78] sm:$0xff]
  %50 = vmatprep.subr.mxu0 0.0
  %51 = vmatpush1.msra.mxu0 %v49
  %52 = vmatprep.subr.mxu0 0.0
  %53 = vmatpush1.msra.mxu0 %v48
  %54 = vmatprep.subr.mxu0 0.0
  %55 = vmatpush1.msra.mxu0 %v47
  %56 = vmatprep.subr.mxu0 0.0
  %57 = vmatpush1.msra.mxu0 %v46
  %58 = vmatprep.subr.mxu0 0.0
  %59 = vmatpush1.msra.mxu0 %v45
  %60 = vmatprep.subr.mxu0 0.0
  %61 = vmatpush1.msra.mxu0 %v44
  %62 = vmatprep.subr.mxu0 0.0
  %63 = vmatpush1.msra.mxu0 %v43
  %64 = vmatprep.subr.mxu0 0.0
  %65 = vmatpush1.msra.mxu0 %v42
  %66 = vmatprep.subr.mxu0 0.0
  %67 = vmatpush1.msra.mxu0 %v41
  %68 = vmatprep.subr.mxu0 0.0
  %69 = vmatpush1.msra.mxu0 %v40
  %70 = vmatprep.subr.mxu0 0.0
  %71 = vmatpush1.msra.mxu0 %v39
  %72 = vmatprep.subr.mxu0 0.0
  %73 = vmatpush1.msra.mxu0 %v38
  %74 = vmatprep.subr.mxu0 0.0
  %75 = vmatpush1.msra.mxu0 %v37
  %76 = vmatprep.subr.mxu0 0.0
  %77 = vmatpush1.msra.mxu0 %v36
  %78 = vmatprep.subr.mxu0 0.0
  %79 = vmatpush1.msra.mxu0 %v35
  %80 = vmatprep.subr.mxu0 0.0
  %81 = vmatpush1.msra.mxu0 %v34
  %82 = vmatprep.subr.mxu0 0.0
  %83 = vmatpush2.msra.mxu0 0.0
  %84 = vmatprep.subr.mxu0 0.0
  %85 = vmatpush2.msra.mxu0 0.0
  %86 = vmatprep.subr.mxu0 0.0
  %87 = vmatpush2.msra.mxu0 0.0
  %88 = vmatprep.subr.mxu0 0.0
  %89 = vmatpush2.msra.mxu0 0.0
  %90 = vmatprep.subr.mxu0 0.0
  %91 = vmatpush2.msra.mxu0 0.0
  %92 = vmatprep.subr.mxu0 0.0
  %93 = vmatpush2.msra.mxu0 0.0
  %94 = vmatprep.subr.mxu0 0.0
  %95 = vmatpush2.msra.mxu0 0.0
  %96 = vmatprep.subr.mxu0 0.0
  %97 = vmatpush2.msra.mxu0 0.0
  %98 = vmatprep.subr.mxu0 0.0
  %99 = vmatpush2.msra.mxu0 0.0
  %100 = vmatprep.subr.mxu0 0.0
  %101 = vmatpush2.msra.mxu0 0.0
  %102 = vmatprep.subr.mxu0 0.0
  %103 = vmatpush2.msra.mxu0 0.0
  %104 = vmatprep.subr.mxu0 0.0
  %105 = vmatpush2.msra.mxu0 0.0
  %106 = vmatprep.subr.mxu0 0.0
  %107 = vmatpush2.msra.mxu0 0.0
  %108 = vmatprep.subr.mxu0 0.0
  %109 = vmatpush2.msra.mxu0 0.0
  %110 = vmatprep.subr.mxu0 0.0
  %111 = vmatpush2.msra.mxu0 0.0
  %112 = vmatprep.subr.mxu0 0.0
  %113 = vmatpush2.msra.mxu0 0.0
  %114 = vmatprep.mubr.f32.mxu0 0.0
  %115 = vmatmul.mubr.f32.gmra.mxu0 %v32
  %v116 = vpop.f32.mrf.mxu0
  %v117 = vadd.f32 0.0, %v116
  %v118 = vpop.f32.mrf.mxu0
  %119 = vdwg.mxu0
  %120 = vmatprep.subr.mxu0 0.0
  %121 = vmatpush1.msra.mxu0 %v30
  %122 = vmatprep.subr.mxu0 0.0
  %123 = vmatpush1.msra.mxu0 %v29
  %124 = vmatprep.subr.mxu0 0.0
  %125 = vmatpush1.msra.mxu0 %v28
  %126 = vmatprep.subr.mxu0 0.0
  %127 = vmatpush1.msra.mxu0 %v27
  %128 = vmatprep.subr.mxu0 0.0
  %129 = vmatpush1.msra.mxu0 %v26
  %130 = vmatprep.subr.mxu0 0.0
  %131 = vmatpush1.msra.mxu0 %v25
  %132 = vmatprep.subr.mxu0 0.0
  %133 = vmatpush1.msra.mxu0 %v24
  %134 = vmatprep.subr.mxu0 0.0
  %135 = vmatpush1.msra.mxu0 %v23
  %136 = vmatprep.subr.mxu0 0.0
  %137 = vmatpush1.msra.mxu0 %v22
  %138 = vmatprep.subr.mxu0 0.0
  %139 = vmatpush1.msra.mxu0 %v21
  %140 = vmatprep.subr.mxu0 0.0
  %141 = vmatpush1.msra.mxu0 %v20
  %142 = vmatprep.subr.mxu0 0.0
  %143 = vmatpush1.msra.mxu0 %v19
  %144 = vmatprep.subr.mxu0 0.0
  %145 = vmatpush1.msra.mxu0 %v18
  %146 = vmatprep.subr.mxu0 0.0
  %147 = vmatpush1.msra.mxu0 %v17
  %148 = vmatprep.subr.mxu0 0.0
  %149 = vmatpush1.msra.mxu0 %v16
  %150 = vmatprep.subr.mxu0 0.0
  %151 = vmatpush1.msra.mxu0 %v15
  %152 = vmatprep.subr.mxu0 0.0
  %153 = vmatpush2.msra.mxu0 0.0
  %154 = vmatprep.subr.mxu0 0.0
  %155 = vmatpush2.msra.mxu0 0.0
  %156 = vmatprep.subr.mxu0 0.0
  %157 = vmatpush2.msra.mxu0 0.0
  %158 = vmatprep.subr.mxu0 0.0
  %159 = vmatpush2.msra.mxu0 0.0
  %160 = vmatprep.subr.mxu0 0.0
  %161 = vmatpush2.msra.mxu0 0.0
  %162 = vmatprep.subr.mxu0 0.0
  %163 = vmatpush2.msra.mxu0 0.0
  %164 = vmatprep.subr.mxu0 0.0
  %165 = vmatpush2.msra.mxu0 0.0
  %166 = vmatprep.subr.mxu0 0.0
  %167 = vmatpush2.msra.mxu0 0.0
  %168 = vmatprep.subr.mxu0 0.0
  %169 = vmatpush2.msra.mxu0 0.0
  %170 = vmatprep.subr.mxu0 0.0
  %171 = vmatpush2.msra.mxu0 0.0
  %172 = vmatprep.subr.mxu0 0.0
  %173 = vmatpush2.msra.mxu0 0.0
  %174 = vmatprep.subr.mxu0 0.0
  %175 = vmatpush2.msra.mxu0 0.0
  %176 = vmatprep.subr.mxu0 0.0
  %177 = vmatpush2.msra.mxu0 0.0
  %178 = vmatprep.subr.mxu0 0.0
  %179 = vmatpush2.msra.mxu0 0.0
  %180 = vmatprep.subr.mxu0 0.0
  %181 = vmatpush2.msra.mxu0 0.0
  %182 = vmatprep.subr.mxu0 0.0
  %183 = vmatpush2.msra.mxu0 0.0
  %184 = vmatprep.mubr.f32.mxu0 0.0
  %185 = vmatmul.mubr.f32.gmra.mxu0 %v14
  %v186 = vpop.f32.mrf.mxu0
  %v187 = vadd.f32 %v117, %v186
  %v188 = vpop.f32.mrf.mxu0
  %189 = vdwg.mxu0
  %v190 = vld [vmem:[%s2] sm:$0x1]
  %v192 = vlaneseq
  %v193 = vshrl.u32 %v192, 7
  %v194 = vsub.s32 0, %v193
  %v195 = vrot.slane %v190, %v194
  %v197 = vadd.f32 %v187, %v195
  %vm198 = vcmask 523264
  %199 = vst.msk [vmem:[%s3] sm:$0xff] %vm198, %v197
  // Predicated region
  $region14: #{video_encoder_forward.5} parent=0 // pred_check
    _
  $region15: #{video_encoder_forward.5} parent=0 // pred_check_branch
    %201 = sbr.rel (0) target = $region17
  $region16: #{video_encoder_forward.5} parent=0 // pred_region
    _
  $region17: #{video_encoder_forward.5} parent=0 // pred_fallthru
    _
  // Predicated region
  $region18: #{video_encoder_forward.5} parent=0 // pred_check
    _
  $region19: #{video_encoder_forward.5} parent=0 // pred_check_branch
    %203 = sbr.rel (0) target = $region21
  $region20: #{video_encoder_forward.5} parent=0 // pred_region
    _
  $region21: #{video_encoder_forward.5} parent=0 // pred_fallthru
    _

// kernel: video_encoder_forward.3
$region0: #{video_encoder_forward.3}
  #allocation0 [shape = 'u32[]', space=smem, size = 0x4, offset = 0x4, fixed_abs, tag = 'smem constant byte address 0x4 - core index']
  #allocation1 [shape = 'u32[144,128]{1,0:T(1,128)}', space=vmem, size = 0x12000, scoped, tag = 'internal scratch']
  #allocation2 [shape = 'f32[64,384]{1,0:T(8,128)}', space=vmem, size = 0x18000, scoped, tag = 'scratch operand']
  #allocation3 [shape = 'f32[64,384]{1,0:T(8,128)}', space=vmem, size = 0x18000, scoped, tag = 'scratch operand']
  #allocation4 [shape = 'f32[8,128]{1,0:T(8,128)}', space=vmem, size = 0x1000, scoped, tag = 'scratch operand']
  #allocation5 [shape = 'f32[8,128]{1,0:T(8,128)}', space=vmem, size = 0x1000, scoped, tag = 'scratch operand']
  %s0 = inlined_call_operand.vmem [shape: f32[64,16], index: 0, kind: input, shape index: {}, may-alias: {0,1}]
  %s1 = inlined_call_operand.vmem [shape: f32[64,16], index: 1, kind: input, shape index: {}, may-alias: {0,1}]
  %s2 = inlined_call_operand.vmem [shape: f32[2,16,384], index: 2, kind: input, shape index: {}]
  %s3 = inlined_call_operand.hbm [shape: f32[2,128,384], index: 3, kind: input, shape index: {}]
  %s4 = inlined_call_operand.vmem [shape: f32[2,1,384], index: 4, kind: input, shape index: {}]
  %s5 = inlined_call_operand.vmem [shape: f32[2,1,128], index: 5, kind: input, shape index: {}]
  %s6 = inlined_call_operand.vmem [shape: f32[64,128], index: 6, kind: output, shape index: {0}]
  %s7 = inlined_call_operand.vmem [shape: f32[64,128], index: 7, kind: output, shape index: {1}]
  %s8 = inlined_call_operand.hbm [shape: f32[2,8,128], index: 8, kind: output, shape index: {2}]
  %9 = xla_tuple %s6, %s7, %s8
  %s10 = sld [smem:[#allocation0]]
  $region62: #{video_encoder_forward.3} parent=0
    _
  %s12 = ssub.s32 1, %s10
  %s13 = scalar_select 0, %s12, %s10
  $region1: #{video_encoder_forward.3} parent=0
    #allocation6 [shape = 'u8[393216]{0}', space=vmem, size = 0x60000, scoped, tag = 'input window, operand 3, single buffered']
    #allocation7 [shape = 's32[1]{0}', space=sflag, size = 0x4, scoped, tag = 'scoped memory for video_encoder_forward.3']
    #allocation8 [shape = 's32[1]{0}', space=sflag, size = 0x4, scoped, tag = 'scoped memory for video_encoder_forward.3']
    #allocation9 [shape = 'u8[8192]{0}', space=vmem, size = 0x2000, scoped, tag = 'output window, operand 2, single buffered']
    %14 = vsyncpa [#allocation7], 0
    %15 = vsyncpa [#allocation8], 0
    // Predicated region
    $region2: #{video_encoder_forward.3} parent=1 // pred_check
      _
    $region3: #{video_encoder_forward.3} parent=1 // pred_check_branch
      %17 = sbr.rel (0) target = $region5
    $region4: #{video_encoder_forward.3} parent=1 // pred_region
      _
    $region5: #{video_encoder_forward.3} parent=1 // pred_fallthru
      _
    // Predicated region
    $region6: #{video_encoder_forward.3} parent=1 // pred_check
      _
    $region7: #{video_encoder_forward.3} parent=1 // pred_check_branch
      %19 = sbr.rel (0) target = $region9
    $region8: #{video_encoder_forward.3} parent=1 // pred_region
      %s20 = ssub.s32 0, 0
      %s21 = smul.u32 8, %s20
      %p22 = scmp.lt.s32.totalorder %s21, 7
      %s23 = scalar_select %p22, %s21, 7
      %s24 = smul.addr %s23, 8
      %s25 = scalar_lea.vmem %s1, %s24
      %s26 = ssub.s32 0, 0
      %s27 = smul.u32 8, %s26
    $region9: #{video_encoder_forward.3} parent=1 // pred_fallthru
      _
    // Predicated region
    $region10: #{video_encoder_forward.3} parent=1 // pred_check
      _
    $region11: #{video_encoder_forward.3} parent=1 // pred_check_branch
      %29 = sbr.rel (0) target = $region13
    $region12: #{video_encoder_forward.3} parent=1 // pred_region
      _
    $region13: #{video_encoder_forward.3} parent=1 // pred_fallthru
      _
    // Predicated region
    $region14: #{video_encoder_forward.3} parent=1 // pred_check
      _
    $region15: #{video_encoder_forward.3} parent=1 // pred_check_branch
      %31 = sbr.rel (0) target = $region17
    $region16: #{video_encoder_forward.3} parent=1 // pred_region
      %s33 = ssub.s32 12288, 12288
      %34 = vsyncadd [#allocation7], %s33
      %s35 = sshll.u32 [#allocation6], 4
      %s36 = int_to_ptr.vmem [resolvable:$true] %s35
      %41 = dma.hbm_to_vmem [thread:$0]  %s3, 12288, %s36, [#allocation7], 384, 384, 24
    $region17: #{video_encoder_forward.3} parent=1 // pred_fallthru
      _
    // Predicated region
    $region18: #{video_encoder_forward.3} parent=1 // pred_check
      _
    $region19: #{video_encoder_forward.3} parent=1 // pred_check_branch
      %43 = sbr.rel (0) target = $region21
    $region20: #{video_encoder_forward.3} parent=1 // pred_region
      _
    $region21: #{video_encoder_forward.3} parent=1 // pred_fallthru
      _
    // Predicated region
    $region22: #{video_encoder_forward.3} parent=1 // pred_check
      _
    $region23: #{video_encoder_forward.3} parent=1 // pred_check_branch
      %45 = sbr.rel (0) target = $region25
    $region24: #{video_encoder_forward.3} parent=1 // pred_region
      _
    $region25: #{video_encoder_forward.3} parent=1 // pred_fallthru
      _
    // Predicated region
    $region26: #{video_encoder_forward.3} parent=1 // pred_check
      _
    $region27: #{video_encoder_forward.3} parent=1 // pred_check_branch
      %47 = sbr.rel (0) target = $region29
    $region28: #{video_encoder_forward.3} parent=1 // pred_region
      %48 = dma.done [#allocation7], 12288
    $region29: #{video_encoder_forward.3} parent=1 // pred_fallthru
      _
    %s49 = ssub.s32 0, 0
    %s50 = smul.u32 8, %s49
    %p51 = scmp.lt.s32.totalorder %s50, 7
    %s52 = scalar_select %p51, %s50, 7
    %s53 = smul.addr %s52, 8
    %s54 = scalar_lea.vmem %s1, %s53
    %s55 = ssub.s32 0, 0
    %s56 = smul.u32 8, %s55
    %p57 = scmp.lt.s32.totalorder %s56, 7
    %s58 = scalar_select %p57, %s56, 7
    %s59 = smul.addr %s58, 8
    %s60 = scalar_lea.vmem %s7, %s59
    %s61 = ssub.s32 0, 0
    %s62 = smul.u32 8, %s61
    %p63 = scmp.lt.s32.totalorder %s62, 7
    %s64 = scalar_select %p63, %s62, 7
    %s65 = smul.addr %s64, 8
    %s66 = scalar_lea.vmem %s1, %s65
    %s67 = ssub.s32 0, 0
    %s68 = smul.u32 8, %s67
    %s69 = ssub.s32 0, 0
    %s70 = smul.u32 8, %s69
    %p71 = scmp.lt.s32.totalorder %s70, 7
    %s72 = scalar_select %p71, %s70, 7
    %s73 = smul.addr %s72, 8
    %s74 = scalar_lea.vmem %s7, %s73
    %s75 = ssub.s32 0, 0
    %s76 = smul.u32 8, %s75
    %v77 = vld [vmem:[%s0] sm:$0xff]
    %v78 = vld [vmem:[%s0 + $0x8] sm:$0xff]
    %v79 = vld [vmem:[%s0 + $0x10] sm:$0xff]
    %v80 = vld [vmem:[%s0 + $0x18] sm:$0xff]
    %v81 = vld [vmem:[%s0 + $0x20] sm:$0xff]
    %v82 = vld [vmem:[%s0 + $0x28] sm:$0xff]
    %v83 = vld [vmem:[%s0 + $0x30] sm:$0xff]
    %v84 = vld [vmem:[%s0 + $0x38] sm:$0xff]
    %v85 = vld [vmem:[%s2] sm:$0xff]
    %v86 = vld [vmem:[%s2 + $0x8] sm:$0xff]
    %v87 = vld [vmem:[%s2 + $0x10] sm:$0xff]
    %v88 = vld [vmem:[%s2 + $0x18] sm:$0xff]
    %v89 = vld [vmem:[%s2 + $0x20] sm:$0xff]
    %v90 = vld [vmem:[%s2 + $0x28] sm:$0xff]
    %v91 = vld [vmem:[%s66] sm:$0xff]
    %v92 = vld [vmem:[%s66 + $0x8] sm:$0xff]
    %v93 = vld [vmem:[%s66 + $0x10] sm:$0xff]
    %v94 = vld [vmem:[%s66 + $0x18] sm:$0xff]
    %v95 = vld [vmem:[%s66 + $0x20] sm:$0xff]
    %v96 = vld [vmem:[%s66 + $0x28] sm:$0xff]
    %v97 = vld [vmem:[%s66 + $0x30] sm:$0xff]
    %v98 = vld [vmem:[%s66 + $0x38] sm:$0xff]
    %s99 = scalar_lea.vmem %s2, 48
    %v100 = vld [vmem:[%s99] sm:$0xff]
    %v101 = vld [vmem:[%s99 + $0x8] sm:$0xff]
    %v102 = vld [vmem:[%s99 + $0x10] sm:$0xff]
    %v103 = vld [vmem:[%s99 + $0x18] sm:$0xff]
    %v104 = vld [vmem:[%s99 + $0x20] sm:$0xff]
    %v105 = vld [vmem:[%s99 + $0x28] sm:$0xff]
    %v106 = vld [vmem:[%s4] sm:$0x7]
    %v108 = vlaneseq
    %v109 = vshrl.u32 %v108, 7
    %v110 = vsub.s32 0, %v109
    %v111 = vrot.slane %v106, %v110
    %v112 = vlaneseq
    %v113 = vshrl.u32 %v112, 7
    %v114 = vsub.s32 1, %v113
    %v115 = vrot.slane %v106, %v114
    %v116 = vlaneseq
    %v117 = vshrl.u32 %v116, 7
    %v118 = vsub.s32 2, %v117
    %v119 = vrot.slane %v106, %v118
    %vm123 = vcmask 130048
    %v125 = vsel %vm123, %v77, 0
    %v128 = vsel %vm123, %v78, 0
    %v131 = vsel %vm123, %v79, 0
    %v134 = vsel %vm123, %v80, 0
    %v137 = vsel %vm123, %v81, 0
    %v140 = vsel %vm123, %v82, 0
    %v143 = vsel %vm123, %v83, 0
    %v146 = vsel %vm123, %v84, 0
    %148 = vmatprep.subr.mxu0 0.0
    %149 = vmatpush1.msra.mxu0 0.0
    %150 = vmatprep.subr.mxu0 0.0
    %151 = vmatpush1.msra.mxu0 0.0
    %152 = vmatprep.subr.mxu0 0.0
    %153 = vmatpush1.msra.mxu0 0.0
    %154 = vmatprep.subr.mxu0 0.0
    %155 = vmatpush1.msra.mxu0 0.0
    %156 = vmatprep.subr.mxu0 0.0
    %157 = vmatpush1.msra.mxu0 0.0
    %158 = vmatprep.subr.mxu0 0.0
    %159 = vmatpush1.msra.mxu0 0.0
    %160 = vmatprep.subr.mxu0 0.0
    %161 = vmatpush1.msra.mxu0 0.0
    %162 = vmatprep.subr.mxu0 0.0
    %163 = vmatpush1.msra.mxu0 0.0
    %164 = vmatprep.subr.mxu0 0.0
    %165 = vmatpush1.msra.mxu0 0.0
    %166 = vmatprep.subr.mxu0 0.0
    %167 = vmatpush1.msra.mxu0 0.0
    %168 = vmatprep.subr.mxu0 0.0
    %169 = vmatpush1.msra.mxu0 0.0
    %170 = vmatprep.subr.mxu0 0.0
    %171 = vmatpush1.msra.mxu0 0.0
    %172 = vmatprep.subr.mxu0 0.0
    %173 = vmatpush1.msra.mxu0 0.0
    %174 = vmatprep.subr.mxu0 0.0
    %175 = vmatpush1.msra.mxu0 0.0
    %176 = vmatprep.subr.mxu0 %v89
    %177 = vmatpush1.msra.mxu0 %v88
    %178 = vmatprep.subr.mxu0 %v86
    %179 = vmatpush1.msra.mxu0 %v85
    %180 = vmatprep.subr.mxu0 0.0
    %181 = vmatpush2.msra.mxu0 0.0
    %182 = vmatprep.subr.mxu0 0.0
    %183 = vmatpush2.msra.mxu0 0.0
    %184 = vmatprep.subr.mxu0 0.0
    %185 = vmatpush2.msra.mxu0 0.0
    %186 = vmatprep.subr.mxu0 0.0
    %187 = vmatpush2.msra.mxu0 0.0
    %188 = vmatprep.subr.mxu0 0.0
    %189 = vmatpush2.msra.mxu0 0.0
    %190 = vmatprep.subr.mxu0 0.0
    %191 = vmatpush2.msra.mxu0 0.0
    %192 = vmatprep.subr.mxu0 0.0
    %193 = vmatpush2.msra.mxu0 0.0
    %194 = vmatprep.subr.mxu0 0.0
    %195 = vmatpush2.msra.mxu0 0.0
    %196 = vmatprep.subr.mxu0 0.0
    %197 = vmatpush2.msra.mxu0 0.0
    %198 = vmatprep.subr.mxu0 0.0
    %199 = vmatpush2.msra.mxu0 0.0
    %200 = vmatprep.subr.mxu0 0.0
    %201 = vmatpush2.msra.mxu0 0.0
    %202 = vmatprep.subr.mxu0 0.0
    %203 = vmatpush2.msra.mxu0 0.0
    %204 = vmatprep.subr.mxu0 0.0
    %205 = vmatpush2.msra.mxu0 0.0
    %206 = vmatprep.subr.mxu0 0.0
    %207 = vmatpush2.msra.mxu0 0.0
    %208 = vmatprep.subr.mxu0 0.0
    %209 = vmatpush2.msra.mxu0 0.0
    %210 = vmatprep.subr.mxu0 0.0
    %211 = vmatpush2.msra.mxu0 0.0
    %212 = vmatprep.mubr.f32.mxu0 0.0
    %213 = vmatmul.mubr.f32.gmra.mxu0 %v125
    %v214 = vpop.f32.mrf.mxu0
    %v215 = vadd.f32 %v111, %v214
    %v216 = vpop.f32.mrf.mxu0
    %v217 = vadd.f32 %v115, %v216
    %218 = vmatprep.mubr.f32.mxu0 0.0
    %219 = vmatmul.mubr.f32.gmra.mxu0 %v128
    %v220 = vpop.f32.mrf.mxu0
    %v221 = vadd.f32 %v111, %v220
    %v222 = vpop.f32.mrf.mxu0
    %v223 = vadd.f32 %v115, %v222
    %224 = vmatprep.mubr.f32.mxu0 0.0
    %225 = vmatmul.mubr.f32.gmra.mxu0 %v131
    %v226 = vpop.f32.mrf.mxu0
    %v227 = vadd.f32 %v111, %v226
    %v228 = vpop.f32.mrf.mxu0
    %v229 = vadd.f32 %v115, %v228
    %230 = vmatprep.mubr.f32.mxu0 0.0
    %231 = vmatmul.mubr.f32.gmra.mxu0 %v134
    %v232 = vpop.f32.mrf.mxu0
    %v233 = vadd.f32 %v111, %v232
    %v234 = vpop.f32.mrf.mxu0
    %v235 = vadd.f32 %v115, %v234
    %236 = vmatprep.mubr.f32.mxu0 0.0
    %237 = vmatmul.mubr.f32.gmra.mxu0 %v137
    %v238 = vpop.f32.mrf.mxu0
    %v239 = vadd.f32 %v111, %v238
    %v240 = vpop.f32.mrf.mxu0
    %v241 = vadd.f32 %v115, %v240
    %242 = vmatprep.mubr.f32.mxu0 0.0
    %243 = vmatmul.mubr.f32.gmra.mxu0 %v140
    %v244 = vpop.f32.mrf.mxu0
    %v245 = vadd.f32 %v111, %v244
    %v246 = vpop.f32.mrf.mxu0
    %v247 = vadd.f32 %v115, %v246
    %248 = vmatprep.mubr.f32.mxu0 0.0
    %249 = vmatmul.mubr.f32.gmra.mxu0 %v143
    %v250 = vpop.f32.mrf.mxu0
    %v251 = vadd.f32 %v111, %v250
    %v252 = vpop.f32.mrf.mxu0
    %v253 = vadd.f32 %v115, %v252
    %254 = vmatprep.mubr.f32.mxu0 0.0
    %255 = vmatmul.mubr.f32.gmra.mxu0 %v146
    %v256 = vpop.f32.mrf.mxu0
    %v257 = vadd.f32 %v111, %v256
    %v258 = vpop.f32.mrf.mxu0
    %v259 = vadd.f32 %v115, %v258
    %260 = vdwg.mxu0
    %261 = vmatprep.subr.mxu0 0.0
    %262 = vmatpush1.msra.mxu0 0.0
    %263 = vmatprep.subr.mxu0 0.0
    %264 = vmatpush1.msra.mxu0 0.0
    %265 = vmatprep.subr.mxu0 0.0
    %266 = vmatpush1.msra.mxu0 0.0
    %267 = vmatprep.subr.mxu0 0.0
    %268 = vmatpush1.msra.mxu0 0.0
    %269 = vmatprep.subr.mxu0 0.0
    %270 = vmatpush1.msra.mxu0 0.0
    %271 = vmatprep.subr.mxu0 0.0
    %272 = vmatpush1.msra.mxu0 0.0
    %273 = vmatprep.subr.mxu0 0.0
    %274 = vmatpush1.msra.mxu0 0.0
    %275 = vmatprep.subr.mxu0 0.0
    %276 = vmatpush1.msra.mxu0 0.0
    %277 = vmatprep.subr.mxu0 0.0
    %278 = vmatpush1.msra.mxu0 0.0
    %279 = vmatprep.subr.mxu0 0.0
    %280 = vmatpush1.msra.mxu0 0.0
    %281 = vmatprep.subr.mxu0 0.0
    %282 = vmatpush1.msra.mxu0 0.0
    %283 = vmatprep.subr.mxu0 0.0
    %284 = vmatpush1.msra.mxu0 0.0
    %285 = vmatprep.subr.mxu0 0.0
    %286 = vmatpush1.msra.mxu0 0.0
    %287 = vmatprep.subr.mxu0 0.0
    %288 = vmatpush1.msra.mxu0 0.0
    %289 = vmatprep.subr.mxu0 0.0
    %290 = vmatpush1.msra.mxu0 %v90
    %291 = vmatprep.subr.mxu0 0.0
    %292 = vmatpush1.msra.mxu0 %v87
    %293 = vmatprep.subr.mxu0 0.0
    %294 = vmatpush2.msra.mxu0 0.0
    %295 = vmatprep.subr.mxu0 0.0
    %296 = vmatpush2.msra.mxu0 0.0
    %297 = vmatprep.subr.mxu0 0.0
    %298 = vmatpush2.msra.mxu0 0.0
    %299 = vmatprep.subr.mxu0 0.0
    %300 = vmatpush2.msra.mxu0 0.0
    %301 = vmatprep.subr.mxu0 0.0
    %302 = vmatpush2.msra.mxu0 0.0
    %303 = vmatprep.subr.mxu0 0.0
    %304 = vmatpush2.msra.mxu0 0.0
    %305 = vmatprep.subr.mxu0 0.0
    %306 = vmatpush2.msra.mxu0 0.0
    %307 = vmatprep.subr.mxu0 0.0
    %308 = vmatpush2.msra.mxu0 0.0
    %309 = vmatprep.subr.mxu0 0.0
    %310 = vmatpush2.msra.mxu0 0.0
    %311 = vmatprep.subr.mxu0 0.0
    %312 = vmatpush2.msra.mxu0 0.0
    %313 = vmatprep.subr.mxu0 0.0
    %314 = vmatpush2.msra.mxu0 0.0
    %315 = vmatprep.subr.mxu0 0.0
    %316 = vmatpush2.msra.mxu0 0.0
    %317 = vmatprep.subr.mxu0 0.0
    %318 = vmatpush2.msra.mxu0 0.0
    %319 = vmatprep.subr.mxu0 0.0
    %320 = vmatpush2.msra.mxu0 0.0
    %321 = vmatprep.subr.mxu0 0.0
    %322 = vmatpush2.msra.mxu0 0.0
    %323 = vmatprep.subr.mxu0 0.0
    %324 = vmatpush2.msra.mxu0 0.0
    %325 = vmatprep.mubr.f32.mxu0 0.0
    %326 = vmatmul.mubr.f32.gmra.mxu0 %v125
    %v327 = vpop.f32.mrf.mxu0
    %v328 = vadd.f32 %v119, %v327
    %v329 = vpop.f32.mrf.mxu0
    %330 = vmatprep.mubr.f32.mxu0 0.0
    %331 = vmatmul.mubr.f32.gmra.mxu0 %v128
    %v332 = vpop.f32.mrf.mxu0
    %v333 = vadd.f32 %v119, %v332
    %v334 = vpop.f32.mrf.mxu0
    %335 = vmatprep.mubr.f32.mxu0 0.0
    %336 = vmatmul.mubr.f32.gmra.mxu0 %v131
    %v337 = vpop.f32.mrf.mxu0
    %v338 = vadd.f32 %v119, %v337
    %v339 = vpop.f32.mrf.mxu0
    %340 = vmatprep.mubr.f32.mxu0 0.0
    %341 = vmatmul.mubr.f32.gmra.mxu0 %v134
    %v342 = vpop.f32.mrf.mxu0
    %v343 = vadd.f32 %v119, %v342
    %v344 = vpop.f32.mrf.mxu0
    %345 = vmatprep.mubr.f32.mxu0 0.0
    %346 = vmatmul.mubr.f32.gmra.mxu0 %v137
    %v347 = vpop.f32.mrf.mxu0
    %v348 = vadd.f32 %v119, %v347
    %v349 = vpop.f32.mrf.mxu0
    %350 = vmatprep.mubr.f32.mxu0 0.0
    %351 = vmatmul.mubr.f32.gmra.mxu0 %v140
    %v352 = vpop.f32.mrf.mxu0
    %v353 = vadd.f32 %v119, %v352
    %v354 = vpop.f32.mrf.mxu0
    %355 = vmatprep.mubr.f32.mxu0 0.0
    %356 = vmatmul.mubr.f32.gmra.mxu0 %v143
    %v357 = vpop.f32.mrf.mxu0
    %v358 = vadd.f32 %v119, %v357
    %v359 = vpop.f32.mrf.mxu0
    %360 = vmatprep.mubr.f32.mxu0 0.0
    %361 = vmatmul.mubr.f32.gmra.mxu0 %v146
    %v362 = vpop.f32.mrf.mxu0
    %v363 = vadd.f32 %v119, %v362
    %v364 = vpop.f32.mrf.mxu0
    %365 = vdwg.mxu0
    %366 = vst [vmem:[#allocation2] sm:$0xff] %v215
    %367 = vst [vmem:[#allocation2 + $0x8] sm:$0xff] %v217
    %368 = vst [vmem:[#allocation2 + $0x10] sm:$0xff] %v328
    %369 = vst [vmem:[#allocation2 + $0x18] sm:$0xff] %v221
    %370 = vst [vmem:[#allocation2 + $0x20] sm:$0xff] %v223
    %371 = vst [vmem:[#allocation2 + $0x28] sm:$0xff] %v333
    %372 = vst [vmem:[#allocation2 + $0x30] sm:$0xff] %v227
    %373 = vst [vmem:[#allocation2 + $0x38] sm:$0xff] %v229
    %374 = vst [vmem:[#allocation2 + $0x40] sm:$0xff] %v338
    %375 = vst [vmem:[#allocation2 + $0x48] sm:$0xff] %v233
    %376 = vst [vmem:[#allocation2 + $0x50] sm:$0xff] %v235
    %377 = vst [vmem:[#allocation2 + $0x58] sm:$0xff] %v343
    %378 = vst [vmem:[#allocation2 + $0x60] sm:$0xff] %v239
    %379 = vst [vmem:[#allocation2 + $0x68] sm:$0xff] %v241
    %380 = vst [vmem:[#allocation2 + $0x70] sm:$0xff] %v348
    %381 = vst [vmem:[#allocation2 + $0x78] sm:$0xff] %v245
    %382 = vst [vmem:[#allocation2 + $0x80] sm:$0xff] %v247
    %383 = vst [vmem:[#allocation2 + $0x88] sm:$0xff] %v353
    %384 = vst [vmem:[#allocation2 + $0x90] sm:$0xff] %v251
    %385 = vst [vmem:[#allocation2 + $0x98] sm:$0xff] %v253
    %386 = vst [vmem:[#allocation2 + $0xa0] sm:$0xff] %v358
    %387 = vst [vmem:[#allocation2 + $0xa8] sm:$0xff] %v257
    %388 = vst [vmem:[#allocation2 + $0xb0] sm:$0xff] %v259
    %389 = vst [vmem:[#allocation2 + $0xb8] sm:$0xff] %v363
    %s390 = scalar_lea.vmem %s4, 3
    %v391 = vld [vmem:[%s390] sm:$0x7]
    %v393 = vlaneseq
    %v394 = vshrl.u32 %v393, 7
    %v395 = vsub.s32 0, %v394
    %v396 = vrot.slane %v391, %v395
    %v397 = vlaneseq
    %v398 = vshrl.u32 %v397, 7
    %v399 = vsub.s32 1, %v398
    %v400 = vrot.slane %v391, %v399
    %v401 = vlaneseq
    %v402 = vshrl.u32 %v401, 7
    %v403 = vsub.s32 2, %v402
    %v404 = vrot.slane %v391, %v403
    %v409 = vsel %vm123, %v91, 0
    %v412 = vsel %vm123, %v92, 0
    %v415 = vsel %vm123, %v93, 0
    %v418 = vsel %vm123, %v94, 0
    %v421 = vsel %vm123, %v95, 0
    %v424 = vsel %vm123, %v96, 0
    %v427 = vsel %vm123, %v97, 0
    %v430 = vsel %vm123, %v98, 0
    %432 = vmatprep.subr.mxu0 0.0
    %433 = vmatpush1.msra.mxu0 0.0
    %434 = vmatprep.subr.mxu0 0.0
    %435 = vmatpush1.msra.mxu0 0.0
    %436 = vmatprep.subr.mxu0 0.0
    %437 = vmatpush1.msra.mxu0 0.0
    %438 = vmatprep.subr.mxu0 0.0
    %439 = vmatpush1.msra.mxu0 0.0
    %440 = vmatprep.subr.mxu0 0.0
    %441 = vmatpush1.msra.mxu0 0.0
    %442 = vmatprep.subr.mxu0 0.0
    %443 = vmatpush1.msra.mxu0 0.0
    %444 = vmatprep.subr.mxu0 0.0
    %445 = vmatpush1.msra.mxu0 0.0
    %446 = vmatprep.subr.mxu0 0.0
    %447 = vmatpush1.msra.mxu0 0.0
    %448 = vmatprep.subr.mxu0 0.0
    %449 = vmatpush1.msra.mxu0 0.0
    %450 = vmatprep.subr.mxu0 0.0
    %451 = vmatpush1.msra.mxu0 0.0
    %452 = vmatprep.subr.mxu0 0.0
    %453 = vmatpush1.msra.mxu0 0.0
    %454 = vmatprep.subr.mxu0 0.0
    %455 = vmatpush1.msra.mxu0 0.0
    %456 = vmatprep.subr.mxu0 0.0
    %457 = vmatpush1.msra.mxu0 0.0
    %458 = vmatprep.subr.mxu0 0.0
    %459 = vmatpush1.msra.mxu0 0.0
    %460 = vmatprep.subr.mxu0 %v104
    %461 = vmatpush1.msra.mxu0 %v103
    %462 = vmatprep.subr.mxu0 %v101
    %463 = vmatpush1.msra.mxu0 %v100
    %464 = vmatprep.subr.mxu0 0.0
    %465 = vmatpush2.msra.mxu0 0.0
    %466 = vmatprep.subr.mxu0 0.0
    %467 = vmatpush2.msra.mxu0 0.0
    %468 = vmatprep.subr.mxu0 0.0
    %469 = vmatpush2.msra.mxu0 0.0
    %470 = vmatprep.subr.mxu0 0.0
    %471 = vmatpush2.msra.mxu0 0.0
    %472 = vmatprep.subr.mxu0 0.0
    %473 = vmatpush2.msra.mxu0 0.0
    %474 = vmatprep.subr.mxu0 0.0
    %475 = vmatpush2.msra.mxu0 0.0
    %476 = vmatprep.subr.mxu0 0.0
    %477 = vmatpush2.msra.mxu0 0.0
    %478 = vmatprep.subr.mxu0 0.0
    %479 = vmatpush2.msra.mxu0 0.0
    %480 = vmatprep.subr.mxu0 0.0
    %481 = vmatpush2.msra.mxu0 0.0
    %482 = vmatprep.subr.mxu0 0.0
    %483 = vmatpush2.msra.mxu0 0.0
    %484 = vmatprep.subr.mxu0 0.0
    %485 = vmatpush2.msra.mxu0 0.0
    %486 = vmatprep.subr.mxu0 0.0
    %487 = vmatpush2.msra.mxu0 0.0
    %488 = vmatprep.subr.mxu0 0.0
    %489 = vmatpush2.msra.mxu0 0.0
    %490 = vmatprep.subr.mxu0 0.0
    %491 = vmatpush2.msra.mxu0 0.0
    %492 = vmatprep.subr.mxu0 0.0
    %493 = vmatpush2.msra.mxu0 0.0
    %494 = vmatprep.subr.mxu0 0.0
    %495 = vmatpush2.msra.mxu0 0.0
    %496 = vmatprep.mubr.f32.mxu0 0.0
    %497 = vmatmul.mubr.f32.gmra.mxu0 %v409
    %v498 = vpop.f32.mrf.mxu0
    %v499 = vadd.f32 %v396, %v498
    %v500 = vpop.f32.mrf.mxu0
    %v501 = vadd.f32 %v400, %v500
    %502 = vmatprep.mubr.f32.mxu0 0.0
    %503 = vmatmul.mubr.f32.gmra.mxu0 %v412
    %v504 = vpop.f32.mrf.mxu0
    %v505 = vadd.f32 %v396, %v504
    %v506 = vpop.f32.mrf.mxu0
    %v507 = vadd.f32 %v400, %v506
    %508 = vmatprep.mubr.f32.mxu0 0.0
    %509 = vmatmul.mubr.f32.gmra.mxu0 %v415
    %v510 = vpop.f32.mrf.mxu0
    %v511 = vadd.f32 %v396, %v510
    %v512 = vpop.f32.mrf.mxu0
    %v513 = vadd.f32 %v400, %v512
    %514 = vmatprep.mubr.f32.mxu0 0.0
    %515 = vmatmul.mubr.f32.gmra.mxu0 %v418
    %v516 = vpop.f32.mrf.mxu0
    %v517 = vadd.f32 %v396, %v516
    %v518 = vpop.f32.mrf.mxu0
    %v519 = vadd.f32 %v400, %v518
    %520 = vmatprep.mubr.f32.mxu0 0.0
    %521 = vmatmul.mubr.f32.gmra.mxu0 %v421
    %v522 = vpop.f32.mrf.mxu0
    %v523 = vadd.f32 %v396, %v522
    %v524 = vpop.f32.mrf.mxu0
    %v525 = vadd.f32 %v400, %v524
    %526 = vmatprep.mubr.f32.mxu0 0.0
    %527 = vmatmul.mubr.f32.gmra.mxu0 %v424
    %v528 = vpop.f32.mrf.mxu0
    %v529 = vadd.f32 %v396, %v528
    %v530 = vpop.f32.mrf.mxu0
    %v531 = vadd.f32 %v400, %v530
    %532 = vmatprep.mubr.f32.mxu0 0.0
    %533 = vmatmul.mubr.f32.gmra.mxu0 %v427
    %v534 = vpop.f32.mrf.mxu0
    %v535 = vadd.f32 %v396, %v534
    %v536 = vpop.f32.mrf.mxu0
    %v537 = vadd.f32 %v400, %v536
    %538 = vmatprep.mubr.f32.mxu0 0.0
    %539 = vmatmul.mubr.f32.gmra.mxu0 %v430
    %v540 = vpop.f32.mrf.mxu0
    %v541 = vadd.f32 %v396, %v540
    %v542 = vpop.f32.mrf.mxu0
    %v543 = vadd.f32 %v400, %v542
    %544 = vdwg.mxu0
    %545 = vmatprep.subr.mxu0 0.0
    %546 = vmatpush1.msra.mxu0 0.0
    %547 = vmatprep.subr.mxu0 0.0
    %548 = vmatpush1.msra.mxu0 0.0
    %549 = vmatprep.subr.mxu0 0.0
    %550 = vmatpush1.msra.mxu0 0.0
    %551 = vmatprep.subr.mxu0 0.0
    %552 = vmatpush1.msra.mxu0 0.0
    %553 = vmatprep.subr.mxu0 0.0
    %554 = vmatpush1.msra.mxu0 0.0
    %555 = vmatprep.subr.mxu0 0.0
    %556 = vmatpush1.msra.mxu0 0.0
    %557 = vmatprep.subr.mxu0 0.0
    %558 = vmatpush1.msra.mxu0 0.0
    %559 = vmatprep.subr.mxu0 0.0
    %560 = vmatpush1.msra.mxu0 0.0
    %561 = vmatprep.subr.mxu0 0.0
    %562 = vmatpush1.msra.mxu0 0.0
    %563 = vmatprep.subr.mxu0 0.0
    %564 = vmatpush1.msra.mxu0 0.0
    %565 = vmatprep.subr.mxu0 0.0
    %566 = vmatpush1.msra.mxu0 0.0
    %567 = vmatprep.subr.mxu0 0.0
    %568 = vmatpush1.msra.mxu0 0.0
    %569 = vmatprep.subr.mxu0 0.0
    %570 = vmatpush1.msra.mxu0 0.0
    %571 = vmatprep.subr.mxu0 0.0
    %572 = vmatpush1.msra.mxu0 0.0
    %573 = vmatprep.subr.mxu0 0.0
    %574 = vmatpush1.msra.mxu0 %v105
    %575 = vmatprep.subr.mxu0 0.0
    %576 = vmatpush1.msra.mxu0 %v102
    %577 = vmatprep.subr.mxu0 0.0
    %578 = vmatpush2.msra.mxu0 0.0
    %579 = vmatprep.subr.mxu0 0.0
    %580 = vmatpush2.msra.mxu0 0.0
    %581 = vmatprep.subr.mxu0 0.0
    %582 = vmatpush2.msra.mxu0 0.0
    %583 = vmatprep.subr.mxu0 0.0
    %584 = vmatpush2.msra.mxu0 0.0
    %585 = vmatprep.subr.mxu0 0.0
    %586 = vmatpush2.msra.mxu0 0.0
    %587 = vmatprep.subr.mxu0 0.0
    %588 = vmatpush2.msra.mxu0 0.0
    %589 = vmatprep.subr.mxu0 0.0
    %590 = vmatpush2.msra.mxu0 0.0
    %591 = vmatprep.subr.mxu0 0.0
    %592 = vmatpush2.msra.mxu0 0.0
    %593 = vmatprep.subr.mxu0 0.0
    %594 = vmatpush2.msra.mxu0 0.0
    %595 = vmatprep.subr.mxu0 0.0
    %596 = vmatpush2.msra.mxu0 0.0
    %597 = vmatprep.subr.mxu0 0.0
    %598 = vmatpush2.msra.mxu0 0.0
    %599 = vmatprep.subr.mxu0 0.0
    %600 = vmatpush2.msra.mxu0 0.0
    %601 = vmatprep.subr.mxu0 0.0
    %602 = vmatpush2.msra.mxu0 0.0
    %603 = vmatprep.subr.mxu0 0.0
    %604 = vmatpush2.msra.mxu0 0.0
    %605 = vmatprep.subr.mxu0 0.0
    %606 = vmatpush2.msra.mxu0 0.0
    %607 = vmatprep.subr.mxu0 0.0
    %608 = vmatpush2.msra.mxu0 0.0
    %609 = vmatprep.mubr.f32.mxu0 0.0
    %610 = vmatmul.mubr.f32.gmra.mxu0 %v409
    %v611 = vpop.f32.mrf.mxu0
    %v612 = vadd.f32 %v404, %v611
    %v613 = vpop.f32.mrf.mxu0
    %614 = vmatprep.mubr.f32.mxu0 0.0
    %615 = vmatmul.mubr.f32.gmra.mxu0 %v412
    %v616 = vpop.f32.mrf.mxu0
    %v617 = vadd.f32 %v404, %v616
    %v618 = vpop.f32.mrf.mxu0
    %619 = vmatprep.mubr.f32.mxu0 0.0
    %620 = vmatmul.mubr.f32.gmra.mxu0 %v415
    %v621 = vpop.f32.mrf.mxu0
    %v622 = vadd.f32 %v404, %v621
    %v623 = vpop.f32.mrf.mxu0
    %624 = vmatprep.mubr.f32.mxu0 0.0
    %625 = vmatmul.mubr.f32.gmra.mxu0 %v418
    %v626 = vpop.f32.mrf.mxu0
    %v627 = vadd.f32 %v404, %v626
    %v628 = vpop.f32.mrf.mxu0
    %629 = vmatprep.mubr.f32.mxu0 0.0
    %630 = vmatmul.mubr.f32.gmra.mxu0 %v421
    %v631 = vpop.f32.mrf.mxu0
    %v632 = vadd.f32 %v404, %v631
    %v633 = vpop.f32.mrf.mxu0
    %634 = vmatprep.mubr.f32.mxu0 0.0
    %635 = vmatmul.mubr.f32.gmra.mxu0 %v424
    %v636 = vpop.f32.mrf.mxu0
    %v637 = vadd.f32 %v404, %v636
    %v638 = vpop.f32.mrf.mxu0
    %639 = vmatprep.mubr.f32.mxu0 0.0
    %640 = vmatmul.mubr.f32.gmra.mxu0 %v427
    %v641 = vpop.f32.mrf.mxu0
    %v642 = vadd.f32 %v404, %v641
    %v643 = vpop.f32.mrf.mxu0
    %644 = vmatprep.mubr.f32.mxu0 0.0
    %645 = vmatmul.mubr.f32.gmra.mxu0 %v430
    %v646 = vpop.f32.mrf.mxu0
    %v647 = vadd.f32 %v404, %v646
    %v648 = vpop.f32.mrf.mxu0
    %649 = vdwg.mxu0
    %650 = vst [vmem:[#allocation3] sm:$0xff] %v499
    %651 = vst [vmem:[#allocation3 + $0x8] sm:$0xff] %v501
    %652 = vst [vmem:[#allocation3 + $0x10] sm:$0xff] %v612
    %653 = vst [vmem:[#allocation3 + $0x18] sm:$0xff] %v505
    %654 = vst [vmem:[#allocation3 + $0x20] sm:$0xff] %v507
    %655 = vst [vmem:[#allocation3 + $0x28] sm:$0xff] %v617
    %656 = vst [vmem:[#allocation3 + $0x30] sm:$0xff] %v511
    %657 = vst [vmem:[#allocation3 + $0x38] sm:$0xff] %v513
    %658 = vst [vmem:[#allocation3 + $0x40] sm:$0xff] %v622
    %659 = vst [vmem:[#allocation3 + $0x48] sm:$0xff] %v517
    %660 = vst [vmem:[#allocation3 + $0x50] sm:$0xff] %v519
    %661 = vst [vmem:[#allocation3 + $0x58] sm:$0xff] %v627
    %662 = vst [vmem:[#allocation3 + $0x60] sm:$0xff] %v523
    %663 = vst [vmem:[#allocation3 + $0x68] sm:$0xff] %v525
    %664 = vst [vmem:[#allocation3 + $0x70] sm:$0xff] %v632
    %665 = vst [vmem:[#allocation3 + $0x78] sm:$0xff] %v529
    %666 = vst [vmem:[#allocation3 + $0x80] sm:$0xff] %v531
    %667 = vst [vmem:[#allocation3 + $0x88] sm:$0xff] %v637
    %668 = vst [vmem:[#allocation3 + $0x90] sm:$0xff] %v535
    %669 = vst [vmem:[#allocation3 + $0x98] sm:$0xff] %v537
    %670 = vst [vmem:[#allocation3 + $0xa0] sm:$0xff] %v642
    %671 = vst [vmem:[#allocation3 + $0xa8] sm:$0xff] %v541
    %672 = vst [vmem:[#allocation3 + $0xb0] sm:$0xff] %v543
    %673 = vst [vmem:[#allocation3 + $0xb8] sm:$0xff] %v647
    %p674 = scmp.eq.s32.totalorder 0, 0
    // Predicated region
    $region30: #{video_encoder_forward.3} parent=1 // pred_check
      %p675 = pneg %p674
    $region31: #{video_encoder_forward.3} parent=1 // pred_check_branch
      %677 = sbr.rel (%p675) target = $region33
    $region32: #{video_encoder_forward.3} parent=1 // pred_region
      %678 = vst [vmem:[#allocation4] sm:$0xff] 0.0
      %679 = vst [vmem:[#allocation5] sm:$0xff] 0.0
    $region33: #{video_encoder_forward.3} parent=1 // pred_fallthru
      _
    %v680 = vld [vmem:[#allocation6] sm:$0xff]
    %v681 = vld [vmem:[#allocation6 + $0x8] sm:$0xff]
    %v682 = vld [vmem:[#allocation6 + $0x10] sm:$0xff]
    %v683 = vld [vmem:[#allocation6 + $0x18] sm:$0xff]
    %v684 = vld [vmem:[#allocation6 + $0x20] sm:$0xff]
    %v685 = vld [vmem:[#allocation6 + $0x28] sm:$0xff]
    %v686 = vld [vmem:[#allocation6 + $0x30] sm:$0xff]
    %v687 = vld [vmem:[#allocation6 + $0x38] sm:$0xff]
    %v688 = vld [vmem:[#allocation6 + $0x40] sm:$0xff]
    %v689 = vld [vmem:[#allocation6 + $0x48] sm:$0xff]
    %v690 = vld [vmem:[#allocation6 + $0x50] sm:$0xff]
    %v691 = vld [vmem:[#allocation6 + $0x58] sm:$0xff]
    %v692 = vld [vmem:[#allocation6 + $0x60] sm:$0xff]
    %v693 = vld [vmem:[#allocation6 + $0x68] sm:$0xff]
    %v694 = vld [vmem:[#allocation6 + $0x70] sm:$0xff]
    %v695 = vld [vmem:[#allocation6 + $0x78] sm:$0xff]
    %v696 = vld [vmem:[#allocation6 + $0x80] sm:$0xff]
    %v697 = vld [vmem:[#allocation6 + $0x88] sm:$0xff]
    %v698 = vld [vmem:[#allocation6 + $0x90] sm:$0xff]
    %v699 = vld [vmem:[#allocation6 + $0x98] sm:$0xff]
    %v700 = vld [vmem:[#allocation6 + $0xa0] sm:$0xff]
    %v701 = vld [vmem:[#allocation6 + $0xa8] sm:$0xff]
    %v702 = vld [vmem:[#allocation6 + $0xb0] sm:$0xff]
    %v703 = vld [vmem:[#allocation6 + $0xb8] sm:$0xff]
    %v704 = vld [vmem:[#allocation6 + $0xc0] sm:$0xff]
    %v705 = vld [vmem:[#allocation6 + $0xc8] sm:$0xff]
    %v706 = vld [vmem:[#allocation6 + $0xd0] sm:$0xff]
    %v707 = vld [vmem:[#allocation6 + $0xd8] sm:$0xff]
    %v708 = vld [vmem:[#allocation6 + $0xe0] sm:$0xff]
    %v709 = vld [vmem:[#allocation6 + $0xe8] sm:$0xff]
    %v710 = vld [vmem:[#allocation6 + $0xf0] sm:$0xff]
    %v711 = vld [vmem:[#allocation6 + $0xf8] sm:$0xff]
    %v712 = vld [vmem:[#allocation6 + $0x100] sm:$0xff]
    %v713 = vld [vmem:[#allocation6 + $0x108] sm:$0xff]
    %v714 = vld [vmem:[#allocation6 + $0x110] sm:$0xff]
    %v715 = vld [vmem:[#allocation6 + $0x118] sm:$0xff]
    %v716 = vld [vmem:[#allocation6 + $0x120] sm:$0xff]
    %v717 = vld [vmem:[#allocation6 + $0x128] sm:$0xff]
    %v718 = vld [vmem:[#allocation6 + $0x130] sm:$0xff]
    %v719 = vld [vmem:[#allocation6 + $0x138] sm:$0xff]
    %v720 = vld [vmem:[#allocation6 + $0x140] sm:$0xff]
    %v721 = vld [vmem:[#allocation6 + $0x148] sm:$0xff]
    %v722 = vld [vmem:[#allocation6 + $0x150] sm:$0xff]
    %v723 = vld [vmem:[#allocation6 + $0x158] sm:$0xff]
    %v724 = vld [vmem:[#allocation6 + $0x160] sm:$0xff]
    %v725 = vld [vmem:[#allocation6 + $0x168] sm:$0xff]
    %v726 = vld [vmem:[#allocation6 + $0x170] sm:$0xff]
    %v727 = vld [vmem:[#allocation6 + $0x178] sm:$0xff]
    %s728 = scalar_lea.vmem [#allocation6], 384
    %v729 = vld [vmem:[%s728] sm:$0xff]
    %v730 = vld [vmem:[%s728 + $0x8] sm:$0xff]
    %v731 = vld [vmem:[%s728 + $0x10] sm:$0xff]
    %v732 = vld [vmem:[%s728 + $0x18] sm:$0xff]
    %v733 = vld [vmem:[%s728 + $0x20] sm:$0xff]
    %v734 = vld [vmem:[%s728 + $0x28] sm:$0xff]
    %v735 = vld [vmem:[%s728 + $0x30] sm:$0xff]
    %v736 = vld [vmem:[%s728 + $0x38] sm:$0xff]
    %v737 = vld [vmem:[%s728 + $0x40] sm:$0xff]
    %v738 = vld [vmem:[%s728 + $0x48] sm:$0xff]
    %v739 = vld [vmem:[%s728 + $0x50] sm:$0xff]
    %v740 = vld [vmem:[%s728 + $0x58] sm:$0xff]
    %v741 = vld [vmem:[%s728 + $0x60] sm:$0xff]
    %v742 = vld [vmem:[%s728 + $0x68] sm:$0xff]
    %v743 = vld [vmem:[%s728 + $0x70] sm:$0xff]
    %v744 = vld [vmem:[%s728 + $0x78] sm:$0xff]
    %v745 = vld [vmem:[%s728 + $0x80] sm:$0xff]
    %v746 = vld [vmem:[%s728 + $0x88] sm:$0xff]
    %v747 = vld [vmem:[%s728 + $0x90] sm:$0xff]
    %v748 = vld [vmem:[%s728 + $0x98] sm:$0xff]
    %v749 = vld [vmem:[%s728 + $0xa0] sm:$0xff]
    %v750 = vld [vmem:[%s728 + $0xa8] sm:$0xff]
    %v751 = vld [vmem:[%s728 + $0xb0] sm:$0xff]
    %v752 = vld [vmem:[%s728 + $0xb8] sm:$0xff]
    %v753 = vld [vmem:[%s728 + $0xc0] sm:$0xff]
    %v754 = vld [vmem:[%s728 + $0xc8] sm:$0xff]
    %v755 = vld [vmem:[%s728 + $0xd0] sm:$0xff]
    %v756 = vld [vmem:[%s728 + $0xd8] sm:$0xff]
    %v757 = vld [vmem:[%s728 + $0xe0] sm:$0xff]
    %v758 = vld [vmem:[%s728 + $0xe8] sm:$0xff]
    %v759 = vld [vmem:[%s728 + $0xf0] sm:$0xff]
    %v760 = vld [vmem:[%s728 + $0xf8] sm:$0xff]
    %v761 = vld [vmem:[%s728 + $0x100] sm:$0xff]
    %v762 = vld [vmem:[%s728 + $0x108] sm:$0xff]
    %v763 = vld [vmem:[%s728 + $0x110] sm:$0xff]
    %v764 = vld [vmem:[%s728 + $0x118] sm:$0xff]
    %v765 = vld [vmem:[%s728 + $0x120] sm:$0xff]
    %v766 = vld [vmem:[%s728 + $0x128] sm:$0xff]
    %v767 = vld [vmem:[%s728 + $0x130] sm:$0xff]
    %v768 = vld [vmem:[%s728 + $0x138] sm:$0xff]
    %v769 = vld [vmem:[%s728 + $0x140] sm:$0xff]
    %v770 = vld [vmem:[%s728 + $0x148] sm:$0xff]
    %v771 = vld [vmem:[%s728 + $0x150] sm:$0xff]
    %v772 = vld [vmem:[%s728 + $0x158] sm:$0xff]
    %v773 = vld [vmem:[%s728 + $0x160] sm:$0xff]
    %v774 = vld [vmem:[%s728 + $0x168] sm:$0xff]
    %v775 = vld [vmem:[%s728 + $0x170] sm:$0xff]
    %v776 = vld [vmem:[%s728 + $0x178] sm:$0xff]
    %v777 = vld [vmem:[%s5] sm:$0x1]
    %s778 = scalar_lea.vmem %s5, 1
    %v779 = vld [vmem:[%s778] sm:$0x1]
    %v780 = vld [vmem:[#allocation4] sm:$0xff]
    %v781 = vld [vmem:[#allocation5] sm:$0xff]
    %782 = vmatprep.subr.mxu0 %v726
    %783 = vmatpush1.msra.mxu0 %v725
    %784 = vmatprep.subr.mxu0 %v723
    %785 = vmatpush1.msra.mxu0 %v722
    %786 = vmatprep.subr.mxu0 %v720
    %787 = vmatpush1.msra.mxu0 %v719
    %788 = vmatprep.subr.mxu0 %v717
    %789 = vmatpush1.msra.mxu0 %v716
    %790 = vmatprep.subr.mxu0 %v714
    %791 = vmatpush1.msra.mxu0 %v713
    %792 = vmatprep.subr.mxu0 %v711
    %793 = vmatpush1.msra.mxu0 %v710
    %794 = vmatprep.subr.mxu0 %v708
    %795 = vmatpush1.msra.mxu0 %v707
    %796 = vmatprep.subr.mxu0 %v705
    %797 = vmatpush1.msra.mxu0 %v704
    %798 = vmatprep.subr.mxu0 %v702
    %799 = vmatpush1.msra.mxu0 %v701
    %800 = vmatprep.subr.mxu0 %v699
    %801 = vmatpush1.msra.mxu0 %v698
    %802 = vmatprep.subr.mxu0 %v696
    %803 = vmatpush1.msra.mxu0 %v695
    %804 = vmatprep.subr.mxu0 %v693
    %805 = vmatpush1.msra.mxu0 %v692
    %806 = vmatprep.subr.mxu0 %v690
    %807 = vmatpush1.msra.mxu0 %v689
    %808 = vmatprep.subr.mxu0 %v687
    %809 = vmatpush1.msra.mxu0 %v686
    %810 = vmatprep.subr.mxu0 %v684
    %811 = vmatpush1.msra.mxu0 %v683
    %812 = vmatprep.subr.mxu0 %v681
    %813 = vmatpush1.msra.mxu0 %v680
    %814 = vmatprep.subr.mxu0 0.0
    %815 = vmatpush2.msra.mxu0 0.0
    %816 = vmatprep.subr.mxu0 0.0
    %817 = vmatpush2.msra.mxu0 0.0
    %818 = vmatprep.subr.mxu0 0.0
    %819 = vmatpush2.msra.mxu0 0.0
    %820 = vmatprep.subr.mxu0 0.0
    %821 = vmatpush2.msra.mxu0 0.0
    %822 = vmatprep.subr.mxu0 0.0
    %823 = vmatpush2.msra.mxu0 0.0
    %824 = vmatprep.subr.mxu0 0.0
    %825 = vmatpush2.msra.mxu0 0.0
    %826 = vmatprep.subr.mxu0 0.0
    %827 = vmatpush2.msra.mxu0 0.0
    %828 = vmatprep.subr.mxu0 0.0
    %829 = vmatpush2.msra.mxu0 0.0
    %830 = vmatprep.subr.mxu0 0.0
    %831 = vmatpush2.msra.mxu0 0.0
    %832 = vmatprep.subr.mxu0 0.0
    %833 = vmatpush2.msra.mxu0 0.0
    %834 = vmatprep.subr.mxu0 0.0
    %835 = vmatpush2.msra.mxu0 0.0
    %836 = vmatprep.subr.mxu0 0.0
    %837 = vmatpush2.msra.mxu0 0.0
    %838 = vmatprep.subr.mxu0 0.0
    %839 = vmatpush2.msra.mxu0 0.0
    %840 = vmatprep.subr.mxu0 0.0
    %841 = vmatpush2.msra.mxu0 0.0
    %842 = vmatprep.subr.mxu0 0.0
    %843 = vmatpush2.msra.mxu0 0.0
    %844 = vmatprep.subr.mxu0 0.0
    %845 = vmatpush2.msra.mxu0 0.0
    %846 = vmatprep.mubr.f32.mxu0 0.0
    %847 = vmatmul.mubr.f32.gmra.mxu0 %v780
    %v848 = vpop.f32.mrf.mxu0
    %v849 = vadd.f32 0.0, %v848
    %v850 = vpop.f32.mrf.mxu0
    %v851 = vadd.f32 0.0, %v850
    %852 = vdwg.mxu0
    %853 = vmatprep.subr.mxu0 0.0
    %854 = vmatpush1.msra.mxu0 %v727
    %855 = vmatprep.subr.mxu0 0.0
    %856 = vmatpush1.msra.mxu0 %v724
    %857 = vmatprep.subr.mxu0 0.0
    %858 = vmatpush1.msra.mxu0 %v721
    %859 = vmatprep.subr.mxu0 0.0
    %860 = vmatpush1.msra.mxu0 %v718
    %861 = vmatprep.subr.mxu0 0.0
    %862 = vmatpush1.msra.mxu0 %v715
    %863 = vmatprep.subr.mxu0 0.0
    %864 = vmatpush1.msra.mxu0 %v712
    %865 = vmatprep.subr.mxu0 0.0
    %866 = vmatpush1.msra.mxu0 %v709
    %867 = vmatprep.subr.mxu0 0.0
    %868 = vmatpush1.msra.mxu0 %v706
    %869 = vmatprep.subr.mxu0 0.0
    %870 = vmatpush1.msra.mxu0 %v703
    %871 = vmatprep.subr.mxu0 0.0
    %872 = vmatpush1.msra.mxu0 %v700
    %873 = vmatprep.subr.mxu0 0.0
    %874 = vmatpush1.msra.mxu0 %v697
    %875 = vmatprep.subr.mxu0 0.0
    %876 = vmatpush1.msra.mxu0 %v694
    %877 = vmatprep.subr.mxu0 0.0
    %878 = vmatpush1.msra.mxu0 %v691
    %879 = vmatprep.subr.mxu0 0.0
    %880 = vmatpush1.msra.mxu0 %v688
    %881 = vmatprep.subr.mxu0 0.0
    %882 = vmatpush1.msra.mxu0 %v685
    %883 = vmatprep.subr.mxu0 0.0
    %884 = vmatpush1.msra.mxu0 %v682
    %885 = vmatprep.subr.mxu0 0.0
    %886 = vmatpush2.msra.mxu0 0.0
    %887 = vmatprep.subr.mxu0 0.0
    %888 = vmatpush2.msra.mxu0 0.0
    %889 = vmatprep.subr.mxu0 0.0
    %890 = vmatpush2.msra.mxu0 0.0
    %891 = vmatprep.subr.mxu0 0.0
    %892 = vmatpush2.msra.mxu0 0.0
    %893 = vmatprep.subr.mxu0 0.0
    %894 = vmatpush2.msra.mxu0 0.0
    %895 = vmatprep.subr.mxu0 0.0
    %896 = vmatpush2.msra.mxu0 0.0
    %897 = vmatprep.subr.mxu0 0.0
    %898 = vmatpush2.msra.mxu0 0.0
    %899 = vmatprep.subr.mxu0 0.0
    %900 = vmatpush2.msra.mxu0 0.0
    %901 = vmatprep.subr.mxu0 0.0
    %902 = vmatpush2.msra.mxu0 0.0
    %903 = vmatprep.subr.mxu0 0.0
    %904 = vmatpush2.msra.mxu0 0.0
    %905 = vmatprep.subr.mxu0 0.0
    %906 = vmatpush2.msra.mxu0 0.0
    %907 = vmatprep.subr.mxu0 0.0
    %908 = vmatpush2.msra.mxu0 0.0
    %909 = vmatprep.subr.mxu0 0.0
    %910 = vmatpush2.msra.mxu0 0.0
    %911 = vmatprep.subr.mxu0 0.0
    %912 = vmatpush2.msra.mxu0 0.0
    %913 = vmatprep.subr.mxu0 0.0
    %914 = vmatpush2.msra.mxu0 0.0
    %915 = vmatprep.subr.mxu0 0.0
    %916 = vmatpush2.msra.mxu0 0.0
    %917 = vmatprep.mubr.f32.mxu0 0.0
    %918 = vmatmul.mubr.f32.gmra.mxu0 %v780
    %v919 = vpop.f32.mrf.mxu0
    %v920 = vadd.f32 0.0, %v919
    %v921 = vpop.f32.mrf.mxu0
    %922 = vdwg.mxu0
    %s923 = smul.u32 0, 3
    %s924 = smul.addr %s923, 8
    %s925 = scalar_lea.vmem [#allocation2], %s924
    %v926 = vld [vmem:[%s925] sm:$0xff]
    %v927 = vld [vmem:[%s925 + $0x8] sm:$0xff]
    %v928 = vld [vmem:[%s925 + $0x10] sm:$0xff]
    %v929 = vadd.f32 %v926, %v849
    %v930 = vxor.u32 %v929, 2147483648
    %v931 = vmul.f32 %v930, 1.442695
    %v932 = vpow.pop %v931
    %v933 = vadd.f32 %v932, 1.0
    %v934 = vrcp.pop %v933
    %v935 = vmul.f32 1.0, %v934
    %v936 = vadd.f32 %v927, %v851
    %v937 = vxor.u32 %v936, 2147483648
    %v938 = vmul.f32 %v937, 1.442695
    %v939 = vpow.pop %v938
    %v940 = vadd.f32 %v939, 1.0
    %v941 = vrcp.pop %v940
    %v942 = vmul.f32 1.0, %v941
    %v944 = vlaneseq
    %v945 = vshrl.u32 %v944, 7
    %v946 = vsub.s32 0, %v945
    %v947 = vrot.slane %v777, %v946
    %v949 = vadd.f32 %v920, %v947
    %v950 = vmul.f32 %v935, %v949
    %v951 = vadd.f32 %v928, %v950
    %v952 = vtanh.pop %v951
    %v953 = vsub.f32 1.0, %v942
    %v954 = vmul.f32 %v953, %v952
    %v955 = vmul.f32 %v942, %v780
    %v956 = vadd.f32 %v954, %v955
    %957 = vmatprep.subr.mxu0 %v775
    %958 = vmatpush1.msra.mxu0 %v774
    %959 = vmatprep.subr.mxu0 %v772
    %960 = vmatpush1.msra.mxu0 %v771
    %961 = vmatprep.subr.mxu0 %v769
    %962 = vmatpush1.msra.mxu0 %v768
    %963 = vmatprep.subr.mxu0 %v766
    %964 = vmatpush1.msra.mxu0 %v765
    %965 = vmatprep.subr.mxu0 %v763
    %966 = vmatpush1.msra.mxu0 %v762
    %967 = vmatprep.subr.mxu0 %v760
    %968 = vmatpush1.msra.mxu0 %v759
    %969 = vmatprep.subr.mxu0 %v757
    %970 = vmatpush1.msra.mxu0 %v756
    %971 = vmatprep.subr.mxu0 %v754
    %972 = vmatpush1.msra.mxu0 %v753
    %973 = vmatprep.subr.mxu0 %v751
    %974 = vmatpush1.msra.mxu0 %v750
    %975 = vmatprep.subr.mxu0 %v748
    %976 = vmatpush1.msra.mxu0 %v747
    %977 = vmatprep.subr.mxu0 %v745
    %978 = vmatpush1.msra.mxu0 %v744
    %979 = vmatprep.subr.mxu0 %v742
    %980 = vmatpush1.msra.mxu0 %v741
    %981 = vmatprep.subr.mxu0 %v739
    %982 = vmatpush1.msra.mxu0 %v738
    %983 = vmatprep.subr.mxu0 %v736
    %984 = vmatpush1.msra.mxu0 %v735
    %985 = vmatprep.subr.mxu0 %v733
    %986 = vmatpush1.msra.mxu0 %v732
    %987 = vmatprep.subr.mxu0 %v730
    %988 = vmatpush1.msra.mxu0 %v729
    %989 = vmatprep.subr.mxu0 0.0
    %990 = vmatpush2.msra.mxu0 0.0
    %991 = vmatprep.subr.mxu0 0.0
    %992 = vmatpush2.msra.mxu0 0.0
    %993 = vmatprep.subr.mxu0 0.0
    %994 = vmatpush2.msra.mxu0 0.0
    %995 = vmatprep.subr.mxu0 0.0
    %996 = vmatpush2.msra.mxu0 0.0
    %997 = vmatprep.subr.mxu0 0.0
    %998 = vmatpush2.msra.mxu0 0.0
    %999 = vmatprep.subr.mxu0 0.0
    %1000 = vmatpush2.msra.mxu0 0.0
    %1001 = vmatprep.subr.mxu0 0.0
    %1002 = vmatpush2.msra.mxu0 0.0
    %1003 = vmatprep.subr.mxu0 0.0
    %1004 = vmatpush2.msra.mxu0 0.0
    %1005 = vmatprep.subr.mxu0 0.0
    %1006 = vmatpush2.msra.mxu0 0.0
    %1007 = vmatprep.subr.mxu0 0.0
    %1008 = vmatpush2.msra.mxu0 0.0
    %1009 = vmatprep.subr.mxu0 0.0
    %1010 = vmatpush2.msra.mxu0 0.0
    %1011 = vmatprep.subr.mxu0 0.0
    %1012 = vmatpush2.msra.mxu0 0.0
    %1013 = vmatprep.subr.mxu0 0.0
    %1014 = vmatpush2.msra.mxu0 0.0
    %1015 = vmatprep.subr.mxu0 0.0
    %1016 = vmatpush2.msra.mxu0 0.0
    %1017 = vmatprep.subr.mxu0 0.0
    %1018 = vmatpush2.msra.mxu0 0.0
    %1019 = vmatprep.subr.mxu0 0.0
    %1020 = vmatpush2.msra.mxu0 0.0
    %1021 = vmatprep.mubr.f32.mxu0 0.0
    %1022 = vmatmul.mubr.f32.gmra.mxu0 %v781
    %v1023 = vpop.f32.mrf.mxu0
    %v1024 = vadd.f32 0.0, %v1023
    %v1025 = vpop.f32.mrf.mxu0
    %v1026 = vadd.f32 0.0, %v1025
    %1027 = vdwg.mxu0
    %1028 = vmatprep.subr.mxu0 0.0
    %1029 = vmatpush1.msra.mxu0 %v776
    %1030 = vmatprep.subr.mxu0 0.0
    %1031 = vmatpush1.msra.mxu0 %v773
    %1032 = vmatprep.subr.mxu0 0.0
    %1033 = vmatpush1.msra.mxu0 %v770
    %1034 = vmatprep.subr.mxu0 0.0
    %1035 = vmatpush1.msra.mxu0 %v767
    %1036 = vmatprep.subr.mxu0 0.0
    %1037 = vmatpush1.msra.mxu0 %v764
    %1038 = vmatprep.subr.mxu0 0.0
    %1039 = vmatpush1.msra.mxu0 %v761
    %1040 = vmatprep.subr.mxu0 0.0
    %1041 = vmatpush1.msra.mxu0 %v758
    %1042 = vmatprep.subr.mxu0 0.0
    %1043 = vmatpush1.msra.mxu0 %v755
    %1044 = vmatprep.subr.mxu0 0.0
    %1045 = vmatpush1.msra.mxu0 %v752
    %1046 = vmatprep.subr.mxu0 0.0
    %1047 = vmatpush1.msra.mxu0 %v749
    %1048 = vmatprep.subr.mxu0 0.0
    %1049 = vmatpush1.msra.mxu0 %v746
    %1050 = vmatprep.subr.mxu0 0.0
    %1051 = vmatpush1.msra.mxu0 %v743
    %1052 = vmatprep.subr.mxu0 0.0
    %1053 = vmatpush1.msra.mxu0 %v740
    %1054 = vmatprep.subr.mxu0 0.0
    %1055 = vmatpush1.msra.mxu0 %v737
    %1056 = vmatprep.subr.mxu0 0.0
    %1057 = vmatpush1.msra.mxu0 %v734
    %1058 = vmatprep.subr.mxu0 0.0
    %1059 = vmatpush1.msra.mxu0 %v731
    %1060 = vmatprep.subr.mxu0 0.0
    %1061 = vmatpush2.msra.mxu0 0.0
    %1062 = vmatprep.subr.mxu0 0.0
    %1063 = vmatpush2.msra.mxu0 0.0
    %1064 = vmatprep.subr.mxu0 0.0
    %1065 = vmatpush2.msra.mxu0 0.0
    %1066 = vmatprep.subr.mxu0 0.0
    %1067 = vmatpush2.msra.mxu0 0.0
    %1068 = vmatprep.subr.mxu0 0.0
    %1069 = vmatpush2.msra.mxu0 0.0
    %1070 = vmatprep.subr.mxu0 0.0
    %1071 = vmatpush2.msra.mxu0 0.0
    %1072 = vmatprep.subr.mxu0 0.0
    %1073 = vmatpush2.msra.mxu0 0.0
    %1074 = vmatprep.subr.mxu0 0.0
    %1075 = vmatpush2.msra.mxu0 0.0
    %1076 = vmatprep.subr.mxu0 0.0
    %1077 = vmatpush2.msra.mxu0 0.0
    %1078 = vmatprep.subr.mxu0 0.0
    %1079 = vmatpush2.msra.mxu0 0.0
    %1080 = vmatprep.subr.mxu0 0.0
    %1081 = vmatpush2.msra.mxu0 0.0
    %1082 = vmatprep.subr.mxu0 0.0
    %1083 = vmatpush2.msra.mxu0 0.0
    %1084 = vmatprep.subr.mxu0 0.0
    %1085 = vmatpush2.msra.mxu0 0.0
    %1086 = vmatprep.subr.mxu0 0.0
    %1087 = vmatpush2.msra.mxu0 0.0
    %1088 = vmatprep.subr.mxu0 0.0
    %1089 = vmatpush2.msra.mxu0 0.0
    %1090 = vmatprep.subr.mxu0 0.0
    %1091 = vmatpush2.msra.mxu0 0.0
    %1092 = vmatprep.mubr.f32.mxu0 0.0
    %1093 = vmatmul.mubr.f32.gmra.mxu0 %v781
    %v1094 = vpop.f32.mrf.mxu0
    %v1095 = vadd.f32 0.0, %v1094
    %v1096 = vpop.f32.mrf.mxu0
    %1097 = vdwg.mxu0
    %s1098 = smul.u32 7, 3
    %s1099 = smul.addr %s1098, 8
    %s1100 = scalar_lea.vmem [#allocation3], %s1099
    %v1101 = vld [vmem:[%s1100] sm:$0xff]
    %v1102 = vld [vmem:[%s1100 + $0x8] sm:$0xff]
    %v1103 = vld [vmem:[%s1100 + $0x10] sm:$0xff]
    %v1104 = vadd.f32 %v1101, %v1024
    %v1105 = vxor.u32 %v1104, 2147483648
    %v1106 = vmul.f32 %v1105, 1.442695
    %v1107 = vpow.pop %v1106
    %v1108 = vadd.f32 %v1107, 1.0
    %v1109 = vrcp.pop %v1108
    %v1110 = vmul.f32 1.0, %v1109
    %v1111 = vadd.f32 %v1102, %v1026
    %v1112 = vxor.u32 %v1111, 2147483648
    %v1113 = vmul.f32 %v1112, 1.442695
    %v1114 = vpow.pop %v1113
    %v1115 = vadd.f32 %v1114, 1.0
    %v1116 = vrcp.pop %v1115
    %v1117 = vmul.f32 1.0, %v1116
    %v1119 = vlaneseq
    %v1120 = vshrl.u32 %v1119, 7
    %v1121 = vsub.s32 0, %v1120
    %v1122 = vrot.slane %v779, %v1121
    %v1124 = vadd.f32 %v1095, %v1122
    %v1125 = vmul.f32 %v1110, %v1124
    %v1126 = vadd.f32 %v1103, %v1125
    %v1127 = vtanh.pop %v1126
    %v1128 = vsub.f32 1.0, %v1117
    %v1129 = vmul.f32 %v1128, %v1127
    %v1130 = vmul.f32 %v1117, %v781
    %v1131 = vadd.f32 %v1129, %v1130
    %1132 = vst [vmem:[%s6] sm:$0xff] %v956
    %s1133 = scalar_lea.vmem %s74, 56
    %1134 = vst [vmem:[%s1133] sm:$0xff] %v1131
    %1135 = vmatprep.subr.mxu0 %v726
    %1136 = vmatpush1.msra.mxu0 %v725
    %1137 = vmatprep.subr.mxu0 %v723
    %1138 = vmatpush1.msra.mxu0 %v722
    %1139 = vmatprep.subr.mxu0 %v720
    %1140 = vmatpush1.msra.mxu0 %v719
    %1141 = vmatprep.subr.mxu0 %v717
    %1142 = vmatpush1.msra.mxu0 %v716
    %1143 = vmatprep.subr.mxu0 %v714
    %1144 = vmatpush1.msra.mxu0 %v713
    %1145 = vmatprep.subr.mxu0 %v711
    %1146 = vmatpush1.msra.mxu0 %v710
    %1147 = vmatprep.subr.mxu0 %v708
    %1148 = vmatpush1.msra.mxu0 %v707
    %1149 = vmatprep.subr.mxu0 %v705
    %1150 = vmatpush1.msra.mxu0 %v704
    %1151 = vmatprep.subr.mxu0 %v702
    %1152 = vmatpush1.msra.mxu0 %v701
    %1153 = vmatprep.subr.mxu0 %v699
    %1154 = vmatpush1.msra.mxu0 %v698
    %1155 = vmatprep.subr.mxu0 %v696
    %1156 = vmatpush1.msra.mxu0 %v695
    %1157 = vmatprep.subr.mxu0 %v693
    %1158 = vmatpush1.msra.mxu0 %v692
    %1159 = vmatprep.subr.mxu0 %v690
    %1160 = vmatpush1.msra.mxu0 %v689
    %1161 = vmatprep.subr.mxu0 %v687
    %1162 = vmatpush1.msra.mxu0 %v686
    %1163 = vmatprep.subr.mxu0 %v684
    %1164 = vmatpush1.msra.mxu0 %v683
    %1165 = vmatprep.subr.mxu0 %v681
    %1166 = vmatpush1.msra.mxu0 %v680
    %1167 = vmatprep.subr.mxu0 0.0
    %1168 = vmatpush2.msra.mxu0 0.0
    %1169 = vmatprep.subr.mxu0 0.0
    %1170 = vmatpush2.msra.mxu0 0.0
    %1171 = vmatprep.subr.mxu0 0.0
    %1172 = vmatpush2.msra.mxu0 0.0
    %1173 = vmatprep.subr.mxu0 0.0
    %1174 = vmatpush2.msra.mxu0 0.0
    %1175 = vmatprep.subr.mxu0 0.0
    %1176 = vmatpush2.msra.mxu0 0.0
    %1177 = vmatprep.subr.mxu0 0.0
    %1178 = vmatpush2.msra.mxu0 0.0
    %1179 = vmatprep.subr.mxu0 0.0
    %1180 = vmatpush2.msra.mxu0 0.0
    %1181 = vmatprep.subr.mxu0 0.0
    %1182 = vmatpush2.msra.mxu0 0.0
    %1183 = vmatprep.subr.mxu0 0.0
    %1184 = vmatpush2.msra.mxu0 0.0
    %1185 = vmatprep.subr.mxu0 0.0
    %1186 = vmatpush2.msra.mxu0 0.0
    %1187 = vmatprep.subr.mxu0 0.0
    %1188 = vmatpush2.msra.mxu0 0.0
    %1189 = vmatprep.subr.mxu0 0.0
    %1190 = vmatpush2.msra.mxu0 0.0
    %1191 = vmatprep.subr.mxu0 0.0
    %1192 = vmatpush2.msra.mxu0 0.0
    %1193 = vmatprep.subr.mxu0 0.0
    %1194 = vmatpush2.msra.mxu0 0.0
    %1195 = vmatprep.subr.mxu0 0.0
    %1196 = vmatpush2.msra.mxu0 0.0
    %1197 = vmatprep.subr.mxu0 0.0
    %1198 = vmatpush2.msra.mxu0 0.0
    %1199 = vmatprep.mubr.f32.mxu0 0.0
    %1200 = vmatmul.mubr.f32.gmra.mxu0 %v956
    %v1201 = vpop.f32.mrf.mxu0
    %v1202 = vadd.f32 0.0, %v1201
    %v1203 = vpop.f32.mrf.mxu0
    %v1204 = vadd.f32 0.0, %v1203
    %1205 = vdwg.mxu0
    %1206 = vmatprep.subr.mxu0 0.0
    %1207 = vmatpush1.msra.mxu0 %v727
    %1208 = vmatprep.subr.mxu0 0.0
    %1209 = vmatpush1.msra.mxu0 %v724
    %1210 = vmatprep.subr.mxu0 0.0
    %1211 = vmatpush1.msra.mxu0 %v721
    %1212 = vmatprep.subr.mxu0 0.0
    %1213 = vmatpush1.msra.mxu0 %v718
    %1214 = vmatprep.subr.mxu0 0.0
    %1215 = vmatpush1.msra.mxu0 %v715
    %1216 = vmatprep.subr.mxu0 0.0
    %1217 = vmatpush1.msra.mxu0 %v712
    %1218 = vmatprep.subr.mxu0 0.0
    %1219 = vmatpush1.msra.mxu0 %v709
    %1220 = vmatprep.subr.mxu0 0.0
    %1221 = vmatpush1.msra.mxu0 %v706
    %1222 = vmatprep.subr.mxu0 0.0
    %1223 = vmatpush1.msra.mxu0 %v703
    %1224 = vmatprep.subr.mxu0 0.0
    %1225 = vmatpush1.msra.mxu0 %v700
    %1226 = vmatprep.subr.mxu0 0.0
    %1227 = vmatpush1.msra.mxu0 %v697
    %1228 = vmatprep.subr.mxu0 0.0
    %1229 = vmatpush1.msra.mxu0 %v694
    %1230 = vmatprep.subr.mxu0 0.0
    %1231 = vmatpush1.msra.mxu0 %v691
    %1232 = vmatprep.subr.mxu0 0.0
    %1233 = vmatpush1.msra.mxu0 %v688
    %1234 = vmatprep.subr.mxu0 0.0
    %1235 = vmatpush1.msra.mxu0 %v685
    %1236 = vmatprep.subr.mxu0 0.0
    %1237 = vmatpush1.msra.mxu0 %v682
    %1238 = vmatprep.subr.mxu0 0.0
    %1239 = vmatpush2.msra.mxu0 0.0
    %1240 = vmatprep.subr.mxu0 0.0
    %1241 = vmatpush2.msra.mxu0 0.0
    %1242 = vmatprep.subr.mxu0 0.0
    %1243 = vmatpush2.msra.mxu0 0.0
    %1244 = vmatprep.subr.mxu0 0.0
    %1245 = vmatpush2.msra.mxu0 0.0
    %1246 = vmatprep.subr.mxu0 0.0
    %1247 = vmatpush2.msra.mxu0 0.0
    %1248 = vmatprep.subr.mxu0 0.0
    %1249 = vmatpush2.msra.mxu0 0.0
    %1250 = vmatprep.subr.mxu0 0.0
    %1251 = vmatpush2.msra.mxu0 0.0
    %1252 = vmatprep.subr.mxu0 0.0
    %1253 = vmatpush2.msra.mxu0 0.0
    %1254 = vmatprep.subr.mxu0 0.0
    %1255 = vmatpush2.msra.mxu0 0.0
    %1256 = vmatprep.subr.mxu0 0.0
    %1257 = vmatpush2.msra.mxu0 0.0
    %1258 = vmatprep.subr.mxu0 0.0
    %1259 = vmatpush2.msra.mxu0 0.0
    %1260 = vmatprep.subr.mxu0 0.0
    %1261 = vmatpush2.msra.mxu0 0.0
    %1262 = vmatprep.subr.mxu0 0.0
    %1263 = vmatpush2.msra.mxu0 0.0
    %1264 = vmatprep.subr.mxu0 0.0
    %1265 = vmatpush2.msra.mxu0 0.0
    %1266 = vmatprep.subr.mxu0 0.0
    %1267 = vmatpush2.msra.mxu0 0.0
    %1268 = vmatprep.subr.mxu0 0.0
    %1269 = vmatpush2.msra.mxu0 0.0
    %1270 = vmatprep.mubr.f32.mxu0 0.0
    %1271 = vmatmul.mubr.f32.gmra.mxu0 %v956
    %v1272 = vpop.f32.mrf.mxu0
    %v1273 = vadd.f32 0.0, %v1272
    %v1274 = vpop.f32.mrf.mxu0
    %1275 = vdwg.mxu0
    %s1276 = smul.u32 1, 3
    %s1277 = smul.addr %s1276, 8
    %s1278 = scalar_lea.vmem [#allocation2], %s1277
    %v1279 = vld [vmem:[%s1278] sm:$0xff]
    %v1280 = vld [vmem:[%s1278 + $0x8] sm:$0xff]
    %v1281 = vld [vmem:[%s1278 + $0x10] sm:$0xff]
    %v1282 = vadd.f32 %v1279, %v1202
    %v1283 = vxor.u32 %v1282, 2147483648
    %v1284 = vmul.f32 %v1283, 1.442695
    %v1285 = vpow.pop %v1284
    %v1286 = vadd.f32 %v1285, 1.0
    %v1287 = vrcp.pop %v1286
    %v1288 = vmul.f32 1.0, %v1287
    %v1289 = vadd.f32 %v1280, %v1204
    %v1290 = vxor.u32 %v1289, 2147483648
    %v1291 = vmul.f32 %v1290, 1.442695
    %v1292 = vpow.pop %v1291
    %v1293 = vadd.f32 %v1292, 1.0
    %v1294 = vrcp.pop %v1293
    %v1295 = vmul.f32 1.0, %v1294
    %v1296 = vadd.f32 %v1273, %v947
    %v1297 = vmul.f32 %v1288, %v1296
    %v1298 = vadd.f32 %v1281, %v1297
    %v1299 = vtanh.pop %v1298
    %v1300 = vsub.f32 1.0, %v1295
    %v1301 = vmul.f32 %v1300, %v1299
    %v1302 = vmul.f32 %v1295, %v956
    %v1303 = vadd.f32 %v1301, %v1302
    %1304 = vmatprep.subr.mxu0 %v775
    %1305 = vmatpush1.msra.mxu0 %v774
    %1306 = vmatprep.subr.mxu0 %v772
    %1307 = vmatpush1.msra.mxu0 %v771
    %1308 = vmatprep.subr.mxu0 %v769
    %1309 = vmatpush1.msra.mxu0 %v768
    %1310 = vmatprep.subr.mxu0 %v766
    %1311 = vmatpush1.msra.mxu0 %v765
    %1312 = vmatprep.subr.mxu0 %v763
    %1313 = vmatpush1.msra.mxu0 %v762
    %1314 = vmatprep.subr.mxu0 %v760
    %1315 = vmatpush1.msra.mxu0 %v759
    %1316 = vmatprep.subr.mxu0 %v757
    %1317 = vmatpush1.msra.mxu0 %v756
    %1318 = vmatprep.subr.mxu0 %v754
    %1319 = vmatpush1.msra.mxu0 %v753
    %1320 = vmatprep.subr.mxu0 %v751
    %1321 = vmatpush1.msra.mxu0 %v750
    %1322 = vmatprep.subr.mxu0 %v748
    %1323 = vmatpush1.msra.mxu0 %v747
    %1324 = vmatprep.subr.mxu0 %v745
    %1325 = vmatpush1.msra.mxu0 %v744
    %1326 = vmatprep.subr.mxu0 %v742
    %1327 = vmatpush1.msra.mxu0 %v741
    %1328 = vmatprep.subr.mxu0 %v739
    %1329 = vmatpush1.msra.mxu0 %v738
    %1330 = vmatprep.subr.mxu0 %v736
    %1331 = vmatpush1.msra.mxu0 %v735
    %1332 = vmatprep.subr.mxu0 %v733
    %1333 = vmatpush1.msra.mxu0 %v732
    %1334 = vmatprep.subr.mxu0 %v730
    %1335 = vmatpush1.msra.mxu0 %v729
    %1336 = vmatprep.subr.mxu0 0.0
    %1337 = vmatpush2.msra.mxu0 0.0
    %1338 = vmatprep.subr.mxu0 0.0
    %1339 = vmatpush2.msra.mxu0 0.0
    %1340 = vmatprep.subr.mxu0 0.0
    %1341 = vmatpush2.msra.mxu0 0.0
    %1342 = vmatprep.subr.mxu0 0.0
    %1343 = vmatpush2.msra.mxu0 0.0
    %1344 = vmatprep.subr.mxu0 0.0
    %1345 = vmatpush2.msra.mxu0 0.0
    %1346 = vmatprep.subr.mxu0 0.0
    %1347 = vmatpush2.msra.mxu0 0.0
    %1348 = vmatprep.subr.mxu0 0.0
    %1349 = vmatpush2.msra.mxu0 0.0
    %1350 = vmatprep.subr.mxu0 0.0
    %1351 = vmatpush2.msra.mxu0 0.0
    %1352 = vmatprep.subr.mxu0 0.0
    %1353 = vmatpush2.msra.mxu0 0.0
    %1354 = vmatprep.subr.mxu0 0.0
    %1355 = vmatpush2.msra.mxu0 0.0
    %1356 = vmatprep.subr.mxu0 0.0
    %1357 = vmatpush2.msra.mxu0 0.0
    %1358 = vmatprep.subr.mxu0 0.0
    %1359 = vmatpush2.msra.mxu0 0.0
    %1360 = vmatprep.subr.mxu0 0.0
    %1361 = vmatpush2.msra.mxu0 0.0
    %1362 = vmatprep.subr.mxu0 0.0
    %1363 = vmatpush2.msra.mxu0 0.0
    %1364 = vmatprep.subr.mxu0 0.0
    %1365 = vmatpush2.msra.mxu0 0.0
    %1366 = vmatprep.subr.mxu0 0.0
    %1367 = vmatpush2.msra.mxu0 0.0
    %1368 = vmatprep.mubr.f32.mxu0 0.0
    %1369 = vmatmul.mubr.f32.gmra.mxu0 %v1131
    %v1370 = vpop.f32.mrf.mxu0
    %v1371 = vadd.f32 0.0, %v1370
    %v1372 = vpop.f32.mrf.mxu0
    %v1373 = vadd.f32 0.0, %v1372
    %1374 = vdwg.mxu0
    %1375 = vmatprep.subr.mxu0 0.0
    %1376 = vmatpush1.msra.mxu0 %v776
    %1377 = vmatprep.subr.mxu0 0.0
    %1378 = vmatpush1.msra.mxu0 %v773
    %1379 = vmatprep.subr.mxu0 0.0
    %1380 = vmatpush1.msra.mxu0 %v770
    %1381 = vmatprep.subr.mxu0 0.0
    %1382 = vmatpush1.msra.mxu0 %v767
    %1383 = vmatprep.subr.mxu0 0.0
    %1384 = vmatpush1.msra.mxu0 %v764
    %1385 = vmatprep.subr.mxu0 0.0
    %1386 = vmatpush1.msra.mxu0 %v761
    %1387 = vmatprep.subr.mxu0 0.0
    %1388 = vmatpush1.msra.mxu0 %v758
    %1389 = vmatprep.subr.mxu0 0.0
    %1390 = vmatpush1.msra.mxu0 %v755
    %1391 = vmatprep.subr.mxu0 0.0
    %1392 = vmatpush1.msra.mxu0 %v752
    %1393 = vmatprep.subr.mxu0 0.0
    %1394 = vmatpush1.msra.mxu0 %v749
    %1395 = vmatprep.subr.mxu0 0.0
    %1396 = vmatpush1.msra.mxu0 %v746
    %1397 = vmatprep.subr.mxu0 0.0
    %1398 = vmatpush1.msra.mxu0 %v743
    %1399 = vmatprep.subr.mxu0 0.0
    %1400 = vmatpush1.msra.mxu0 %v740
    %1401 = vmatprep.subr.mxu0 0.0
    %1402 = vmatpush1.msra.mxu0 %v737
    %1403 = vmatprep.subr.mxu0 0.0
    %1404 = vmatpush1.msra.mxu0 %v734
    %1405 = vmatprep.subr.mxu0 0.0
    %1406 = vmatpush1.msra.mxu0 %v731
    %1407 = vmatprep.subr.mxu0 0.0
    %1408 = vmatpush2.msra.mxu0 0.0
    %1409 = vmatprep.subr.mxu0 0.0
    %1410 = vmatpush2.msra.mxu0 0.0
    %1411 = vmatprep.subr.mxu0 0.0
    %1412 = vmatpush2.msra.mxu0 0.0
    %1413 = vmatprep.subr.mxu0 0.0
    %1414 = vmatpush2.msra.mxu0 0.0
    %1415 = vmatprep.subr.mxu0 0.0
    %1416 = vmatpush2.msra.mxu0 0.0
    %1417 = vmatprep.subr.mxu0 0.0
    %1418 = vmatpush2.msra.mxu0 0.0
    %1419 = vmatprep.subr.mxu0 0.0
    %1420 = vmatpush2.msra.mxu0 0.0
    %1421 = vmatprep.subr.mxu0 0.0
    %1422 = vmatpush2.msra.mxu0 0.0
    %1423 = vmatprep.subr.mxu0 0.0
    %1424 = vmatpush2.msra.mxu0 0.0
    %1425 = vmatprep.subr.mxu0 0.0
    %1426 = vmatpush2.msra.mxu0 0.0
    %1427 = vmatprep.subr.mxu0 0.0
    %1428 = vmatpush2.msra.mxu0 0.0
    %1429 = vmatprep.subr.mxu0 0.0
    %1430 = vmatpush2.msra.mxu0 0.0
    %1431 = vmatprep.subr.mxu0 0.0
    %1432 = vmatpush2.msra.mxu0 0.0
    %1433 = vmatprep.subr.mxu0 0.0
    %1434 = vmatpush2.msra.mxu0 0.0
    %1435 = vmatprep.subr.mxu0 0.0
    %1436 = vmatpush2.msra.mxu0 0.0
    %1437 = vmatprep.subr.mxu0 0.0
    %1438 = vmatpush2.msra.mxu0 0.0
    %1439 = vmatprep.mubr.f32.mxu0 0.0
    %1440 = vmatmul.mubr.f32.gmra.mxu0 %v1131
    %v1441 = vpop.f32.mrf.mxu0
    %v1442 = vadd.f32 0.0, %v1441
    %v1443 = vpop.f32.mrf.mxu0
    %1444 = vdwg.mxu0
    %s1445 = smul.u32 6, 3
    %s1446 = smul.addr %s1445, 8
    %s1447 = scalar_lea.vmem [#allocation3], %s1446
    %v1448 = vld [vmem:[%s1447] sm:$0xff]
    %v1449 = vld [vmem:[%s1447 + $0x8] sm:$0xff]
    %v1450 = vld [vmem:[%s1447 + $0x10] sm:$0xff]
    %v1451 = vadd.f32 %v1448, %v1371
    %v1452 = vxor.u32 %v1451, 2147483648
    %v1453 = vmul.f32 %v1452, 1.442695
    %v1454 = vpow.pop %v1453
    %v1455 = vadd.f32 %v1454, 1.0
    %v1456 = vrcp.pop %v1455
    %v1457 = vmul.f32 1.0, %v1456
    %v1458 = vadd.f32 %v1449, %v1373
    %v1459 = vxor.u32 %v1458, 2147483648
    %v1460 = vmul.f32 %v1459, 1.442695
    %v1461 = vpow.pop %v1460
    %v1462 = vadd.f32 %v1461, 1.0
    %v1463 = vrcp.pop %v1462
    %v1464 = vmul.f32 1.0, %v1463
    %v1465 = vadd.f32 %v1442, %v1122
    %v1466 = vmul.f32 %v1457, %v1465
    %v1467 = vadd.f32 %v1450, %v1466
    %v1468 = vtanh.pop %v1467
    %v1469 = vsub.f32 1.0, %v1464
    %v1470 = vmul.f32 %v1469, %v1468
    %v1471 = vmul.f32 %v1464, %v1131
    %v1472 = vadd.f32 %v1470, %v1471
    %s1473 = scalar_lea.vmem %s6, 8
    %1474 = vst [vmem:[%s1473] sm:$0xff] %v1303
    %s1475 = scalar_lea.vmem %s74, 48
    %1476 = vst [vmem:[%s1475] sm:$0xff] %v1472
    %1477 = vmatprep.subr.mxu0 %v726
    %1478 = vmatpush1.msra.mxu0 %v725
    %1479 = vmatprep.subr.mxu0 %v723
    %1480 = vmatpush1.msra.mxu0 %v722
    %1481 = vmatprep.subr.mxu0 %v720
    %1482 = vmatpush1.msra.mxu0 %v719
    %1483 = vmatprep.subr.mxu0 %v717
    %1484 = vmatpush1.msra.mxu0 %v716
    %1485 = vmatprep.subr.mxu0 %v714
    %1486 = vmatpush1.msra.mxu0 %v713
    %1487 = vmatprep.subr.mxu0 %v711
    %1488 = vmatpush1.msra.mxu0 %v710
    %1489 = vmatprep.subr.mxu0 %v708
    %1490 = vmatpush1.msra.mxu0 %v707
    %1491 = vmatprep.subr.mxu0 %v705
    %1492 = vmatpush1.msra.mxu0 %v704
    %1493 = vmatprep.subr.mxu0 %v702
    %1494 = vmatpush1.msra.mxu0 %v701
    %1495 = vmatprep.subr.mxu0 %v699
    %1496 = vmatpush1.msra.mxu0 %v698
    %1497 = vmatprep.subr.mxu0 %v696
    %1498 = vmatpush1.msra.mxu0 %v695
    %1499 = vmatprep.subr.mxu0 %v693
    %1500 = vmatpush1.msra.mxu0 %v692
    %1501 = vmatprep.subr.mxu0 %v690
    %1502 = vmatpush1.msra.mxu0 %v689
    %1503 = vmatprep.subr.mxu0 %v687
    %1504 = vmatpush1.msra.mxu0 %v686
    %1505 = vmatprep.subr.mxu0 %v684
    %1506 = vmatpush1.msra.mxu0 %v683
    %1507 = vmatprep.subr.mxu0 %v681
    %1508 = vmatpush1.msra.mxu0 %v680
    %1509 = vmatprep.subr.mxu0 0.0
    %1510 = vmatpush2.msra.mxu0 0.0
    %1511 = vmatprep.subr.mxu0 0.0
    %1512 = vmatpush2.msra.mxu0 0.0
    %1513 = vmatprep.subr.mxu0 0.0
    %1514 = vmatpush2.msra.mxu0 0.0
    %1515 = vmatprep.subr.mxu0 0.0
    %1516 = vmatpush2.msra.mxu0 0.0
    %1517 = vmatprep.subr.mxu0 0.0
    %1518 = vmatpush2.msra.mxu0 0.0
    %1519 = vmatprep.subr.mxu0 0.0
    %1520 = vmatpush2.msra.mxu0 0.0
    %1521 = vmatprep.subr.mxu0 0.0
    %1522 = vmatpush2.msra.mxu0 0.0
    %1523 = vmatprep.subr.mxu0 0.0
    %1524 = vmatpush2.msra.mxu0 0.0
    %1525 = vmatprep.subr.mxu0 0.0
    %1526 = vmatpush2.msra.mxu0 0.0
    %1527 = vmatprep.subr.mxu0 0.0
    %1528 = vmatpush2.msra.mxu0 0.0
    %1529 = vmatprep.subr.mxu0 0.0
    %1530 = vmatpush2.msra.mxu0 0.0
    %1531 = vmatprep.subr.mxu0 0.0
    %1532 = vmatpush2.msra.mxu0 0.0
    %1533 = vmatprep.subr.mxu0 0.0
    %1534 = vmatpush2.msra.mxu0 0.0
    %1535 = vmatprep.subr.mxu0 0.0
    %1536 = vmatpush2.msra.mxu0 0.0
    %1537 = vmatprep.subr.mxu0 0.0
    %1538 = vmatpush2.msra.mxu0 0.0
    %1539 = vmatprep.subr.mxu0 0.0
    %1540 = vmatpush2.msra.mxu0 0.0
    %1541 = vmatprep.mubr.f32.mxu0 0.0
    %1542 = vmatmul.mubr.f32.gmra.mxu0 %v1303
    %v1543 = vpop.f32.mrf.mxu0
    %v1544 = vadd.f32 0.0, %v1543
    %v1545 = vpop.f32.mrf.mxu0
    %v1546 = vadd.f32 0.0, %v1545
    %1547 = vdwg.mxu0
    %1548 = vmatprep.subr.mxu0 0.0
    %1549 = vmatpush1.msra.mxu0 %v727
    %1550 = vmatprep.subr.mxu0 0.0
    %1551 = vmatpush1.msra.mxu0 %v724
    %1552 = vmatprep.subr.mxu0 0.0
    %1553 = vmatpush1.msra.mxu0 %v721
    %1554 = vmatprep.subr.mxu0 0.0
    %1555 = vmatpush1.msra.mxu0 %v718
    %1556 = vmatprep.subr.mxu0 0.0
    %1557 = vmatpush1.msra.mxu0 %v715
    %1558 = vmatprep.subr.mxu0 0.0
    %1559 = vmatpush1.msra.mxu0 %v712
    %1560 = vmatprep.subr.mxu0 0.0
    %1561 = vmatpush1.msra.mxu0 %v709
    %1562 = vmatprep.subr.mxu0 0.0
    %1563 = vmatpush1.msra.mxu0 %v706
    %1564 = vmatprep.subr.mxu0 0.0
    %1565 = vmatpush1.msra.mxu0 %v703
    %1566 = vmatprep.subr.mxu0 0.0
    %1567 = vmatpush1.msra.mxu0 %v700
    %1568 = vmatprep.subr.mxu0 0.0
    %1569 = vmatpush1.msra.mxu0 %v697
    %1570 = vmatprep.subr.mxu0 0.0
    %1571 = vmatpush1.msra.mxu0 %v694
    %1572 = vmatprep.subr.mxu0 0.0
    %1573 = vmatpush1.msra.mxu0 %v691
    %1574 = vmatprep.subr.mxu0 0.0
    %1575 = vmatpush1.msra.mxu0 %v688
    %1576 = vmatprep.subr.mxu0 0.0
    %1577 = vmatpush1.msra.mxu0 %v685
    %1578 = vmatprep.subr.mxu0 0.0
    %1579 = vmatpush1.msra.mxu0 %v682
    %1580 = vmatprep.subr.mxu0 0.0
    %1581 = vmatpush2.msra.mxu0 0.0
    %1582 = vmatprep.subr.mxu0 0.0
    %1583 = vmatpush2.msra.mxu0 0.0
    %1584 = vmatprep.subr.mxu0 0.0
    %1585 = vmatpush2.msra.mxu0 0.0
    %1586 = vmatprep.subr.mxu0 0.0
    %1587 = vmatpush2.msra.mxu0 0.0
    %1588 = vmatprep.subr.mxu0 0.0
    %1589 = vmatpush2.msra.mxu0 0.0
    %1590 = vmatprep.subr.mxu0 0.0
    %1591 = vmatpush2.msra.mxu0 0.0
    %1592 = vmatprep.subr.mxu0 0.0
    %1593 = vmatpush2.msra.mxu0 0.0
    %1594 = vmatprep.subr.mxu0 0.0
    %1595 = vmatpush2.msra.mxu0 0.0
    %1596 = vmatprep.subr.mxu0 0.0
    %1597 = vmatpush2.msra.mxu0 0.0
    %1598 = vmatprep.subr.mxu0 0.0
    %1599 = vmatpush2.msra.mxu0 0.0
    %1600 = vmatprep.subr.mxu0 0.0
    %1601 = vmatpush2.msra.mxu0 0.0
    %1602 = vmatprep.subr.mxu0 0.0
    %1603 = vmatpush2.msra.mxu0 0.0
    %1604 = vmatprep.subr.mxu0 0.0
    %1605 = vmatpush2.msra.mxu0 0.0
    %1606 = vmatprep.subr.mxu0 0.0
    %1607 = vmatpush2.msra.mxu0 0.0
    %1608 = vmatprep.subr.mxu0 0.0
    %1609 = vmatpush2.msra.mxu0 0.0
    %1610 = vmatprep.subr.mxu0 0.0
    %1611 = vmatpush2.msra.mxu0 0.0
    %1612 = vmatprep.mubr.f32.mxu0 0.0
    %1613 = vmatmul.mubr.f32.gmra.mxu0 %v1303
    %v1614 = vpop.f32.mrf.mxu0
    %v1615 = vadd.f32 0.0, %v1614
    %v1616 = vpop.f32.mrf.mxu0
    %1617 = vdwg.mxu0
    %s1618 = smul.u32 2, 3
    %s1619 = smul.addr %s1618, 8
    %s1620 = scalar_lea.vmem [#allocation2], %s1619
    %v1621 = vld [vmem:[%s1620] sm:$0xff]
    %v1622 = vld [vmem:[%s1620 + $0x8] sm:$0xff]
    %v1623 = vld [vmem:[%s1620 + $0x10] sm:$0xff]
    %v1624 = vadd.f32 %v1621, %v1544
    %v1625 = vxor.u32 %v1624, 2147483648
    %v1626 = vmul.f32 %v1625, 1.442695
    %v1627 = vpow.pop %v1626
    %v1628 = vadd.f32 %v1627, 1.0
    %v1629 = vrcp.pop %v1628
    %v1630 = vmul.f32 1.0, %v1629
    %v1631 = vadd.f32 %v1622, %v1546
    %v1632 = vxor.u32 %v1631, 2147483648
    %v1633 = vmul.f32 %v1632, 1.442695
    %v1634 = vpow.pop %v1633
    %v1635 = vadd.f32 %v1634, 1.0
    %v1636 = vrcp.pop %v1635
    %v1637 = vmul.f32 1.0, %v1636
    %v1638 = vadd.f32 %v1615, %v947
    %v1639 = vmul.f32 %v1630, %v1638
    %v1640 = vadd.f32 %v1623, %v1639
    %v1641 = vtanh.pop %v1640
    %v1642 = vsub.f32 1.0, %v1637
    %v1643 = vmul.f32 %v1642, %v1641
    %v1644 = vmul.f32 %v1637, %v1303
    %v1645 = vadd.f32 %v1643, %v1644
    %1646 = vmatprep.subr.mxu0 %v775
    %1647 = vmatpush1.msra.mxu0 %v774
    %1648 = vmatprep.subr.mxu0 %v772
    %1649 = vmatpush1.msra.mxu0 %v771
    %1650 = vmatprep.subr.mxu0 %v769
    %1651 = vmatpush1.msra.mxu0 %v768
    %1652 = vmatprep.subr.mxu0 %v766
    %1653 = vmatpush1.msra.mxu0 %v765
    %1654 = vmatprep.subr.mxu0 %v763
    %1655 = vmatpush1.msra.mxu0 %v762
    %1656 = vmatprep.subr.mxu0 %v760
    %1657 = vmatpush1.msra.mxu0 %v759
    %1658 = vmatprep.subr.mxu0 %v757
    %1659 = vmatpush1.msra.mxu0 %v756
    %1660 = vmatprep.subr.mxu0 %v754
    %1661 = vmatpush1.msra.mxu0 %v753
    %1662 = vmatprep.subr.mxu0 %v751
    %1663 = vmatpush1.msra.mxu0 %v750
    %1664 = vmatprep.subr.mxu0 %v748
    %1665 = vmatpush1.msra.mxu0 %v747
    %1666 = vmatprep.subr.mxu0 %v745
    %1667 = vmatpush1.msra.mxu0 %v744
    %1668 = vmatprep.subr.mxu0 %v742
    %1669 = vmatpush1.msra.mxu0 %v741
    %1670 = vmatprep.subr.mxu0 %v739
    %1671 = vmatpush1.msra.mxu0 %v738
    %1672 = vmatprep.subr.mxu0 %v736
    %1673 = vmatpush1.msra.mxu0 %v735
    %1674 = vmatprep.subr.mxu0 %v733
    %1675 = vmatpush1.msra.mxu0 %v732
    %1676 = vmatprep.subr.mxu0 %v730
    %1677 = vmatpush1.msra.mxu0 %v729
    %1678 = vmatprep.subr.mxu0 0.0
    %1679 = vmatpush2.msra.mxu0 0.0
    %1680 = vmatprep.subr.mxu0 0.0
    %1681 = vmatpush2.msra.mxu0 0.0
    %1682 = vmatprep.subr.mxu0 0.0
    %1683 = vmatpush2.msra.mxu0 0.0
    %1684 = vmatprep.subr.mxu0 0.0
    %1685 = vmatpush2.msra.mxu0 0.0
    %1686 = vmatprep.subr.mxu0 0.0
    %1687 = vmatpush2.msra.mxu0 0.0
    %1688 = vmatprep.subr.mxu0 0.0
    %1689 = vmatpush2.msra.mxu0 0.0
    %1690 = vmatprep.subr.mxu0 0.0
    %1691 = vmatpush2.msra.mxu0 0.0
    %1692 = vmatprep.subr.mxu0 0.0
    %1693 = vmatpush2.msra.mxu0 0.0
    %1694 = vmatprep.subr.mxu0 0.0
    %1695 = vmatpush2.msra.mxu0 0.0
    %1696 = vmatprep.subr.mxu0 0.0
    %1697 = vmatpush2.msra.mxu0 0.0
    %1698 = vmatprep.subr.mxu0 0.0
    %1699 = vmatpush2.msra.mxu0 0.0
    %1700 = vmatprep.subr.mxu0 0.0
    %1701 = vmatpush2.msra.mxu0 0.0
    %1702 = vmatprep.subr.mxu0 0.0
    %1703 = vmatpush2.msra.mxu0 0.0
    %1704 = vmatprep.subr.mxu0 0.0
    %1705 = vmatpush2.msra.mxu0 0.0
    %1706 = vmatprep.subr.mxu0 0.0
    %1707 = vmatpush2.msra.mxu0 0.0
    %1708 = vmatprep.subr.mxu0 0.0
    %1709 = vmatpush2.msra.mxu0 0.0
    %1710 = vmatprep.mubr.f32.mxu0 0.0
    %1711 = vmatmul.mubr.f32.gmra.mxu0 %v1472
    %v1712 = vpop.f32.mrf.mxu0
    %v1713 = vadd.f32 0.0, %v1712
    %v1714 = vpop.f32.mrf.mxu0
    %v1715 = vadd.f32 0.0, %v1714
    %1716 = vdwg.mxu0
    %1717 = vmatprep.subr.mxu0 0.0
    %1718 = vmatpush1.msra.mxu0 %v776
    %1719 = vmatprep.subr.mxu0 0.0
    %1720 = vmatpush1.msra.mxu0 %v773
    %1721 = vmatprep.subr.mxu0 0.0
    %1722 = vmatpush1.msra.mxu0 %v770
    %1723 = vmatprep.subr.mxu0 0.0
    %1724 = vmatpush1.msra.mxu0 %v767
    %1725 = vmatprep.subr.mxu0 0.0
    %1726 = vmatpush1.msra.mxu0 %v764
    %1727 = vmatprep.subr.mxu0 0.0
    %1728 = vmatpush1.msra.mxu0 %v761
    %1729 = vmatprep.subr.mxu0 0.0
    %1730 = vmatpush1.msra.mxu0 %v758
    %1731 = vmatprep.subr.mxu0 0.0
    %1732 = vmatpush1.msra.mxu0 %v755
    %1733 = vmatprep.subr.mxu0 0.0
    %1734 = vmatpush1.msra.mxu0 %v752
    %1735 = vmatprep.subr.mxu0 0.0
    %1736 = vmatpush1.msra.mxu0 %v749
    %1737 = vmatprep.subr.mxu0 0.0
    %1738 = vmatpush1.msra.mxu0 %v746
    %1739 = vmatprep.subr.mxu0 0.0
    %1740 = vmatpush1.msra.mxu0 %v743
    %1741 = vmatprep.subr.mxu0 0.0
    %1742 = vmatpush1.msra.mxu0 %v740
    %1743 = vmatprep.subr.mxu0 0.0
    %1744 = vmatpush1.msra.mxu0 %v737
    %1745 = vmatprep.subr.mxu0 0.0
    %1746 = vmatpush1.msra.mxu0 %v734
    %1747 = vmatprep.subr.mxu0 0.0
    %1748 = vmatpush1.msra.mxu0 %v731
    %1749 = vmatprep.subr.mxu0 0.0
    %1750 = vmatpush2.msra.mxu0 0.0
    %1751 = vmatprep.subr.mxu0 0.0
    %1752 = vmatpush2.msra.mxu0 0.0
    %1753 = vmatprep.subr.mxu0 0.0
    %1754 = vmatpush2.msra.mxu0 0.0
    %1755 = vmatprep.subr.mxu0 0.0
    %1756 = vmatpush2.msra.mxu0 0.0
    %1757 = vmatprep.subr.mxu0 0.0
    %1758 = vmatpush2.msra.mxu0 0.0
    %1759 = vmatprep.subr.mxu0 0.0
    %1760 = vmatpush2.msra.mxu0 0.0
    %1761 = vmatprep.subr.mxu0 0.0
    %1762 = vmatpush2.msra.mxu0 0.0
    %1763 = vmatprep.subr.mxu0 0.0
    %1764 = vmatpush2.msra.mxu0 0.0
    %1765 = vmatprep.subr.mxu0 0.0
    %1766 = vmatpush2.msra.mxu0 0.0
    %1767 = vmatprep.subr.mxu0 0.0
    %1768 = vmatpush2.msra.mxu0 0.0
    %1769 = vmatprep.subr.mxu0 0.0
    %1770 = vmatpush2.msra.mxu0 0.0
    %1771 = vmatprep.subr.mxu0 0.0
    %1772 = vmatpush2.msra.mxu0 0.0
    %1773 = vmatprep.subr.mxu0 0.0
    %1774 = vmatpush2.msra.mxu0 0.0
    %1775 = vmatprep.subr.mxu0 0.0
    %1776 = vmatpush2.msra.mxu0 0.0
    %1777 = vmatprep.subr.mxu0 0.0
    %1778 = vmatpush2.msra.mxu0 0.0
    %1779 = vmatprep.subr.mxu0 0.0
    %1780 = vmatpush2.msra.mxu0 0.0
    %1781 = vmatprep.mubr.f32.mxu0 0.0
    %1782 = vmatmul.mubr.f32.gmra.mxu0 %v1472
    %v1783 = vpop.f32.mrf.mxu0
    %v1784 = vadd.f32 0.0, %v1783
    %v1785 = vpop.f32.mrf.mxu0
    %1786 = vdwg.mxu0
    %s1787 = smul.u32 5, 3
    %s1788 = smul.addr %s1787, 8
    %s1789 = scalar_lea.vmem [#allocation3], %s1788
    %v1790 = vld [vmem:[%s1789] sm:$0xff]
    %v1791 = vld [vmem:[%s1789 + $0x8] sm:$0xff]
    %v1792 = vld [vmem:[%s1789 + $0x10] sm:$0xff]
    %v1793 = vadd.f32 %v1790, %v1713
    %v1794 = vxor.u32 %v1793, 2147483648
    %v1795 = vmul.f32 %v1794, 1.442695
    %v1796 = vpow.pop %v1795
    %v1797 = vadd.f32 %v1796, 1.0
    %v1798 = vrcp.pop %v1797
    %v1799 = vmul.f32 1.0, %v1798
    %v1800 = vadd.f32 %v1791, %v1715
    %v1801 = vxor.u32 %v1800, 2147483648
    %v1802 = vmul.f32 %v1801, 1.442695
    %v1803 = vpow.pop %v1802
    %v1804 = vadd.f32 %v1803, 1.0
    %v1805 = vrcp.pop %v1804
    %v1806 = vmul.f32 1.0, %v1805
    %v1807 = vadd.f32 %v1784, %v1122
    %v1808 = vmul.f32 %v1799, %v1807
    %v1809 = vadd.f32 %v1792, %v1808
    %v1810 = vtanh.pop %v1809
    %v1811 = vsub.f32 1.0, %v1806
    %v1812 = vmul.f32 %v1811, %v1810
    %v1813 = vmul.f32 %v1806, %v1472
    %v1814 = vadd.f32 %v1812, %v1813
    %s1815 = scalar_lea.vmem %s6, 16
    %1816 = vst [vmem:[%s1815] sm:$0xff] %v1645
    %s1817 = scalar_lea.vmem %s74, 40
    %1818 = vst [vmem:[%s1817] sm:$0xff] %v1814
    %1819 = vmatprep.subr.mxu0 %v726
    %1820 = vmatpush1.msra.mxu0 %v725
    %1821 = vmatprep.subr.mxu0 %v723
    %1822 = vmatpush1.msra.mxu0 %v722
    %1823 = vmatprep.subr.mxu0 %v720
    %1824 = vmatpush1.msra.mxu0 %v719
    %1825 = vmatprep.subr.mxu0 %v717
    %1826 = vmatpush1.msra.mxu0 %v716
    %1827 = vmatprep.subr.mxu0 %v714
    %1828 = vmatpush1.msra.mxu0 %v713
    %1829 = vmatprep.subr.mxu0 %v711
    %1830 = vmatpush1.msra.mxu0 %v710
    %1831 = vmatprep.subr.mxu0 %v708
    %1832 = vmatpush1.msra.mxu0 %v707
    %1833 = vmatprep.subr.mxu0 %v705
    %1834 = vmatpush1.msra.mxu0 %v704
    %1835 = vmatprep.subr.mxu0 %v702
    %1836 = vmatpush1.msra.mxu0 %v701
    %1837 = vmatprep.subr.mxu0 %v699
    %1838 = vmatpush1.msra.mxu0 %v698
    %1839 = vmatprep.subr.mxu0 %v696
    %1840 = vmatpush1.msra.mxu0 %v695
    %1841 = vmatprep.subr.mxu0 %v693
    %1842 = vmatpush1.msra.mxu0 %v692
    %1843 = vmatprep.subr.mxu0 %v690
    %1844 = vmatpush1.msra.mxu0 %v689
    %1845 = vmatprep.subr.mxu0 %v687
    %1846 = vmatpush1.msra.mxu0 %v686
    %1847 = vmatprep.subr.mxu0 %v684
    %1848 = vmatpush1.msra.mxu0 %v683
    %1849 = vmatprep.subr.mxu0 %v681
    %1850 = vmatpush1.msra.mxu0 %v680
    %1851 = vmatprep.subr.mxu0 0.0
    %1852 = vmatpush2.msra.mxu0 0.0
    %1853 = vmatprep.subr.mxu0 0.0
    %1854 = vmatpush2.msra.mxu0 0.0
    %1855 = vmatprep.subr.mxu0 0.0
    %1856 = vmatpush2.msra.mxu0 0.0
    %1857 = vmatprep.subr.mxu0 0.0
    %1858 = vmatpush2.msra.mxu0 0.0
    %1859 = vmatprep.subr.mxu0 0.0
    %1860 = vmatpush2.msra.mxu0 0.0
    %1861 = vmatprep.subr.mxu0 0.0
    %1862 = vmatpush2.msra.mxu0 0.0
    %1863 = vmatprep.subr.mxu0 0.0
    %1864 = vmatpush2.msra.mxu0 0.0
    %1865 = vmatprep.subr.mxu0 0.0
    %1866 = vmatpush2.msra.mxu0 0.0
    %1867 = vmatprep.subr.mxu0 0.0
    %1868 = vmatpush2.msra.mxu0 0.0
    %1869 = vmatprep.subr.mxu0 0.0
    %1870 = vmatpush2.msra.mxu0 0.0
    %1871 = vmatprep.subr.mxu0 0.0
    %1872 = vmatpush2.msra.mxu0 0.0
    %1873 = vmatprep.subr.mxu0 0.0
    %1874 = vmatpush2.msra.mxu0 0.0
    %1875 = vmatprep.subr.mxu0 0.0
    %1876 = vmatpush2.msra.mxu0 0.0
    %1877 = vmatprep.subr.mxu0 0.0
    %1878 = vmatpush2.msra.mxu0 0.0
    %1879 = vmatprep.subr.mxu0 0.0
    %1880 = vmatpush2.msra.mxu0 0.0
    %1881 = vmatprep.subr.mxu0 0.0
    %1882 = vmatpush2.msra.mxu0 0.0
    %1883 = vmatprep.mubr.f32.mxu0 0.0
    %1884 = vmatmul.mubr.f32.gmra.mxu0 %v1645
    %v1885 = vpop.f32.mrf.mxu0
    %v1886 = vadd.f32 0.0, %v1885
    %v1887 = vpop.f32.mrf.mxu0
    %v1888 = vadd.f32 0.0, %v1887
    %1889 = vdwg.mxu0
    %1890 = vmatprep.subr.mxu0 0.0
    %1891 = vmatpush1.msra.mxu0 %v727
    %1892 = vmatprep.subr.mxu0 0.0
    %1893 = vmatpush1.msra.mxu0 %v724
    %1894 = vmatprep.subr.mxu0 0.0
    %1895 = vmatpush1.msra.mxu0 %v721
    %1896 = vmatprep.subr.mxu0 0.0
    %1897 = vmatpush1.msra.mxu0 %v718
    %1898 = vmatprep.subr.mxu0 0.0
    %1899 = vmatpush1.msra.mxu0 %v715
    %1900 = vmatprep.subr.mxu0 0.0
    %1901 = vmatpush1.msra.mxu0 %v712
    %1902 = vmatprep.subr.mxu0 0.0
    %1903 = vmatpush1.msra.mxu0 %v709
    %1904 = vmatprep.subr.mxu0 0.0
    %1905 = vmatpush1.msra.mxu0 %v706
    %1906 = vmatprep.subr.mxu0 0.0
    %1907 = vmatpush1.msra.mxu0 %v703
    %1908 = vmatprep.subr.mxu0 0.0
    %1909 = vmatpush1.msra.mxu0 %v700
    %1910 = vmatprep.subr.mxu0 0.0
    %1911 = vmatpush1.msra.mxu0 %v697
    %1912 = vmatprep.subr.mxu0 0.0
    %1913 = vmatpush1.msra.mxu0 %v694
    %1914 = vmatprep.subr.mxu0 0.0
    %1915 = vmatpush1.msra.mxu0 %v691
    %1916 = vmatprep.subr.mxu0 0.0
    %1917 = vmatpush1.msra.mxu0 %v688
    %1918 = vmatprep.subr.mxu0 0.0
    %1919 = vmatpush1.msra.mxu0 %v685
    %1920 = vmatprep.subr.mxu0 0.0
    %1921 = vmatpush1.msra.mxu0 %v682
    %1922 = vmatprep.subr.mxu0 0.0
    %1923 = vmatpush2.msra.mxu0 0.0
    %1924 = vmatprep.subr.mxu0 0.0
    %1925 = vmatpush2.msra.mxu0 0.0
    %1926 = vmatprep.subr.mxu0 0.0
    %1927 = vmatpush2.msra.mxu0 0.0
    %1928 = vmatprep.subr.mxu0 0.0
    %1929 = vmatpush2.msra.mxu0 0.0
    %1930 = vmatprep.subr.mxu0 0.0
    %1931 = vmatpush2.msra.mxu0 0.0
    %1932 = vmatprep.subr.mxu0 0.0
    %1933 = vmatpush2.msra.mxu0 0.0
    %1934 = vmatprep.subr.mxu0 0.0
    %1935 = vmatpush2.msra.mxu0 0.0
    %1936 = vmatprep.subr.mxu0 0.0
    %1937 = vmatpush2.msra.mxu0 0.0
    %1938 = vmatprep.subr.mxu0 0.0
    %1939 = vmatpush2.msra.mxu0 0.0
    %1940 = vmatprep.subr.mxu0 0.0
    %1941 = vmatpush2.msra.mxu0 0.0
    %1942 = vmatprep.subr.mxu0 0.0
    %1943 = vmatpush2.msra.mxu0 0.0
    %1944 = vmatprep.subr.mxu0 0.0
    %1945 = vmatpush2.msra.mxu0 0.0
    %1946 = vmatprep.subr.mxu0 0.0
    %1947 = vmatpush2.msra.mxu0 0.0
    %1948 = vmatprep.subr.mxu0 0.0
    %1949 = vmatpush2.msra.mxu0 0.0
    %1950 = vmatprep.subr.mxu0 0.0
    %1951 = vmatpush2.msra.mxu0 0.0
    %1952 = vmatprep.subr.mxu0 0.0
    %1953 = vmatpush2.msra.mxu0 0.0
    %1954 = vmatprep.mubr.f32.mxu0 0.0
    %1955 = vmatmul.mubr.f32.gmra.mxu0 %v1645
    %v1956 = vpop.f32.mrf.mxu0
    %v1957 = vadd.f32 0.0, %v1956
    %v1958 = vpop.f32.mrf.mxu0
    %1959 = vdwg.mxu0
    %s1960 = smul.u32 3, 3
    %s1961 = smul.addr %s1960, 8
    %s1962 = scalar_lea.vmem [#allocation2], %s1961
    %v1963 = vld [vmem:[%s1962] sm:$0xff]
    %v1964 = vld [vmem:[%s1962 + $0x8] sm:$0xff]
    %v1965 = vld [vmem:[%s1962 + $0x10] sm:$0xff]
    %v1966 = vadd.f32 %v1963, %v1886
    %v1967 = vxor.u32 %v1966, 2147483648
    %v1968 = vmul.f32 %v1967, 1.442695
    %v1969 = vpow.pop %v1968
    %v1970 = vadd.f32 %v1969, 1.0
    %v1971 = vrcp.pop %v1970
    %v1972 = vmul.f32 1.0, %v1971
    %v1973 = vadd.f32 %v1964, %v1888
    %v1974 = vxor.u32 %v1973, 2147483648
    %v1975 = vmul.f32 %v1974, 1.442695
    %v1976 = vpow.pop %v1975
    %v1977 = vadd.f32 %v1976, 1.0
    %v1978 = vrcp.pop %v1977
    %v1979 = vmul.f32 1.0, %v1978
    %v1980 = vadd.f32 %v1957, %v947
    %v1981 = vmul.f32 %v1972, %v1980
    %v1982 = vadd.f32 %v1965, %v1981
    %v1983 = vtanh.pop %v1982
    %v1984 = vsub.f32 1.0, %v1979
    %v1985 = vmul.f32 %v1984, %v1983
    %v1986 = vmul.f32 %v1979, %v1645
    %v1987 = vadd.f32 %v1985, %v1986
    %1988 = vmatprep.subr.mxu0 %v775
    %1989 = vmatpush1.msra.mxu0 %v774
    %1990 = vmatprep.subr.mxu0 %v772
    %1991 = vmatpush1.msra.mxu0 %v771
    %1992 = vmatprep.subr.mxu0 %v769
    %1993 = vmatpush1.msra.mxu0 %v768
    %1994 = vmatprep.subr.mxu0 %v766
    %1995 = vmatpush1.msra.mxu0 %v765
    %1996 = vmatprep.subr.mxu0 %v763
    %1997 = vmatpush1.msra.mxu0 %v762
    %1998 = vmatprep.subr.mxu0 %v760
    %1999 = vmatpush1.msra.mxu0 %v759
    %2000 = vmatprep.subr.mxu0 %v757
    %2001 = vmatpush1.msra.mxu0 %v756
    %2002 = vmatprep.subr.mxu0 %v754
    %2003 = vmatpush1.msra.mxu0 %v753
    %2004 = vmatprep.subr.mxu0 %v751
    %2005 = vmatpush1.msra.mxu0 %v750
    %2006 = vmatprep.subr.mxu0 %v748
    %2007 = vmatpush1.msra.mxu0 %v747
    %2008 = vmatprep.subr.mxu0 %v745
    %2009 = vmatpush1.msra.mxu0 %v744
    %2010 = vmatprep.subr.mxu0 %v742
    %2011 = vmatpush1.msra.mxu0 %v741
    %2012 = vmatprep.subr.mxu0 %v739
    %2013 = vmatpush1.msra.mxu0 %v738
    %2014 = vmatprep.subr.mxu0 %v736
    %2015 = vmatpush1.msra.mxu0 %v735
    %2016 = vmatprep.subr.mxu0 %v733
    %2017 = vmatpush1.msra.mxu0 %v732
    %2018 = vmatprep.subr.mxu0 %v730
    %2019 = vmatpush1.msra.mxu0 %v729
    %2020 = vmatprep.subr.mxu0 0.0
    %2021 = vmatpush2.msra.mxu0 0.0
    %2022 = vmatprep.subr.mxu0 0.0
    %2023 = vmatpush2.msra.mxu0 0.0
    %2024 = vmatprep.subr.mxu0 0.0
    %2025 = vmatpush2.msra.mxu0 0.0
    %2026 = vmatprep.subr.mxu0 0.0
    %2027 = vmatpush2.msra.mxu0 0.0
    %2028 = vmatprep.subr.mxu0 0.0
    %2029 = vmatpush2.msra.mxu0 0.0
    %2030 = vmatprep.subr.mxu0 0.0
    %2031 = vmatpush2.msra.mxu0 0.0
    %2032 = vmatprep.subr.mxu0 0.0
    %2033 = vmatpush2.msra.mxu0 0.0
    %2034 = vmatprep.subr.mxu0 0.0
    %2035 = vmatpush2.msra.mxu0 0.0
    %2036 = vmatprep.subr.mxu0 0.0
    %2037 = vmatpush2.msra.mxu0 0.0
    %2038 = vmatprep.subr.mxu0 0.0
    %2039 = vmatpush2.msra.mxu0 0.0
    %2040 = vmatprep.subr.mxu0 0.0
    %2041 = vmatpush2.msra.mxu0 0.0
    %2042 = vmatprep.subr.mxu0 0.0
    %2043 = vmatpush2.msra.mxu0 0.0
    %2044 = vmatprep.subr.mxu0 0.0
    %2045 = vmatpush2.msra.mxu0 0.0
    %2046 = vmatprep.subr.mxu0 0.0
    %2047 = vmatpush2.msra.mxu0 0.0
    %2048 = vmatprep.subr.mxu0 0.0
    %2049 = vmatpush2.msra.mxu0 0.0
    %2050 = vmatprep.subr.mxu0 0.0
    %2051 = vmatpush2.msra.mxu0 0.0
    %2052 = vmatprep.mubr.f32.mxu0 0.0
    %2053 = vmatmul.mubr.f32.gmra.mxu0 %v1814
    %v2054 = vpop.f32.mrf.mxu0
    %v2055 = vadd.f32 0.0, %v2054
    %v2056 = vpop.f32.mrf.mxu0
    %v2057 = vadd.f32 0.0, %v2056
    %2058 = vdwg.mxu0
    %2059 = vmatprep.subr.mxu0 0.0
    %2060 = vmatpush1.msra.mxu0 %v776
    %2061 = vmatprep.subr.mxu0 0.0
    %2062 = vmatpush1.msra.mxu0 %v773
    %2063 = vmatprep.subr.mxu0 0.0
    %2064 = vmatpush1.msra.mxu0 %v770
    %2065 = vmatprep.subr.mxu0 0.0
    %2066 = vmatpush1.msra.mxu0 %v767
    %2067 = vmatprep.subr.mxu0 0.0
    %2068 = vmatpush1.msra.mxu0 %v764
    %2069 = vmatprep.subr.mxu0 0.0
    %2070 = vmatpush1.msra.mxu0 %v761
    %2071 = vmatprep.subr.mxu0 0.0
    %2072 = vmatpush1.msra.mxu0 %v758
    %2073 = vmatprep.subr.mxu0 0.0
    %2074 = vmatpush1.msra.mxu0 %v755
    %2075 = vmatprep.subr.mxu0 0.0
    %2076 = vmatpush1.msra.mxu0 %v752
    %2077 = vmatprep.subr.mxu0 0.0
    %2078 = vmatpush1.msra.mxu0 %v749
    %2079 = vmatprep.subr.mxu0 0.0
    %2080 = vmatpush1.msra.mxu0 %v746
    %2081 = vmatprep.subr.mxu0 0.0
    %2082 = vmatpush1.msra.mxu0 %v743
    %2083 = vmatprep.subr.mxu0 0.0
    %2084 = vmatpush1.msra.mxu0 %v740
    %2085 = vmatprep.subr.mxu0 0.0
    %2086 = vmatpush1.msra.mxu0 %v737
    %2087 = vmatprep.subr.mxu0 0.0
    %2088 = vmatpush1.msra.mxu0 %v734
    %2089 = vmatprep.subr.mxu0 0.0
    %2090 = vmatpush1.msra.mxu0 %v731
    %2091 = vmatprep.subr.mxu0 0.0
    %2092 = vmatpush2.msra.mxu0 0.0
    %2093 = vmatprep.subr.mxu0 0.0
    %2094 = vmatpush2.msra.mxu0 0.0
    %2095 = vmatprep.subr.mxu0 0.0
    %2096 = vmatpush2.msra.mxu0 0.0
    %2097 = vmatprep.subr.mxu0 0.0
    %2098 = vmatpush2.msra.mxu0 0.0
    %2099 = vmatprep.subr.mxu0 0.0
    %2100 = vmatpush2.msra.mxu0 0.0
    %2101 = vmatprep.subr.mxu0 0.0
    %2102 = vmatpush2.msra.mxu0 0.0
    %2103 = vmatprep.subr.mxu0 0.0
    %2104 = vmatpush2.msra.mxu0 0.0
    %2105 = vmatprep.subr.mxu0 0.0
    %2106 = vmatpush2.msra.mxu0 0.0
    %2107 = vmatprep.subr.mxu0 0.0
    %2108 = vmatpush2.msra.mxu0 0.0
    %2109 = vmatprep.subr.mxu0 0.0
    %2110 = vmatpush2.msra.mxu0 0.0
    %2111 = vmatprep.subr.mxu0 0.0
    %2112 = vmatpush2.msra.mxu0 0.0
    %2113 = vmatprep.subr.mxu0 0.0
    %2114 = vmatpush2.msra.mxu0 0.0
    %2115 = vmatprep.subr.mxu0 0.0
    %2116 = vmatpush2.msra.mxu0 0.0
    %2117 = vmatprep.subr.mxu0 0.0
    %2118 = vmatpush2.msra.mxu0 0.0
    %2119 = vmatprep.subr.mxu0 0.0
    %2120 = vmatpush2.msra.mxu0 0.0
    %2121 = vmatprep.subr.mxu0 0.0
    %2122 = vmatpush2.msra.mxu0 0.0
    %2123 = vmatprep.mubr.f32.mxu0 0.0
    %2124 = vmatmul.mubr.f32.gmra.mxu0 %v1814
    %v2125 = vpop.f32.mrf.mxu0
    %v2126 = vadd.f32 0.0, %v2125
    %v2127 = vpop.f32.mrf.mxu0
    %2128 = vdwg.mxu0
    %s2129 = smul.u32 4, 3
    %s2130 = smul.addr %s2129, 8
    %s2131 = scalar_lea.vmem [#allocation3], %s2130
    %v2132 = vld [vmem:[%s2131] sm:$0xff]
    %v2133 = vld [vmem:[%s2131 + $0x8] sm:$0xff]
    %v2134 = vld [vmem:[%s2131 + $0x10] sm:$0xff]
    %v2135 = vadd.f32 %v2132, %v2055
    %v2136 = vxor.u32 %v2135, 2147483648
    %v2137 = vmul.f32 %v2136, 1.442695
    %v2138 = vpow.pop %v2137
    %v2139 = vadd.f32 %v2138, 1.0
    %v2140 = vrcp.pop %v2139
    %v2141 = vmul.f32 1.0, %v2140
    %v2142 = vadd.f32 %v2133, %v2057
    %v2143 = vxor.u32 %v2142, 2147483648
    %v2144 = vmul.f32 %v2143, 1.442695
    %v2145 = vpow.pop %v2144
    %v2146 = vadd.f32 %v2145, 1.0
    %v2147 = vrcp.pop %v2146
    %v2148 = vmul.f32 1.0, %v2147
    %v2149 = vadd.f32 %v2126, %v1122
    %v2150 = vmul.f32 %v2141, %v2149
    %v2151 = vadd.f32 %v2134, %v2150
    %v2152 = vtanh.pop %v2151
    %v2153 = vsub.f32 1.0, %v2148
    %v2154 = vmul.f32 %v2153, %v2152
    %v2155 = vmul.f32 %v2148, %v1814
    %v2156 = vadd.f32 %v2154, %v2155
    %s2157 = scalar_lea.vmem %s6, 24
    %2158 = vst [vmem:[%s2157] sm:$0xff] %v1987
    %s2159 = scalar_lea.vmem %s74, 32
    %2160 = vst [vmem:[%s2159] sm:$0xff] %v2156
    %2161 = vmatprep.subr.mxu0 %v726
    %2162 = vmatpush1.msra.mxu0 %v725
    %2163 = vmatprep.subr.mxu0 %v723
    %2164 = vmatpush1.msra.mxu0 %v722
    %2165 = vmatprep.subr.mxu0 %v720
    %2166 = vmatpush1.msra.mxu0 %v719
    %2167 = vmatprep.subr.mxu0 %v717
    %2168 = vmatpush1.msra.mxu0 %v716
    %2169 = vmatprep.subr.mxu0 %v714
    %2170 = vmatpush1.msra.mxu0 %v713
    %2171 = vmatprep.subr.mxu0 %v711
    %2172 = vmatpush1.msra.mxu0 %v710
    %2173 = vmatprep.subr.mxu0 %v708
    %2174 = vmatpush1.msra.mxu0 %v707
    %2175 = vmatprep.subr.mxu0 %v705
    %2176 = vmatpush1.msra.mxu0 %v704
    %2177 = vmatprep.subr.mxu0 %v702
    %2178 = vmatpush1.msra.mxu0 %v701
    %2179 = vmatprep.subr.mxu0 %v699
    %2180 = vmatpush1.msra.mxu0 %v698
    %2181 = vmatprep.subr.mxu0 %v696
    %2182 = vmatpush1.msra.mxu0 %v695
    %2183 = vmatprep.subr.mxu0 %v693
    %2184 = vmatpush1.msra.mxu0 %v692
    %2185 = vmatprep.subr.mxu0 %v690
    %2186 = vmatpush1.msra.mxu0 %v689
    %2187 = vmatprep.subr.mxu0 %v687
    %2188 = vmatpush1.msra.mxu0 %v686
    %2189 = vmatprep.subr.mxu0 %v684
    %2190 = vmatpush1.msra.mxu0 %v683
    %2191 = vmatprep.subr.mxu0 %v681
    %2192 = vmatpush1.msra.mxu0 %v680
    %2193 = vmatprep.subr.mxu0 0.0
    %2194 = vmatpush2.msra.mxu0 0.0
    %2195 = vmatprep.subr.mxu0 0.0
    %2196 = vmatpush2.msra.mxu0 0.0
    %2197 = vmatprep.subr.mxu0 0.0
    %2198 = vmatpush2.msra.mxu0 0.0
    %2199 = vmatprep.subr.mxu0 0.0
    %2200 = vmatpush2.msra.mxu0 0.0
    %2201 = vmatprep.subr.mxu0 0.0
    %2202 = vmatpush2.msra.mxu0 0.0
    %2203 = vmatprep.subr.mxu0 0.0
    %2204 = vmatpush2.msra.mxu0 0.0
    %2205 = vmatprep.subr.mxu0 0.0
    %2206 = vmatpush2.msra.mxu0 0.0
    %2207 = vmatprep.subr.mxu0 0.0
    %2208 = vmatpush2.msra.mxu0 0.0
    %2209 = vmatprep.subr.mxu0 0.0
    %2210 = vmatpush2.msra.mxu0 0.0
    %2211 = vmatprep.subr.mxu0 0.0
    %2212 = vmatpush2.msra.mxu0 0.0
    %2213 = vmatprep.subr.mxu0 0.0
    %2214 = vmatpush2.msra.mxu0 0.0
    %2215 = vmatprep.subr.mxu0 0.0
    %2216 = vmatpush2.msra.mxu0 0.0
    %2217 = vmatprep.subr.mxu0 0.0
    %2218 = vmatpush2.msra.mxu0 0.0
    %2219 = vmatprep.subr.mxu0 0.0
    %2220 = vmatpush2.msra.mxu0 0.0
    %2221 = vmatprep.subr.mxu0 0.0
    %2222 = vmatpush2.msra.mxu0 0.0
    %2223 = vmatprep.subr.mxu0 0.0
    %2224 = vmatpush2.msra.mxu0 0.0
    %2225 = vmatprep.mubr.f32.mxu0 0.0
    %2226 = vmatmul.mubr.f32.gmra.mxu0 %v1987
    %v2227 = vpop.f32.mrf.mxu0
    %v2228 = vadd.f32 0.0, %v2227
    %v2229 = vpop.f32.mrf.mxu0
    %v2230 = vadd.f32 0.0, %v2229
    %2231 = vdwg.mxu0
    %2232 = vmatprep.subr.mxu0 0.0
    %2233 = vmatpush1.msra.mxu0 %v727
    %2234 = vmatprep.subr.mxu0 0.0
    %2235 = vmatpush1.msra.mxu0 %v724
    %2236 = vmatprep.subr.mxu0 0.0
    %2237 = vmatpush1.msra.mxu0 %v721
    %2238 = vmatprep.subr.mxu0 0.0
    %2239 = vmatpush1.msra.mxu0 %v718
    %2240 = vmatprep.subr.mxu0 0.0
    %2241 = vmatpush1.msra.mxu0 %v715
    %2242 = vmatprep.subr.mxu0 0.0
    %2243 = vmatpush1.msra.mxu0 %v712
    %2244 = vmatprep.subr.mxu0 0.0
    %2245 = vmatpush1.msra.mxu0 %v709
    %2246 = vmatprep.subr.mxu0 0.0
    %2247 = vmatpush1.msra.mxu0 %v706
    %2248 = vmatprep.subr.mxu0 0.0
    %2249 = vmatpush1.msra.mxu0 %v703
    %2250 = vmatprep.subr.mxu0 0.0
    %2251 = vmatpush1.msra.mxu0 %v700
    %2252 = vmatprep.subr.mxu0 0.0
    %2253 = vmatpush1.msra.mxu0 %v697
    %2254 = vmatprep.subr.mxu0 0.0
    %2255 = vmatpush1.msra.mxu0 %v694
    %2256 = vmatprep.subr.mxu0 0.0
    %2257 = vmatpush1.msra.mxu0 %v691
    %2258 = vmatprep.subr.mxu0 0.0
    %2259 = vmatpush1.msra.mxu0 %v688
    %2260 = vmatprep.subr.mxu0 0.0
    %2261 = vmatpush1.msra.mxu0 %v685
    %2262 = vmatprep.subr.mxu0 0.0
    %2263 = vmatpush1.msra.mxu0 %v682
    %2264 = vmatprep.subr.mxu0 0.0
    %2265 = vmatpush2.msra.mxu0 0.0
    %2266 = vmatprep.subr.mxu0 0.0
    %2267 = vmatpush2.msra.mxu0 0.0
    %2268 = vmatprep.subr.mxu0 0.0
    %2269 = vmatpush2.msra.mxu0 0.0
    %2270 = vmatprep.subr.mxu0 0.0
    %2271 = vmatpush2.msra.mxu0 0.0
    %2272 = vmatprep.subr.mxu0 0.0
    %2273 = vmatpush2.msra.mxu0 0.0
    %2274 = vmatprep.subr.mxu0 0.0
    %2275 = vmatpush2.msra.mxu0 0.0
    %2276 = vmatprep.subr.mxu0 0.0
    %2277 = vmatpush2.msra.mxu0 0.0
    %2278 = vmatprep.subr.mxu0 0.0
    %2279 = vmatpush2.msra.mxu0 0.0
    %2280 = vmatprep.subr.mxu0 0.0
    %2281 = vmatpush2.msra.mxu0 0.0
    %2282 = vmatprep.subr.mxu0 0.0
    %2283 = vmatpush2.msra.mxu0 0.0
    %2284 = vmatprep.subr.mxu0 0.0
    %2285 = vmatpush2.msra.mxu0 0.0
    %2286 = vmatprep.subr.mxu0 0.0
    %2287 = vmatpush2.msra.mxu0 0.0
    %2288 = vmatprep.subr.mxu0 0.0
    %2289 = vmatpush2.msra.mxu0 0.0
    %2290 = vmatprep.subr.mxu0 0.0
    %2291 = vmatpush2.msra.mxu0 0.0
    %2292 = vmatprep.subr.mxu0 0.0
    %2293 = vmatpush2.msra.mxu0 0.0
    %2294 = vmatprep.subr.mxu0 0.0
    %2295 = vmatpush2.msra.mxu0 0.0
    %2296 = vmatprep.mubr.f32.mxu0 0.0
    %2297 = vmatmul.mubr.f32.gmra.mxu0 %v1987
    %v2298 = vpop.f32.mrf.mxu0
    %v2299 = vadd.f32 0.0, %v2298
    %v2300 = vpop.f32.mrf.mxu0
    %2301 = vdwg.mxu0
    %s2302 = smul.addr %s2129, 8
    %s2303 = scalar_lea.vmem [#allocation2], %s2302
    %v2304 = vld [vmem:[%s2303] sm:$0xff]
    %v2305 = vld [vmem:[%s2303 + $0x8] sm:$0xff]
    %v2306 = vld [vmem:[%s2303 + $0x10] sm:$0xff]
    %v2307 = vadd.f32 %v2304, %v2228
    %v2308 = vxor.u32 %v2307, 2147483648
    %v2309 = vmul.f32 %v2308, 1.442695
    %v2310 = vpow.pop %v2309
    %v2311 = vadd.f32 %v2310, 1.0
    %v2312 = vrcp.pop %v2311
    %v2313 = vmul.f32 1.0, %v2312
    %v2314 = vadd.f32 %v2305, %v2230
    %v2315 = vxor.u32 %v2314, 2147483648
    %v2316 = vmul.f32 %v2315, 1.442695
    %v2317 = vpow.pop %v2316
    %v2318 = vadd.f32 %v2317, 1.0
    %v2319 = vrcp.pop %v2318
    %v2320 = vmul.f32 1.0, %v2319
    %v2321 = vadd.f32 %v2299, %v947
    %v2322 = vmul.f32 %v2313, %v2321
    %v2323 = vadd.f32 %v2306, %v2322
    %v2324 = vtanh.pop %v2323
    %v2325 = vsub.f32 1.0, %v2320
    %v2326 = vmul.f32 %v2325, %v2324
    %v2327 = vmul.f32 %v2320, %v1987
    %v2328 = vadd.f32 %v2326, %v2327
    %2329 = vmatprep.subr.mxu0 %v775
    %2330 = vmatpush1.msra.mxu0 %v774
    %2331 = vmatprep.subr.mxu0 %v772
    %2332 = vmatpush1.msra.mxu0 %v771
    %2333 = vmatprep.subr.mxu0 %v769
    %2334 = vmatpush1.msra.mxu0 %v768
    %2335 = vmatprep.subr.mxu0 %v766
    %2336 = vmatpush1.msra.mxu0 %v765
    %2337 = vmatprep.subr.mxu0 %v763
    %2338 = vmatpush1.msra.mxu0 %v762
    %2339 = vmatprep.subr.mxu0 %v760
    %2340 = vmatpush1.msra.mxu0 %v759
    %2341 = vmatprep.subr.mxu0 %v757
    %2342 = vmatpush1.msra.mxu0 %v756
    %2343 = vmatprep.subr.mxu0 %v754
    %2344 = vmatpush1.msra.mxu0 %v753
    %2345 = vmatprep.subr.mxu0 %v751
    %2346 = vmatpush1.msra.mxu0 %v750
    %2347 = vmatprep.subr.mxu0 %v748
    %2348 = vmatpush1.msra.mxu0 %v747
    %2349 = vmatprep.subr.mxu0 %v745
    %2350 = vmatpush1.msra.mxu0 %v744
    %2351 = vmatprep.subr.mxu0 %v742
    %2352 = vmatpush1.msra.mxu0 %v741
    %2353 = vmatprep.subr.mxu0 %v739
    %2354 = vmatpush1.msra.mxu0 %v738
    %2355 = vmatprep.subr.mxu0 %v736
    %2356 = vmatpush1.msra.mxu0 %v735
    %2357 = vmatprep.subr.mxu0 %v733
    %2358 = vmatpush1.msra.mxu0 %v732
    %2359 = vmatprep.subr.mxu0 %v730
    %2360 = vmatpush1.msra.mxu0 %v729
    %2361 = vmatprep.subr.mxu0 0.0
    %2362 = vmatpush2.msra.mxu0 0.0
    %2363 = vmatprep.subr.mxu0 0.0
    %2364 = vmatpush2.msra.mxu0 0.0
    %2365 = vmatprep.subr.mxu0 0.0
    %2366 = vmatpush2.msra.mxu0 0.0
    %2367 = vmatprep.subr.mxu0 0.0
    %2368 = vmatpush2.msra.mxu0 0.0
    %2369 = vmatprep.subr.mxu0 0.0
    %2370 = vmatpush2.msra.mxu0 0.0
    %2371 = vmatprep.subr.mxu0 0.0
    %2372 = vmatpush2.msra.mxu0 0.0
    %2373 = vmatprep.subr.mxu0 0.0
    %2374 = vmatpush2.msra.mxu0 0.0
    %2375 = vmatprep.subr.mxu0 0.0
    %2376 = vmatpush2.msra.mxu0 0.0
    %2377 = vmatprep.subr.mxu0 0.0
    %2378 = vmatpush2.msra.mxu0 0.0
    %2379 = vmatprep.subr.mxu0 0.0
    %2380 = vmatpush2.msra.mxu0 0.0
    %2381 = vmatprep.subr.mxu0 0.0
    %2382 = vmatpush2.msra.mxu0 0.0
    %2383 = vmatprep.subr.mxu0 0.0
    %2384 = vmatpush2.msra.mxu0 0.0
    %2385 = vmatprep.subr.mxu0 0.0
    %2386 = vmatpush2.msra.mxu0 0.0
    %2387 = vmatprep.subr.mxu0 0.0
    %2388 = vmatpush2.msra.mxu0 0.0
    %2389 = vmatprep.subr.mxu0 0.0
    %2390 = vmatpush2.msra.mxu0 0.0
    %2391 = vmatprep.subr.mxu0 0.0
    %2392 = vmatpush2.msra.mxu0 0.0
    %2393 = vmatprep.mubr.f32.mxu0 0.0
    %2394 = vmatmul.mubr.f32.gmra.mxu0 %v2156
    %v2395 = vpop.f32.mrf.mxu0
    %v2396 = vadd.f32 0.0, %v2395
    %v2397 = vpop.f32.mrf.mxu0
    %v2398 = vadd.f32 0.0, %v2397
    %2399 = vdwg.mxu0
    %2400 = vmatprep.subr.mxu0 0.0
    %2401 = vmatpush1.msra.mxu0 %v776
    %2402 = vmatprep.subr.mxu0 0.0
    %2403 = vmatpush1.msra.mxu0 %v773
    %2404 = vmatprep.subr.mxu0 0.0
    %2405 = vmatpush1.msra.mxu0 %v770
    %2406 = vmatprep.subr.mxu0 0.0
    %2407 = vmatpush1.msra.mxu0 %v767
    %2408 = vmatprep.subr.mxu0 0.0
    %2409 = vmatpush1.msra.mxu0 %v764
    %2410 = vmatprep.subr.mxu0 0.0
    %2411 = vmatpush1.msra.mxu0 %v761
    %2412 = vmatprep.subr.mxu0 0.0
    %2413 = vmatpush1.msra.mxu0 %v758
    %2414 = vmatprep.subr.mxu0 0.0
    %2415 = vmatpush1.msra.mxu0 %v755
    %2416 = vmatprep.subr.mxu0 0.0
    %2417 = vmatpush1.msra.mxu0 %v752
    %2418 = vmatprep.subr.mxu0 0.0
    %2419 = vmatpush1.msra.mxu0 %v749
    %2420 = vmatprep.subr.mxu0 0.0
    %2421 = vmatpush1.msra.mxu0 %v746
    %2422 = vmatprep.subr.mxu0 0.0
    %2423 = vmatpush1.msra.mxu0 %v743
    %2424 = vmatprep.subr.mxu0 0.0
    %2425 = vmatpush1.msra.mxu0 %v740
    %2426 = vmatprep.subr.mxu0 0.0
    %2427 = vmatpush1.msra.mxu0 %v737
    %2428 = vmatprep.subr.mxu0 0.0
    %2429 = vmatpush1.msra.mxu0 %v734
    %2430 = vmatprep.subr.mxu0 0.0
    %2431 = vmatpush1.msra.mxu0 %v731
    %2432 = vmatprep.subr.mxu0 0.0
    %2433 = vmatpush2.msra.mxu0 0.0
    %2434 = vmatprep.subr.mxu0 0.0
    %2435 = vmatpush2.msra.mxu0 0.0
    %2436 = vmatprep.subr.mxu0 0.0
    %2437 = vmatpush2.msra.mxu0 0.0
    %2438 = vmatprep.subr.mxu0 0.0
    %2439 = vmatpush2.msra.mxu0 0.0
    %2440 = vmatprep.subr.mxu0 0.0
    %2441 = vmatpush2.msra.mxu0 0.0
    %2442 = vmatprep.subr.mxu0 0.0
    %2443 = vmatpush2.msra.mxu0 0.0
    %2444 = vmatprep.subr.mxu0 0.0
    %2445 = vmatpush2.msra.mxu0 0.0
    %2446 = vmatprep.subr.mxu0 0.0
    %2447 = vmatpush2.msra.mxu0 0.0
    %2448 = vmatprep.subr.mxu0 0.0
    %2449 = vmatpush2.msra.mxu0 0.0
    %2450 = vmatprep.subr.mxu0 0.0
    %2451 = vmatpush2.msra.mxu0 0.0
    %2452 = vmatprep.subr.mxu0 0.0
    %2453 = vmatpush2.msra.mxu0 0.0
    %2454 = vmatprep.subr.mxu0 0.0
    %2455 = vmatpush2.msra.mxu0 0.0
    %2456 = vmatprep.subr.mxu0 0.0
    %2457 = vmatpush2.msra.mxu0 0.0
    %2458 = vmatprep.subr.mxu0 0.0
    %2459 = vmatpush2.msra.mxu0 0.0
    %2460 = vmatprep.subr.mxu0 0.0
    %2461 = vmatpush2.msra.mxu0 0.0
    %2462 = vmatprep.subr.mxu0 0.0
    %2463 = vmatpush2.msra.mxu0 0.0
    %2464 = vmatprep.mubr.f32.mxu0 0.0
    %2465 = vmatmul.mubr.f32.gmra.mxu0 %v2156
    %v2466 = vpop.f32.mrf.mxu0
    %v2467 = vadd.f32 0.0, %v2466
    %v2468 = vpop.f32.mrf.mxu0
    %2469 = vdwg.mxu0
    %s2470 = smul.addr %s1960, 8
    %s2471 = scalar_lea.vmem [#allocation3], %s2470
    %v2472 = vld [vmem:[%s2471] sm:$0xff]
    %v2473 = vld [vmem:[%s2471 + $0x8] sm:$0xff]
    %v2474 = vld [vmem:[%s2471 + $0x10] sm:$0xff]
    %v2475 = vadd.f32 %v2472, %v2396
    %v2476 = vxor.u32 %v2475, 2147483648
    %v2477 = vmul.f32 %v2476, 1.442695
    %v2478 = vpow.pop %v2477
    %v2479 = vadd.f32 %v2478, 1.0
    %v2480 = vrcp.pop %v2479
    %v2481 = vmul.f32 1.0, %v2480
    %v2482 = vadd.f32 %v2473, %v2398
    %v2483 = vxor.u32 %v2482, 2147483648
    %v2484 = vmul.f32 %v2483, 1.442695
    %v2485 = vpow.pop %v2484
    %v2486 = vadd.f32 %v2485, 1.0
    %v2487 = vrcp.pop %v2486
    %v2488 = vmul.f32 1.0, %v2487
    %v2489 = vadd.f32 %v2467, %v1122
    %v2490 = vmul.f32 %v2481, %v2489
    %v2491 = vadd.f32 %v2474, %v2490
    %v2492 = vtanh.pop %v2491
    %v2493 = vsub.f32 1.0, %v2488
    %v2494 = vmul.f32 %v2493, %v2492
    %v2495 = vmul.f32 %v2488, %v2156
    %v2496 = vadd.f32 %v2494, %v2495
    %s2497 = scalar_lea.vmem %s6, 32
    %2498 = vst [vmem:[%s2497] sm:$0xff] %v2328
    %s2499 = scalar_lea.vmem %s74, 24
    %2500 = vst [vmem:[%s2499] sm:$0xff] %v2496
    %2501 = vmatprep.subr.mxu0 %v726
    %2502 = vmatpush1.msra.mxu0 %v725
    %2503 = vmatprep.subr.mxu0 %v723
    %2504 = vmatpush1.msra.mxu0 %v722
    %2505 = vmatprep.subr.mxu0 %v720
    %2506 = vmatpush1.msra.mxu0 %v719
    %2507 = vmatprep.subr.mxu0 %v717
    %2508 = vmatpush1.msra.mxu0 %v716
    %2509 = vmatprep.subr.mxu0 %v714
    %2510 = vmatpush1.msra.mxu0 %v713
    %2511 = vmatprep.subr.mxu0 %v711
    %2512 = vmatpush1.msra.mxu0 %v710
    %2513 = vmatprep.subr.mxu0 %v708
    %2514 = vmatpush1.msra.mxu0 %v707
    %2515 = vmatprep.subr.mxu0 %v705
    %2516 = vmatpush1.msra.mxu0 %v704
    %2517 = vmatprep.subr.mxu0 %v702
    %2518 = vmatpush1.msra.mxu0 %v701
    %2519 = vmatprep.subr.mxu0 %v699
    %2520 = vmatpush1.msra.mxu0 %v698
    %2521 = vmatprep.subr.mxu0 %v696
    %2522 = vmatpush1.msra.mxu0 %v695
    %2523 = vmatprep.subr.mxu0 %v693
    %2524 = vmatpush1.msra.mxu0 %v692
    %2525 = vmatprep.subr.mxu0 %v690
    %2526 = vmatpush1.msra.mxu0 %v689
    %2527 = vmatprep.subr.mxu0 %v687
    %2528 = vmatpush1.msra.mxu0 %v686
    %2529 = vmatprep.subr.mxu0 %v684
    %2530 = vmatpush1.msra.mxu0 %v683
    %2531 = vmatprep.subr.mxu0 %v681
    %2532 = vmatpush1.msra.mxu0 %v680
    %2533 = vmatprep.subr.mxu0 0.0
    %2534 = vmatpush2.msra.mxu0 0.0
    %2535 = vmatprep.subr.mxu0 0.0
    %2536 = vmatpush2.msra.mxu0 0.0
    %2537 = vmatprep.subr.mxu0 0.0
    %2538 = vmatpush2.msra.mxu0 0.0
    %2539 = vmatprep.subr.mxu0 0.0
    %2540 = vmatpush2.msra.mxu0 0.0
    %2541 = vmatprep.subr.mxu0 0.0
    %2542 = vmatpush2.msra.mxu0 0.0
    %2543 = vmatprep.subr.mxu0 0.0
    %2544 = vmatpush2.msra.mxu0 0.0
    %2545 = vmatprep.subr.mxu0 0.0
    %2546 = vmatpush2.msra.mxu0 0.0
    %2547 = vmatprep.subr.mxu0 0.0
    %2548 = vmatpush2.msra.mxu0 0.0
    %2549 = vmatprep.subr.mxu0 0.0
    %2550 = vmatpush2.msra.mxu0 0.0
    %2551 = vmatprep.subr.mxu0 0.0
    %2552 = vmatpush2.msra.mxu0 0.0
    %2553 = vmatprep.subr.mxu0 0.0
    %2554 = vmatpush2.msra.mxu0 0.0
    %2555 = vmatprep.subr.mxu0 0.0
    %2556 = vmatpush2.msra.mxu0 0.0
    %2557 = vmatprep.subr.mxu0 0.0
    %2558 = vmatpush2.msra.mxu0 0.0
    %2559 = vmatprep.subr.mxu0 0.0
    %2560 = vmatpush2.msra.mxu0 0.0
    %2561 = vmatprep.subr.mxu0 0.0
    %2562 = vmatpush2.msra.mxu0 0.0
    %2563 = vmatprep.subr.mxu0 0.0
    %2564 = vmatpush2.msra.mxu0 0.0
    %2565 = vmatprep.mubr.f32.mxu0 0.0
    %2566 = vmatmul.mubr.f32.gmra.mxu0 %v2328
    %v2567 = vpop.f32.mrf.mxu0
    %v2568 = vadd.f32 0.0, %v2567
    %v2569 = vpop.f32.mrf.mxu0
    %v2570 = vadd.f32 0.0, %v2569
    %2571 = vdwg.mxu0
    %2572 = vmatprep.subr.mxu0 0.0
    %2573 = vmatpush1.msra.mxu0 %v727
    %2574 = vmatprep.subr.mxu0 0.0
    %2575 = vmatpush1.msra.mxu0 %v724
    %2576 = vmatprep.subr.mxu0 0.0
    %2577 = vmatpush1.msra.mxu0 %v721
    %2578 = vmatprep.subr.mxu0 0.0
    %2579 = vmatpush1.msra.mxu0 %v718
    %2580 = vmatprep.subr.mxu0 0.0
    %2581 = vmatpush1.msra.mxu0 %v715
    %2582 = vmatprep.subr.mxu0 0.0
    %2583 = vmatpush1.msra.mxu0 %v712
    %2584 = vmatprep.subr.mxu0 0.0
    %2585 = vmatpush1.msra.mxu0 %v709
    %2586 = vmatprep.subr.mxu0 0.0
    %2587 = vmatpush1.msra.mxu0 %v706
    %2588 = vmatprep.subr.mxu0 0.0
    %2589 = vmatpush1.msra.mxu0 %v703
    %2590 = vmatprep.subr.mxu0 0.0
    %2591 = vmatpush1.msra.mxu0 %v700
    %2592 = vmatprep.subr.mxu0 0.0
    %2593 = vmatpush1.msra.mxu0 %v697
    %2594 = vmatprep.subr.mxu0 0.0
    %2595 = vmatpush1.msra.mxu0 %v694
    %2596 = vmatprep.subr.mxu0 0.0
    %2597 = vmatpush1.msra.mxu0 %v691
    %2598 = vmatprep.subr.mxu0 0.0
    %2599 = vmatpush1.msra.mxu0 %v688
    %2600 = vmatprep.subr.mxu0 0.0
    %2601 = vmatpush1.msra.mxu0 %v685
    %2602 = vmatprep.subr.mxu0 0.0
    %2603 = vmatpush1.msra.mxu0 %v682
    %2604 = vmatprep.subr.mxu0 0.0
    %2605 = vmatpush2.msra.mxu0 0.0
    %2606 = vmatprep.subr.mxu0 0.0
    %2607 = vmatpush2.msra.mxu0 0.0
    %2608 = vmatprep.subr.mxu0 0.0
    %2609 = vmatpush2.msra.mxu0 0.0
    %2610 = vmatprep.subr.mxu0 0.0
    %2611 = vmatpush2.msra.mxu0 0.0
    %2612 = vmatprep.subr.mxu0 0.0
    %2613 = vmatpush2.msra.mxu0 0.0
    %2614 = vmatprep.subr.mxu0 0.0
    %2615 = vmatpush2.msra.mxu0 0.0
    %2616 = vmatprep.subr.mxu0 0.0
    %2617 = vmatpush2.msra.mxu0 0.0
    %2618 = vmatprep.subr.mxu0 0.0
    %2619 = vmatpush2.msra.mxu0 0.0
    %2620 = vmatprep.subr.mxu0 0.0
    %2621 = vmatpush2.msra.mxu0 0.0
    %2622 = vmatprep.subr.mxu0 0.0
    %2623 = vmatpush2.msra.mxu0 0.0
    %2624 = vmatprep.subr.mxu0 0.0
    %2625 = vmatpush2.msra.mxu0 0.0
    %2626 = vmatprep.subr.mxu0 0.0
    %2627 = vmatpush2.msra.mxu0 0.0
    %2628 = vmatprep.subr.mxu0 0.0
    %2629 = vmatpush2.msra.mxu0 0.0
    %2630 = vmatprep.subr.mxu0 0.0
    %2631 = vmatpush2.msra.mxu0 0.0
    %2632 = vmatprep.subr.mxu0 0.0
    %2633 = vmatpush2.msra.mxu0 0.0
    %2634 = vmatprep.subr.mxu0 0.0
    %2635 = vmatpush2.msra.mxu0 0.0
    %2636 = vmatprep.mubr.f32.mxu0 0.0
    %2637 = vmatmul.mubr.f32.gmra.mxu0 %v2328
    %v2638 = vpop.f32.mrf.mxu0
    %v2639 = vadd.f32 0.0, %v2638
    %v2640 = vpop.f32.mrf.mxu0
    %2641 = vdwg.mxu0
    %s2642 = smul.addr %s1787, 8
    %s2643 = scalar_lea.vmem [#allocation2], %s2642
    %v2644 = vld [vmem:[%s2643] sm:$0xff]
    %v2645 = vld [vmem:[%s2643 + $0x8] sm:$0xff]
    %v2646 = vld [vmem:[%s2643 + $0x10] sm:$0xff]
    %v2647 = vadd.f32 %v2644, %v2568
    %v2648 = vxor.u32 %v2647, 2147483648
    %v2649 = vmul.f32 %v2648, 1.442695
    %v2650 = vpow.pop %v2649
    %v2651 = vadd.f32 %v2650, 1.0
    %v2652 = vrcp.pop %v2651
    %v2653 = vmul.f32 1.0, %v2652
    %v2654 = vadd.f32 %v2645, %v2570
    %v2655 = vxor.u32 %v2654, 2147483648
    %v2656 = vmul.f32 %v2655, 1.442695
    %v2657 = vpow.pop %v2656
    %v2658 = vadd.f32 %v2657, 1.0
    %v2659 = vrcp.pop %v2658
    %v2660 = vmul.f32 1.0, %v2659
    %v2661 = vadd.f32 %v2639, %v947
    %v2662 = vmul.f32 %v2653, %v2661
    %v2663 = vadd.f32 %v2646, %v2662
    %v2664 = vtanh.pop %v2663
    %v2665 = vsub.f32 1.0, %v2660
    %v2666 = vmul.f32 %v2665, %v2664
    %v2667 = vmul.f32 %v2660, %v2328
    %v2668 = vadd.f32 %v2666, %v2667
    %2669 = vmatprep.subr.mxu0 %v775
    %2670 = vmatpush1.msra.mxu0 %v774
    %2671 = vmatprep.subr.mxu0 %v772
    %2672 = vmatpush1.msra.mxu0 %v771
    %2673 = vmatprep.subr.mxu0 %v769
    %2674 = vmatpush1.msra.mxu0 %v768
    %2675 = vmatprep.subr.mxu0 %v766
    %2676 = vmatpush1.msra.mxu0 %v765
    %2677 = vmatprep.subr.mxu0 %v763
    %2678 = vmatpush1.msra.mxu0 %v762
    %2679 = vmatprep.subr.mxu0 %v760
    %2680 = vmatpush1.msra.mxu0 %v759
    %2681 = vmatprep.subr.mxu0 %v757
    %2682 = vmatpush1.msra.mxu0 %v756
    %2683 = vmatprep.subr.mxu0 %v754
    %2684 = vmatpush1.msra.mxu0 %v753
    %2685 = vmatprep.subr.mxu0 %v751
    %2686 = vmatpush1.msra.mxu0 %v750
    %2687 = vmatprep.subr.mxu0 %v748
    %2688 = vmatpush1.msra.mxu0 %v747
    %2689 = vmatprep.subr.mxu0 %v745
    %2690 = vmatpush1.msra.mxu0 %v744
    %2691 = vmatprep.subr.mxu0 %v742
    %2692 = vmatpush1.msra.mxu0 %v741
    %2693 = vmatprep.subr.mxu0 %v739
    %2694 = vmatpush1.msra.mxu0 %v738
    %2695 = vmatprep.subr.mxu0 %v736
    %2696 = vmatpush1.msra.mxu0 %v735
    %2697 = vmatprep.subr.mxu0 %v733
    %2698 = vmatpush1.msra.mxu0 %v732
    %2699 = vmatprep.subr.mxu0 %v730
    %2700 = vmatpush1.msra.mxu0 %v729
    %2701 = vmatprep.subr.mxu0 0.0
    %2702 = vmatpush2.msra.mxu0 0.0
    %2703 = vmatprep.subr.mxu0 0.0
    %2704 = vmatpush2.msra.mxu0 0.0
    %2705 = vmatprep.subr.mxu0 0.0
    %2706 = vmatpush2.msra.mxu0 0.0
    %2707 = vmatprep.subr.mxu0 0.0
    %2708 = vmatpush2.msra.mxu0 0.0
    %2709 = vmatprep.subr.mxu0 0.0
    %2710 = vmatpush2.msra.mxu0 0.0
    %2711 = vmatprep.subr.mxu0 0.0
    %2712 = vmatpush2.msra.mxu0 0.0
    %2713 = vmatprep.subr.mxu0 0.0
    %2714 = vmatpush2.msra.mxu0 0.0
    %2715 = vmatprep.subr.mxu0 0.0
    %2716 = vmatpush2.msra.mxu0 0.0
    %2717 = vmatprep.subr.mxu0 0.0
    %2718 = vmatpush2.msra.mxu0 0.0
    %2719 = vmatprep.subr.mxu0 0.0
    %2720 = vmatpush2.msra.mxu0 0.0
    %2721 = vmatprep.subr.mxu0 0.0
    %2722 = vmatpush2.msra.mxu0 0.0
    %2723 = vmatprep.subr.mxu0 0.0
    %2724 = vmatpush2.msra.mxu0 0.0
    %2725 = vmatprep.subr.mxu0 0.0
    %2726 = vmatpush2.msra.mxu0 0.0
    %2727 = vmatprep.subr.mxu0 0.0
    %2728 = vmatpush2.msra.mxu0 0.0
    %2729 = vmatprep.subr.mxu0 0.0
    %2730 = vmatpush2.msra.mxu0 0.0
    %2731 = vmatprep.subr.mxu0 0.0
    %2732 = vmatpush2.msra.mxu0 0.0
    %2733 = vmatprep.mubr.f32.mxu0 0.0
    %2734 = vmatmul.mubr.f32.gmra.mxu0 %v2496
    %v2735 = vpop.f32.mrf.mxu0
    %v2736 = vadd.f32 0.0, %v2735
    %v2737 = vpop.f32.mrf.mxu0
    %v2738 = vadd.f32 0.0, %v2737
    %2739 = vdwg.mxu0
    %2740 = vmatprep.subr.mxu0 0.0
    %2741 = vmatpush1.msra.mxu0 %v776
    %2742 = vmatprep.subr.mxu0 0.0
    %2743 = vmatpush1.msra.mxu0 %v773
    %2744 = vmatprep.subr.mxu0 0.0
    %2745 = vmatpush1.msra.mxu0 %v770
    %2746 = vmatprep.subr.mxu0 0.0
    %2747 = vmatpush1.msra.mxu0 %v767
    %2748 = vmatprep.subr.mxu0 0.0
    %2749 = vmatpush1.msra.mxu0 %v764
    %2750 = vmatprep.subr.mxu0 0.0
    %2751 = vmatpush1.msra.mxu0 %v761
    %2752 = vmatprep.subr.mxu0 0.0
    %2753 = vmatpush1.msra.mxu0 %v758
    %2754 = vmatprep.subr.mxu0 0.0
    %2755 = vmatpush1.msra.mxu0 %v755
    %2756 = vmatprep.subr.mxu0 0.0
    %2757 = vmatpush1.msra.mxu0 %v752
    %2758 = vmatprep.subr.mxu0 0.0
    %2759 = vmatpush1.msra.mxu0 %v749
    %2760 = vmatprep.subr.mxu0 0.0
    %2761 = vmatpush1.msra.mxu0 %v746
    %2762 = vmatprep.subr.mxu0 0.0
    %2763 = vmatpush1.msra.mxu0 %v743
    %2764 = vmatprep.subr.mxu0 0.0
    %2765 = vmatpush1.msra.mxu0 %v740
    %2766 = vmatprep.subr.mxu0 0.0
    %2767 = vmatpush1.msra.mxu0 %v737
    %2768 = vmatprep.subr.mxu0 0.0
    %2769 = vmatpush1.msra.mxu0 %v734
    %2770 = vmatprep.subr.mxu0 0.0
    %2771 = vmatpush1.msra.mxu0 %v731
    %2772 = vmatprep.subr.mxu0 0.0
    %2773 = vmatpush2.msra.mxu0 0.0
    %2774 = vmatprep.subr.mxu0 0.0
    %2775 = vmatpush2.msra.mxu0 0.0
    %2776 = vmatprep.subr.mxu0 0.0
    %2777 = vmatpush2.msra.mxu0 0.0
    %2778 = vmatprep.subr.mxu0 0.0
    %2779 = vmatpush2.msra.mxu0 0.0
    %2780 = vmatprep.subr.mxu0 0.0
    %2781 = vmatpush2.msra.mxu0 0.0
    %2782 = vmatprep.subr.mxu0 0.0
    %2783 = vmatpush2.msra.mxu0 0.0
    %2784 = vmatprep.subr.mxu0 0.0
    %2785 = vmatpush2.msra.mxu0 0.0
    %2786 = vmatprep.subr.mxu0 0.0
    %2787 = vmatpush2.msra.mxu0 0.0
    %2788 = vmatprep.subr.mxu0 0.0
    %2789 = vmatpush2.msra.mxu0 0.0
    %2790 = vmatprep.subr.mxu0 0.0
    %2791 = vmatpush2.msra.mxu0 0.0
    %2792 = vmatprep.subr.mxu0 0.0
    %2793 = vmatpush2.msra.mxu0 0.0
    %2794 = vmatprep.subr.mxu0 0.0
    %2795 = vmatpush2.msra.mxu0 0.0
    %2796 = vmatprep.subr.mxu0 0.0
    %2797 = vmatpush2.msra.mxu0 0.0
    %2798 = vmatprep.subr.mxu0 0.0
    %2799 = vmatpush2.msra.mxu0 0.0
    %2800 = vmatprep.subr.mxu0 0.0
    %2801 = vmatpush2.msra.mxu0 0.0
    %2802 = vmatprep.subr.mxu0 0.0
    %2803 = vmatpush2.msra.mxu0 0.0
    %2804 = vmatprep.mubr.f32.mxu0 0.0
    %2805 = vmatmul.mubr.f32.gmra.mxu0 %v2496
    %v2806 = vpop.f32.mrf.mxu0
    %v2807 = vadd.f32 0.0, %v2806
    %v2808 = vpop.f32.mrf.mxu0
    %2809 = vdwg.mxu0
    %s2810 = smul.addr %s1618, 8
    %s2811 = scalar_lea.vmem [#allocation3], %s2810
    %v2812 = vld [vmem:[%s2811] sm:$0xff]
    %v2813 = vld [vmem:[%s2811 + $0x8] sm:$0xff]
    %v2814 = vld [vmem:[%s2811 + $0x10] sm:$0xff]
    %v2815 = vadd.f32 %v2812, %v2736
    %v2816 = vxor.u32 %v2815, 2147483648
    %v2817 = vmul.f32 %v2816, 1.442695
    %v2818 = vpow.pop %v2817
    %v2819 = vadd.f32 %v2818, 1.0
    %v2820 = vrcp.pop %v2819
    %v2821 = vmul.f32 1.0, %v2820
    %v2822 = vadd.f32 %v2813, %v2738
    %v2823 = vxor.u32 %v2822, 2147483648
    %v2824 = vmul.f32 %v2823, 1.442695
    %v2825 = vpow.pop %v2824
    %v2826 = vadd.f32 %v2825, 1.0
    %v2827 = vrcp.pop %v2826
    %v2828 = vmul.f32 1.0, %v2827
    %v2829 = vadd.f32 %v2807, %v1122
    %v2830 = vmul.f32 %v2821, %v2829
    %v2831 = vadd.f32 %v2814, %v2830
    %v2832 = vtanh.pop %v2831
    %v2833 = vsub.f32 1.0, %v2828
    %v2834 = vmul.f32 %v2833, %v2832
    %v2835 = vmul.f32 %v2828, %v2496
    %v2836 = vadd.f32 %v2834, %v2835
    %s2837 = scalar_lea.vmem %s6, 40
    %2838 = vst [vmem:[%s2837] sm:$0xff] %v2668
    %s2839 = scalar_lea.vmem %s74, 16
    %2840 = vst [vmem:[%s2839] sm:$0xff] %v2836
    %2841 = vmatprep.subr.mxu0 %v726
    %2842 = vmatpush1.msra.mxu0 %v725
    %2843 = vmatprep.subr.mxu0 %v723
    %2844 = vmatpush1.msra.mxu0 %v722
    %2845 = vmatprep.subr.mxu0 %v720
    %2846 = vmatpush1.msra.mxu0 %v719
    %2847 = vmatprep.subr.mxu0 %v717
    %2848 = vmatpush1.msra.mxu0 %v716
    %2849 = vmatprep.subr.mxu0 %v714
    %2850 = vmatpush1.msra.mxu0 %v713
    %2851 = vmatprep.subr.mxu0 %v711
    %2852 = vmatpush1.msra.mxu0 %v710
    %2853 = vmatprep.subr.mxu0 %v708
    %2854 = vmatpush1.msra.mxu0 %v707
    %2855 = vmatprep.subr.mxu0 %v705
    %2856 = vmatpush1.msra.mxu0 %v704
    %2857 = vmatprep.subr.mxu0 %v702
    %2858 = vmatpush1.msra.mxu0 %v701
    %2859 = vmatprep.subr.mxu0 %v699
    %2860 = vmatpush1.msra.mxu0 %v698
    %2861 = vmatprep.subr.mxu0 %v696
    %2862 = vmatpush1.msra.mxu0 %v695
    %2863 = vmatprep.subr.mxu0 %v693
    %2864 = vmatpush1.msra.mxu0 %v692
    %2865 = vmatprep.subr.mxu0 %v690
    %2866 = vmatpush1.msra.mxu0 %v689
    %2867 = vmatprep.subr.mxu0 %v687
    %2868 = vmatpush1.msra.mxu0 %v686
    %2869 = vmatprep.subr.mxu0 %v684
    %2870 = vmatpush1.msra.mxu0 %v683
    %2871 = vmatprep.subr.mxu0 %v681
    %2872 = vmatpush1.msra.mxu0 %v680
    %2873 = vmatprep.subr.mxu0 0.0
    %2874 = vmatpush2.msra.mxu0 0.0
    %2875 = vmatprep.subr.mxu0 0.0
    %2876 = vmatpush2.msra.mxu0 0.0
    %2877 = vmatprep.subr.mxu0 0.0
    %2878 = vmatpush2.msra.mxu0 0.0
    %2879 = vmatprep.subr.mxu0 0.0
    %2880 = vmatpush2.msra.mxu0 0.0
    %2881 = vmatprep.subr.mxu0 0.0
    %2882 = vmatpush2.msra.mxu0 0.0
    %2883 = vmatprep.subr.mxu0 0.0
    %2884 = vmatpush2.msra.mxu0 0.0
    %2885 = vmatprep.subr.mxu0 0.0
    %2886 = vmatpush2.msra.mxu0 0.0
    %2887 = vmatprep.subr.mxu0 0.0
    %2888 = vmatpush2.msra.mxu0 0.0
    %2889 = vmatprep.subr.mxu0 0.0
    %2890 = vmatpush2.msra.mxu0 0.0
    %2891 = vmatprep.subr.mxu0 0.0
    %2892 = vmatpush2.msra.mxu0 0.0
    %2893 = vmatprep.subr.mxu0 0.0
    %2894 = vmatpush2.msra.mxu0 0.0
    %2895 = vmatprep.subr.mxu0 0.0
    %2896 = vmatpush2.msra.mxu0 0.0
    %2897 = vmatprep.subr.mxu0 0.0
    %2898 = vmatpush2.msra.mxu0 0.0
    %2899 = vmatprep.subr.mxu0 0.0
    %2900 = vmatpush2.msra.mxu0 0.0
    %2901 = vmatprep.subr.mxu0 0.0
    %2902 = vmatpush2.msra.mxu0 0.0
    %2903 = vmatprep.subr.mxu0 0.0
    %2904 = vmatpush2.msra.mxu0 0.0
    %2905 = vmatprep.mubr.f32.mxu0 0.0
    %2906 = vmatmul.mubr.f32.gmra.mxu0 %v2668
    %v2907 = vpop.f32.mrf.mxu0
    %v2908 = vadd.f32 0.0, %v2907
    %v2909 = vpop.f32.mrf.mxu0
    %v2910 = vadd.f32 0.0, %v2909
    %2911 = vdwg.mxu0
    %2912 = vmatprep.subr.mxu0 0.0
    %2913 = vmatpush1.msra.mxu0 %v727
    %2914 = vmatprep.subr.mxu0 0.0
    %2915 = vmatpush1.msra.mxu0 %v724
    %2916 = vmatprep.subr.mxu0 0.0
    %2917 = vmatpush1.msra.mxu0 %v721
    %2918 = vmatprep.subr.mxu0 0.0
    %2919 = vmatpush1.msra.mxu0 %v718
    %2920 = vmatprep.subr.mxu0 0.0
    %2921 = vmatpush1.msra.mxu0 %v715
    %2922 = vmatprep.subr.mxu0 0.0
    %2923 = vmatpush1.msra.mxu0 %v712
    %2924 = vmatprep.subr.mxu0 0.0
    %2925 = vmatpush1.msra.mxu0 %v709
    %2926 = vmatprep.subr.mxu0 0.0
    %2927 = vmatpush1.msra.mxu0 %v706
    %2928 = vmatprep.subr.mxu0 0.0
    %2929 = vmatpush1.msra.mxu0 %v703
    %2930 = vmatprep.subr.mxu0 0.0
    %2931 = vmatpush1.msra.mxu0 %v700
    %2932 = vmatprep.subr.mxu0 0.0
    %2933 = vmatpush1.msra.mxu0 %v697
    %2934 = vmatprep.subr.mxu0 0.0
    %2935 = vmatpush1.msra.mxu0 %v694
    %2936 = vmatprep.subr.mxu0 0.0
    %2937 = vmatpush1.msra.mxu0 %v691
    %2938 = vmatprep.subr.mxu0 0.0
    %2939 = vmatpush1.msra.mxu0 %v688
    %2940 = vmatprep.subr.mxu0 0.0
    %2941 = vmatpush1.msra.mxu0 %v685
    %2942 = vmatprep.subr.mxu0 0.0
    %2943 = vmatpush1.msra.mxu0 %v682
    %2944 = vmatprep.subr.mxu0 0.0
    %2945 = vmatpush2.msra.mxu0 0.0
    %2946 = vmatprep.subr.mxu0 0.0
    %2947 = vmatpush2.msra.mxu0 0.0
    %2948 = vmatprep.subr.mxu0 0.0
    %2949 = vmatpush2.msra.mxu0 0.0
    %2950 = vmatprep.subr.mxu0 0.0
    %2951 = vmatpush2.msra.mxu0 0.0
    %2952 = vmatprep.subr.mxu0 0.0
    %2953 = vmatpush2.msra.mxu0 0.0
    %2954 = vmatprep.subr.mxu0 0.0
    %2955 = vmatpush2.msra.mxu0 0.0
    %2956 = vmatprep.subr.mxu0 0.0
    %2957 = vmatpush2.msra.mxu0 0.0
    %2958 = vmatprep.subr.mxu0 0.0
    %2959 = vmatpush2.msra.mxu0 0.0
    %2960 = vmatprep.subr.mxu0 0.0
    %2961 = vmatpush2.msra.mxu0 0.0
    %2962 = vmatprep.subr.mxu0 0.0
    %2963 = vmatpush2.msra.mxu0 0.0
    %2964 = vmatprep.subr.mxu0 0.0
    %2965 = vmatpush2.msra.mxu0 0.0
    %2966 = vmatprep.subr.mxu0 0.0
    %2967 = vmatpush2.msra.mxu0 0.0
    %2968 = vmatprep.subr.mxu0 0.0
    %2969 = vmatpush2.msra.mxu0 0.0
    %2970 = vmatprep.subr.mxu0 0.0
    %2971 = vmatpush2.msra.mxu0 0.0
    %2972 = vmatprep.subr.mxu0 0.0
    %2973 = vmatpush2.msra.mxu0 0.0
    %2974 = vmatprep.subr.mxu0 0.0
    %2975 = vmatpush2.msra.mxu0 0.0
    %2976 = vmatprep.mubr.f32.mxu0 0.0
    %2977 = vmatmul.mubr.f32.gmra.mxu0 %v2668
    %v2978 = vpop.f32.mrf.mxu0
    %v2979 = vadd.f32 0.0, %v2978
    %v2980 = vpop.f32.mrf.mxu0
    %2981 = vdwg.mxu0
    %s2982 = smul.addr %s1445, 8
    %s2983 = scalar_lea.vmem [#allocation2], %s2982
    %v2984 = vld [vmem:[%s2983] sm:$0xff]
    %v2985 = vld [vmem:[%s2983 + $0x8] sm:$0xff]
    %v2986 = vld [vmem:[%s2983 + $0x10] sm:$0xff]
    %v2987 = vadd.f32 %v2984, %v2908
    %v2988 = vxor.u32 %v2987, 2147483648
    %v2989 = vmul.f32 %v2988, 1.442695
    %v2990 = vpow.pop %v2989
    %v2991 = vadd.f32 %v2990, 1.0
    %v2992 = vrcp.pop %v2991
    %v2993 = vmul.f32 1.0, %v2992
    %v2994 = vadd.f32 %v2985, %v2910
    %v2995 = vxor.u32 %v2994, 2147483648
    %v2996 = vmul.f32 %v2995, 1.442695
    %v2997 = vpow.pop %v2996
    %v2998 = vadd.f32 %v2997, 1.0
    %v2999 = vrcp.pop %v2998
    %v3000 = vmul.f32 1.0, %v2999
    %v3001 = vadd.f32 %v2979, %v947
    %v3002 = vmul.f32 %v2993, %v3001
    %v3003 = vadd.f32 %v2986, %v3002
    %v3004 = vtanh.pop %v3003
    %v3005 = vsub.f32 1.0, %v3000
    %v3006 = vmul.f32 %v3005, %v3004
    %v3007 = vmul.f32 %v3000, %v2668
    %v3008 = vadd.f32 %v3006, %v3007
    %3009 = vmatprep.subr.mxu0 %v775
    %3010 = vmatpush1.msra.mxu0 %v774
    %3011 = vmatprep.subr.mxu0 %v772
    %3012 = vmatpush1.msra.mxu0 %v771
    %3013 = vmatprep.subr.mxu0 %v769
    %3014 = vmatpush1.msra.mxu0 %v768
    %3015 = vmatprep.subr.mxu0 %v766
    %3016 = vmatpush1.msra.mxu0 %v765
    %3017 = vmatprep.subr.mxu0 %v763
    %3018 = vmatpush1.msra.mxu0 %v762
    %3019 = vmatprep.subr.mxu0 %v760
    %3020 = vmatpush1.msra.mxu0 %v759
    %3021 = vmatprep.subr.mxu0 %v757
    %3022 = vmatpush1.msra.mxu0 %v756
    %3023 = vmatprep.subr.mxu0 %v754
    %3024 = vmatpush1.msra.mxu0 %v753
    %3025 = vmatprep.subr.mxu0 %v751
    %3026 = vmatpush1.msra.mxu0 %v750
    %3027 = vmatprep.subr.mxu0 %v748
    %3028 = vmatpush1.msra.mxu0 %v747
    %3029 = vmatprep.subr.mxu0 %v745
    %3030 = vmatpush1.msra.mxu0 %v744
    %3031 = vmatprep.subr.mxu0 %v742
    %3032 = vmatpush1.msra.mxu0 %v741
    %3033 = vmatprep.subr.mxu0 %v739
    %3034 = vmatpush1.msra.mxu0 %v738
    %3035 = vmatprep.subr.mxu0 %v736
    %3036 = vmatpush1.msra.mxu0 %v735
    %3037 = vmatprep.subr.mxu0 %v733
    %3038 = vmatpush1.msra.mxu0 %v732
    %3039 = vmatprep.subr.mxu0 %v730
    %3040 = vmatpush1.msra.mxu0 %v729
    %3041 = vmatprep.subr.mxu0 0.0
    %3042 = vmatpush2.msra.mxu0 0.0
    %3043 = vmatprep.subr.mxu0 0.0
    %3044 = vmatpush2.msra.mxu0 0.0
    %3045 = vmatprep.subr.mxu0 0.0
    %3046 = vmatpush2.msra.mxu0 0.0
    %3047 = vmatprep.subr.mxu0 0.0
    %3048 = vmatpush2.msra.mxu0 0.0
    %3049 = vmatprep.subr.mxu0 0.0
    %3050 = vmatpush2.msra.mxu0 0.0
    %3051 = vmatprep.subr.mxu0 0.0
    %3052 = vmatpush2.msra.mxu0 0.0
    %3053 = vmatprep.subr.mxu0 0.0
    %3054 = vmatpush2.msra.mxu0 0.0
    %3055 = vmatprep.subr.mxu0 0.0
    %3056 = vmatpush2.msra.mxu0 0.0
    %3057 = vmatprep.subr.mxu0 0.0
    %3058 = vmatpush2.msra.mxu0 0.0
    %3059 = vmatprep.subr.mxu0 0.0
    %3060 = vmatpush2.msra.mxu0 0.0
    %3061 = vmatprep.subr.mxu0 0.0
    %3062 = vmatpush2.msra.mxu0 0.0
    %3063 = vmatprep.subr.mxu0 0.0
    %3064 = vmatpush2.msra.mxu0 0.0
    %3065 = vmatprep.subr.mxu0 0.0
    %3066 = vmatpush2.msra.mxu0 0.0
    %3067 = vmatprep.subr.mxu0 0.0
    %3068 = vmatpush2.msra.mxu0 0.0
    %3069 = vmatprep.subr.mxu0 0.0
    %3070 = vmatpush2.msra.mxu0 0.0
    %3071 = vmatprep.subr.mxu0 0.0
    %3072 = vmatpush2.msra.mxu0 0.0
    %3073 = vmatprep.mubr.f32.mxu0 0.0
    %3074 = vmatmul.mubr.f32.gmra.mxu0 %v2836
    %v3075 = vpop.f32.mrf.mxu0
    %v3076 = vadd.f32 0.0, %v3075
    %v3077 = vpop.f32.mrf.mxu0
    %v3078 = vadd.f32 0.0, %v3077
    %3079 = vdwg.mxu0
    %3080 = vmatprep.subr.mxu0 0.0
    %3081 = vmatpush1.msra.mxu0 %v776
    %3082 = vmatprep.subr.mxu0 0.0
    %3083 = vmatpush1.msra.mxu0 %v773
    %3084 = vmatprep.subr.mxu0 0.0
    %3085 = vmatpush1.msra.mxu0 %v770
    %3086 = vmatprep.subr.mxu0 0.0
    %3087 = vmatpush1.msra.mxu0 %v767
    %3088 = vmatprep.subr.mxu0 0.0
    %3089 = vmatpush1.msra.mxu0 %v764
    %3090 = vmatprep.subr.mxu0 0.0
    %3091 = vmatpush1.msra.mxu0 %v761
    %3092 = vmatprep.subr.mxu0 0.0
    %3093 = vmatpush1.msra.mxu0 %v758
    %3094 = vmatprep.subr.mxu0 0.0
    %3095 = vmatpush1.msra.mxu0 %v755
    %3096 = vmatprep.subr.mxu0 0.0
    %3097 = vmatpush1.msra.mxu0 %v752
    %3098 = vmatprep.subr.mxu0 0.0
    %3099 = vmatpush1.msra.mxu0 %v749
    %3100 = vmatprep.subr.mxu0 0.0
    %3101 = vmatpush1.msra.mxu0 %v746
    %3102 = vmatprep.subr.mxu0 0.0
    %3103 = vmatpush1.msra.mxu0 %v743
    %3104 = vmatprep.subr.mxu0 0.0
    %3105 = vmatpush1.msra.mxu0 %v740
    %3106 = vmatprep.subr.mxu0 0.0
    %3107 = vmatpush1.msra.mxu0 %v737
    %3108 = vmatprep.subr.mxu0 0.0
    %3109 = vmatpush1.msra.mxu0 %v734
    %3110 = vmatprep.subr.mxu0 0.0
    %3111 = vmatpush1.msra.mxu0 %v731
    %3112 = vmatprep.subr.mxu0 0.0
    %3113 = vmatpush2.msra.mxu0 0.0
    %3114 = vmatprep.subr.mxu0 0.0
    %3115 = vmatpush2.msra.mxu0 0.0
    %3116 = vmatprep.subr.mxu0 0.0
    %3117 = vmatpush2.msra.mxu0 0.0
    %3118 = vmatprep.subr.mxu0 0.0
    %3119 = vmatpush2.msra.mxu0 0.0
    %3120 = vmatprep.subr.mxu0 0.0
    %3121 = vmatpush2.msra.mxu0 0.0
    %3122 = vmatprep.subr.mxu0 0.0
    %3123 = vmatpush2.msra.mxu0 0.0
    %3124 = vmatprep.subr.mxu0 0.0
    %3125 = vmatpush2.msra.mxu0 0.0
    %3126 = vmatprep.subr.mxu0 0.0
    %3127 = vmatpush2.msra.mxu0 0.0
    %3128 = vmatprep.subr.mxu0 0.0
    %3129 = vmatpush2.msra.mxu0 0.0
    %3130 = vmatprep.subr.mxu0 0.0
    %3131 = vmatpush2.msra.mxu0 0.0
    %3132 = vmatprep.subr.mxu0 0.0
    %3133 = vmatpush2.msra.mxu0 0.0
    %3134 = vmatprep.subr.mxu0 0.0
    %3135 = vmatpush2.msra.mxu0 0.0
    %3136 = vmatprep.subr.mxu0 0.0
    %3137 = vmatpush2.msra.mxu0 0.0
    %3138 = vmatprep.subr.mxu0 0.0
    %3139 = vmatpush2.msra.mxu0 0.0
    %3140 = vmatprep.subr.mxu0 0.0
    %3141 = vmatpush2.msra.mxu0 0.0
    %3142 = vmatprep.subr.mxu0 0.0
    %3143 = vmatpush2.msra.mxu0 0.0
    %3144 = vmatprep.mubr.f32.mxu0 0.0
    %3145 = vmatmul.mubr.f32.gmra.mxu0 %v2836
    %v3146 = vpop.f32.mrf.mxu0
    %v3147 = vadd.f32 0.0, %v3146
    %v3148 = vpop.f32.mrf.mxu0
    %3149 = vdwg.mxu0
    %s3150 = smul.addr %s1276, 8
    %s3151 = scalar_lea.vmem [#allocation3], %s3150
    %v3152 = vld [vmem:[%s3151] sm:$0xff]
    %v3153 = vld [vmem:[%s3151 + $0x8] sm:$0xff]
    %v3154 = vld [vmem:[%s3151 + $0x10] sm:$0xff]
    %v3155 = vadd.f32 %v3152, %v3076
    %v3156 = vxor.u32 %v3155, 2147483648
    %v3157 = vmul.f32 %v3156, 1.442695
    %v3158 = vpow.pop %v3157
    %v3159 = vadd.f32 %v3158, 1.0
    %v3160 = vrcp.pop %v3159
    %v3161 = vmul.f32 1.0, %v3160
    %v3162 = vadd.f32 %v3153, %v3078
    %v3163 = vxor.u32 %v3162, 2147483648
    %v3164 = vmul.f32 %v3163, 1.442695
    %v3165 = vpow.pop %v3164
    %v3166 = vadd.f32 %v3165, 1.0
    %v3167 = vrcp.pop %v3166
    %v3168 = vmul.f32 1.0, %v3167
    %v3169 = vadd.f32 %v3147, %v1122
    %v3170 = vmul.f32 %v3161, %v3169
    %v3171 = vadd.f32 %v3154, %v3170
    %v3172 = vtanh.pop %v3171
    %v3173 = vsub.f32 1.0, %v3168
    %v3174 = vmul.f32 %v3173, %v3172
    %v3175 = vmul.f32 %v3168, %v2836
    %v3176 = vadd.f32 %v3174, %v3175
    %s3177 = scalar_lea.vmem %s6, 48
    %3178 = vst [vmem:[%s3177] sm:$0xff] %v3008
    %s3179 = scalar_lea.vmem %s74, 8
    %3180 = vst [vmem:[%s3179] sm:$0xff] %v3176
    %3181 = vmatprep.subr.mxu0 %v726
    %3182 = vmatpush1.msra.mxu0 %v725
    %3183 = vmatprep.subr.mxu0 %v723
    %3184 = vmatpush1.msra.mxu0 %v722
    %3185 = vmatprep.subr.mxu0 %v720
    %3186 = vmatpush1.msra.mxu0 %v719
    %3187 = vmatprep.subr.mxu0 %v717
    %3188 = vmatpush1.msra.mxu0 %v716
    %3189 = vmatprep.subr.mxu0 %v714
    %3190 = vmatpush1.msra.mxu0 %v713
    %3191 = vmatprep.subr.mxu0 %v711
    %3192 = vmatpush1.msra.mxu0 %v710
    %3193 = vmatprep.subr.mxu0 %v708
    %3194 = vmatpush1.msra.mxu0 %v707
    %3195 = vmatprep.subr.mxu0 %v705
    %3196 = vmatpush1.msra.mxu0 %v704
    %3197 = vmatprep.subr.mxu0 %v702
    %3198 = vmatpush1.msra.mxu0 %v701
    %3199 = vmatprep.subr.mxu0 %v699
    %3200 = vmatpush1.msra.mxu0 %v698
    %3201 = vmatprep.subr.mxu0 %v696
    %3202 = vmatpush1.msra.mxu0 %v695
    %3203 = vmatprep.subr.mxu0 %v693
    %3204 = vmatpush1.msra.mxu0 %v692
    %3205 = vmatprep.subr.mxu0 %v690
    %3206 = vmatpush1.msra.mxu0 %v689
    %3207 = vmatprep.subr.mxu0 %v687
    %3208 = vmatpush1.msra.mxu0 %v686
    %3209 = vmatprep.subr.mxu0 %v684
    %3210 = vmatpush1.msra.mxu0 %v683
    %3211 = vmatprep.subr.mxu0 %v681
    %3212 = vmatpush1.msra.mxu0 %v680
    %3213 = vmatprep.subr.mxu0 0.0
    %3214 = vmatpush2.msra.mxu0 0.0
    %3215 = vmatprep.subr.mxu0 0.0
    %3216 = vmatpush2.msra.mxu0 0.0
    %3217 = vmatprep.subr.mxu0 0.0
    %3218 = vmatpush2.msra.mxu0 0.0
    %3219 = vmatprep.subr.mxu0 0.0
    %3220 = vmatpush2.msra.mxu0 0.0
    %3221 = vmatprep.subr.mxu0 0.0
    %3222 = vmatpush2.msra.mxu0 0.0
    %3223 = vmatprep.subr.mxu0 0.0
    %3224 = vmatpush2.msra.mxu0 0.0
    %3225 = vmatprep.subr.mxu0 0.0
    %3226 = vmatpush2.msra.mxu0 0.0
    %3227 = vmatprep.subr.mxu0 0.0
    %3228 = vmatpush2.msra.mxu0 0.0
    %3229 = vmatprep.subr.mxu0 0.0
    %3230 = vmatpush2.msra.mxu0 0.0
    %3231 = vmatprep.subr.mxu0 0.0
    %3232 = vmatpush2.msra.mxu0 0.0
    %3233 = vmatprep.subr.mxu0 0.0
    %3234 = vmatpush2.msra.mxu0 0.0
    %3235 = vmatprep.subr.mxu0 0.0
    %3236 = vmatpush2.msra.mxu0 0.0
    %3237 = vmatprep.subr.mxu0 0.0
    %3238 = vmatpush2.msra.mxu0 0.0
    %3239 = vmatprep.subr.mxu0 0.0
    %3240 = vmatpush2.msra.mxu0 0.0
    %3241 = vmatprep.subr.mxu0 0.0
    %3242 = vmatpush2.msra.mxu0 0.0
    %3243 = vmatprep.subr.mxu0 0.0
    %3244 = vmatpush2.msra.mxu0 0.0
    %3245 = vmatprep.mubr.f32.mxu0 0.0
    %3246 = vmatmul.mubr.f32.gmra.mxu0 %v3008
    %v3247 = vpop.f32.mrf.mxu0
    %v3248 = vadd.f32 0.0, %v3247
    %v3249 = vpop.f32.mrf.mxu0
    %v3250 = vadd.f32 0.0, %v3249
    %3251 = vdwg.mxu0
    %3252 = vmatprep.subr.mxu0 0.0
    %3253 = vmatpush1.msra.mxu0 %v727
    %3254 = vmatprep.subr.mxu0 0.0
    %3255 = vmatpush1.msra.mxu0 %v724
    %3256 = vmatprep.subr.mxu0 0.0
    %3257 = vmatpush1.msra.mxu0 %v721
    %3258 = vmatprep.subr.mxu0 0.0
    %3259 = vmatpush1.msra.mxu0 %v718
    %3260 = vmatprep.subr.mxu0 0.0
    %3261 = vmatpush1.msra.mxu0 %v715
    %3262 = vmatprep.subr.mxu0 0.0
    %3263 = vmatpush1.msra.mxu0 %v712
    %3264 = vmatprep.subr.mxu0 0.0
    %3265 = vmatpush1.msra.mxu0 %v709
    %3266 = vmatprep.subr.mxu0 0.0
    %3267 = vmatpush1.msra.mxu0 %v706
    %3268 = vmatprep.subr.mxu0 0.0
    %3269 = vmatpush1.msra.mxu0 %v703
    %3270 = vmatprep.subr.mxu0 0.0
    %3271 = vmatpush1.msra.mxu0 %v700
    %3272 = vmatprep.subr.mxu0 0.0
    %3273 = vmatpush1.msra.mxu0 %v697
    %3274 = vmatprep.subr.mxu0 0.0
    %3275 = vmatpush1.msra.mxu0 %v694
    %3276 = vmatprep.subr.mxu0 0.0
    %3277 = vmatpush1.msra.mxu0 %v691
    %3278 = vmatprep.subr.mxu0 0.0
    %3279 = vmatpush1.msra.mxu0 %v688
    %3280 = vmatprep.subr.mxu0 0.0
    %3281 = vmatpush1.msra.mxu0 %v685
    %3282 = vmatprep.subr.mxu0 0.0
    %3283 = vmatpush1.msra.mxu0 %v682
    %3284 = vmatprep.subr.mxu0 0.0
    %3285 = vmatpush2.msra.mxu0 0.0
    %3286 = vmatprep.subr.mxu0 0.0
    %3287 = vmatpush2.msra.mxu0 0.0
    %3288 = vmatprep.subr.mxu0 0.0
    %3289 = vmatpush2.msra.mxu0 0.0
    %3290 = vmatprep.subr.mxu0 0.0
    %3291 = vmatpush2.msra.mxu0 0.0
    %3292 = vmatprep.subr.mxu0 0.0
    %3293 = vmatpush2.msra.mxu0 0.0
    %3294 = vmatprep.subr.mxu0 0.0
    %3295 = vmatpush2.msra.mxu0 0.0
    %3296 = vmatprep.subr.mxu0 0.0
    %3297 = vmatpush2.msra.mxu0 0.0
    %3298 = vmatprep.subr.mxu0 0.0
    %3299 = vmatpush2.msra.mxu0 0.0
    %3300 = vmatprep.subr.mxu0 0.0
    %3301 = vmatpush2.msra.mxu0 0.0
    %3302 = vmatprep.subr.mxu0 0.0
    %3303 = vmatpush2.msra.mxu0 0.0
    %3304 = vmatprep.subr.mxu0 0.0
    %3305 = vmatpush2.msra.mxu0 0.0
    %3306 = vmatprep.subr.mxu0 0.0
    %3307 = vmatpush2.msra.mxu0 0.0
    %3308 = vmatprep.subr.mxu0 0.0
    %3309 = vmatpush2.msra.mxu0 0.0
    %3310 = vmatprep.subr.mxu0 0.0
    %3311 = vmatpush2.msra.mxu0 0.0
    %3312 = vmatprep.subr.mxu0 0.0
    %3313 = vmatpush2.msra.mxu0 0.0
    %3314 = vmatprep.subr.mxu0 0.0
    %3315 = vmatpush2.msra.mxu0 0.0
    %3316 = vmatprep.mubr.f32.mxu0 0.0
    %3317 = vmatmul.mubr.f32.gmra.mxu0 %v3008
    %v3318 = vpop.f32.mrf.mxu0
    %v3319 = vadd.f32 0.0, %v3318
    %v3320 = vpop.f32.mrf.mxu0
    %3321 = vdwg.mxu0
    %s3322 = smul.addr %s1098, 8
    %s3323 = scalar_lea.vmem [#allocation2], %s3322
    %v3324 = vld [vmem:[%s3323] sm:$0xff]
    %v3325 = vld [vmem:[%s3323 + $0x8] sm:$0xff]
    %v3326 = vld [vmem:[%s3323 + $0x10] sm:$0xff]
    %v3327 = vadd.f32 %v3324, %v3248
    %v3328 = vxor.u32 %v3327, 2147483648
    %v3329 = vmul.f32 %v3328, 1.442695
    %v3330 = vpow.pop %v3329
    %v3331 = vadd.f32 %v3330, 1.0
    %v3332 = vrcp.pop %v3331
    %v3333 = vmul.f32 1.0, %v3332
    %v3334 = vadd.f32 %v3325, %v3250
    %v3335 = vxor.u32 %v3334, 2147483648
    %v3336 = vmul.f32 %v3335, 1.442695
    %v3337 = vpow.pop %v3336
    %v3338 = vadd.f32 %v3337, 1.0
    %v3339 = vrcp.pop %v3338
    %v3340 = vmul.f32 1.0, %v3339
    %v3341 = vadd.f32 %v3319, %v947
    %v3342 = vmul.f32 %v3333, %v3341
    %v3343 = vadd.f32 %v3326, %v3342
    %v3344 = vtanh.pop %v3343
    %v3345 = vsub.f32 1.0, %v3340
    %v3346 = vmul.f32 %v3345, %v3344
    %v3347 = vmul.f32 %v3340, %v3008
    %v3348 = vadd.f32 %v3346, %v3347
    %3349 = vmatprep.subr.mxu0 %v775
    %3350 = vmatpush1.msra.mxu0 %v774
    %3351 = vmatprep.subr.mxu0 %v772
    %3352 = vmatpush1.msra.mxu0 %v771
    %3353 = vmatprep.subr.mxu0 %v769
    %3354 = vmatpush1.msra.mxu0 %v768
    %3355 = vmatprep.subr.mxu0 %v766
    %3356 = vmatpush1.msra.mxu0 %v765
    %3357 = vmatprep.subr.mxu0 %v763
    %3358 = vmatpush1.msra.mxu0 %v762
    %3359 = vmatprep.subr.mxu0 %v760
    %3360 = vmatpush1.msra.mxu0 %v759
    %3361 = vmatprep.subr.mxu0 %v757
    %3362 = vmatpush1.msra.mxu0 %v756
    %3363 = vmatprep.subr.mxu0 %v754
    %3364 = vmatpush1.msra.mxu0 %v753
    %3365 = vmatprep.subr.mxu0 %v751
    %3366 = vmatpush1.msra.mxu0 %v750
    %3367 = vmatprep.subr.mxu0 %v748
    %3368 = vmatpush1.msra.mxu0 %v747
    %3369 = vmatprep.subr.mxu0 %v745
    %3370 = vmatpush1.msra.mxu0 %v744
    %3371 = vmatprep.subr.mxu0 %v742
    %3372 = vmatpush1.msra.mxu0 %v741
    %3373 = vmatprep.subr.mxu0 %v739
    %3374 = vmatpush1.msra.mxu0 %v738
    %3375 = vmatprep.subr.mxu0 %v736
    %3376 = vmatpush1.msra.mxu0 %v735
    %3377 = vmatprep.subr.mxu0 %v733
    %3378 = vmatpush1.msra.mxu0 %v732
    %3379 = vmatprep.subr.mxu0 %v730
    %3380 = vmatpush1.msra.mxu0 %v729
    %3381 = vmatprep.subr.mxu0 0.0
    %3382 = vmatpush2.msra.mxu0 0.0
    %3383 = vmatprep.subr.mxu0 0.0
    %3384 = vmatpush2.msra.mxu0 0.0
    %3385 = vmatprep.subr.mxu0 0.0
    %3386 = vmatpush2.msra.mxu0 0.0
    %3387 = vmatprep.subr.mxu0 0.0
    %3388 = vmatpush2.msra.mxu0 0.0
    %3389 = vmatprep.subr.mxu0 0.0
    %3390 = vmatpush2.msra.mxu0 0.0
    %3391 = vmatprep.subr.mxu0 0.0
    %3392 = vmatpush2.msra.mxu0 0.0
    %3393 = vmatprep.subr.mxu0 0.0
    %3394 = vmatpush2.msra.mxu0 0.0
    %3395 = vmatprep.subr.mxu0 0.0
    %3396 = vmatpush2.msra.mxu0 0.0
    %3397 = vmatprep.subr.mxu0 0.0
    %3398 = vmatpush2.msra.mxu0 0.0
    %3399 = vmatprep.subr.mxu0 0.0
    %3400 = vmatpush2.msra.mxu0 0.0
    %3401 = vmatprep.subr.mxu0 0.0
    %3402 = vmatpush2.msra.mxu0 0.0
    %3403 = vmatprep.subr.mxu0 0.0
    %3404 = vmatpush2.msra.mxu0 0.0
    %3405 = vmatprep.subr.mxu0 0.0
    %3406 = vmatpush2.msra.mxu0 0.0
    %3407 = vmatprep.subr.mxu0 0.0
    %3408 = vmatpush2.msra.mxu0 0.0
    %3409 = vmatprep.subr.mxu0 0.0
    %3410 = vmatpush2.msra.mxu0 0.0
    %3411 = vmatprep.subr.mxu0 0.0
    %3412 = vmatpush2.msra.mxu0 0.0
    %3413 = vmatprep.mubr.f32.mxu0 0.0
    %3414 = vmatmul.mubr.f32.gmra.mxu0 %v3176
    %v3415 = vpop.f32.mrf.mxu0
    %v3416 = vadd.f32 0.0, %v3415
    %v3417 = vpop.f32.mrf.mxu0
    %v3418 = vadd.f32 0.0, %v3417
    %3419 = vdwg.mxu0
    %3420 = vmatprep.subr.mxu0 0.0
    %3421 = vmatpush1.msra.mxu0 %v776
    %3422 = vmatprep.subr.mxu0 0.0
    %3423 = vmatpush1.msra.mxu0 %v773
    %3424 = vmatprep.subr.mxu0 0.0
    %3425 = vmatpush1.msra.mxu0 %v770
    %3426 = vmatprep.subr.mxu0 0.0
    %3427 = vmatpush1.msra.mxu0 %v767
    %3428 = vmatprep.subr.mxu0 0.0
    %3429 = vmatpush1.msra.mxu0 %v764
    %3430 = vmatprep.subr.mxu0 0.0
    %3431 = vmatpush1.msra.mxu0 %v761
    %3432 = vmatprep.subr.mxu0 0.0
    %3433 = vmatpush1.msra.mxu0 %v758
    %3434 = vmatprep.subr.mxu0 0.0
    %3435 = vmatpush1.msra.mxu0 %v755
    %3436 = vmatprep.subr.mxu0 0.0
    %3437 = vmatpush1.msra.mxu0 %v752
    %3438 = vmatprep.subr.mxu0 0.0
    %3439 = vmatpush1.msra.mxu0 %v749
    %3440 = vmatprep.subr.mxu0 0.0
    %3441 = vmatpush1.msra.mxu0 %v746
    %3442 = vmatprep.subr.mxu0 0.0
    %3443 = vmatpush1.msra.mxu0 %v743
    %3444 = vmatprep.subr.mxu0 0.0
    %3445 = vmatpush1.msra.mxu0 %v740
    %3446 = vmatprep.subr.mxu0 0.0
    %3447 = vmatpush1.msra.mxu0 %v737
    %3448 = vmatprep.subr.mxu0 0.0
    %3449 = vmatpush1.msra.mxu0 %v734
    %3450 = vmatprep.subr.mxu0 0.0
    %3451 = vmatpush1.msra.mxu0 %v731
    %3452 = vmatprep.subr.mxu0 0.0
    %3453 = vmatpush2.msra.mxu0 0.0
    %3454 = vmatprep.subr.mxu0 0.0
    %3455 = vmatpush2.msra.mxu0 0.0
    %3456 = vmatprep.subr.mxu0 0.0
    %3457 = vmatpush2.msra.mxu0 0.0
    %3458 = vmatprep.subr.mxu0 0.0
    %3459 = vmatpush2.msra.mxu0 0.0
    %3460 = vmatprep.subr.mxu0 0.0
    %3461 = vmatpush2.msra.mxu0 0.0
    %3462 = vmatprep.subr.mxu0 0.0
    %3463 = vmatpush2.msra.mxu0 0.0
    %3464 = vmatprep.subr.mxu0 0.0
    %3465 = vmatpush2.msra.mxu0 0.0
    %3466 = vmatprep.subr.mxu0 0.0
    %3467 = vmatpush2.msra.mxu0 0.0
    %3468 = vmatprep.subr.mxu0 0.0
    %3469 = vmatpush2.msra.mxu0 0.0
    %3470 = vmatprep.subr.mxu0 0.0
    %3471 = vmatpush2.msra.mxu0 0.0
    %3472 = vmatprep.subr.mxu0 0.0
    %3473 = vmatpush2.msra.mxu0 0.0
    %3474 = vmatprep.subr.mxu0 0.0
    %3475 = vmatpush2.msra.mxu0 0.0
    %3476 = vmatprep.subr.mxu0 0.0
    %3477 = vmatpush2.msra.mxu0 0.0
    %3478 = vmatprep.subr.mxu0 0.0
    %3479 = vmatpush2.msra.mxu0 0.0
    %3480 = vmatprep.subr.mxu0 0.0
    %3481 = vmatpush2.msra.mxu0 0.0
    %3482 = vmatprep.subr.mxu0 0.0
    %3483 = vmatpush2.msra.mxu0 0.0
    %3484 = vmatprep.mubr.f32.mxu0 0.0
    %3485 = vmatmul.mubr.f32.gmra.mxu0 %v3176
    %v3486 = vpop.f32.mrf.mxu0
    %v3487 = vadd.f32 0.0, %v3486
    %v3488 = vpop.f32.mrf.mxu0
    %3489 = vdwg.mxu0
    %s3490 = smul.addr %s923, 8
    %s3491 = scalar_lea.vmem [#allocation3], %s3490
    %v3492 = vld [vmem:[%s3491] sm:$0xff]
    %v3493 = vld [vmem:[%s3491 + $0x8] sm:$0xff]
    %v3494 = vld [vmem:[%s3491 + $0x10] sm:$0xff]
    %v3495 = vadd.f32 %v3492, %v3416
    %v3496 = vxor.u32 %v3495, 2147483648
    %v3497 = vmul.f32 %v3496, 1.442695
    %v3498 = vpow.pop %v3497
    %v3499 = vadd.f32 %v3498, 1.0
    %v3500 = vrcp.pop %v3499
    %v3501 = vmul.f32 1.0, %v3500
    %v3502 = vadd.f32 %v3493, %v3418
    %v3503 = vxor.u32 %v3502, 2147483648
    %v3504 = vmul.f32 %v3503, 1.442695
    %v3505 = vpow.pop %v3504
    %v3506 = vadd.f32 %v3505, 1.0
    %v3507 = vrcp.pop %v3506
    %v3508 = vmul.f32 1.0, %v3507
    %v3509 = vadd.f32 %v3487, %v1122
    %v3510 = vmul.f32 %v3501, %v3509
    %v3511 = vadd.f32 %v3494, %v3510
    %v3512 = vtanh.pop %v3511
    %v3513 = vsub.f32 1.0, %v3508
    %v3514 = vmul.f32 %v3513, %v3512
    %v3515 = vmul.f32 %v3508, %v3176
    %v3516 = vadd.f32 %v3514, %v3515
    %s3517 = scalar_lea.vmem %s6, 56
    %3518 = vst [vmem:[%s3517] sm:$0xff] %v3348
    %3519 = vst [vmem:[%s74] sm:$0xff] %v3516
    %3520 = vst [vmem:[#allocation4] sm:$0xff] %v3348
    %3521 = vst [vmem:[#allocation5] sm:$0xff] %v3516
    // Predicated region
    $region34: #{video_encoder_forward.3} parent=1 // pred_check
      %p3522 = pneg %p674
    $region35: #{video_encoder_forward.3} parent=1 // pred_check_branch
      %3524 = sbr.rel (%p3522) target = $region37
    $region36: #{video_encoder_forward.3} parent=1 // pred_region
      %3525 = vst [vmem:[#allocation9] sm:$0xff] %v3348
      %s3526 = scalar_lea.vmem [#allocation9], 8
      %3527 = vst [vmem:[%s3526] sm:$0xff] %v3516
    $region37: #{video_encoder_forward.3} parent=1 // pred_fallthru
      _
    %s3528 = ssub.s32 0, 0
    %s3529 = smul.u32 8, %s3528
    %p3530 = scmp.lt.s32.totalorder %s3529, 7
    %s3531 = scalar_select %p3530, %s3529, 7
    %s3532 = smul.addr %s3531, 8
    %s3533 = scalar_lea.vmem %s7, %s3532
    // Predicated region
    $region38: #{video_encoder_forward.3} parent=1 // pred_check
      _
    $region39: #{video_encoder_forward.3} parent=1 // pred_check_branch
      %3535 = sbr.rel (0) target = $region41
    $region40: #{video_encoder_forward.3} parent=1 // pred_region
      _
    $region41: #{video_encoder_forward.3} parent=1 // pred_fallthru
      _
    // Predicated region
    $region42: #{video_encoder_forward.3} parent=1 // pred_check
      _
    $region43: #{video_encoder_forward.3} parent=1 // pred_check_branch
      %3537 = sbr.rel (0) target = $region45
    $region44: #{video_encoder_forward.3} parent=1 // pred_region
      %s3538 = ssub.s32 0, 0
      %s3539 = smul.u32 8, %s3538
    $region45: #{video_encoder_forward.3} parent=1 // pred_fallthru
      _
    // Predicated region
    $region46: #{video_encoder_forward.3} parent=1 // pred_check
      _
    $region47: #{video_encoder_forward.3} parent=1 // pred_check_branch
      %3541 = sbr.rel (0) target = $region49
    $region48: #{video_encoder_forward.3} parent=1 // pred_region
      %s3543 = ssub.s32 256, 256
      %3544 = vsyncadd [#allocation8], %s3543
      %s3545 = sshll.u32 [#allocation9], 4
      %s3546 = int_to_ptr.vmem [resolvable:$true] %s3545
      %3551 = dma.vmem_to_hbm [thread:$0]  %s3546, 256, %s8, [#allocation8], 128, 128, 8
    $region49: #{video_encoder_forward.3} parent=1 // pred_fallthru
      _
    // Predicated region
    $region50: #{video_encoder_forward.3} parent=1 // pred_check
      _
    $region51: #{video_encoder_forward.3} parent=1 // pred_check_branch
      %3553 = sbr.rel (0) target = $region53
    $region52: #{video_encoder_forward.3} parent=1 // pred_region
      _
    $region53: #{video_encoder_forward.3} parent=1 // pred_fallthru
      _
    // Predicated region
    $region54: #{video_encoder_forward.3} parent=1 // pred_check
      _
    $region55: #{video_encoder_forward.3} parent=1 // pred_check_branch
      %3555 = sbr.rel (0) target = $region57
    $region56: #{video_encoder_forward.3} parent=1 // pred_region
      %s3556 = ssub.s32 0, 0
      %s3557 = smul.u32 8, %s3556
      %p3558 = scmp.lt.s32.totalorder %s3557, 7
      %s3559 = scalar_select %p3558, %s3557, 7
      %s3560 = smul.addr %s3559, 8
      %s3561 = scalar_lea.vmem %s7, %s3560
    $region57: #{video_encoder_forward.3} parent=1 // pred_fallthru
      _
    // Predicated region
    $region58: #{video_encoder_forward.3} parent=1 // pred_check
      _
    $region59: #{video_encoder_forward.3} parent=1 // pred_check_branch
      %3563 = sbr.rel (0) target = $region61
    $region60: #{video_encoder_forward.3} parent=1 // pred_region
      %3564 = dma.done [#allocation8], 256
    $region61: #{video_encoder_forward.3} parent=1 // pred_fallthru
      _
    %3565 = vsyncpa [#allocation7], 1
    %3566 = vsyncpa [#allocation8], 1

// kernel: video_encoder_forward.4
$region0: #{video_encoder_forward.4}
  #allocation0 [shape = 'u32[]', space=smem, size = 0x4, offset = 0x4, fixed_abs, tag = 'smem constant byte address 0x4 - core index']
  #allocation1 [shape = 'u32[144,128]{1,0:T(1,128)}', space=vmem, size = 0x12000, scoped, tag = 'internal scratch']
  #allocation2 [shape = 'f32[64,384]{1,0:T(8,128)}', space=vmem, size = 0x18000, scoped, tag = 'scratch operand']
  #allocation3 [shape = 'f32[64,384]{1,0:T(8,128)}', space=vmem, size = 0x18000, scoped, tag = 'scratch operand']
  #allocation4 [shape = 'f32[8,128]{1,0:T(8,128)}', space=vmem, size = 0x1000, scoped, tag = 'scratch operand']
  #allocation5 [shape = 'f32[8,128]{1,0:T(8,128)}', space=vmem, size = 0x1000, scoped, tag = 'scratch operand']
  %s0 = inlined_call_operand.vmem [shape: f32[64,128], index: 0, kind: input, shape index: {}, may-alias: {0,2}]
  %s1 = inlined_call_operand.vmem [shape: f32[64,128], index: 1, kind: input, shape index: {}, may-alias: {1,3}]
  %s2 = inlined_call_operand.vmem [shape: f32[64,128], index: 2, kind: input, shape index: {}, may-alias: {0,2}]
  %s3 = inlined_call_operand.vmem [shape: f32[64,128], index: 3, kind: input, shape index: {}, may-alias: {1,3}]
  %s4 = inlined_call_operand.hbm [shape: f32[2,2,128,384], index: 4, kind: input, shape index: {}]
  %s5 = inlined_call_operand.vmem [shape: f32[2,128,384], index: 5, kind: input, shape index: {}]
  %s6 = inlined_call_operand.vmem [shape: f32[2,1,384], index: 6, kind: input, shape index: {}]
  %s7 = inlined_call_operand.vmem [shape: f32[2,1,128], index: 7, kind: input, shape index: {}]
  %s8 = inlined_call_operand.vmem [shape: f32[2,8,128], index: 8, kind: output, shape index: {}]
  %s9 = sld [smem:[#allocation0]]
  $region54: #{video_encoder_forward.4} parent=0
    _
  %s11 = ssub.s32 1, %s9
  %s12 = scalar_select 0, %s11, %s9
  $region1: #{video_encoder_forward.4} parent=0
    #allocation6 [shape = 'u8[786432]{0}', space=vmem, size = 0xc0000, scoped, tag = 'input window, operand 4, single buffered']
    #allocation7 [shape = 's32[1]{0}', space=sflag, size = 0x4, scoped, tag = 'scoped memory for video_encoder_forward.4']
    %13 = vsyncpa [#allocation7], 0
    // Predicated region
    $region2: #{video_encoder_forward.4} parent=1 // pred_check
      _
    $region3: #{video_encoder_forward.4} parent=1 // pred_check_branch
      %15 = sbr.rel (0) target = $region5
    $region4: #{video_encoder_forward.4} parent=1 // pred_region
      _
    $region5: #{video_encoder_forward.4} parent=1 // pred_fallthru
      _
    // Predicated region
    $region6: #{video_encoder_forward.4} parent=1 // pred_check
      _
    $region7: #{video_encoder_forward.4} parent=1 // pred_check_branch
      %17 = sbr.rel (0) target = $region9
    $region8: #{video_encoder_forward.4} parent=1 // pred_region
      _
    $region9: #{video_encoder_forward.4} parent=1 // pred_fallthru
      _
    // Predicated region
    $region10: #{video_encoder_forward.4} parent=1 // pred_check
      _
    $region11: #{video_encoder_forward.4} parent=1 // pred_check_branch
      %19 = sbr.rel (0) target = $region13
    $region12: #{video_encoder_forward.4} parent=1 // pred_region
      %s20 = ssub.s32 0, 0
      %s21 = smul.u32 8, %s20
      %p22 = scmp.lt.s32.totalorder %s21, 7
      %s23 = scalar_select %p22, %s21, 7
      %s24 = smul.addr %s23, 8
      %s25 = scalar_lea.vmem %s2, %s24
      %s26 = ssub.s32 0, 0
      %s27 = smul.u32 8, %s26
    $region13: #{video_encoder_forward.4} parent=1 // pred_fallthru
      _
    // Predicated region
    $region14: #{video_encoder_forward.4} parent=1 // pred_check
      _
    $region15: #{video_encoder_forward.4} parent=1 // pred_check_branch
      %29 = sbr.rel (0) target = $region17
    $region16: #{video_encoder_forward.4} parent=1 // pred_region
      %s30 = ssub.s32 0, 0
      %s31 = smul.u32 8, %s30
      %p32 = scmp.lt.s32.totalorder %s31, 7
      %s33 = scalar_select %p32, %s31, 7
      %s34 = smul.addr %s33, 8
      %s35 = scalar_lea.vmem %s3, %s34
      %s36 = ssub.s32 0, 0
      %s37 = smul.u32 8, %s36
    $region17: #{video_encoder_forward.4} parent=1 // pred_fallthru
      _
    // Predicated region
    $region18: #{video_encoder_forward.4} parent=1 // pred_check
      _
    $region19: #{video_encoder_forward.4} parent=1 // pred_check_branch
      %39 = sbr.rel (0) target = $region21
    $region20: #{video_encoder_forward.4} parent=1 // pred_region
      %s41 = ssub.s32 24576, 24576
      %42 = vsyncadd [#allocation7], %s41
      %s43 = sshll.u32 [#allocation6], 4
      %s44 = int_to_ptr.vmem [resolvable:$true] %s43
      %49 = dma.hbm_to_vmem [thread:$0]  %s4, 24576, %s44, [#allocation7], 384, 384, 24
    $region21: #{video_encoder_forward.4} parent=1 // pred_fallthru
      _
    // Predicated region
    $region22: #{video_encoder_forward.4} parent=1 // pred_check
      _
    $region23: #{video_encoder_forward.4} parent=1 // pred_check_branch
      %51 = sbr.rel (0) target = $region25
    $region24: #{video_encoder_forward.4} parent=1 // pred_region
      _
    $region25: #{video_encoder_forward.4} parent=1 // pred_fallthru
      _
    // Predicated region
    $region26: #{video_encoder_forward.4} parent=1 // pred_check
      _
    $region27: #{video_encoder_forward.4} parent=1 // pred_check_branch
      %53 = sbr.rel (0) target = $region29
    $region28: #{video_encoder_forward.4} parent=1 // pred_region
      _
    $region29: #{video_encoder_forward.4} parent=1 // pred_fallthru
      _
    // Predicated region
    $region30: #{video_encoder_forward.4} parent=1 // pred_check
      _
    $region31: #{video_encoder_forward.4} parent=1 // pred_check_branch
      %55 = sbr.rel (0) target = $region33
    $region32: #{video_encoder_forward.4} parent=1 // pred_region
      _
    $region33: #{video_encoder_forward.4} parent=1 // pred_fallthru
      _
    // Predicated region
    $region34: #{video_encoder_forward.4} parent=1 // pred_check
      _
    $region35: #{video_encoder_forward.4} parent=1 // pred_check_branch
      %57 = sbr.rel (0) target = $region37
    $region36: #{video_encoder_forward.4} parent=1 // pred_region
      %58 = dma.done [#allocation7], 24576
    $region37: #{video_encoder_forward.4} parent=1 // pred_fallthru
      _
    %s59 = ssub.s32 0, 0
    %s60 = smul.u32 8, %s59
    %p61 = scmp.lt.s32.totalorder %s60, 7
    %s62 = scalar_select %p61, %s60, 7
    %s63 = smul.addr %s62, 8
    %s64 = scalar_lea.vmem %s2, %s63
    %s65 = ssub.s32 0, 0
    %s66 = smul.u32 8, %s65
    %p67 = scmp.lt.s32.totalorder %s66, 7
    %s68 = scalar_select %p67, %s66, 7
    %s69 = smul.addr %s68, 8
    %s70 = scalar_lea.vmem %s3, %s69
    %s71 = ssub.s32 0, 0
    %s72 = smul.u32 8, %s71
    %p73 = scmp.lt.s32.totalorder %s72, 7
    %s74 = scalar_select %p73, %s72, 7
    %s75 = smul.addr %s74, 8
    %s76 = scalar_lea.vmem %s2, %s75
    %s77 = ssub.s32 0, 0
    %s78 = smul.u32 8, %s77
    %s79 = ssub.s32 0, 0
    %s80 = smul.u32 8, %s79
    %p81 = scmp.lt.s32.totalorder %s80, 7
    %s82 = scalar_select %p81, %s80, 7
    %s83 = smul.addr %s82, 8
    %s84 = scalar_lea.vmem %s3, %s83
    %s85 = ssub.s32 0, 0
    %s86 = smul.u32 8, %s85
    %v87 = vld [vmem:[%s0] sm:$0xff]
    %v88 = vld [vmem:[%s0 + $0x8] sm:$0xff]
    %v89 = vld [vmem:[%s0 + $0x10] sm:$0xff]
    %v90 = vld [vmem:[%s0 + $0x18] sm:$0xff]
    %v91 = vld [vmem:[%s0 + $0x20] sm:$0xff]
    %v92 = vld [vmem:[%s0 + $0x28] sm:$0xff]
    %v93 = vld [vmem:[%s0 + $0x30] sm:$0xff]
    %v94 = vld [vmem:[%s0 + $0x38] sm:$0xff]
    %v95 = vld [vmem:[#allocation6] sm:$0xff]
    %v96 = vld [vmem:[#allocation6 + $0x8] sm:$0xff]
    %v97 = vld [vmem:[#allocation6 + $0x10] sm:$0xff]
    %v98 = vld [vmem:[#allocation6 + $0x18] sm:$0xff]
    %v99 = vld [vmem:[#allocation6 + $0x20] sm:$0xff]
    %v100 = vld [vmem:[#allocation6 + $0x28] sm:$0xff]
    %v101 = vld [vmem:[#allocation6 + $0x30] sm:$0xff]
    %v102 = vld [vmem:[#allocation6 + $0x38] sm:$0xff]
    %v103 = vld [vmem:[#allocation6 + $0x40] sm:$0xff]
    %v104 = vld [vmem:[#allocation6 + $0x48] sm:$0xff]
    %v105 = vld [vmem:[#allocation6 + $0x50] sm:$0xff]
    %v106 = vld [vmem:[#allocation6 + $0x58] sm:$0xff]
    %v107 = vld [vmem:[#allocation6 + $0x60] sm:$0xff]
    %v108 = vld [vmem:[#allocation6 + $0x68] sm:$0xff]
    %v109 = vld [vmem:[#allocation6 + $0x70] sm:$0xff]
    %v110 = vld [vmem:[#allocation6 + $0x78] sm:$0xff]
    %v111 = vld [vmem:[#allocation6 + $0x80] sm:$0xff]
    %v112 = vld [vmem:[#allocation6 + $0x88] sm:$0xff]
    %v113 = vld [vmem:[#allocation6 + $0x90] sm:$0xff]
    %v114 = vld [vmem:[#allocation6 + $0x98] sm:$0xff]
    %v115 = vld [vmem:[#allocation6 + $0xa0] sm:$0xff]
    %v116 = vld [vmem:[#allocation6 + $0xa8] sm:$0xff]
    %v117 = vld [vmem:[#allocation6 + $0xb0] sm:$0xff]
    %v118 = vld [vmem:[#allocation6 + $0xb8] sm:$0xff]
    %v119 = vld [vmem:[#allocation6 + $0xc0] sm:$0xff]
    %v120 = vld [vmem:[#allocation6 + $0xc8] sm:$0xff]
    %v121 = vld [vmem:[#allocation6 + $0xd0] sm:$0xff]
    %v122 = vld [vmem:[#allocation6 + $0xd8] sm:$0xff]
    %v123 = vld [vmem:[#allocation6 + $0xe0] sm:$0xff]
    %v124 = vld [vmem:[#allocation6 + $0xe8] sm:$0xff]
    %v125 = vld [vmem:[#allocation6 + $0xf0] sm:$0xff]
    %v126 = vld [vmem:[#allocation6 + $0xf8] sm:$0xff]
    %v127 = vld [vmem:[#allocation6 + $0x100] sm:$0xff]
    %v128 = vld [vmem:[#allocation6 + $0x108] sm:$0xff]
    %v129 = vld [vmem:[#allocation6 + $0x110] sm:$0xff]
    %v130 = vld [vmem:[#allocation6 + $0x118] sm:$0xff]
    %v131 = vld [vmem:[#allocation6 + $0x120] sm:$0xff]
    %v132 = vld [vmem:[#allocation6 + $0x128] sm:$0xff]
    %v133 = vld [vmem:[#allocation6 + $0x130] sm:$0xff]
    %v134 = vld [vmem:[#allocation6 + $0x138] sm:$0xff]
    %v135 = vld [vmem:[#allocation6 + $0x140] sm:$0xff]
    %v136 = vld [vmem:[#allocation6 + $0x148] sm:$0xff]
    %v137 = vld [vmem:[#allocation6 + $0x150] sm:$0xff]
    %v138 = vld [vmem:[#allocation6 + $0x158] sm:$0xff]
    %v139 = vld [vmem:[#allocation6 + $0x160] sm:$0xff]
    %v140 = vld [vmem:[#allocation6 + $0x168] sm:$0xff]
    %v141 = vld [vmem:[#allocation6 + $0x170] sm:$0xff]
    %v142 = vld [vmem:[#allocation6 + $0x178] sm:$0xff]
    %v143 = vld [vmem:[%s1] sm:$0xff]
    %v144 = vld [vmem:[%s1 + $0x8] sm:$0xff]
    %v145 = vld [vmem:[%s1 + $0x10] sm:$0xff]
    %v146 = vld [vmem:[%s1 + $0x18] sm:$0xff]
    %v147 = vld [vmem:[%s1 + $0x20] sm:$0xff]
    %v148 = vld [vmem:[%s1 + $0x28] sm:$0xff]
    %v149 = vld [vmem:[%s1 + $0x30] sm:$0xff]
    %v150 = vld [vmem:[%s1 + $0x38] sm:$0xff]
    %s151 = scalar_lea.vmem [#allocation6], 384
    %v152 = vld [vmem:[%s151] sm:$0xff]
    %v153 = vld [vmem:[%s151 + $0x8] sm:$0xff]
    %v154 = vld [vmem:[%s151 + $0x10] sm:$0xff]
    %v155 = vld [vmem:[%s151 + $0x18] sm:$0xff]
    %v156 = vld [vmem:[%s151 + $0x20] sm:$0xff]
    %v157 = vld [vmem:[%s151 + $0x28] sm:$0xff]
    %v158 = vld [vmem:[%s151 + $0x30] sm:$0xff]
    %v159 = vld [vmem:[%s151 + $0x38] sm:$0xff]
    %v160 = vld [vmem:[%s151 + $0x40] sm:$0xff]
    %v161 = vld [vmem:[%s151 + $0x48] sm:$0xff]
    %v162 = vld [vmem:[%s151 + $0x50] sm:$0xff]
    %v163 = vld [vmem:[%s151 + $0x58] sm:$0xff]
    %v164 = vld [vmem:[%s151 + $0x60] sm:$0xff]
    %v165 = vld [vmem:[%s151 + $0x68] sm:$0xff]
    %v166 = vld [vmem:[%s151 + $0x70] sm:$0xff]
    %v167 = vld [vmem:[%s151 + $0x78] sm:$0xff]
    %v168 = vld [vmem:[%s151 + $0x80] sm:$0xff]
    %v169 = vld [vmem:[%s151 + $0x88] sm:$0xff]
    %v170 = vld [vmem:[%s151 + $0x90] sm:$0xff]
    %v171 = vld [vmem:[%s151 + $0x98] sm:$0xff]
    %v172 = vld [vmem:[%s151 + $0xa0] sm:$0xff]
    %v173 = vld [vmem:[%s151 + $0xa8] sm:$0xff]
    %v174 = vld [vmem:[%s151 + $0xb0] sm:$0xff]
    %v175 = vld [vmem:[%s151 + $0xb8] sm:$0xff]
    %v176 = vld [vmem:[%s151 + $0xc0] sm:$0xff]
    %v177 = vld [vmem:[%s151 + $0xc8] sm:$0xff]
    %v178 = vld [vmem:[%s151 + $0xd0] sm:$0xff]
    %v179 = vld [vmem:[%s151 + $0xd8] sm:$0xff]
    %v180 = vld [vmem:[%s151 + $0xe0] sm:$0xff]
    %v181 = vld [vmem:[%s151 + $0xe8] sm:$0xff]
    %v182 = vld [vmem:[%s151 + $0xf0] sm:$0xff]
    %v183 = vld [vmem:[%s151 + $0xf8] sm:$0xff]
    %v184 = vld [vmem:[%s151 + $0x100] sm:$0xff]
    %v185 = vld [vmem:[%s151 + $0x108] sm:$0xff]
    %v186 = vld [vmem:[%s151 + $0x110] sm:$0xff]
    %v187 = vld [vmem:[%s151 + $0x118] sm:$0xff]
    %v188 = vld [vmem:[%s151 + $0x120] sm:$0xff]
    %v189 = vld [vmem:[%s151 + $0x128] sm:$0xff]
    %v190 = vld [vmem:[%s151 + $0x130] sm:$0xff]
    %v191 = vld [vmem:[%s151 + $0x138] sm:$0xff]
    %v192 = vld [vmem:[%s151 + $0x140] sm:$0xff]
    %v193 = vld [vmem:[%s151 + $0x148] sm:$0xff]
    %v194 = vld [vmem:[%s151 + $0x150] sm:$0xff]
    %v195 = vld [vmem:[%s151 + $0x158] sm:$0xff]
    %v196 = vld [vmem:[%s151 + $0x160] sm:$0xff]
    %v197 = vld [vmem:[%s151 + $0x168] sm:$0xff]
    %v198 = vld [vmem:[%s151 + $0x170] sm:$0xff]
    %v199 = vld [vmem:[%s151 + $0x178] sm:$0xff]
    %200 = vmatprep.subr.mxu0 %v198
    %201 = vmatpush1.msra.mxu0 %v197
    %202 = vmatprep.subr.mxu0 %v195
    %203 = vmatpush1.msra.mxu0 %v194
    %204 = vmatprep.subr.mxu0 %v192
    %205 = vmatpush1.msra.mxu0 %v191
    %206 = vmatprep.subr.mxu0 %v189
    %207 = vmatpush1.msra.mxu0 %v188
    %208 = vmatprep.subr.mxu0 %v186
    %209 = vmatpush1.msra.mxu0 %v185
    %210 = vmatprep.subr.mxu0 %v183
    %211 = vmatpush1.msra.mxu0 %v182
    %212 = vmatprep.subr.mxu0 %v180
    %213 = vmatpush1.msra.mxu0 %v179
    %214 = vmatprep.subr.mxu0 %v177
    %215 = vmatpush1.msra.mxu0 %v176
    %216 = vmatprep.subr.mxu0 %v174
    %217 = vmatpush1.msra.mxu0 %v173
    %218 = vmatprep.subr.mxu0 %v171
    %219 = vmatpush1.msra.mxu0 %v170
    %220 = vmatprep.subr.mxu0 %v168
    %221 = vmatpush1.msra.mxu0 %v167
    %222 = vmatprep.subr.mxu0 %v165
    %223 = vmatpush1.msra.mxu0 %v164
    %224 = vmatprep.subr.mxu0 %v162
    %225 = vmatpush1.msra.mxu0 %v161
    %226 = vmatprep.subr.mxu0 %v159
    %227 = vmatpush1.msra.mxu0 %v158
    %228 = vmatprep.subr.mxu0 %v156
    %229 = vmatpush1.msra.mxu0 %v155
    %230 = vmatprep.subr.mxu0 %v153
    %231 = vmatpush1.msra.mxu0 %v152
    %232 = vmatprep.subr.mxu0 0.0
    %233 = vmatpush2.msra.mxu0 0.0
    %234 = vmatprep.subr.mxu0 0.0
    %235 = vmatpush2.msra.mxu0 0.0
    %236 = vmatprep.subr.mxu0 0.0
    %237 = vmatpush2.msra.mxu0 0.0
    %238 = vmatprep.subr.mxu0 0.0
    %239 = vmatpush2.msra.mxu0 0.0
    %240 = vmatprep.subr.mxu0 0.0
    %241 = vmatpush2.msra.mxu0 0.0
    %242 = vmatprep.subr.mxu0 0.0
    %243 = vmatpush2.msra.mxu0 0.0
    %244 = vmatprep.subr.mxu0 0.0
    %245 = vmatpush2.msra.mxu0 0.0
    %246 = vmatprep.subr.mxu0 0.0
    %247 = vmatpush2.msra.mxu0 0.0
    %248 = vmatprep.subr.mxu0 0.0
    %249 = vmatpush2.msra.mxu0 0.0
    %250 = vmatprep.subr.mxu0 0.0
    %251 = vmatpush2.msra.mxu0 0.0
    %252 = vmatprep.subr.mxu0 0.0
    %253 = vmatpush2.msra.mxu0 0.0
    %254 = vmatprep.subr.mxu0 0.0
    %255 = vmatpush2.msra.mxu0 0.0
    %256 = vmatprep.subr.mxu0 0.0
    %257 = vmatpush2.msra.mxu0 0.0
    %258 = vmatprep.subr.mxu0 0.0
    %259 = vmatpush2.msra.mxu0 0.0
    %260 = vmatprep.subr.mxu0 0.0
    %261 = vmatpush2.msra.mxu0 0.0
    %262 = vmatprep.subr.mxu0 0.0
    %263 = vmatpush2.msra.mxu0 0.0
    %264 = vmatprep.mubr.f32.mxu0 0.0
    %265 = vmatmul.mubr.f32.gmra.mxu0 %v143
    %v266 = vpop.f32.mrf.mxu0
    %v267 = vadd.f32 0.0, %v266
    %v268 = vpop.f32.mrf.mxu0
    %v269 = vadd.f32 0.0, %v268
    %270 = vmatprep.mubr.f32.mxu0 0.0
    %271 = vmatmul.mubr.f32.gmra.mxu0 %v144
    %v272 = vpop.f32.mrf.mxu0
    %v273 = vadd.f32 0.0, %v272
    %v274 = vpop.f32.mrf.mxu0
    %v275 = vadd.f32 0.0, %v274
    %276 = vmatprep.mubr.f32.mxu0 0.0
    %277 = vmatmul.mubr.f32.gmra.mxu0 %v145
    %v278 = vpop.f32.mrf.mxu0
    %v279 = vadd.f32 0.0, %v278
    %v280 = vpop.f32.mrf.mxu0
    %v281 = vadd.f32 0.0, %v280
    %282 = vmatprep.mubr.f32.mxu0 0.0
    %283 = vmatmul.mubr.f32.gmra.mxu0 %v146
    %v284 = vpop.f32.mrf.mxu0
    %v285 = vadd.f32 0.0, %v284
    %v286 = vpop.f32.mrf.mxu0
    %v287 = vadd.f32 0.0, %v286
    %288 = vmatprep.mubr.f32.mxu0 0.0
    %289 = vmatmul.mubr.f32.gmra.mxu0 %v147
    %v290 = vpop.f32.mrf.mxu0
    %v291 = vadd.f32 0.0, %v290
    %v292 = vpop.f32.mrf.mxu0
    %v293 = vadd.f32 0.0, %v292
    %294 = vmatprep.mubr.f32.mxu0 0.0
    %295 = vmatmul.mubr.f32.gmra.mxu0 %v148
    %v296 = vpop.f32.mrf.mxu0
    %v297 = vadd.f32 0.0, %v296
    %v298 = vpop.f32.mrf.mxu0
    %v299 = vadd.f32 0.0, %v298
    %300 = vmatprep.mubr.f32.mxu0 0.0
    %301 = vmatmul.mubr.f32.gmra.mxu0 %v149
    %v302 = vpop.f32.mrf.mxu0
    %v303 = vadd.f32 0.0, %v302
    %v304 = vpop.f32.mrf.mxu0
    %v305 = vadd.f32 0.0, %v304
    %306 = vmatprep.mubr.f32.mxu0 0.0
    %307 = vmatmul.mubr.f32.gmra.mxu0 %v150
    %v308 = vpop.f32.mrf.mxu0
    %v309 = vadd.f32 0.0, %v308
    %v310 = vpop.f32.mrf.mxu0
    %v311 = vadd.f32 0.0, %v310
    %312 = vdwg.mxu0
    %313 = vmatprep.subr.mxu0 0.0
    %314 = vmatpush1.msra.mxu0 %v199
    %315 = vmatprep.subr.mxu0 0.0
    %316 = vmatpush1.msra.mxu0 %v196
    %317 = vmatprep.subr.mxu0 0.0
    %318 = vmatpush1.msra.mxu0 %v193
    %319 = vmatprep.subr.mxu0 0.0
    %320 = vmatpush1.msra.mxu0 %v190
    %321 = vmatprep.subr.mxu0 0.0
    %322 = vmatpush1.msra.mxu0 %v187
    %323 = vmatprep.subr.mxu0 0.0
    %324 = vmatpush1.msra.mxu0 %v184
    %325 = vmatprep.subr.mxu0 0.0
    %326 = vmatpush1.msra.mxu0 %v181
    %327 = vmatprep.subr.mxu0 0.0
    %328 = vmatpush1.msra.mxu0 %v178
    %329 = vmatprep.subr.mxu0 0.0
    %330 = vmatpush1.msra.mxu0 %v175
    %331 = vmatprep.subr.mxu0 0.0
    %332 = vmatpush1.msra.mxu0 %v172
    %333 = vmatprep.subr.mxu0 0.0
    %334 = vmatpush1.msra.mxu0 %v169
    %335 = vmatprep.subr.mxu0 0.0
    %336 = vmatpush1.msra.mxu0 %v166
    %337 = vmatprep.subr.mxu0 0.0
    %338 = vmatpush1.msra.mxu0 %v163
    %339 = vmatprep.subr.mxu0 0.0
    %340 = vmatpush1.msra.mxu0 %v160
    %341 = vmatprep.subr.mxu0 0.0
    %342 = vmatpush1.msra.mxu0 %v157
    %343 = vmatprep.subr.mxu0 0.0
    %344 = vmatpush1.msra.mxu0 %v154
    %345 = vmatprep.subr.mxu0 0.0
    %346 = vmatpush2.msra.mxu0 0.0
    %347 = vmatprep.subr.mxu0 0.0
    %348 = vmatpush2.msra.mxu0 0.0
    %349 = vmatprep.subr.mxu0 0.0
    %350 = vmatpush2.msra.mxu0 0.0
    %351 = vmatprep.subr.mxu0 0.0
    %352 = vmatpush2.msra.mxu0 0.0
    %353 = vmatprep.subr.mxu0 0.0
    %354 = vmatpush2.msra.mxu0 0.0
    %355 = vmatprep.subr.mxu0 0.0
    %356 = vmatpush2.msra.mxu0 0.0
    %357 = vmatprep.subr.mxu0 0.0
    %358 = vmatpush2.msra.mxu0 0.0
    %359 = vmatprep.subr.mxu0 0.0
    %360 = vmatpush2.msra.mxu0 0.0
    %361 = vmatprep.subr.mxu0 0.0
    %362 = vmatpush2.msra.mxu0 0.0
    %363 = vmatprep.subr.mxu0 0.0
    %364 = vmatpush2.msra.mxu0 0.0
    %365 = vmatprep.subr.mxu0 0.0
    %366 = vmatpush2.msra.mxu0 0.0
    %367 = vmatprep.subr.mxu0 0.0
    %368 = vmatpush2.msra.mxu0 0.0
    %369 = vmatprep.subr.mxu0 0.0
    %370 = vmatpush2.msra.mxu0 0.0
    %371 = vmatprep.subr.mxu0 0.0
    %372 = vmatpush2.msra.mxu0 0.0
    %373 = vmatprep.subr.mxu0 0.0
    %374 = vmatpush2.msra.mxu0 0.0
    %375 = vmatprep.subr.mxu0 0.0
    %376 = vmatpush2.msra.mxu0 0.0
    %377 = vmatprep.mubr.f32.mxu0 0.0
    %378 = vmatmul.mubr.f32.gmra.mxu0 %v143
    %v379 = vpop.f32.mrf.mxu0
    %v380 = vadd.f32 0.0, %v379
    %v381 = vpop.f32.mrf.mxu0
    %382 = vmatprep.mubr.f32.mxu0 0.0
    %383 = vmatmul.mubr.f32.gmra.mxu0 %v144
    %v384 = vpop.f32.mrf.mxu0
    %v385 = vadd.f32 0.0, %v384
    %v386 = vpop.f32.mrf.mxu0
    %387 = vmatprep.mubr.f32.mxu0 0.0
    %388 = vmatmul.mubr.f32.gmra.mxu0 %v145
    %v389 = vpop.f32.mrf.mxu0
    %v390 = vadd.f32 0.0, %v389
    %v391 = vpop.f32.mrf.mxu0
    %392 = vmatprep.mubr.f32.mxu0 0.0
    %393 = vmatmul.mubr.f32.gmra.mxu0 %v146
    %v394 = vpop.f32.mrf.mxu0
    %v395 = vadd.f32 0.0, %v394
    %v396 = vpop.f32.mrf.mxu0
    %397 = vmatprep.mubr.f32.mxu0 0.0
    %398 = vmatmul.mubr.f32.gmra.mxu0 %v147
    %v399 = vpop.f32.mrf.mxu0
    %v400 = vadd.f32 0.0, %v399
    %v401 = vpop.f32.mrf.mxu0
    %402 = vmatprep.mubr.f32.mxu0 0.0
    %403 = vmatmul.mubr.f32.gmra.mxu0 %v148
    %v404 = vpop.f32.mrf.mxu0
    %v405 = vadd.f32 0.0, %v404
    %v406 = vpop.f32.mrf.mxu0
    %407 = vmatprep.mubr.f32.mxu0 0.0
    %408 = vmatmul.mubr.f32.gmra.mxu0 %v149
    %v409 = vpop.f32.mrf.mxu0
    %v410 = vadd.f32 0.0, %v409
    %v411 = vpop.f32.mrf.mxu0
    %412 = vmatprep.mubr.f32.mxu0 0.0
    %413 = vmatmul.mubr.f32.gmra.mxu0 %v150
    %v414 = vpop.f32.mrf.mxu0
    %v415 = vadd.f32 0.0, %v414
    %v416 = vpop.f32.mrf.mxu0
    %417 = vdwg.mxu0
    %418 = vmatprep.subr.mxu0 %v141
    %419 = vmatpush1.msra.mxu0 %v140
    %420 = vmatprep.subr.mxu0 %v138
    %421 = vmatpush1.msra.mxu0 %v137
    %422 = vmatprep.subr.mxu0 %v135
    %423 = vmatpush1.msra.mxu0 %v134
    %424 = vmatprep.subr.mxu0 %v132
    %425 = vmatpush1.msra.mxu0 %v131
    %426 = vmatprep.subr.mxu0 %v129
    %427 = vmatpush1.msra.mxu0 %v128
    %428 = vmatprep.subr.mxu0 %v126
    %429 = vmatpush1.msra.mxu0 %v125
    %430 = vmatprep.subr.mxu0 %v123
    %431 = vmatpush1.msra.mxu0 %v122
    %432 = vmatprep.subr.mxu0 %v120
    %433 = vmatpush1.msra.mxu0 %v119
    %434 = vmatprep.subr.mxu0 %v117
    %435 = vmatpush1.msra.mxu0 %v116
    %436 = vmatprep.subr.mxu0 %v114
    %437 = vmatpush1.msra.mxu0 %v113
    %438 = vmatprep.subr.mxu0 %v111
    %439 = vmatpush1.msra.mxu0 %v110
    %440 = vmatprep.subr.mxu0 %v108
    %441 = vmatpush1.msra.mxu0 %v107
    %442 = vmatprep.subr.mxu0 %v105
    %443 = vmatpush1.msra.mxu0 %v104
    %444 = vmatprep.subr.mxu0 %v102
    %445 = vmatpush1.msra.mxu0 %v101
    %446 = vmatprep.subr.mxu0 %v99
    %447 = vmatpush1.msra.mxu0 %v98
    %448 = vmatprep.subr.mxu0 %v96
    %449 = vmatpush1.msra.mxu0 %v95
    %450 = vmatprep.subr.mxu0 0.0
    %451 = vmatpush2.msra.mxu0 0.0
    %452 = vmatprep.subr.mxu0 0.0
    %453 = vmatpush2.msra.mxu0 0.0
    %454 = vmatprep.subr.mxu0 0.0
    %455 = vmatpush2.msra.mxu0 0.0
    %456 = vmatprep.subr.mxu0 0.0
    %457 = vmatpush2.msra.mxu0 0.0
    %458 = vmatprep.subr.mxu0 0.0
    %459 = vmatpush2.msra.mxu0 0.0
    %460 = vmatprep.subr.mxu0 0.0
    %461 = vmatpush2.msra.mxu0 0.0
    %462 = vmatprep.subr.mxu0 0.0
    %463 = vmatpush2.msra.mxu0 0.0
    %464 = vmatprep.subr.mxu0 0.0
    %465 = vmatpush2.msra.mxu0 0.0
    %466 = vmatprep.subr.mxu0 0.0
    %467 = vmatpush2.msra.mxu0 0.0
    %468 = vmatprep.subr.mxu0 0.0
    %469 = vmatpush2.msra.mxu0 0.0
    %470 = vmatprep.subr.mxu0 0.0
    %471 = vmatpush2.msra.mxu0 0.0
    %472 = vmatprep.subr.mxu0 0.0
    %473 = vmatpush2.msra.mxu0 0.0
    %474 = vmatprep.subr.mxu0 0.0
    %475 = vmatpush2.msra.mxu0 0.0
    %476 = vmatprep.subr.mxu0 0.0
    %477 = vmatpush2.msra.mxu0 0.0
    %478 = vmatprep.subr.mxu0 0.0
    %479 = vmatpush2.msra.mxu0 0.0
    %480 = vmatprep.subr.mxu0 0.0
    %481 = vmatpush2.msra.mxu0 0.0
    %482 = vmatprep.mubr.f32.mxu0 0.0
    %483 = vmatmul.mubr.f32.gmra.mxu0 %v87
    %v484 = vpop.f32.mrf.mxu0
    %v485 = vadd.f32 %v267, %v484
    %v486 = vpop.f32.mrf.mxu0
    %v487 = vadd.f32 %v269, %v486
    %488 = vmatprep.mubr.f32.mxu0 0.0
    %489 = vmatmul.mubr.f32.gmra.mxu0 %v88
    %v490 = vpop.f32.mrf.mxu0
    %v491 = vadd.f32 %v273, %v490
    %v492 = vpop.f32.mrf.mxu0
    %v493 = vadd.f32 %v275, %v492
    %494 = vmatprep.mubr.f32.mxu0 0.0
    %495 = vmatmul.mubr.f32.gmra.mxu0 %v89
    %v496 = vpop.f32.mrf.mxu0
    %v497 = vadd.f32 %v279, %v496
    %v498 = vpop.f32.mrf.mxu0
    %v499 = vadd.f32 %v281, %v498
    %500 = vmatprep.mubr.f32.mxu0 0.0
    %501 = vmatmul.mubr.f32.gmra.mxu0 %v90
    %v502 = vpop.f32.mrf.mxu0
    %v503 = vadd.f32 %v285, %v502
    %v504 = vpop.f32.mrf.mxu0
    %v505 = vadd.f32 %v287, %v504
    %506 = vmatprep.mubr.f32.mxu0 0.0
    %507 = vmatmul.mubr.f32.gmra.mxu0 %v91
    %v508 = vpop.f32.mrf.mxu0
    %v509 = vadd.f32 %v291, %v508
    %v510 = vpop.f32.mrf.mxu0
    %v511 = vadd.f32 %v293, %v510
    %512 = vmatprep.mubr.f32.mxu0 0.0
    %513 = vmatmul.mubr.f32.gmra.mxu0 %v92
    %v514 = vpop.f32.mrf.mxu0
    %v515 = vadd.f32 %v297, %v514
    %v516 = vpop.f32.mrf.mxu0
    %v517 = vadd.f32 %v299, %v516
    %518 = vmatprep.mubr.f32.mxu0 0.0
    %519 = vmatmul.mubr.f32.gmra.mxu0 %v93
    %v520 = vpop.f32.mrf.mxu0
    %v521 = vadd.f32 %v303, %v520
    %v522 = vpop.f32.mrf.mxu0
    %v523 = vadd.f32 %v305, %v522
    %524 = vmatprep.mubr.f32.mxu0 0.0
    %525 = vmatmul.mubr.f32.gmra.mxu0 %v94
    %v526 = vpop.f32.mrf.mxu0
    %v527 = vadd.f32 %v309, %v526
    %v528 = vpop.f32.mrf.mxu0
    %v529 = vadd.f32 %v311, %v528
    %530 = vdwg.mxu0
    %531 = vmatprep.subr.mxu0 0.0
    %532 = vmatpush1.msra.mxu0 %v142
    %533 = vmatprep.subr.mxu0 0.0
    %534 = vmatpush1.msra.mxu0 %v139
    %535 = vmatprep.subr.mxu0 0.0
    %536 = vmatpush1.msra.mxu0 %v136
    %537 = vmatprep.subr.mxu0 0.0
    %538 = vmatpush1.msra.mxu0 %v133
    %539 = vmatprep.subr.mxu0 0.0
    %540 = vmatpush1.msra.mxu0 %v130
    %541 = vmatprep.subr.mxu0 0.0
    %542 = vmatpush1.msra.mxu0 %v127
    %543 = vmatprep.subr.mxu0 0.0
    %544 = vmatpush1.msra.mxu0 %v124
    %545 = vmatprep.subr.mxu0 0.0
    %546 = vmatpush1.msra.mxu0 %v121
    %547 = vmatprep.subr.mxu0 0.0
    %548 = vmatpush1.msra.mxu0 %v118
    %549 = vmatprep.subr.mxu0 0.0
    %550 = vmatpush1.msra.mxu0 %v115
    %551 = vmatprep.subr.mxu0 0.0
    %552 = vmatpush1.msra.mxu0 %v112
    %553 = vmatprep.subr.mxu0 0.0
    %554 = vmatpush1.msra.mxu0 %v109
    %555 = vmatprep.subr.mxu0 0.0
    %556 = vmatpush1.msra.mxu0 %v106
    %557 = vmatprep.subr.mxu0 0.0
    %558 = vmatpush1.msra.mxu0 %v103
    %559 = vmatprep.subr.mxu0 0.0
    %560 = vmatpush1.msra.mxu0 %v100
    %561 = vmatprep.subr.mxu0 0.0
    %562 = vmatpush1.msra.mxu0 %v97
    %563 = vmatprep.subr.mxu0 0.0
    %564 = vmatpush2.msra.mxu0 0.0
    %565 = vmatprep.subr.mxu0 0.0
    %566 = vmatpush2.msra.mxu0 0.0
    %567 = vmatprep.subr.mxu0 0.0
    %568 = vmatpush2.msra.mxu0 0.0
    %569 = vmatprep.subr.mxu0 0.0
    %570 = vmatpush2.msra.mxu0 0.0
    %571 = vmatprep.subr.mxu0 0.0
    %572 = vmatpush2.msra.mxu0 0.0
    %573 = vmatprep.subr.mxu0 0.0
    %574 = vmatpush2.msra.mxu0 0.0
    %575 = vmatprep.subr.mxu0 0.0
    %576 = vmatpush2.msra.mxu0 0.0
    %577 = vmatprep.subr.mxu0 0.0
    %578 = vmatpush2.msra.mxu0 0.0
    %579 = vmatprep.subr.mxu0 0.0
    %580 = vmatpush2.msra.mxu0 0.0
    %581 = vmatprep.subr.mxu0 0.0
    %582 = vmatpush2.msra.mxu0 0.0
    %583 = vmatprep.subr.mxu0 0.0
    %584 = vmatpush2.msra.mxu0 0.0
    %585 = vmatprep.subr.mxu0 0.0
    %586 = vmatpush2.msra.mxu0 0.0
    %587 = vmatprep.subr.mxu0 0.0
    %588 = vmatpush2.msra.mxu0 0.0
    %589 = vmatprep.subr.mxu0 0.0
    %590 = vmatpush2.msra.mxu0 0.0
    %591 = vmatprep.subr.mxu0 0.0
    %592 = vmatpush2.msra.mxu0 0.0
    %593 = vmatprep.subr.mxu0 0.0
    %594 = vmatpush2.msra.mxu0 0.0
    %595 = vmatprep.mubr.f32.mxu0 0.0
    %596 = vmatmul.mubr.f32.gmra.mxu0 %v87
    %v597 = vpop.f32.mrf.mxu0
    %v598 = vadd.f32 %v380, %v597
    %v599 = vpop.f32.mrf.mxu0
    %600 = vmatprep.mubr.f32.mxu0 0.0
    %601 = vmatmul.mubr.f32.gmra.mxu0 %v88
    %v602 = vpop.f32.mrf.mxu0
    %v603 = vadd.f32 %v385, %v602
    %v604 = vpop.f32.mrf.mxu0
    %605 = vmatprep.mubr.f32.mxu0 0.0
    %606 = vmatmul.mubr.f32.gmra.mxu0 %v89
    %v607 = vpop.f32.mrf.mxu0
    %v608 = vadd.f32 %v390, %v607
    %v609 = vpop.f32.mrf.mxu0
    %610 = vmatprep.mubr.f32.mxu0 0.0
    %611 = vmatmul.mubr.f32.gmra.mxu0 %v90
    %v612 = vpop.f32.mrf.mxu0
    %v613 = vadd.f32 %v395, %v612
    %v614 = vpop.f32.mrf.mxu0
    %615 = vmatprep.mubr.f32.mxu0 0.0
    %616 = vmatmul.mubr.f32.gmra.mxu0 %v91
    %v617 = vpop.f32.mrf.mxu0
    %v618 = vadd.f32 %v400, %v617
    %v619 = vpop.f32.mrf.mxu0
    %620 = vmatprep.mubr.f32.mxu0 0.0
    %621 = vmatmul.mubr.f32.gmra.mxu0 %v92
    %v622 = vpop.f32.mrf.mxu0
    %v623 = vadd.f32 %v405, %v622
    %v624 = vpop.f32.mrf.mxu0
    %625 = vmatprep.mubr.f32.mxu0 0.0
    %626 = vmatmul.mubr.f32.gmra.mxu0 %v93
    %v627 = vpop.f32.mrf.mxu0
    %v628 = vadd.f32 %v410, %v627
    %v629 = vpop.f32.mrf.mxu0
    %630 = vmatprep.mubr.f32.mxu0 0.0
    %631 = vmatmul.mubr.f32.gmra.mxu0 %v94
    %v632 = vpop.f32.mrf.mxu0
    %v633 = vadd.f32 %v415, %v632
    %v634 = vpop.f32.mrf.mxu0
    %635 = vdwg.mxu0
    %v636 = vld [vmem:[%s76] sm:$0xff]
    %v637 = vld [vmem:[%s76 + $0x8] sm:$0xff]
    %v638 = vld [vmem:[%s76 + $0x10] sm:$0xff]
    %v639 = vld [vmem:[%s76 + $0x18] sm:$0xff]
    %v640 = vld [vmem:[%s76 + $0x20] sm:$0xff]
    %v641 = vld [vmem:[%s76 + $0x28] sm:$0xff]
    %v642 = vld [vmem:[%s76 + $0x30] sm:$0xff]
    %v643 = vld [vmem:[%s76 + $0x38] sm:$0xff]
    %s644 = scalar_lea.vmem [#allocation6], 768
    %v645 = vld [vmem:[%s644] sm:$0xff]
    %v646 = vld [vmem:[%s644 + $0x8] sm:$0xff]
    %v647 = vld [vmem:[%s644 + $0x10] sm:$0xff]
    %v648 = vld [vmem:[%s644 + $0x18] sm:$0xff]
    %v649 = vld [vmem:[%s644 + $0x20] sm:$0xff]
    %v650 = vld [vmem:[%s644 + $0x28] sm:$0xff]
    %v651 = vld [vmem:[%s644 + $0x30] sm:$0xff]
    %v652 = vld [vmem:[%s644 + $0x38] sm:$0xff]
    %v653 = vld [vmem:[%s644 + $0x40] sm:$0xff]
    %v654 = vld [vmem:[%s644 + $0x48] sm:$0xff]
    %v655 = vld [vmem:[%s644 + $0x50] sm:$0xff]
    %v656 = vld [vmem:[%s644 + $0x58] sm:$0xff]
    %v657 = vld [vmem:[%s644 + $0x60] sm:$0xff]
    %v658 = vld [vmem:[%s644 + $0x68] sm:$0xff]
    %v659 = vld [vmem:[%s644 + $0x70] sm:$0xff]
    %v660 = vld [vmem:[%s644 + $0x78] sm:$0xff]
    %v661 = vld [vmem:[%s644 + $0x80] sm:$0xff]
    %v662 = vld [vmem:[%s644 + $0x88] sm:$0xff]
    %v663 = vld [vmem:[%s644 + $0x90] sm:$0xff]
    %v664 = vld [vmem:[%s644 + $0x98] sm:$0xff]
    %v665 = vld [vmem:[%s644 + $0xa0] sm:$0xff]
    %v666 = vld [vmem:[%s644 + $0xa8] sm:$0xff]
    %v667 = vld [vmem:[%s644 + $0xb0] sm:$0xff]
    %v668 = vld [vmem:[%s644 + $0xb8] sm:$0xff]
    %v669 = vld [vmem:[%s644 + $0xc0] sm:$0xff]
    %v670 = vld [vmem:[%s644 + $0xc8] sm:$0xff]
    %v671 = vld [vmem:[%s644 + $0xd0] sm:$0xff]
    %v672 = vld [vmem:[%s644 + $0xd8] sm:$0xff]
    %v673 = vld [vmem:[%s644 + $0xe0] sm:$0xff]
    %v674 = vld [vmem:[%s644 + $0xe8] sm:$0xff]
    %v675 = vld [vmem:[%s644 + $0xf0] sm:$0xff]
    %v676 = vld [vmem:[%s644 + $0xf8] sm:$0xff]
    %v677 = vld [vmem:[%s644 + $0x100] sm:$0xff]
    %v678 = vld [vmem:[%s644 + $0x108] sm:$0xff]
    %v679 = vld [vmem:[%s644 + $0x110] sm:$0xff]
    %v680 = vld [vmem:[%s644 + $0x118] sm:$0xff]
    %v681 = vld [vmem:[%s644 + $0x120] sm:$0xff]
    %v682 = vld [vmem:[%s644 + $0x128] sm:$0xff]
    %v683 = vld [vmem:[%s644 + $0x130] sm:$0xff]
    %v684 = vld [vmem:[%s644 + $0x138] sm:$0xff]
    %v685 = vld [vmem:[%s644 + $0x140] sm:$0xff]
    %v686 = vld [vmem:[%s644 + $0x148] sm:$0xff]
    %v687 = vld [vmem:[%s644 + $0x150] sm:$0xff]
    %v688 = vld [vmem:[%s644 + $0x158] sm:$0xff]
    %v689 = vld [vmem:[%s644 + $0x160] sm:$0xff]
    %v690 = vld [vmem:[%s644 + $0x168] sm:$0xff]
    %v691 = vld [vmem:[%s644 + $0x170] sm:$0xff]
    %v692 = vld [vmem:[%s644 + $0x178] sm:$0xff]
    %v693 = vld [vmem:[%s84] sm:$0xff]
    %v694 = vld [vmem:[%s84 + $0x8] sm:$0xff]
    %v695 = vld [vmem:[%s84 + $0x10] sm:$0xff]
    %v696 = vld [vmem:[%s84 + $0x18] sm:$0xff]
    %v697 = vld [vmem:[%s84 + $0x20] sm:$0xff]
    %v698 = vld [vmem:[%s84 + $0x28] sm:$0xff]
    %v699 = vld [vmem:[%s84 + $0x30] sm:$0xff]
    %v700 = vld [vmem:[%s84 + $0x38] sm:$0xff]
    %s701 = scalar_lea.vmem [#allocation6], 1152
    %v702 = vld [vmem:[%s701] sm:$0xff]
    %v703 = vld [vmem:[%s701 + $0x8] sm:$0xff]
    %v704 = vld [vmem:[%s701 + $0x10] sm:$0xff]
    %v705 = vld [vmem:[%s701 + $0x18] sm:$0xff]
    %v706 = vld [vmem:[%s701 + $0x20] sm:$0xff]
    %v707 = vld [vmem:[%s701 + $0x28] sm:$0xff]
    %v708 = vld [vmem:[%s701 + $0x30] sm:$0xff]
    %v709 = vld [vmem:[%s701 + $0x38] sm:$0xff]
    %v710 = vld [vmem:[%s701 + $0x40] sm:$0xff]
    %v711 = vld [vmem:[%s701 + $0x48] sm:$0xff]
    %v712 = vld [vmem:[%s701 + $0x50] sm:$0xff]
    %v713 = vld [vmem:[%s701 + $0x58] sm:$0xff]
    %v714 = vld [vmem:[%s701 + $0x60] sm:$0xff]
    %v715 = vld [vmem:[%s701 + $0x68] sm:$0xff]
    %v716 = vld [vmem:[%s701 + $0x70] sm:$0xff]
    %v717 = vld [vmem:[%s701 + $0x78] sm:$0xff]
    %v718 = vld [vmem:[%s701 + $0x80] sm:$0xff]
    %v719 = vld [vmem:[%s701 + $0x88] sm:$0xff]
    %v720 = vld [vmem:[%s701 + $0x90] sm:$0xff]
    %v721 = vld [vmem:[%s701 + $0x98] sm:$0xff]
    %v722 = vld [vmem:[%s701 + $0xa0] sm:$0xff]
    %v723 = vld [vmem:[%s701 + $0xa8] sm:$0xff]
    %v724 = vld [vmem:[%s701 + $0xb0] sm:$0xff]
    %v725 = vld [vmem:[%s701 + $0xb8] sm:$0xff]
    %v726 = vld [vmem:[%s701 + $0xc0] sm:$0xff]
    %v727 = vld [vmem:[%s701 + $0xc8] sm:$0xff]
    %v728 = vld [vmem:[%s701 + $0xd0] sm:$0xff]
    %v729 = vld [vmem:[%s701 + $0xd8] sm:$0xff]
    %v730 = vld [vmem:[%s701 + $0xe0] sm:$0xff]
    %v731 = vld [vmem:[%s701 + $0xe8] sm:$0xff]
    %v732 = vld [vmem:[%s701 + $0xf0] sm:$0xff]
    %v733 = vld [vmem:[%s701 + $0xf8] sm:$0xff]
    %v734 = vld [vmem:[%s701 + $0x100] sm:$0xff]
    %v735 = vld [vmem:[%s701 + $0x108] sm:$0xff]
    %v736 = vld [vmem:[%s701 + $0x110] sm:$0xff]
    %v737 = vld [vmem:[%s701 + $0x118] sm:$0xff]
    %v738 = vld [vmem:[%s701 + $0x120] sm:$0xff]
    %v739 = vld [vmem:[%s701 + $0x128] sm:$0xff]
    %v740 = vld [vmem:[%s701 + $0x130] sm:$0xff]
    %v741 = vld [vmem:[%s701 + $0x138] sm:$0xff]
    %v742 = vld [vmem:[%s701 + $0x140] sm:$0xff]
    %v743 = vld [vmem:[%s701 + $0x148] sm:$0xff]
    %v744 = vld [vmem:[%s701 + $0x150] sm:$0xff]
    %v745 = vld [vmem:[%s701 + $0x158] sm:$0xff]
    %v746 = vld [vmem:[%s701 + $0x160] sm:$0xff]
    %v747 = vld [vmem:[%s701 + $0x168] sm:$0xff]
    %v748 = vld [vmem:[%s701 + $0x170] sm:$0xff]
    %v749 = vld [vmem:[%s701 + $0x178] sm:$0xff]
    %750 = vmatprep.subr.mxu0 %v748
    %751 = vmatpush1.msra.mxu0 %v747
    %752 = vmatprep.subr.mxu0 %v745
    %753 = vmatpush1.msra.mxu0 %v744
    %754 = vmatprep.subr.mxu0 %v742
    %755 = vmatpush1.msra.mxu0 %v741
    %756 = vmatprep.subr.mxu0 %v739
    %757 = vmatpush1.msra.mxu0 %v738
    %758 = vmatprep.subr.mxu0 %v736
    %759 = vmatpush1.msra.mxu0 %v735
    %760 = vmatprep.subr.mxu0 %v733
    %761 = vmatpush1.msra.mxu0 %v732
    %762 = vmatprep.subr.mxu0 %v730
    %763 = vmatpush1.msra.mxu0 %v729
    %764 = vmatprep.subr.mxu0 %v727
    %765 = vmatpush1.msra.mxu0 %v726
    %766 = vmatprep.subr.mxu0 %v724
    %767 = vmatpush1.msra.mxu0 %v723
    %768 = vmatprep.subr.mxu0 %v721
    %769 = vmatpush1.msra.mxu0 %v720
    %770 = vmatprep.subr.mxu0 %v718
    %771 = vmatpush1.msra.mxu0 %v717
    %772 = vmatprep.subr.mxu0 %v715
    %773 = vmatpush1.msra.mxu0 %v714
    %774 = vmatprep.subr.mxu0 %v712
    %775 = vmatpush1.msra.mxu0 %v711
    %776 = vmatprep.subr.mxu0 %v709
    %777 = vmatpush1.msra.mxu0 %v708
    %778 = vmatprep.subr.mxu0 %v706
    %779 = vmatpush1.msra.mxu0 %v705
    %780 = vmatprep.subr.mxu0 %v703
    %781 = vmatpush1.msra.mxu0 %v702
    %782 = vmatprep.subr.mxu0 0.0
    %783 = vmatpush2.msra.mxu0 0.0
    %784 = vmatprep.subr.mxu0 0.0
    %785 = vmatpush2.msra.mxu0 0.0
    %786 = vmatprep.subr.mxu0 0.0
    %787 = vmatpush2.msra.mxu0 0.0
    %788 = vmatprep.subr.mxu0 0.0
    %789 = vmatpush2.msra.mxu0 0.0
    %790 = vmatprep.subr.mxu0 0.0
    %791 = vmatpush2.msra.mxu0 0.0
    %792 = vmatprep.subr.mxu0 0.0
    %793 = vmatpush2.msra.mxu0 0.0
    %794 = vmatprep.subr.mxu0 0.0
    %795 = vmatpush2.msra.mxu0 0.0
    %796 = vmatprep.subr.mxu0 0.0
    %797 = vmatpush2.msra.mxu0 0.0
    %798 = vmatprep.subr.mxu0 0.0
    %799 = vmatpush2.msra.mxu0 0.0
    %800 = vmatprep.subr.mxu0 0.0
    %801 = vmatpush2.msra.mxu0 0.0
    %802 = vmatprep.subr.mxu0 0.0
    %803 = vmatpush2.msra.mxu0 0.0
    %804 = vmatprep.subr.mxu0 0.0
    %805 = vmatpush2.msra.mxu0 0.0
    %806 = vmatprep.subr.mxu0 0.0
    %807 = vmatpush2.msra.mxu0 0.0
    %808 = vmatprep.subr.mxu0 0.0
    %809 = vmatpush2.msra.mxu0 0.0
    %810 = vmatprep.subr.mxu0 0.0
    %811 = vmatpush2.msra.mxu0 0.0
    %812 = vmatprep.subr.mxu0 0.0
    %813 = vmatpush2.msra.mxu0 0.0
    %814 = vmatprep.mubr.f32.mxu0 0.0
    %815 = vmatmul.mubr.f32.gmra.mxu0 %v693
    %v816 = vpop.f32.mrf.mxu0
    %v817 = vadd.f32 0.0, %v816
    %v818 = vpop.f32.mrf.mxu0
    %v819 = vadd.f32 0.0, %v818
    %820 = vmatprep.mubr.f32.mxu0 0.0
    %821 = vmatmul.mubr.f32.gmra.mxu0 %v694
    %v822 = vpop.f32.mrf.mxu0
    %v823 = vadd.f32 0.0, %v822
    %v824 = vpop.f32.mrf.mxu0
    %v825 = vadd.f32 0.0, %v824
    %826 = vmatprep.mubr.f32.mxu0 0.0
    %827 = vmatmul.mubr.f32.gmra.mxu0 %v695
    %v828 = vpop.f32.mrf.mxu0
    %v829 = vadd.f32 0.0, %v828
    %v830 = vpop.f32.mrf.mxu0
    %v831 = vadd.f32 0.0, %v830
    %832 = vmatprep.mubr.f32.mxu0 0.0
    %833 = vmatmul.mubr.f32.gmra.mxu0 %v696
    %v834 = vpop.f32.mrf.mxu0
    %v835 = vadd.f32 0.0, %v834
    %v836 = vpop.f32.mrf.mxu0
    %v837 = vadd.f32 0.0, %v836
    %838 = vmatprep.mubr.f32.mxu0 0.0
    %839 = vmatmul.mubr.f32.gmra.mxu0 %v697
    %v840 = vpop.f32.mrf.mxu0
    %v841 = vadd.f32 0.0, %v840
    %v842 = vpop.f32.mrf.mxu0
    %v843 = vadd.f32 0.0, %v842
    %844 = vmatprep.mubr.f32.mxu0 0.0
    %845 = vmatmul.mubr.f32.gmra.mxu0 %v698
    %v846 = vpop.f32.mrf.mxu0
    %v847 = vadd.f32 0.0, %v846
    %v848 = vpop.f32.mrf.mxu0
    %v849 = vadd.f32 0.0, %v848
    %850 = vmatprep.mubr.f32.mxu0 0.0
    %851 = vmatmul.mubr.f32.gmra.mxu0 %v699
    %v852 = vpop.f32.mrf.mxu0
    %v853 = vadd.f32 0.0, %v852
    %v854 = vpop.f32.mrf.mxu0
    %v855 = vadd.f32 0.0, %v854
    %856 = vmatprep.mubr.f32.mxu0 0.0
    %857 = vmatmul.mubr.f32.gmra.mxu0 %v700
    %v858 = vpop.f32.mrf.mxu0
    %v859 = vadd.f32 0.0, %v858
    %v860 = vpop.f32.mrf.mxu0
    %v861 = vadd.f32 0.0, %v860
    %862 = vdwg.mxu0
    %863 = vmatprep.subr.mxu0 0.0
    %864 = vmatpush1.msra.mxu0 %v749
    %865 = vmatprep.subr.mxu0 0.0
    %866 = vmatpush1.msra.mxu0 %v746
    %867 = vmatprep.subr.mxu0 0.0
    %868 = vmatpush1.msra.mxu0 %v743
    %869 = vmatprep.subr.mxu0 0.0
    %870 = vmatpush1.msra.mxu0 %v740
    %871 = vmatprep.subr.mxu0 0.0
    %872 = vmatpush1.msra.mxu0 %v737
    %873 = vmatprep.subr.mxu0 0.0
    %874 = vmatpush1.msra.mxu0 %v734
    %875 = vmatprep.subr.mxu0 0.0
    %876 = vmatpush1.msra.mxu0 %v731
    %877 = vmatprep.subr.mxu0 0.0
    %878 = vmatpush1.msra.mxu0 %v728
    %879 = vmatprep.subr.mxu0 0.0
    %880 = vmatpush1.msra.mxu0 %v725
    %881 = vmatprep.subr.mxu0 0.0
    %882 = vmatpush1.msra.mxu0 %v722
    %883 = vmatprep.subr.mxu0 0.0
    %884 = vmatpush1.msra.mxu0 %v719
    %885 = vmatprep.subr.mxu0 0.0
    %886 = vmatpush1.msra.mxu0 %v716
    %887 = vmatprep.subr.mxu0 0.0
    %888 = vmatpush1.msra.mxu0 %v713
    %889 = vmatprep.subr.mxu0 0.0
    %890 = vmatpush1.msra.mxu0 %v710
    %891 = vmatprep.subr.mxu0 0.0
    %892 = vmatpush1.msra.mxu0 %v707
    %893 = vmatprep.subr.mxu0 0.0
    %894 = vmatpush1.msra.mxu0 %v704
    %895 = vmatprep.subr.mxu0 0.0
    %896 = vmatpush2.msra.mxu0 0.0
    %897 = vmatprep.subr.mxu0 0.0
    %898 = vmatpush2.msra.mxu0 0.0
    %899 = vmatprep.subr.mxu0 0.0
    %900 = vmatpush2.msra.mxu0 0.0
    %901 = vmatprep.subr.mxu0 0.0
    %902 = vmatpush2.msra.mxu0 0.0
    %903 = vmatprep.subr.mxu0 0.0
    %904 = vmatpush2.msra.mxu0 0.0
    %905 = vmatprep.subr.mxu0 0.0
    %906 = vmatpush2.msra.mxu0 0.0
    %907 = vmatprep.subr.mxu0 0.0
    %908 = vmatpush2.msra.mxu0 0.0
    %909 = vmatprep.subr.mxu0 0.0
    %910 = vmatpush2.msra.mxu0 0.0
    %911 = vmatprep.subr.mxu0 0.0
    %912 = vmatpush2.msra.mxu0 0.0
    %913 = vmatprep.subr.mxu0 0.0
    %914 = vmatpush2.msra.mxu0 0.0
    %915 = vmatprep.subr.mxu0 0.0
    %916 = vmatpush2.msra.mxu0 0.0
    %917 = vmatprep.subr.mxu0 0.0
    %918 = vmatpush2.msra.mxu0 0.0
    %919 = vmatprep.subr.mxu0 0.0
    %920 = vmatpush2.msra.mxu0 0.0
    %921 = vmatprep.subr.mxu0 0.0
    %922 = vmatpush2.msra.mxu0 0.0
    %923 = vmatprep.subr.mxu0 0.0
    %924 = vmatpush2.msra.mxu0 0.0
    %925 = vmatprep.subr.mxu0 0.0
    %926 = vmatpush2.msra.mxu0 0.0
    %927 = vmatprep.mubr.f32.mxu0 0.0
    %928 = vmatmul.mubr.f32.gmra.mxu0 %v693
    %v929 = vpop.f32.mrf.mxu0
    %v930 = vadd.f32 0.0, %v929
    %v931 = vpop.f32.mrf.mxu0
    %932 = vmatprep.mubr.f32.mxu0 0.0
    %933 = vmatmul.mubr.f32.gmra.mxu0 %v694
    %v934 = vpop.f32.mrf.mxu0
    %v935 = vadd.f32 0.0, %v934
    %v936 = vpop.f32.mrf.mxu0
    %937 = vmatprep.mubr.f32.mxu0 0.0
    %938 = vmatmul.mubr.f32.gmra.mxu0 %v695
    %v939 = vpop.f32.mrf.mxu0
    %v940 = vadd.f32 0.0, %v939
    %v941 = vpop.f32.mrf.mxu0
    %942 = vmatprep.mubr.f32.mxu0 0.0
    %943 = vmatmul.mubr.f32.gmra.mxu0 %v696
    %v944 = vpop.f32.mrf.mxu0
    %v945 = vadd.f32 0.0, %v944
    %v946 = vpop.f32.mrf.mxu0
    %947 = vmatprep.mubr.f32.mxu0 0.0
    %948 = vmatmul.mubr.f32.gmra.mxu0 %v697
    %v949 = vpop.f32.mrf.mxu0
    %v950 = vadd.f32 0.0, %v949
    %v951 = vpop.f32.mrf.mxu0
    %952 = vmatprep.mubr.f32.mxu0 0.0
    %953 = vmatmul.mubr.f32.gmra.mxu0 %v698
    %v954 = vpop.f32.mrf.mxu0
    %v955 = vadd.f32 0.0, %v954
    %v956 = vpop.f32.mrf.mxu0
    %957 = vmatprep.mubr.f32.mxu0 0.0
    %958 = vmatmul.mubr.f32.gmra.mxu0 %v699
    %v959 = vpop.f32.mrf.mxu0
    %v960 = vadd.f32 0.0, %v959
    %v961 = vpop.f32.mrf.mxu0
    %962 = vmatprep.mubr.f32.mxu0 0.0
    %963 = vmatmul.mubr.f32.gmra.mxu0 %v700
    %v964 = vpop.f32.mrf.mxu0
    %v965 = vadd.f32 0.0, %v964
    %v966 = vpop.f32.mrf.mxu0
    %967 = vdwg.mxu0
    %968 = vmatprep.subr.mxu0 %v691
    %969 = vmatpush1.msra.mxu0 %v690
    %970 = vmatprep.subr.mxu0 %v688
    %971 = vmatpush1.msra.mxu0 %v687
    %972 = vmatprep.subr.mxu0 %v685
    %973 = vmatpush1.msra.mxu0 %v684
    %974 = vmatprep.subr.mxu0 %v682
    %975 = vmatpush1.msra.mxu0 %v681
    %976 = vmatprep.subr.mxu0 %v679
    %977 = vmatpush1.msra.mxu0 %v678
    %978 = vmatprep.subr.mxu0 %v676
    %979 = vmatpush1.msra.mxu0 %v675
    %980 = vmatprep.subr.mxu0 %v673
    %981 = vmatpush1.msra.mxu0 %v672
    %982 = vmatprep.subr.mxu0 %v670
    %983 = vmatpush1.msra.mxu0 %v669
    %984 = vmatprep.subr.mxu0 %v667
    %985 = vmatpush1.msra.mxu0 %v666
    %986 = vmatprep.subr.mxu0 %v664
    %987 = vmatpush1.msra.mxu0 %v663
    %988 = vmatprep.subr.mxu0 %v661
    %989 = vmatpush1.msra.mxu0 %v660
    %990 = vmatprep.subr.mxu0 %v658
    %991 = vmatpush1.msra.mxu0 %v657
    %992 = vmatprep.subr.mxu0 %v655
    %993 = vmatpush1.msra.mxu0 %v654
    %994 = vmatprep.subr.mxu0 %v652
    %995 = vmatpush1.msra.mxu0 %v651
    %996 = vmatprep.subr.mxu0 %v649
    %997 = vmatpush1.msra.mxu0 %v648
    %998 = vmatprep.subr.mxu0 %v646
    %999 = vmatpush1.msra.mxu0 %v645
    %1000 = vmatprep.subr.mxu0 0.0
    %1001 = vmatpush2.msra.mxu0 0.0
    %1002 = vmatprep.subr.mxu0 0.0
    %1003 = vmatpush2.msra.mxu0 0.0
    %1004 = vmatprep.subr.mxu0 0.0
    %1005 = vmatpush2.msra.mxu0 0.0
    %1006 = vmatprep.subr.mxu0 0.0
    %1007 = vmatpush2.msra.mxu0 0.0
    %1008 = vmatprep.subr.mxu0 0.0
    %1009 = vmatpush2.msra.mxu0 0.0
    %1010 = vmatprep.subr.mxu0 0.0
    %1011 = vmatpush2.msra.mxu0 0.0
    %1012 = vmatprep.subr.mxu0 0.0
    %1013 = vmatpush2.msra.mxu0 0.0
    %1014 = vmatprep.subr.mxu0 0.0
    %1015 = vmatpush2.msra.mxu0 0.0
    %1016 = vmatprep.subr.mxu0 0.0
    %1017 = vmatpush2.msra.mxu0 0.0
    %1018 = vmatprep.subr.mxu0 0.0
    %1019 = vmatpush2.msra.mxu0 0.0
    %1020 = vmatprep.subr.mxu0 0.0
    %1021 = vmatpush2.msra.mxu0 0.0
    %1022 = vmatprep.subr.mxu0 0.0
    %1023 = vmatpush2.msra.mxu0 0.0
    %1024 = vmatprep.subr.mxu0 0.0
    %1025 = vmatpush2.msra.mxu0 0.0
    %1026 = vmatprep.subr.mxu0 0.0
    %1027 = vmatpush2.msra.mxu0 0.0
    %1028 = vmatprep.subr.mxu0 0.0
    %1029 = vmatpush2.msra.mxu0 0.0
    %1030 = vmatprep.subr.mxu0 0.0
    %1031 = vmatpush2.msra.mxu0 0.0
    %1032 = vmatprep.mubr.f32.mxu0 0.0
    %1033 = vmatmul.mubr.f32.gmra.mxu0 %v636
    %v1034 = vpop.f32.mrf.mxu0
    %v1035 = vadd.f32 %v817, %v1034
    %v1036 = vpop.f32.mrf.mxu0
    %v1037 = vadd.f32 %v819, %v1036
    %1038 = vmatprep.mubr.f32.mxu0 0.0
    %1039 = vmatmul.mubr.f32.gmra.mxu0 %v637
    %v1040 = vpop.f32.mrf.mxu0
    %v1041 = vadd.f32 %v823, %v1040
    %v1042 = vpop.f32.mrf.mxu0
    %v1043 = vadd.f32 %v825, %v1042
    %1044 = vmatprep.mubr.f32.mxu0 0.0
    %1045 = vmatmul.mubr.f32.gmra.mxu0 %v638
    %v1046 = vpop.f32.mrf.mxu0
    %v1047 = vadd.f32 %v829, %v1046
    %v1048 = vpop.f32.mrf.mxu0
    %v1049 = vadd.f32 %v831, %v1048
    %1050 = vmatprep.mubr.f32.mxu0 0.0
    %1051 = vmatmul.mubr.f32.gmra.mxu0 %v639
    %v1052 = vpop.f32.mrf.mxu0
    %v1053 = vadd.f32 %v835, %v1052
    %v1054 = vpop.f32.mrf.mxu0
    %v1055 = vadd.f32 %v837, %v1054
    %1056 = vmatprep.mubr.f32.mxu0 0.0
    %1057 = vmatmul.mubr.f32.gmra.mxu0 %v640
    %v1058 = vpop.f32.mrf.mxu0
    %v1059 = vadd.f32 %v841, %v1058
    %v1060 = vpop.f32.mrf.mxu0
    %v1061 = vadd.f32 %v843, %v1060
    %1062 = vmatprep.mubr.f32.mxu0 0.0
    %1063 = vmatmul.mubr.f32.gmra.mxu0 %v641
    %v1064 = vpop.f32.mrf.mxu0
    %v1065 = vadd.f32 %v847, %v1064
    %v1066 = vpop.f32.mrf.mxu0
    %v1067 = vadd.f32 %v849, %v1066
    %1068 = vmatprep.mubr.f32.mxu0 0.0
    %1069 = vmatmul.mubr.f32.gmra.mxu0 %v642
    %v1070 = vpop.f32.mrf.mxu0
    %v1071 = vadd.f32 %v853, %v1070
    %v1072 = vpop.f32.mrf.mxu0
    %v1073 = vadd.f32 %v855, %v1072
    %1074 = vmatprep.mubr.f32.mxu0 0.0
    %1075 = vmatmul.mubr.f32.gmra.mxu0 %v643
    %v1076 = vpop.f32.mrf.mxu0
    %v1077 = vadd.f32 %v859, %v1076
    %v1078 = vpop.f32.mrf.mxu0
    %v1079 = vadd.f32 %v861, %v1078
    %1080 = vdwg.mxu0
    %1081 = vmatprep.subr.mxu0 0.0
    %1082 = vmatpush1.msra.mxu0 %v692
    %1083 = vmatprep.subr.mxu0 0.0
    %1084 = vmatpush1.msra.mxu0 %v689
    %1085 = vmatprep.subr.mxu0 0.0
    %1086 = vmatpush1.msra.mxu0 %v686
    %1087 = vmatprep.subr.mxu0 0.0
    %1088 = vmatpush1.msra.mxu0 %v683
    %1089 = vmatprep.subr.mxu0 0.0
    %1090 = vmatpush1.msra.mxu0 %v680
    %1091 = vmatprep.subr.mxu0 0.0
    %1092 = vmatpush1.msra.mxu0 %v677
    %1093 = vmatprep.subr.mxu0 0.0
    %1094 = vmatpush1.msra.mxu0 %v674
    %1095 = vmatprep.subr.mxu0 0.0
    %1096 = vmatpush1.msra.mxu0 %v671
    %1097 = vmatprep.subr.mxu0 0.0
    %1098 = vmatpush1.msra.mxu0 %v668
    %1099 = vmatprep.subr.mxu0 0.0
    %1100 = vmatpush1.msra.mxu0 %v665
    %1101 = vmatprep.subr.mxu0 0.0
    %1102 = vmatpush1.msra.mxu0 %v662
    %1103 = vmatprep.subr.mxu0 0.0
    %1104 = vmatpush1.msra.mxu0 %v659
    %1105 = vmatprep.subr.mxu0 0.0
    %1106 = vmatpush1.msra.mxu0 %v656
    %1107 = vmatprep.subr.mxu0 0.0
    %1108 = vmatpush1.msra.mxu0 %v653
    %1109 = vmatprep.subr.mxu0 0.0
    %1110 = vmatpush1.msra.mxu0 %v650
    %1111 = vmatprep.subr.mxu0 0.0
    %1112 = vmatpush1.msra.mxu0 %v647
    %1113 = vmatprep.subr.mxu0 0.0
    %1114 = vmatpush2.msra.mxu0 0.0
    %1115 = vmatprep.subr.mxu0 0.0
    %1116 = vmatpush2.msra.mxu0 0.0
    %1117 = vmatprep.subr.mxu0 0.0
    %1118 = vmatpush2.msra.mxu0 0.0
    %1119 = vmatprep.subr.mxu0 0.0
    %1120 = vmatpush2.msra.mxu0 0.0
    %1121 = vmatprep.subr.mxu0 0.0
    %1122 = vmatpush2.msra.mxu0 0.0
    %1123 = vmatprep.subr.mxu0 0.0
    %1124 = vmatpush2.msra.mxu0 0.0
    %1125 = vmatprep.subr.mxu0 0.0
    %1126 = vmatpush2.msra.mxu0 0.0
    %1127 = vmatprep.subr.mxu0 0.0
    %1128 = vmatpush2.msra.mxu0 0.0
    %1129 = vmatprep.subr.mxu0 0.0
    %1130 = vmatpush2.msra.mxu0 0.0
    %1131 = vmatprep.subr.mxu0 0.0
    %1132 = vmatpush2.msra.mxu0 0.0
    %1133 = vmatprep.subr.mxu0 0.0
    %1134 = vmatpush2.msra.mxu0 0.0
    %1135 = vmatprep.subr.mxu0 0.0
    %1136 = vmatpush2.msra.mxu0 0.0
    %1137 = vmatprep.subr.mxu0 0.0
    %1138 = vmatpush2.msra.mxu0 0.0
    %1139 = vmatprep.subr.mxu0 0.0
    %1140 = vmatpush2.msra.mxu0 0.0
    %1141 = vmatprep.subr.mxu0 0.0
    %1142 = vmatpush2.msra.mxu0 0.0
    %1143 = vmatprep.subr.mxu0 0.0
    %1144 = vmatpush2.msra.mxu0 0.0
    %1145 = vmatprep.mubr.f32.mxu0 0.0
    %1146 = vmatmul.mubr.f32.gmra.mxu0 %v636
    %v1147 = vpop.f32.mrf.mxu0
    %v1148 = vadd.f32 %v930, %v1147
    %v1149 = vpop.f32.mrf.mxu0
    %1150 = vmatprep.mubr.f32.mxu0 0.0
    %1151 = vmatmul.mubr.f32.gmra.mxu0 %v637
    %v1152 = vpop.f32.mrf.mxu0
    %v1153 = vadd.f32 %v935, %v1152
    %v1154 = vpop.f32.mrf.mxu0
    %1155 = vmatprep.mubr.f32.mxu0 0.0
    %1156 = vmatmul.mubr.f32.gmra.mxu0 %v638
    %v1157 = vpop.f32.mrf.mxu0
    %v1158 = vadd.f32 %v940, %v1157
    %v1159 = vpop.f32.mrf.mxu0
    %1160 = vmatprep.mubr.f32.mxu0 0.0
    %1161 = vmatmul.mubr.f32.gmra.mxu0 %v639
    %v1162 = vpop.f32.mrf.mxu0
    %v1163 = vadd.f32 %v945, %v1162
    %v1164 = vpop.f32.mrf.mxu0
    %1165 = vmatprep.mubr.f32.mxu0 0.0
    %1166 = vmatmul.mubr.f32.gmra.mxu0 %v640
    %v1167 = vpop.f32.mrf.mxu0
    %v1168 = vadd.f32 %v950, %v1167
    %v1169 = vpop.f32.mrf.mxu0
    %1170 = vmatprep.mubr.f32.mxu0 0.0
    %1171 = vmatmul.mubr.f32.gmra.mxu0 %v641
    %v1172 = vpop.f32.mrf.mxu0
    %v1173 = vadd.f32 %v955, %v1172
    %v1174 = vpop.f32.mrf.mxu0
    %1175 = vmatprep.mubr.f32.mxu0 0.0
    %1176 = vmatmul.mubr.f32.gmra.mxu0 %v642
    %v1177 = vpop.f32.mrf.mxu0
    %v1178 = vadd.f32 %v960, %v1177
    %v1179 = vpop.f32.mrf.mxu0
    %1180 = vmatprep.mubr.f32.mxu0 0.0
    %1181 = vmatmul.mubr.f32.gmra.mxu0 %v643
    %v1182 = vpop.f32.mrf.mxu0
    %v1183 = vadd.f32 %v965, %v1182
    %v1184 = vpop.f32.mrf.mxu0
    %1185 = vdwg.mxu0
    %v1186 = vld [vmem:[%s6] sm:$0x7]
    %v1188 = vlaneseq
    %v1189 = vshrl.u32 %v1188, 7
    %v1190 = vsub.s32 0, %v1189
    %v1191 = vrot.slane %v1186, %v1190
    %v1192 = vlaneseq
    %v1193 = vshrl.u32 %v1192, 7
    %v1194 = vsub.s32 1, %v1193
    %v1195 = vrot.slane %v1186, %v1194
    %v1196 = vlaneseq
    %v1197 = vshrl.u32 %v1196, 7
    %v1198 = vsub.s32 2, %v1197
    %v1199 = vrot.slane %v1186, %v1198
    %v1203 = vadd.f32 %v485, %v1191
    %v1204 = vadd.f32 %v487, %v1195
    %v1205 = vadd.f32 %v598, %v1199
    %v1206 = vadd.f32 %v491, %v1191
    %v1207 = vadd.f32 %v493, %v1195
    %v1208 = vadd.f32 %v603, %v1199
    %v1209 = vadd.f32 %v497, %v1191
    %v1210 = vadd.f32 %v499, %v1195
    %v1211 = vadd.f32 %v608, %v1199
    %v1212 = vadd.f32 %v503, %v1191
    %v1213 = vadd.f32 %v505, %v1195
    %v1214 = vadd.f32 %v613, %v1199
    %v1215 = vadd.f32 %v509, %v1191
    %v1216 = vadd.f32 %v511, %v1195
    %v1217 = vadd.f32 %v618, %v1199
    %v1218 = vadd.f32 %v515, %v1191
    %v1219 = vadd.f32 %v517, %v1195
    %v1220 = vadd.f32 %v623, %v1199
    %v1221 = vadd.f32 %v521, %v1191
    %v1222 = vadd.f32 %v523, %v1195
    %v1223 = vadd.f32 %v628, %v1199
    %v1224 = vadd.f32 %v527, %v1191
    %v1225 = vadd.f32 %v529, %v1195
    %v1226 = vadd.f32 %v633, %v1199
    %1227 = vst [vmem:[#allocation2] sm:$0xff] %v1203
    %1228 = vst [vmem:[#allocation2 + $0x8] sm:$0xff] %v1204
    %1229 = vst [vmem:[#allocation2 + $0x10] sm:$0xff] %v1205
    %1230 = vst [vmem:[#allocation2 + $0x18] sm:$0xff] %v1206
    %1231 = vst [vmem:[#allocation2 + $0x20] sm:$0xff] %v1207
    %1232 = vst [vmem:[#allocation2 + $0x28] sm:$0xff] %v1208
    %1233 = vst [vmem:[#allocation2 + $0x30] sm:$0xff] %v1209
    %1234 = vst [vmem:[#allocation2 + $0x38] sm:$0xff] %v1210
    %1235 = vst [vmem:[#allocation2 + $0x40] sm:$0xff] %v1211
    %1236 = vst [vmem:[#allocation2 + $0x48] sm:$0xff] %v1212
    %1237 = vst [vmem:[#allocation2 + $0x50] sm:$0xff] %v1213
    %1238 = vst [vmem:[#allocation2 + $0x58] sm:$0xff] %v1214
    %1239 = vst [vmem:[#allocation2 + $0x60] sm:$0xff] %v1215
    %1240 = vst [vmem:[#allocation2 + $0x68] sm:$0xff] %v1216
    %1241 = vst [vmem:[#allocation2 + $0x70] sm:$0xff] %v1217
    %1242 = vst [vmem:[#allocation2 + $0x78] sm:$0xff] %v1218
    %1243 = vst [vmem:[#allocation2 + $0x80] sm:$0xff] %v1219
    %1244 = vst [vmem:[#allocation2 + $0x88] sm:$0xff] %v1220
    %1245 = vst [vmem:[#allocation2 + $0x90] sm:$0xff] %v1221
    %1246 = vst [vmem:[#allocation2 + $0x98] sm:$0xff] %v1222
    %1247 = vst [vmem:[#allocation2 + $0xa0] sm:$0xff] %v1223
    %1248 = vst [vmem:[#allocation2 + $0xa8] sm:$0xff] %v1224
    %1249 = vst [vmem:[#allocation2 + $0xb0] sm:$0xff] %v1225
    %1250 = vst [vmem:[#allocation2 + $0xb8] sm:$0xff] %v1226
    %s1251 = scalar_lea.vmem %s6, 3
    %v1252 = vld [vmem:[%s1251] sm:$0x7]
    %v1254 = vlaneseq
    %v1255 = vshrl.u32 %v1254, 7
    %v1256 = vsub.s32 0, %v1255
    %v1257 = vrot.slane %v1252, %v1256
    %v1258 = vlaneseq
    %v1259 = vshrl.u32 %v1258, 7
    %v1260 = vsub.s32 1, %v1259
    %v1261 = vrot.slane %v1252, %v1260
    %v1262 = vlaneseq
    %v1263 = vshrl.u32 %v1262, 7
    %v1264 = vsub.s32 2, %v1263
    %v1265 = vrot.slane %v1252, %v1264
    %v1269 = vadd.f32 %v1035, %v1257
    %v1270 = vadd.f32 %v1037, %v1261
    %v1271 = vadd.f32 %v1148, %v1265
    %v1272 = vadd.f32 %v1041, %v1257
    %v1273 = vadd.f32 %v1043, %v1261
    %v1274 = vadd.f32 %v1153, %v1265
    %v1275 = vadd.f32 %v1047, %v1257
    %v1276 = vadd.f32 %v1049, %v1261
    %v1277 = vadd.f32 %v1158, %v1265
    %v1278 = vadd.f32 %v1053, %v1257
    %v1279 = vadd.f32 %v1055, %v1261
    %v1280 = vadd.f32 %v1163, %v1265
    %v1281 = vadd.f32 %v1059, %v1257
    %v1282 = vadd.f32 %v1061, %v1261
    %v1283 = vadd.f32 %v1168, %v1265
    %v1284 = vadd.f32 %v1065, %v1257
    %v1285 = vadd.f32 %v1067, %v1261
    %v1286 = vadd.f32 %v1173, %v1265
    %v1287 = vadd.f32 %v1071, %v1257
    %v1288 = vadd.f32 %v1073, %v1261
    %v1289 = vadd.f32 %v1178, %v1265
    %v1290 = vadd.f32 %v1077, %v1257
    %v1291 = vadd.f32 %v1079, %v1261
    %v1292 = vadd.f32 %v1183, %v1265
    %1293 = vst [vmem:[#allocation3] sm:$0xff] %v1269
    %1294 = vst [vmem:[#allocation3 + $0x8] sm:$0xff] %v1270
    %1295 = vst [vmem:[#allocation3 + $0x10] sm:$0xff] %v1271
    %1296 = vst [vmem:[#allocation3 + $0x18] sm:$0xff] %v1272
    %1297 = vst [vmem:[#allocation3 + $0x20] sm:$0xff] %v1273
    %1298 = vst [vmem:[#allocation3 + $0x28] sm:$0xff] %v1274
    %1299 = vst [vmem:[#allocation3 + $0x30] sm:$0xff] %v1275
    %1300 = vst [vmem:[#allocation3 + $0x38] sm:$0xff] %v1276
    %1301 = vst [vmem:[#allocation3 + $0x40] sm:$0xff] %v1277
    %1302 = vst [vmem:[#allocation3 + $0x48] sm:$0xff] %v1278
    %1303 = vst [vmem:[#allocation3 + $0x50] sm:$0xff] %v1279
    %1304 = vst [vmem:[#allocation3 + $0x58] sm:$0xff] %v1280
    %1305 = vst [vmem:[#allocation3 + $0x60] sm:$0xff] %v1281
    %1306 = vst [vmem:[#allocation3 + $0x68] sm:$0xff] %v1282
    %1307 = vst [vmem:[#allocation3 + $0x70] sm:$0xff] %v1283
    %1308 = vst [vmem:[#allocation3 + $0x78] sm:$0xff] %v1284
    %1309 = vst [vmem:[#allocation3 + $0x80] sm:$0xff] %v1285
    %1310 = vst [vmem:[#allocation3 + $0x88] sm:$0xff] %v1286
    %1311 = vst [vmem:[#allocation3 + $0x90] sm:$0xff] %v1287
    %1312 = vst [vmem:[#allocation3 + $0x98] sm:$0xff] %v1288
    %1313 = vst [vmem:[#allocation3 + $0xa0] sm:$0xff] %v1289
    %1314 = vst [vmem:[#allocation3 + $0xa8] sm:$0xff] %v1290
    %1315 = vst [vmem:[#allocation3 + $0xb0] sm:$0xff] %v1291
    %1316 = vst [vmem:[#allocation3 + $0xb8] sm:$0xff] %v1292
    %p1317 = scmp.eq.s32.totalorder 0, 0
    // Predicated region
    $region38: #{video_encoder_forward.4} parent=1 // pred_check
      %p1318 = pneg %p1317
    $region39: #{video_encoder_forward.4} parent=1 // pred_check_branch
      %1320 = sbr.rel (%p1318) target = $region41
    $region40: #{video_encoder_forward.4} parent=1 // pred_region
      %1321 = vst [vmem:[#allocation4] sm:$0xff] 0.0
      %1322 = vst [vmem:[#allocation5] sm:$0xff] 0.0
    $region41: #{video_encoder_forward.4} parent=1 // pred_fallthru
      _
    %v1323 = vld [vmem:[%s5] sm:$0xff]
    %v1324 = vld [vmem:[%s5 + $0x8] sm:$0xff]
    %v1325 = vld [vmem:[%s5 + $0x10] sm:$0xff]
    %v1326 = vld [vmem:[%s5 + $0x18] sm:$0xff]
    %v1327 = vld [vmem:[%s5 + $0x20] sm:$0xff]
    %v1328 = vld [vmem:[%s5 + $0x28] sm:$0xff]
    %v1329 = vld [vmem:[%s5 + $0x30] sm:$0xff]
    %v1330 = vld [vmem:[%s5 + $0x38] sm:$0xff]
    %v1331 = vld [vmem:[%s5 + $0x40] sm:$0xff]
    %v1332 = vld [vmem:[%s5 + $0x48] sm:$0xff]
    %v1333 = vld [vmem:[%s5 + $0x50] sm:$0xff]
    %v1334 = vld [vmem:[%s5 + $0x58] sm:$0xff]
    %v1335 = vld [vmem:[%s5 + $0x60] sm:$0xff]
    %v1336 = vld [vmem:[%s5 + $0x68] sm:$0xff]
    %v1337 = vld [vmem:[%s5 + $0x70] sm:$0xff]
    %v1338 = vld [vmem:[%s5 + $0x78] sm:$0xff]
    %v1339 = vld [vmem:[%s5 + $0x80] sm:$0xff]
    %v1340 = vld [vmem:[%s5 + $0x88] sm:$0xff]
    %v1341 = vld [vmem:[%s5 + $0x90] sm:$0xff]
    %v1342 = vld [vmem:[%s5 + $0x98] sm:$0xff]
    %v1343 = vld [vmem:[%s5 + $0xa0] sm:$0xff]
    %v1344 = vld [vmem:[%s5 + $0xa8] sm:$0xff]
    %v1345 = vld [vmem:[%s5 + $0xb0] sm:$0xff]
    %v1346 = vld [vmem:[%s5 + $0xb8] sm:$0xff]
    %v1347 = vld [vmem:[%s5 + $0xc0] sm:$0xff]
    %v1348 = vld [vmem:[%s5 + $0xc8] sm:$0xff]
    %v1349 = vld [vmem:[%s5 + $0xd0] sm:$0xff]
    %v1350 = vld [vmem:[%s5 + $0xd8] sm:$0xff]
    %v1351 = vld [vmem:[%s5 + $0xe0] sm:$0xff]
    %v1352 = vld [vmem:[%s5 + $0xe8] sm:$0xff]
    %v1353 = vld [vmem:[%s5 + $0xf0] sm:$0xff]
    %v1354 = vld [vmem:[%s5 + $0xf8] sm:$0xff]
    %v1355 = vld [vmem:[%s5 + $0x100] sm:$0xff]
    %v1356 = vld [vmem:[%s5 + $0x108] sm:$0xff]
    %v1357 = vld [vmem:[%s5 + $0x110] sm:$0xff]
    %v1358 = vld [vmem:[%s5 + $0x118] sm:$0xff]
    %v1359 = vld [vmem:[%s5 + $0x120] sm:$0xff]
    %v1360 = vld [vmem:[%s5 + $0x128] sm:$0xff]
    %v1361 = vld [vmem:[%s5 + $0x130] sm:$0xff]
    %v1362 = vld [vmem:[%s5 + $0x138] sm:$0xff]
    %v1363 = vld [vmem:[%s5 + $0x140] sm:$0xff]
    %v1364 = vld [vmem:[%s5 + $0x148] sm:$0xff]
    %v1365 = vld [vmem:[%s5 + $0x150] sm:$0xff]
    %v1366 = vld [vmem:[%s5 + $0x158] sm:$0xff]
    %v1367 = vld [vmem:[%s5 + $0x160] sm:$0xff]
    %v1368 = vld [vmem:[%s5 + $0x168] sm:$0xff]
    %v1369 = vld [vmem:[%s5 + $0x170] sm:$0xff]
    %v1370 = vld [vmem:[%s5 + $0x178] sm:$0xff]
    %s1371 = scalar_lea.vmem %s5, 384
    %v1372 = vld [vmem:[%s1371] sm:$0xff]
    %v1373 = vld [vmem:[%s1371 + $0x8] sm:$0xff]
    %v1374 = vld [vmem:[%s1371 + $0x10] sm:$0xff]
    %v1375 = vld [vmem:[%s1371 + $0x18] sm:$0xff]
    %v1376 = vld [vmem:[%s1371 + $0x20] sm:$0xff]
    %v1377 = vld [vmem:[%s1371 + $0x28] sm:$0xff]
    %v1378 = vld [vmem:[%s1371 + $0x30] sm:$0xff]
    %v1379 = vld [vmem:[%s1371 + $0x38] sm:$0xff]
    %v1380 = vld [vmem:[%s1371 + $0x40] sm:$0xff]
    %v1381 = vld [vmem:[%s1371 + $0x48] sm:$0xff]
    %v1382 = vld [vmem:[%s1371 + $0x50] sm:$0xff]
    %v1383 = vld [vmem:[%s1371 + $0x58] sm:$0xff]
    %v1384 = vld [vmem:[%s1371 + $0x60] sm:$0xff]
    %v1385 = vld [vmem:[%s1371 + $0x68] sm:$0xff]
    %v1386 = vld [vmem:[%s1371 + $0x70] sm:$0xff]
    %v1387 = vld [vmem:[%s1371 + $0x78] sm:$0xff]
    %v1388 = vld [vmem:[%s1371 + $0x80] sm:$0xff]
    %v1389 = vld [vmem:[%s1371 + $0x88] sm:$0xff]
    %v1390 = vld [vmem:[%s1371 + $0x90] sm:$0xff]
    %v1391 = vld [vmem:[%s1371 + $0x98] sm:$0xff]
    %v1392 = vld [vmem:[%s1371 + $0xa0] sm:$0xff]
    %v1393 = vld [vmem:[%s1371 + $0xa8] sm:$0xff]
    %v1394 = vld [vmem:[%s1371 + $0xb0] sm:$0xff]
    %v1395 = vld [vmem:[%s1371 + $0xb8] sm:$0xff]
    %v1396 = vld [vmem:[%s1371 + $0xc0] sm:$0xff]
    %v1397 = vld [vmem:[%s1371 + $0xc8] sm:$0xff]
    %v1398 = vld [vmem:[%s1371 + $0xd0] sm:$0xff]
    %v1399 = vld [vmem:[%s1371 + $0xd8] sm:$0xff]
    %v1400 = vld [vmem:[%s1371 + $0xe0] sm:$0xff]
    %v1401 = vld [vmem:[%s1371 + $0xe8] sm:$0xff]
    %v1402 = vld [vmem:[%s1371 + $0xf0] sm:$0xff]
    %v1403 = vld [vmem:[%s1371 + $0xf8] sm:$0xff]
    %v1404 = vld [vmem:[%s1371 + $0x100] sm:$0xff]
    %v1405 = vld [vmem:[%s1371 + $0x108] sm:$0xff]
    %v1406 = vld [vmem:[%s1371 + $0x110] sm:$0xff]
    %v1407 = vld [vmem:[%s1371 + $0x118] sm:$0xff]
    %v1408 = vld [vmem:[%s1371 + $0x120] sm:$0xff]
    %v1409 = vld [vmem:[%s1371 + $0x128] sm:$0xff]
    %v1410 = vld [vmem:[%s1371 + $0x130] sm:$0xff]
    %v1411 = vld [vmem:[%s1371 + $0x138] sm:$0xff]
    %v1412 = vld [vmem:[%s1371 + $0x140] sm:$0xff]
    %v1413 = vld [vmem:[%s1371 + $0x148] sm:$0xff]
    %v1414 = vld [vmem:[%s1371 + $0x150] sm:$0xff]
    %v1415 = vld [vmem:[%s1371 + $0x158] sm:$0xff]
    %v1416 = vld [vmem:[%s1371 + $0x160] sm:$0xff]
    %v1417 = vld [vmem:[%s1371 + $0x168] sm:$0xff]
    %v1418 = vld [vmem:[%s1371 + $0x170] sm:$0xff]
    %v1419 = vld [vmem:[%s1371 + $0x178] sm:$0xff]
    %v1420 = vld [vmem:[%s7] sm:$0x1]
    %s1421 = scalar_lea.vmem %s7, 1
    %v1422 = vld [vmem:[%s1421] sm:$0x1]
    %v1423 = vld [vmem:[#allocation4] sm:$0xff]
    %v1424 = vld [vmem:[#allocation5] sm:$0xff]
    %1425 = vmatprep.subr.mxu0 %v1369
    %1426 = vmatpush1.msra.mxu0 %v1368
    %1427 = vmatprep.subr.mxu0 %v1366
    %1428 = vmatpush1.msra.mxu0 %v1365
    %1429 = vmatprep.subr.mxu0 %v1363
    %1430 = vmatpush1.msra.mxu0 %v1362
    %1431 = vmatprep.subr.mxu0 %v1360
    %1432 = vmatpush1.msra.mxu0 %v1359
    %1433 = vmatprep.subr.mxu0 %v1357
    %1434 = vmatpush1.msra.mxu0 %v1356
    %1435 = vmatprep.subr.mxu0 %v1354
    %1436 = vmatpush1.msra.mxu0 %v1353
    %1437 = vmatprep.subr.mxu0 %v1351
    %1438 = vmatpush1.msra.mxu0 %v1350
    %1439 = vmatprep.subr.mxu0 %v1348
    %1440 = vmatpush1.msra.mxu0 %v1347
    %1441 = vmatprep.subr.mxu0 %v1345
    %1442 = vmatpush1.msra.mxu0 %v1344
    %1443 = vmatprep.subr.mxu0 %v1342
    %1444 = vmatpush1.msra.mxu0 %v1341
    %1445 = vmatprep.subr.mxu0 %v1339
    %1446 = vmatpush1.msra.mxu0 %v1338
    %1447 = vmatprep.subr.mxu0 %v1336
    %1448 = vmatpush1.msra.mxu0 %v1335
    %1449 = vmatprep.subr.mxu0 %v1333
    %1450 = vmatpush1.msra.mxu0 %v1332
    %1451 = vmatprep.subr.mxu0 %v1330
    %1452 = vmatpush1.msra.mxu0 %v1329
    %1453 = vmatprep.subr.mxu0 %v1327
    %1454 = vmatpush1.msra.mxu0 %v1326
    %1455 = vmatprep.subr.mxu0 %v1324
    %1456 = vmatpush1.msra.mxu0 %v1323
    %1457 = vmatprep.subr.mxu0 0.0
    %1458 = vmatpush2.msra.mxu0 0.0
    %1459 = vmatprep.subr.mxu0 0.0
    %1460 = vmatpush2.msra.mxu0 0.0
    %1461 = vmatprep.subr.mxu0 0.0
    %1462 = vmatpush2.msra.mxu0 0.0
    %1463 = vmatprep.subr.mxu0 0.0
    %1464 = vmatpush2.msra.mxu0 0.0
    %1465 = vmatprep.subr.mxu0 0.0
    %1466 = vmatpush2.msra.mxu0 0.0
    %1467 = vmatprep.subr.mxu0 0.0
    %1468 = vmatpush2.msra.mxu0 0.0
    %1469 = vmatprep.subr.mxu0 0.0
    %1470 = vmatpush2.msra.mxu0 0.0
    %1471 = vmatprep.subr.mxu0 0.0
    %1472 = vmatpush2.msra.mxu0 0.0
    %1473 = vmatprep.subr.mxu0 0.0
    %1474 = vmatpush2.msra.mxu0 0.0
    %1475 = vmatprep.subr.mxu0 0.0
    %1476 = vmatpush2.msra.mxu0 0.0
    %1477 = vmatprep.subr.mxu0 0.0
    %1478 = vmatpush2.msra.mxu0 0.0
    %1479 = vmatprep.subr.mxu0 0.0
    %1480 = vmatpush2.msra.mxu0 0.0
    %1481 = vmatprep.subr.mxu0 0.0
    %1482 = vmatpush2.msra.mxu0 0.0
    %1483 = vmatprep.subr.mxu0 0.0
    %1484 = vmatpush2.msra.mxu0 0.0
    %1485 = vmatprep.subr.mxu0 0.0
    %1486 = vmatpush2.msra.mxu0 0.0
    %1487 = vmatprep.subr.mxu0 0.0
    %1488 = vmatpush2.msra.mxu0 0.0
    %1489 = vmatprep.mubr.f32.mxu0 0.0
    %1490 = vmatmul.mubr.f32.gmra.mxu0 %v1423
    %v1491 = vpop.f32.mrf.mxu0
    %v1492 = vadd.f32 0.0, %v1491
    %v1493 = vpop.f32.mrf.mxu0
    %v1494 = vadd.f32 0.0, %v1493
    %1495 = vdwg.mxu0
    %1496 = vmatprep.subr.mxu0 0.0
    %1497 = vmatpush1.msra.mxu0 %v1370
    %1498 = vmatprep.subr.mxu0 0.0
    %1499 = vmatpush1.msra.mxu0 %v1367
    %1500 = vmatprep.subr.mxu0 0.0
    %1501 = vmatpush1.msra.mxu0 %v1364
    %1502 = vmatprep.subr.mxu0 0.0
    %1503 = vmatpush1.msra.mxu0 %v1361
    %1504 = vmatprep.subr.mxu0 0.0
    %1505 = vmatpush1.msra.mxu0 %v1358
    %1506 = vmatprep.subr.mxu0 0.0
    %1507 = vmatpush1.msra.mxu0 %v1355
    %1508 = vmatprep.subr.mxu0 0.0
    %1509 = vmatpush1.msra.mxu0 %v1352
    %1510 = vmatprep.subr.mxu0 0.0
    %1511 = vmatpush1.msra.mxu0 %v1349
    %1512 = vmatprep.subr.mxu0 0.0
    %1513 = vmatpush1.msra.mxu0 %v1346
    %1514 = vmatprep.subr.mxu0 0.0
    %1515 = vmatpush1.msra.mxu0 %v1343
    %1516 = vmatprep.subr.mxu0 0.0
    %1517 = vmatpush1.msra.mxu0 %v1340
    %1518 = vmatprep.subr.mxu0 0.0
    %1519 = vmatpush1.msra.mxu0 %v1337
    %1520 = vmatprep.subr.mxu0 0.0
    %1521 = vmatpush1.msra.mxu0 %v1334
    %1522 = vmatprep.subr.mxu0 0.0
    %1523 = vmatpush1.msra.mxu0 %v1331
    %1524 = vmatprep.subr.mxu0 0.0
    %1525 = vmatpush1.msra.mxu0 %v1328
    %1526 = vmatprep.subr.mxu0 0.0
    %1527 = vmatpush1.msra.mxu0 %v1325
    %1528 = vmatprep.subr.mxu0 0.0
    %1529 = vmatpush2.msra.mxu0 0.0
    %1530 = vmatprep.subr.mxu0 0.0
    %1531 = vmatpush2.msra.mxu0 0.0
    %1532 = vmatprep.subr.mxu0 0.0
    %1533 = vmatpush2.msra.mxu0 0.0
    %1534 = vmatprep.subr.mxu0 0.0
    %1535 = vmatpush2.msra.mxu0 0.0
    %1536 = vmatprep.subr.mxu0 0.0
    %1537 = vmatpush2.msra.mxu0 0.0
    %1538 = vmatprep.subr.mxu0 0.0
    %1539 = vmatpush2.msra.mxu0 0.0
    %1540 = vmatprep.subr.mxu0 0.0
    %1541 = vmatpush2.msra.mxu0 0.0
    %1542 = vmatprep.subr.mxu0 0.0
    %1543 = vmatpush2.msra.mxu0 0.0
    %1544 = vmatprep.subr.mxu0 0.0
    %1545 = vmatpush2.msra.mxu0 0.0
    %1546 = vmatprep.subr.mxu0 0.0
    %1547 = vmatpush2.msra.mxu0 0.0
    %1548 = vmatprep.subr.mxu0 0.0
    %1549 = vmatpush2.msra.mxu0 0.0
    %1550 = vmatprep.subr.mxu0 0.0
    %1551 = vmatpush2.msra.mxu0 0.0
    %1552 = vmatprep.subr.mxu0 0.0
    %1553 = vmatpush2.msra.mxu0 0.0
    %1554 = vmatprep.subr.mxu0 0.0
    %1555 = vmatpush2.msra.mxu0 0.0
    %1556 = vmatprep.subr.mxu0 0.0
    %1557 = vmatpush2.msra.mxu0 0.0
    %1558 = vmatprep.subr.mxu0 0.0
    %1559 = vmatpush2.msra.mxu0 0.0
    %1560 = vmatprep.mubr.f32.mxu0 0.0
    %1561 = vmatmul.mubr.f32.gmra.mxu0 %v1423
    %v1562 = vpop.f32.mrf.mxu0
    %v1563 = vadd.f32 0.0, %v1562
    %v1564 = vpop.f32.mrf.mxu0
    %1565 = vdwg.mxu0
    %s1566 = smul.u32 0, 3
    %s1567 = smul.addr %s1566, 8
    %s1568 = scalar_lea.vmem [#allocation2], %s1567
    %v1569 = vld [vmem:[%s1568] sm:$0xff]
    %v1570 = vld [vmem:[%s1568 + $0x8] sm:$0xff]
    %v1571 = vld [vmem:[%s1568 + $0x10] sm:$0xff]
    %v1572 = vadd.f32 %v1569, %v1492
    %v1573 = vxor.u32 %v1572, 2147483648
    %v1574 = vmul.f32 %v1573, 1.442695
    %v1575 = vpow.pop %v1574
    %v1576 = vadd.f32 %v1575, 1.0
    %v1577 = vrcp.pop %v1576
    %v1578 = vmul.f32 1.0, %v1577
    %v1579 = vadd.f32 %v1570, %v1494
    %v1580 = vxor.u32 %v1579, 2147483648
    %v1581 = vmul.f32 %v1580, 1.442695
    %v1582 = vpow.pop %v1581
    %v1583 = vadd.f32 %v1582, 1.0
    %v1584 = vrcp.pop %v1583
    %v1585 = vmul.f32 1.0, %v1584
    %v1587 = vlaneseq
    %v1588 = vshrl.u32 %v1587, 7
    %v1589 = vsub.s32 0, %v1588
    %v1590 = vrot.slane %v1420, %v1589
    %v1592 = vadd.f32 %v1563, %v1590
    %v1593 = vmul.f32 %v1578, %v1592
    %v1594 = vadd.f32 %v1571, %v1593
    %v1595 = vtanh.pop %v1594
    %v1596 = vsub.f32 1.0, %v1585
    %v1597 = vmul.f32 %v1596, %v1595
    %v1598 = vmul.f32 %v1585, %v1423
    %v1599 = vadd.f32 %v1597, %v1598
    %1600 = vmatprep.subr.mxu0 %v1418
    %1601 = vmatpush1.msra.mxu0 %v1417
    %1602 = vmatprep.subr.mxu0 %v1415
    %1603 = vmatpush1.msra.mxu0 %v1414
    %1604 = vmatprep.subr.mxu0 %v1412
    %1605 = vmatpush1.msra.mxu0 %v1411
    %1606 = vmatprep.subr.mxu0 %v1409
    %1607 = vmatpush1.msra.mxu0 %v1408
    %1608 = vmatprep.subr.mxu0 %v1406
    %1609 = vmatpush1.msra.mxu0 %v1405
    %1610 = vmatprep.subr.mxu0 %v1403
    %1611 = vmatpush1.msra.mxu0 %v1402
    %1612 = vmatprep.subr.mxu0 %v1400
    %1613 = vmatpush1.msra.mxu0 %v1399
    %1614 = vmatprep.subr.mxu0 %v1397
    %1615 = vmatpush1.msra.mxu0 %v1396
    %1616 = vmatprep.subr.mxu0 %v1394
    %1617 = vmatpush1.msra.mxu0 %v1393
    %1618 = vmatprep.subr.mxu0 %v1391
    %1619 = vmatpush1.msra.mxu0 %v1390
    %1620 = vmatprep.subr.mxu0 %v1388
    %1621 = vmatpush1.msra.mxu0 %v1387
    %1622 = vmatprep.subr.mxu0 %v1385
    %1623 = vmatpush1.msra.mxu0 %v1384
    %1624 = vmatprep.subr.mxu0 %v1382
    %1625 = vmatpush1.msra.mxu0 %v1381
    %1626 = vmatprep.subr.mxu0 %v1379
    %1627 = vmatpush1.msra.mxu0 %v1378
    %1628 = vmatprep.subr.mxu0 %v1376
    %1629 = vmatpush1.msra.mxu0 %v1375
    %1630 = vmatprep.subr.mxu0 %v1373
    %1631 = vmatpush1.msra.mxu0 %v1372
    %1632 = vmatprep.subr.mxu0 0.0
    %1633 = vmatpush2.msra.mxu0 0.0
    %1634 = vmatprep.subr.mxu0 0.0
    %1635 = vmatpush2.msra.mxu0 0.0
    %1636 = vmatprep.subr.mxu0 0.0
    %1637 = vmatpush2.msra.mxu0 0.0
    %1638 = vmatprep.subr.mxu0 0.0
    %1639 = vmatpush2.msra.mxu0 0.0
    %1640 = vmatprep.subr.mxu0 0.0
    %1641 = vmatpush2.msra.mxu0 0.0
    %1642 = vmatprep.subr.mxu0 0.0
    %1643 = vmatpush2.msra.mxu0 0.0
    %1644 = vmatprep.subr.mxu0 0.0
    %1645 = vmatpush2.msra.mxu0 0.0
    %1646 = vmatprep.subr.mxu0 0.0
    %1647 = vmatpush2.msra.mxu0 0.0
    %1648 = vmatprep.subr.mxu0 0.0
    %1649 = vmatpush2.msra.mxu0 0.0
    %1650 = vmatprep.subr.mxu0 0.0
    %1651 = vmatpush2.msra.mxu0 0.0
    %1652 = vmatprep.subr.mxu0 0.0
    %1653 = vmatpush2.msra.mxu0 0.0
    %1654 = vmatprep.subr.mxu0 0.0
    %1655 = vmatpush2.msra.mxu0 0.0
    %1656 = vmatprep.subr.mxu0 0.0
    %1657 = vmatpush2.msra.mxu0 0.0
    %1658 = vmatprep.subr.mxu0 0.0
    %1659 = vmatpush2.msra.mxu0 0.0
    %1660 = vmatprep.subr.mxu0 0.0
    %1661 = vmatpush2.msra.mxu0 0.0
    %1662 = vmatprep.subr.mxu0 0.0
    %1663 = vmatpush2.msra.mxu0 0.0
    %1664 = vmatprep.mubr.f32.mxu0 0.0
    %1665 = vmatmul.mubr.f32.gmra.mxu0 %v1424
    %v1666 = vpop.f32.mrf.mxu0
    %v1667 = vadd.f32 0.0, %v1666
    %v1668 = vpop.f32.mrf.mxu0
    %v1669 = vadd.f32 0.0, %v1668
    %1670 = vdwg.mxu0
    %1671 = vmatprep.subr.mxu0 0.0
    %1672 = vmatpush1.msra.mxu0 %v1419
    %1673 = vmatprep.subr.mxu0 0.0
    %1674 = vmatpush1.msra.mxu0 %v1416
    %1675 = vmatprep.subr.mxu0 0.0
    %1676 = vmatpush1.msra.mxu0 %v1413
    %1677 = vmatprep.subr.mxu0 0.0
    %1678 = vmatpush1.msra.mxu0 %v1410
    %1679 = vmatprep.subr.mxu0 0.0
    %1680 = vmatpush1.msra.mxu0 %v1407
    %1681 = vmatprep.subr.mxu0 0.0
    %1682 = vmatpush1.msra.mxu0 %v1404
    %1683 = vmatprep.subr.mxu0 0.0
    %1684 = vmatpush1.msra.mxu0 %v1401
    %1685 = vmatprep.subr.mxu0 0.0
    %1686 = vmatpush1.msra.mxu0 %v1398
    %1687 = vmatprep.subr.mxu0 0.0
    %1688 = vmatpush1.msra.mxu0 %v1395
    %1689 = vmatprep.subr.mxu0 0.0
    %1690 = vmatpush1.msra.mxu0 %v1392
    %1691 = vmatprep.subr.mxu0 0.0
    %1692 = vmatpush1.msra.mxu0 %v1389
    %1693 = vmatprep.subr.mxu0 0.0
    %1694 = vmatpush1.msra.mxu0 %v1386
    %1695 = vmatprep.subr.mxu0 0.0
    %1696 = vmatpush1.msra.mxu0 %v1383
    %1697 = vmatprep.subr.mxu0 0.0
    %1698 = vmatpush1.msra.mxu0 %v1380
    %1699 = vmatprep.subr.mxu0 0.0
    %1700 = vmatpush1.msra.mxu0 %v1377
    %1701 = vmatprep.subr.mxu0 0.0
    %1702 = vmatpush1.msra.mxu0 %v1374
    %1703 = vmatprep.subr.mxu0 0.0
    %1704 = vmatpush2.msra.mxu0 0.0
    %1705 = vmatprep.subr.mxu0 0.0
    %1706 = vmatpush2.msra.mxu0 0.0
    %1707 = vmatprep.subr.mxu0 0.0
    %1708 = vmatpush2.msra.mxu0 0.0
    %1709 = vmatprep.subr.mxu0 0.0
    %1710 = vmatpush2.msra.mxu0 0.0
    %1711 = vmatprep.subr.mxu0 0.0
    %1712 = vmatpush2.msra.mxu0 0.0
    %1713 = vmatprep.subr.mxu0 0.0
    %1714 = vmatpush2.msra.mxu0 0.0
    %1715 = vmatprep.subr.mxu0 0.0
    %1716 = vmatpush2.msra.mxu0 0.0
    %1717 = vmatprep.subr.mxu0 0.0
    %1718 = vmatpush2.msra.mxu0 0.0
    %1719 = vmatprep.subr.mxu0 0.0
    %1720 = vmatpush2.msra.mxu0 0.0
    %1721 = vmatprep.subr.mxu0 0.0
    %1722 = vmatpush2.msra.mxu0 0.0
    %1723 = vmatprep.subr.mxu0 0.0
    %1724 = vmatpush2.msra.mxu0 0.0
    %1725 = vmatprep.subr.mxu0 0.0
    %1726 = vmatpush2.msra.mxu0 0.0
    %1727 = vmatprep.subr.mxu0 0.0
    %1728 = vmatpush2.msra.mxu0 0.0
    %1729 = vmatprep.subr.mxu0 0.0
    %1730 = vmatpush2.msra.mxu0 0.0
    %1731 = vmatprep.subr.mxu0 0.0
    %1732 = vmatpush2.msra.mxu0 0.0
    %1733 = vmatprep.subr.mxu0 0.0
    %1734 = vmatpush2.msra.mxu0 0.0
    %1735 = vmatprep.mubr.f32.mxu0 0.0
    %1736 = vmatmul.mubr.f32.gmra.mxu0 %v1424
    %v1737 = vpop.f32.mrf.mxu0
    %v1738 = vadd.f32 0.0, %v1737
    %v1739 = vpop.f32.mrf.mxu0
    %1740 = vdwg.mxu0
    %s1741 = smul.u32 7, 3
    %s1742 = smul.addr %s1741, 8
    %s1743 = scalar_lea.vmem [#allocation3], %s1742
    %v1744 = vld [vmem:[%s1743] sm:$0xff]
    %v1745 = vld [vmem:[%s1743 + $0x8] sm:$0xff]
    %v1746 = vld [vmem:[%s1743 + $0x10] sm:$0xff]
    %v1747 = vadd.f32 %v1744, %v1667
    %v1748 = vxor.u32 %v1747, 2147483648
    %v1749 = vmul.f32 %v1748, 1.442695
    %v1750 = vpow.pop %v1749
    %v1751 = vadd.f32 %v1750, 1.0
    %v1752 = vrcp.pop %v1751
    %v1753 = vmul.f32 1.0, %v1752
    %v1754 = vadd.f32 %v1745, %v1669
    %v1755 = vxor.u32 %v1754, 2147483648
    %v1756 = vmul.f32 %v1755, 1.442695
    %v1757 = vpow.pop %v1756
    %v1758 = vadd.f32 %v1757, 1.0
    %v1759 = vrcp.pop %v1758
    %v1760 = vmul.f32 1.0, %v1759
    %v1762 = vlaneseq
    %v1763 = vshrl.u32 %v1762, 7
    %v1764 = vsub.s32 0, %v1763
    %v1765 = vrot.slane %v1422, %v1764
    %v1767 = vadd.f32 %v1738, %v1765
    %v1768 = vmul.f32 %v1753, %v1767
    %v1769 = vadd.f32 %v1746, %v1768
    %v1770 = vtanh.pop %v1769
    %v1771 = vsub.f32 1.0, %v1760
    %v1772 = vmul.f32 %v1771, %v1770
    %v1773 = vmul.f32 %v1760, %v1424
    %v1774 = vadd.f32 %v1772, %v1773
    %1775 = vmatprep.subr.mxu0 %v1369
    %1776 = vmatpush1.msra.mxu0 %v1368
    %1777 = vmatprep.subr.mxu0 %v1366
    %1778 = vmatpush1.msra.mxu0 %v1365
    %1779 = vmatprep.subr.mxu0 %v1363
    %1780 = vmatpush1.msra.mxu0 %v1362
    %1781 = vmatprep.subr.mxu0 %v1360
    %1782 = vmatpush1.msra.mxu0 %v1359
    %1783 = vmatprep.subr.mxu0 %v1357
    %1784 = vmatpush1.msra.mxu0 %v1356
    %1785 = vmatprep.subr.mxu0 %v1354
    %1786 = vmatpush1.msra.mxu0 %v1353
    %1787 = vmatprep.subr.mxu0 %v1351
    %1788 = vmatpush1.msra.mxu0 %v1350
    %1789 = vmatprep.subr.mxu0 %v1348
    %1790 = vmatpush1.msra.mxu0 %v1347
    %1791 = vmatprep.subr.mxu0 %v1345
    %1792 = vmatpush1.msra.mxu0 %v1344
    %1793 = vmatprep.subr.mxu0 %v1342
    %1794 = vmatpush1.msra.mxu0 %v1341
    %1795 = vmatprep.subr.mxu0 %v1339
    %1796 = vmatpush1.msra.mxu0 %v1338
    %1797 = vmatprep.subr.mxu0 %v1336
    %1798 = vmatpush1.msra.mxu0 %v1335
    %1799 = vmatprep.subr.mxu0 %v1333
    %1800 = vmatpush1.msra.mxu0 %v1332
    %1801 = vmatprep.subr.mxu0 %v1330
    %1802 = vmatpush1.msra.mxu0 %v1329
    %1803 = vmatprep.subr.mxu0 %v1327
    %1804 = vmatpush1.msra.mxu0 %v1326
    %1805 = vmatprep.subr.mxu0 %v1324
    %1806 = vmatpush1.msra.mxu0 %v1323
    %1807 = vmatprep.subr.mxu0 0.0
    %1808 = vmatpush2.msra.mxu0 0.0
    %1809 = vmatprep.subr.mxu0 0.0
    %1810 = vmatpush2.msra.mxu0 0.0
    %1811 = vmatprep.subr.mxu0 0.0
    %1812 = vmatpush2.msra.mxu0 0.0
    %1813 = vmatprep.subr.mxu0 0.0
    %1814 = vmatpush2.msra.mxu0 0.0
    %1815 = vmatprep.subr.mxu0 0.0
    %1816 = vmatpush2.msra.mxu0 0.0
    %1817 = vmatprep.subr.mxu0 0.0
    %1818 = vmatpush2.msra.mxu0 0.0
    %1819 = vmatprep.subr.mxu0 0.0
    %1820 = vmatpush2.msra.mxu0 0.0
    %1821 = vmatprep.subr.mxu0 0.0
    %1822 = vmatpush2.msra.mxu0 0.0
    %1823 = vmatprep.subr.mxu0 0.0
    %1824 = vmatpush2.msra.mxu0 0.0
    %1825 = vmatprep.subr.mxu0 0.0
    %1826 = vmatpush2.msra.mxu0 0.0
    %1827 = vmatprep.subr.mxu0 0.0
    %1828 = vmatpush2.msra.mxu0 0.0
    %1829 = vmatprep.subr.mxu0 0.0
    %1830 = vmatpush2.msra.mxu0 0.0
    %1831 = vmatprep.subr.mxu0 0.0
    %1832 = vmatpush2.msra.mxu0 0.0
    %1833 = vmatprep.subr.mxu0 0.0
    %1834 = vmatpush2.msra.mxu0 0.0
    %1835 = vmatprep.subr.mxu0 0.0
    %1836 = vmatpush2.msra.mxu0 0.0
    %1837 = vmatprep.subr.mxu0 0.0
    %1838 = vmatpush2.msra.mxu0 0.0
    %1839 = vmatprep.mubr.f32.mxu0 0.0
    %1840 = vmatmul.mubr.f32.gmra.mxu0 %v1599
    %v1841 = vpop.f32.mrf.mxu0
    %v1842 = vadd.f32 0.0, %v1841
    %v1843 = vpop.f32.mrf.mxu0
    %v1844 = vadd.f32 0.0, %v1843
    %1845 = vdwg.mxu0
    %1846 = vmatprep.subr.mxu0 0.0
    %1847 = vmatpush1.msra.mxu0 %v1370
    %1848 = vmatprep.subr.mxu0 0.0
    %1849 = vmatpush1.msra.mxu0 %v1367
    %1850 = vmatprep.subr.mxu0 0.0
    %1851 = vmatpush1.msra.mxu0 %v1364
    %1852 = vmatprep.subr.mxu0 0.0
    %1853 = vmatpush1.msra.mxu0 %v1361
    %1854 = vmatprep.subr.mxu0 0.0
    %1855 = vmatpush1.msra.mxu0 %v1358
    %1856 = vmatprep.subr.mxu0 0.0
    %1857 = vmatpush1.msra.mxu0 %v1355
    %1858 = vmatprep.subr.mxu0 0.0
    %1859 = vmatpush1.msra.mxu0 %v1352
    %1860 = vmatprep.subr.mxu0 0.0
    %1861 = vmatpush1.msra.mxu0 %v1349
    %1862 = vmatprep.subr.mxu0 0.0
    %1863 = vmatpush1.msra.mxu0 %v1346
    %1864 = vmatprep.subr.mxu0 0.0
    %1865 = vmatpush1.msra.mxu0 %v1343
    %1866 = vmatprep.subr.mxu0 0.0
    %1867 = vmatpush1.msra.mxu0 %v1340
    %1868 = vmatprep.subr.mxu0 0.0
    %1869 = vmatpush1.msra.mxu0 %v1337
    %1870 = vmatprep.subr.mxu0 0.0
    %1871 = vmatpush1.msra.mxu0 %v1334
    %1872 = vmatprep.subr.mxu0 0.0
    %1873 = vmatpush1.msra.mxu0 %v1331
    %1874 = vmatprep.subr.mxu0 0.0
    %1875 = vmatpush1.msra.mxu0 %v1328
    %1876 = vmatprep.subr.mxu0 0.0
    %1877 = vmatpush1.msra.mxu0 %v1325
    %1878 = vmatprep.subr.mxu0 0.0
    %1879 = vmatpush2.msra.mxu0 0.0
    %1880 = vmatprep.subr.mxu0 0.0
    %1881 = vmatpush2.msra.mxu0 0.0
    %1882 = vmatprep.subr.mxu0 0.0
    %1883 = vmatpush2.msra.mxu0 0.0
    %1884 = vmatprep.subr.mxu0 0.0
    %1885 = vmatpush2.msra.mxu0 0.0
    %1886 = vmatprep.subr.mxu0 0.0
    %1887 = vmatpush2.msra.mxu0 0.0
    %1888 = vmatprep.subr.mxu0 0.0
    %1889 = vmatpush2.msra.mxu0 0.0
    %1890 = vmatprep.subr.mxu0 0.0
    %1891 = vmatpush2.msra.mxu0 0.0
    %1892 = vmatprep.subr.mxu0 0.0
    %1893 = vmatpush2.msra.mxu0 0.0
    %1894 = vmatprep.subr.mxu0 0.0
    %1895 = vmatpush2.msra.mxu0 0.0
    %1896 = vmatprep.subr.mxu0 0.0
    %1897 = vmatpush2.msra.mxu0 0.0
    %1898 = vmatprep.subr.mxu0 0.0
    %1899 = vmatpush2.msra.mxu0 0.0
    %1900 = vmatprep.subr.mxu0 0.0
    %1901 = vmatpush2.msra.mxu0 0.0
    %1902 = vmatprep.subr.mxu0 0.0
    %1903 = vmatpush2.msra.mxu0 0.0
    %1904 = vmatprep.subr.mxu0 0.0
    %1905 = vmatpush2.msra.mxu0 0.0
    %1906 = vmatprep.subr.mxu0 0.0
    %1907 = vmatpush2.msra.mxu0 0.0
    %1908 = vmatprep.subr.mxu0 0.0
    %1909 = vmatpush2.msra.mxu0 0.0
    %1910 = vmatprep.mubr.f32.mxu0 0.0
    %1911 = vmatmul.mubr.f32.gmra.mxu0 %v1599
    %v1912 = vpop.f32.mrf.mxu0
    %v1913 = vadd.f32 0.0, %v1912
    %v1914 = vpop.f32.mrf.mxu0
    %1915 = vdwg.mxu0
    %s1916 = smul.u32 1, 3
    %s1917 = smul.addr %s1916, 8
    %s1918 = scalar_lea.vmem [#allocation2], %s1917
    %v1919 = vld [vmem:[%s1918] sm:$0xff]
    %v1920 = vld [vmem:[%s1918 + $0x8] sm:$0xff]
    %v1921 = vld [vmem:[%s1918 + $0x10] sm:$0xff]
    %v1922 = vadd.f32 %v1919, %v1842
    %v1923 = vxor.u32 %v1922, 2147483648
    %v1924 = vmul.f32 %v1923, 1.442695
    %v1925 = vpow.pop %v1924
    %v1926 = vadd.f32 %v1925, 1.0
    %v1927 = vrcp.pop %v1926
    %v1928 = vmul.f32 1.0, %v1927
    %v1929 = vadd.f32 %v1920, %v1844
    %v1930 = vxor.u32 %v1929, 2147483648
    %v1931 = vmul.f32 %v1930, 1.442695
    %v1932 = vpow.pop %v1931
    %v1933 = vadd.f32 %v1932, 1.0
    %v1934 = vrcp.pop %v1933
    %v1935 = vmul.f32 1.0, %v1934
    %v1936 = vadd.f32 %v1913, %v1590
    %v1937 = vmul.f32 %v1928, %v1936
    %v1938 = vadd.f32 %v1921, %v1937
    %v1939 = vtanh.pop %v1938
    %v1940 = vsub.f32 1.0, %v1935
    %v1941 = vmul.f32 %v1940, %v1939
    %v1942 = vmul.f32 %v1935, %v1599
    %v1943 = vadd.f32 %v1941, %v1942
    %1944 = vmatprep.subr.mxu0 %v1418
    %1945 = vmatpush1.msra.mxu0 %v1417
    %1946 = vmatprep.subr.mxu0 %v1415
    %1947 = vmatpush1.msra.mxu0 %v1414
    %1948 = vmatprep.subr.mxu0 %v1412
    %1949 = vmatpush1.msra.mxu0 %v1411
    %1950 = vmatprep.subr.mxu0 %v1409
    %1951 = vmatpush1.msra.mxu0 %v1408
    %1952 = vmatprep.subr.mxu0 %v1406
    %1953 = vmatpush1.msra.mxu0 %v1405
    %1954 = vmatprep.subr.mxu0 %v1403
    %1955 = vmatpush1.msra.mxu0 %v1402
    %1956 = vmatprep.subr.mxu0 %v1400
    %1957 = vmatpush1.msra.mxu0 %v1399
    %1958 = vmatprep.subr.mxu0 %v1397
    %1959 = vmatpush1.msra.mxu0 %v1396
    %1960 = vmatprep.subr.mxu0 %v1394
    %1961 = vmatpush1.msra.mxu0 %v1393
    %1962 = vmatprep.subr.mxu0 %v1391
    %1963 = vmatpush1.msra.mxu0 %v1390
    %1964 = vmatprep.subr.mxu0 %v1388
    %1965 = vmatpush1.msra.mxu0 %v1387
    %1966 = vmatprep.subr.mxu0 %v1385
    %1967 = vmatpush1.msra.mxu0 %v1384
    %1968 = vmatprep.subr.mxu0 %v1382
    %1969 = vmatpush1.msra.mxu0 %v1381
    %1970 = vmatprep.subr.mxu0 %v1379
    %1971 = vmatpush1.msra.mxu0 %v1378
    %1972 = vmatprep.subr.mxu0 %v1376
    %1973 = vmatpush1.msra.mxu0 %v1375
    %1974 = vmatprep.subr.mxu0 %v1373
    %1975 = vmatpush1.msra.mxu0 %v1372
    %1976 = vmatprep.subr.mxu0 0.0
    %1977 = vmatpush2.msra.mxu0 0.0
    %1978 = vmatprep.subr.mxu0 0.0
    %1979 = vmatpush2.msra.mxu0 0.0
    %1980 = vmatprep.subr.mxu0 0.0
    %1981 = vmatpush2.msra.mxu0 0.0
    %1982 = vmatprep.subr.mxu0 0.0
    %1983 = vmatpush2.msra.mxu0 0.0
    %1984 = vmatprep.subr.mxu0 0.0
    %1985 = vmatpush2.msra.mxu0 0.0
    %1986 = vmatprep.subr.mxu0 0.0
    %1987 = vmatpush2.msra.mxu0 0.0
    %1988 = vmatprep.subr.mxu0 0.0
    %1989 = vmatpush2.msra.mxu0 0.0
    %1990 = vmatprep.subr.mxu0 0.0
    %1991 = vmatpush2.msra.mxu0 0.0
    %1992 = vmatprep.subr.mxu0 0.0
    %1993 = vmatpush2.msra.mxu0 0.0
    %1994 = vmatprep.subr.mxu0 0.0
    %1995 = vmatpush2.msra.mxu0 0.0
    %1996 = vmatprep.subr.mxu0 0.0
    %1997 = vmatpush2.msra.mxu0 0.0
    %1998 = vmatprep.subr.mxu0 0.0
    %1999 = vmatpush2.msra.mxu0 0.0
    %2000 = vmatprep.subr.mxu0 0.0
    %2001 = vmatpush2.msra.mxu0 0.0
    %2002 = vmatprep.subr.mxu0 0.0
    %2003 = vmatpush2.msra.mxu0 0.0
    %2004 = vmatprep.subr.mxu0 0.0
    %2005 = vmatpush2.msra.mxu0 0.0
    %2006 = vmatprep.subr.mxu0 0.0
    %2007 = vmatpush2.msra.mxu0 0.0
    %2008 = vmatprep.mubr.f32.mxu0 0.0
    %2009 = vmatmul.mubr.f32.gmra.mxu0 %v1774
    %v2010 = vpop.f32.mrf.mxu0
    %v2011 = vadd.f32 0.0, %v2010
    %v2012 = vpop.f32.mrf.mxu0
    %v2013 = vadd.f32 0.0, %v2012
    %2014 = vdwg.mxu0
    %2015 = vmatprep.subr.mxu0 0.0
    %2016 = vmatpush1.msra.mxu0 %v1419
    %2017 = vmatprep.subr.mxu0 0.0
    %2018 = vmatpush1.msra.mxu0 %v1416
    %2019 = vmatprep.subr.mxu0 0.0
    %2020 = vmatpush1.msra.mxu0 %v1413
    %2021 = vmatprep.subr.mxu0 0.0
    %2022 = vmatpush1.msra.mxu0 %v1410
    %2023 = vmatprep.subr.mxu0 0.0
    %2024 = vmatpush1.msra.mxu0 %v1407
    %2025 = vmatprep.subr.mxu0 0.0
    %2026 = vmatpush1.msra.mxu0 %v1404
    %2027 = vmatprep.subr.mxu0 0.0
    %2028 = vmatpush1.msra.mxu0 %v1401
    %2029 = vmatprep.subr.mxu0 0.0
    %2030 = vmatpush1.msra.mxu0 %v1398
    %2031 = vmatprep.subr.mxu0 0.0
    %2032 = vmatpush1.msra.mxu0 %v1395
    %2033 = vmatprep.subr.mxu0 0.0
    %2034 = vmatpush1.msra.mxu0 %v1392
    %2035 = vmatprep.subr.mxu0 0.0
    %2036 = vmatpush1.msra.mxu0 %v1389
    %2037 = vmatprep.subr.mxu0 0.0
    %2038 = vmatpush1.msra.mxu0 %v1386
    %2039 = vmatprep.subr.mxu0 0.0
    %2040 = vmatpush1.msra.mxu0 %v1383
    %2041 = vmatprep.subr.mxu0 0.0
    %2042 = vmatpush1.msra.mxu0 %v1380
    %2043 = vmatprep.subr.mxu0 0.0
    %2044 = vmatpush1.msra.mxu0 %v1377
    %2045 = vmatprep.subr.mxu0 0.0
    %2046 = vmatpush1.msra.mxu0 %v1374
    %2047 = vmatprep.subr.mxu0 0.0
    %2048 = vmatpush2.msra.mxu0 0.0
    %2049 = vmatprep.subr.mxu0 0.0
    %2050 = vmatpush2.msra.mxu0 0.0
    %2051 = vmatprep.subr.mxu0 0.0
    %2052 = vmatpush2.msra.mxu0 0.0
    %2053 = vmatprep.subr.mxu0 0.0
    %2054 = vmatpush2.msra.mxu0 0.0
    %2055 = vmatprep.subr.mxu0 0.0
    %2056 = vmatpush2.msra.mxu0 0.0
    %2057 = vmatprep.subr.mxu0 0.0
    %2058 = vmatpush2.msra.mxu0 0.0
    %2059 = vmatprep.subr.mxu0 0.0
    %2060 = vmatpush2.msra.mxu0 0.0
    %2061 = vmatprep.subr.mxu0 0.0
    %2062 = vmatpush2.msra.mxu0 0.0
    %2063 = vmatprep.subr.mxu0 0.0
    %2064 = vmatpush2.msra.mxu0 0.0
    %2065 = vmatprep.subr.mxu0 0.0
    %2066 = vmatpush2.msra.mxu0 0.0
    %2067 = vmatprep.subr.mxu0 0.0
    %2068 = vmatpush2.msra.mxu0 0.0
    %2069 = vmatprep.subr.mxu0 0.0
    %2070 = vmatpush2.msra.mxu0 0.0
    %2071 = vmatprep.subr.mxu0 0.0
    %2072 = vmatpush2.msra.mxu0 0.0
    %2073 = vmatprep.subr.mxu0 0.0
    %2074 = vmatpush2.msra.mxu0 0.0
    %2075 = vmatprep.subr.mxu0 0.0
    %2076 = vmatpush2.msra.mxu0 0.0
    %2077 = vmatprep.subr.mxu0 0.0
    %2078 = vmatpush2.msra.mxu0 0.0
    %2079 = vmatprep.mubr.f32.mxu0 0.0
    %2080 = vmatmul.mubr.f32.gmra.mxu0 %v1774
    %v2081 = vpop.f32.mrf.mxu0
    %v2082 = vadd.f32 0.0, %v2081
    %v2083 = vpop.f32.mrf.mxu0
    %2084 = vdwg.mxu0
    %s2085 = smul.u32 6, 3
    %s2086 = smul.addr %s2085, 8
    %s2087 = scalar_lea.vmem [#allocation3], %s2086
    %v2088 = vld [vmem:[%s2087] sm:$0xff]
    %v2089 = vld [vmem:[%s2087 + $0x8] sm:$0xff]
    %v2090 = vld [vmem:[%s2087 + $0x10] sm:$0xff]
    %v2091 = vadd.f32 %v2088, %v2011
    %v2092 = vxor.u32 %v2091, 2147483648
    %v2093 = vmul.f32 %v2092, 1.442695
    %v2094 = vpow.pop %v2093
    %v2095 = vadd.f32 %v2094, 1.0
    %v2096 = vrcp.pop %v2095
    %v2097 = vmul.f32 1.0, %v2096
    %v2098 = vadd.f32 %v2089, %v2013
    %v2099 = vxor.u32 %v2098, 2147483648
    %v2100 = vmul.f32 %v2099, 1.442695
    %v2101 = vpow.pop %v2100
    %v2102 = vadd.f32 %v2101, 1.0
    %v2103 = vrcp.pop %v2102
    %v2104 = vmul.f32 1.0, %v2103
    %v2105 = vadd.f32 %v2082, %v1765
    %v2106 = vmul.f32 %v2097, %v2105
    %v2107 = vadd.f32 %v2090, %v2106
    %v2108 = vtanh.pop %v2107
    %v2109 = vsub.f32 1.0, %v2104
    %v2110 = vmul.f32 %v2109, %v2108
    %v2111 = vmul.f32 %v2104, %v1774
    %v2112 = vadd.f32 %v2110, %v2111
    %2113 = vmatprep.subr.mxu0 %v1369
    %2114 = vmatpush1.msra.mxu0 %v1368
    %2115 = vmatprep.subr.mxu0 %v1366
    %2116 = vmatpush1.msra.mxu0 %v1365
    %2117 = vmatprep.subr.mxu0 %v1363
    %2118 = vmatpush1.msra.mxu0 %v1362
    %2119 = vmatprep.subr.mxu0 %v1360
    %2120 = vmatpush1.msra.mxu0 %v1359
    %2121 = vmatprep.subr.mxu0 %v1357
    %2122 = vmatpush1.msra.mxu0 %v1356
    %2123 = vmatprep.subr.mxu0 %v1354
    %2124 = vmatpush1.msra.mxu0 %v1353
    %2125 = vmatprep.subr.mxu0 %v1351
    %2126 = vmatpush1.msra.mxu0 %v1350
    %2127 = vmatprep.subr.mxu0 %v1348
    %2128 = vmatpush1.msra.mxu0 %v1347
    %2129 = vmatprep.subr.mxu0 %v1345
    %2130 = vmatpush1.msra.mxu0 %v1344
    %2131 = vmatprep.subr.mxu0 %v1342
    %2132 = vmatpush1.msra.mxu0 %v1341
    %2133 = vmatprep.subr.mxu0 %v1339
    %2134 = vmatpush1.msra.mxu0 %v1338
    %2135 = vmatprep.subr.mxu0 %v1336
    %2136 = vmatpush1.msra.mxu0 %v1335
    %2137 = vmatprep.subr.mxu0 %v1333
    %2138 = vmatpush1.msra.mxu0 %v1332
    %2139 = vmatprep.subr.mxu0 %v1330
    %2140 = vmatpush1.msra.mxu0 %v1329
    %2141 = vmatprep.subr.mxu0 %v1327
    %2142 = vmatpush1.msra.mxu0 %v1326
    %2143 = vmatprep.subr.mxu0 %v1324
    %2144 = vmatpush1.msra.mxu0 %v1323
    %2145 = vmatprep.subr.mxu0 0.0
    %2146 = vmatpush2.msra.mxu0 0.0
    %2147 = vmatprep.subr.mxu0 0.0
    %2148 = vmatpush2.msra.mxu0 0.0
    %2149 = vmatprep.subr.mxu0 0.0
    %2150 = vmatpush2.msra.mxu0 0.0
    %2151 = vmatprep.subr.mxu0 0.0
    %2152 = vmatpush2.msra.mxu0 0.0
    %2153 = vmatprep.subr.mxu0 0.0
    %2154 = vmatpush2.msra.mxu0 0.0
    %2155 = vmatprep.subr.mxu0 0.0
    %2156 = vmatpush2.msra.mxu0 0.0
    %2157 = vmatprep.subr.mxu0 0.0
    %2158 = vmatpush2.msra.mxu0 0.0
    %2159 = vmatprep.subr.mxu0 0.0
    %2160 = vmatpush2.msra.mxu0 0.0
    %2161 = vmatprep.subr.mxu0 0.0
    %2162 = vmatpush2.msra.mxu0 0.0
    %2163 = vmatprep.subr.mxu0 0.0
    %2164 = vmatpush2.msra.mxu0 0.0
    %2165 = vmatprep.subr.mxu0 0.0
    %2166 = vmatpush2.msra.mxu0 0.0
    %2167 = vmatprep.subr.mxu0 0.0
    %2168 = vmatpush2.msra.mxu0 0.0
    %2169 = vmatprep.subr.mxu0 0.0
    %2170 = vmatpush2.msra.mxu0 0.0
    %2171 = vmatprep.subr.mxu0 0.0
    %2172 = vmatpush2.msra.mxu0 0.0
    %2173 = vmatprep.subr.mxu0 0.0
    %2174 = vmatpush2.msra.mxu0 0.0
    %2175 = vmatprep.subr.mxu0 0.0
    %2176 = vmatpush2.msra.mxu0 0.0
    %2177 = vmatprep.mubr.f32.mxu0 0.0
    %2178 = vmatmul.mubr.f32.gmra.mxu0 %v1943
    %v2179 = vpop.f32.mrf.mxu0
    %v2180 = vadd.f32 0.0, %v2179
    %v2181 = vpop.f32.mrf.mxu0
    %v2182 = vadd.f32 0.0, %v2181
    %2183 = vdwg.mxu0
    %2184 = vmatprep.subr.mxu0 0.0
    %2185 = vmatpush1.msra.mxu0 %v1370
    %2186 = vmatprep.subr.mxu0 0.0
    %2187 = vmatpush1.msra.mxu0 %v1367
    %2188 = vmatprep.subr.mxu0 0.0
    %2189 = vmatpush1.msra.mxu0 %v1364
    %2190 = vmatprep.subr.mxu0 0.0
    %2191 = vmatpush1.msra.mxu0 %v1361
    %2192 = vmatprep.subr.mxu0 0.0
    %2193 = vmatpush1.msra.mxu0 %v1358
    %2194 = vmatprep.subr.mxu0 0.0
    %2195 = vmatpush1.msra.mxu0 %v1355
    %2196 = vmatprep.subr.mxu0 0.0
    %2197 = vmatpush1.msra.mxu0 %v1352
    %2198 = vmatprep.subr.mxu0 0.0
    %2199 = vmatpush1.msra.mxu0 %v1349
    %2200 = vmatprep.subr.mxu0 0.0
    %2201 = vmatpush1.msra.mxu0 %v1346
    %2202 = vmatprep.subr.mxu0 0.0
    %2203 = vmatpush1.msra.mxu0 %v1343
    %2204 = vmatprep.subr.mxu0 0.0
    %2205 = vmatpush1.msra.mxu0 %v1340
    %2206 = vmatprep.subr.mxu0 0.0
    %2207 = vmatpush1.msra.mxu0 %v1337
    %2208 = vmatprep.subr.mxu0 0.0
    %2209 = vmatpush1.msra.mxu0 %v1334
    %2210 = vmatprep.subr.mxu0 0.0
    %2211 = vmatpush1.msra.mxu0 %v1331
    %2212 = vmatprep.subr.mxu0 0.0
    %2213 = vmatpush1.msra.mxu0 %v1328
    %2214 = vmatprep.subr.mxu0 0.0
    %2215 = vmatpush1.msra.mxu0 %v1325
    %2216 = vmatprep.subr.mxu0 0.0
    %2217 = vmatpush2.msra.mxu0 0.0
    %2218 = vmatprep.subr.mxu0 0.0
    %2219 = vmatpush2.msra.mxu0 0.0
    %2220 = vmatprep.subr.mxu0 0.0
    %2221 = vmatpush2.msra.mxu0 0.0
    %2222 = vmatprep.subr.mxu0 0.0
    %2223 = vmatpush2.msra.mxu0 0.0
    %2224 = vmatprep.subr.mxu0 0.0
    %2225 = vmatpush2.msra.mxu0 0.0
    %2226 = vmatprep.subr.mxu0 0.0
    %2227 = vmatpush2.msra.mxu0 0.0
    %2228 = vmatprep.subr.mxu0 0.0
    %2229 = vmatpush2.msra.mxu0 0.0
    %2230 = vmatprep.subr.mxu0 0.0
    %2231 = vmatpush2.msra.mxu0 0.0
    %2232 = vmatprep.subr.mxu0 0.0
    %2233 = vmatpush2.msra.mxu0 0.0
    %2234 = vmatprep.subr.mxu0 0.0
    %2235 = vmatpush2.msra.mxu0 0.0
    %2236 = vmatprep.subr.mxu0 0.0
    %2237 = vmatpush2.msra.mxu0 0.0
    %2238 = vmatprep.subr.mxu0 0.0
    %2239 = vmatpush2.msra.mxu0 0.0
    %2240 = vmatprep.subr.mxu0 0.0
    %2241 = vmatpush2.msra.mxu0 0.0
    %2242 = vmatprep.subr.mxu0 0.0
    %2243 = vmatpush2.msra.mxu0 0.0
    %2244 = vmatprep.subr.mxu0 0.0
    %2245 = vmatpush2.msra.mxu0 0.0
    %2246 = vmatprep.subr.mxu0 0.0
    %2247 = vmatpush2.msra.mxu0 0.0
    %2248 = vmatprep.mubr.f32.mxu0 0.0
    %2249 = vmatmul.mubr.f32.gmra.mxu0 %v1943
    %v2250 = vpop.f32.mrf.mxu0
    %v2251 = vadd.f32 0.0, %v2250
    %v2252 = vpop.f32.mrf.mxu0
    %2253 = vdwg.mxu0
    %s2254 = smul.u32 2, 3
    %s2255 = smul.addr %s2254, 8
    %s2256 = scalar_lea.vmem [#allocation2], %s2255
    %v2257 = vld [vmem:[%s2256] sm:$0xff]
    %v2258 = vld [vmem:[%s2256 + $0x8] sm:$0xff]
    %v2259 = vld [vmem:[%s2256 + $0x10] sm:$0xff]
    %v2260 = vadd.f32 %v2257, %v2180
    %v2261 = vxor.u32 %v2260, 2147483648
    %v2262 = vmul.f32 %v2261, 1.442695
    %v2263 = vpow.pop %v2262
    %v2264 = vadd.f32 %v2263, 1.0
    %v2265 = vrcp.pop %v2264
    %v2266 = vmul.f32 1.0, %v2265
    %v2267 = vadd.f32 %v2258, %v2182
    %v2268 = vxor.u32 %v2267, 2147483648
    %v2269 = vmul.f32 %v2268, 1.442695
    %v2270 = vpow.pop %v2269
    %v2271 = vadd.f32 %v2270, 1.0
    %v2272 = vrcp.pop %v2271
    %v2273 = vmul.f32 1.0, %v2272
    %v2274 = vadd.f32 %v2251, %v1590
    %v2275 = vmul.f32 %v2266, %v2274
    %v2276 = vadd.f32 %v2259, %v2275
    %v2277 = vtanh.pop %v2276
    %v2278 = vsub.f32 1.0, %v2273
    %v2279 = vmul.f32 %v2278, %v2277
    %v2280 = vmul.f32 %v2273, %v1943
    %v2281 = vadd.f32 %v2279, %v2280
    %2282 = vmatprep.subr.mxu0 %v1418
    %2283 = vmatpush1.msra.mxu0 %v1417
    %2284 = vmatprep.subr.mxu0 %v1415
    %2285 = vmatpush1.msra.mxu0 %v1414
    %2286 = vmatprep.subr.mxu0 %v1412
    %2287 = vmatpush1.msra.mxu0 %v1411
    %2288 = vmatprep.subr.mxu0 %v1409
    %2289 = vmatpush1.msra.mxu0 %v1408
    %2290 = vmatprep.subr.mxu0 %v1406
    %2291 = vmatpush1.msra.mxu0 %v1405
    %2292 = vmatprep.subr.mxu0 %v1403
    %2293 = vmatpush1.msra.mxu0 %v1402
    %2294 = vmatprep.subr.mxu0 %v1400
    %2295 = vmatpush1.msra.mxu0 %v1399
    %2296 = vmatprep.subr.mxu0 %v1397
    %2297 = vmatpush1.msra.mxu0 %v1396
    %2298 = vmatprep.subr.mxu0 %v1394
    %2299 = vmatpush1.msra.mxu0 %v1393
    %2300 = vmatprep.subr.mxu0 %v1391
    %2301 = vmatpush1.msra.mxu0 %v1390
    %2302 = vmatprep.subr.mxu0 %v1388
    %2303 = vmatpush1.msra.mxu0 %v1387
    %2304 = vmatprep.subr.mxu0 %v1385
    %2305 = vmatpush1.msra.mxu0 %v1384
    %2306 = vmatprep.subr.mxu0 %v1382
    %2307 = vmatpush1.msra.mxu0 %v1381
    %2308 = vmatprep.subr.mxu0 %v1379
    %2309 = vmatpush1.msra.mxu0 %v1378
    %2310 = vmatprep.subr.mxu0 %v1376
    %2311 = vmatpush1.msra.mxu0 %v1375
    %2312 = vmatprep.subr.mxu0 %v1373
    %2313 = vmatpush1.msra.mxu0 %v1372
    %2314 = vmatprep.subr.mxu0 0.0
    %2315 = vmatpush2.msra.mxu0 0.0
    %2316 = vmatprep.subr.mxu0 0.0
    %2317 = vmatpush2.msra.mxu0 0.0
    %2318 = vmatprep.subr.mxu0 0.0
    %2319 = vmatpush2.msra.mxu0 0.0
    %2320 = vmatprep.subr.mxu0 0.0
    %2321 = vmatpush2.msra.mxu0 0.0
    %2322 = vmatprep.subr.mxu0 0.0
    %2323 = vmatpush2.msra.mxu0 0.0
    %2324 = vmatprep.subr.mxu0 0.0
    %2325 = vmatpush2.msra.mxu0 0.0
    %2326 = vmatprep.subr.mxu0 0.0
    %2327 = vmatpush2.msra.mxu0 0.0
    %2328 = vmatprep.subr.mxu0 0.0
    %2329 = vmatpush2.msra.mxu0 0.0
    %2330 = vmatprep.subr.mxu0 0.0
    %2331 = vmatpush2.msra.mxu0 0.0
    %2332 = vmatprep.subr.mxu0 0.0
    %2333 = vmatpush2.msra.mxu0 0.0
    %2334 = vmatprep.subr.mxu0 0.0
    %2335 = vmatpush2.msra.mxu0 0.0
    %2336 = vmatprep.subr.mxu0 0.0
    %2337 = vmatpush2.msra.mxu0 0.0
    %2338 = vmatprep.subr.mxu0 0.0
    %2339 = vmatpush2.msra.mxu0 0.0
    %2340 = vmatprep.subr.mxu0 0.0
    %2341 = vmatpush2.msra.mxu0 0.0
    %2342 = vmatprep.subr.mxu0 0.0
    %2343 = vmatpush2.msra.mxu0 0.0
    %2344 = vmatprep.subr.mxu0 0.0
    %2345 = vmatpush2.msra.mxu0 0.0
    %2346 = vmatprep.mubr.f32.mxu0 0.0
    %2347 = vmatmul.mubr.f32.gmra.mxu0 %v2112
    %v2348 = vpop.f32.mrf.mxu0
    %v2349 = vadd.f32 0.0, %v2348
    %v2350 = vpop.f32.mrf.mxu0
    %v2351 = vadd.f32 0.0, %v2350
    %2352 = vdwg.mxu0
    %2353 = vmatprep.subr.mxu0 0.0
    %2354 = vmatpush1.msra.mxu0 %v1419
    %2355 = vmatprep.subr.mxu0 0.0
    %2356 = vmatpush1.msra.mxu0 %v1416
    %2357 = vmatprep.subr.mxu0 0.0
    %2358 = vmatpush1.msra.mxu0 %v1413
    %2359 = vmatprep.subr.mxu0 0.0
    %2360 = vmatpush1.msra.mxu0 %v1410
    %2361 = vmatprep.subr.mxu0 0.0
    %2362 = vmatpush1.msra.mxu0 %v1407
    %2363 = vmatprep.subr.mxu0 0.0
    %2364 = vmatpush1.msra.mxu0 %v1404
    %2365 = vmatprep.subr.mxu0 0.0
    %2366 = vmatpush1.msra.mxu0 %v1401
    %2367 = vmatprep.subr.mxu0 0.0
    %2368 = vmatpush1.msra.mxu0 %v1398
    %2369 = vmatprep.subr.mxu0 0.0
    %2370 = vmatpush1.msra.mxu0 %v1395
    %2371 = vmatprep.subr.mxu0 0.0
    %2372 = vmatpush1.msra.mxu0 %v1392
    %2373 = vmatprep.subr.mxu0 0.0
    %2374 = vmatpush1.msra.mxu0 %v1389
    %2375 = vmatprep.subr.mxu0 0.0
    %2376 = vmatpush1.msra.mxu0 %v1386
    %2377 = vmatprep.subr.mxu0 0.0
    %2378 = vmatpush1.msra.mxu0 %v1383
    %2379 = vmatprep.subr.mxu0 0.0
    %2380 = vmatpush1.msra.mxu0 %v1380
    %2381 = vmatprep.subr.mxu0 0.0
    %2382 = vmatpush1.msra.mxu0 %v1377
    %2383 = vmatprep.subr.mxu0 0.0
    %2384 = vmatpush1.msra.mxu0 %v1374
    %2385 = vmatprep.subr.mxu0 0.0
    %2386 = vmatpush2.msra.mxu0 0.0
    %2387 = vmatprep.subr.mxu0 0.0
    %2388 = vmatpush2.msra.mxu0 0.0
    %2389 = vmatprep.subr.mxu0 0.0
    %2390 = vmatpush2.msra.mxu0 0.0
    %2391 = vmatprep.subr.mxu0 0.0
    %2392 = vmatpush2.msra.mxu0 0.0
    %2393 = vmatprep.subr.mxu0 0.0
    %2394 = vmatpush2.msra.mxu0 0.0
    %2395 = vmatprep.subr.mxu0 0.0
    %2396 = vmatpush2.msra.mxu0 0.0
    %2397 = vmatprep.subr.mxu0 0.0
    %2398 = vmatpush2.msra.mxu0 0.0
    %2399 = vmatprep.subr.mxu0 0.0
    %2400 = vmatpush2.msra.mxu0 0.0
    %2401 = vmatprep.subr.mxu0 0.0
    %2402 = vmatpush2.msra.mxu0 0.0
    %2403 = vmatprep.subr.mxu0 0.0
    %2404 = vmatpush2.msra.mxu0 0.0
    %2405 = vmatprep.subr.mxu0 0.0
    %2406 = vmatpush2.msra.mxu0 0.0
    %2407 = vmatprep.subr.mxu0 0.0
    %2408 = vmatpush2.msra.mxu0 0.0
    %2409 = vmatprep.subr.mxu0 0.0
    %2410 = vmatpush2.msra.mxu0 0.0
    %2411 = vmatprep.subr.mxu0 0.0
    %2412 = vmatpush2.msra.mxu0 0.0
    %2413 = vmatprep.subr.mxu0 0.0
    %2414 = vmatpush2.msra.mxu0 0.0
    %2415 = vmatprep.subr.mxu0 0.0
    %2416 = vmatpush2.msra.mxu0 0.0
    %2417 = vmatprep.mubr.f32.mxu0 0.0
    %2418 = vmatmul.mubr.f32.gmra.mxu0 %v2112
    %v2419 = vpop.f32.mrf.mxu0
    %v2420 = vadd.f32 0.0, %v2419
    %v2421 = vpop.f32.mrf.mxu0
    %2422 = vdwg.mxu0
    %s2423 = smul.u32 5, 3
    %s2424 = smul.addr %s2423, 8
    %s2425 = scalar_lea.vmem [#allocation3], %s2424
    %v2426 = vld [vmem:[%s2425] sm:$0xff]
    %v2427 = vld [vmem:[%s2425 + $0x8] sm:$0xff]
    %v2428 = vld [vmem:[%s2425 + $0x10] sm:$0xff]
    %v2429 = vadd.f32 %v2426, %v2349
    %v2430 = vxor.u32 %v2429, 2147483648
    %v2431 = vmul.f32 %v2430, 1.442695
    %v2432 = vpow.pop %v2431
    %v2433 = vadd.f32 %v2432, 1.0
    %v2434 = vrcp.pop %v2433
    %v2435 = vmul.f32 1.0, %v2434
    %v2436 = vadd.f32 %v2427, %v2351
    %v2437 = vxor.u32 %v2436, 2147483648
    %v2438 = vmul.f32 %v2437, 1.442695
    %v2439 = vpow.pop %v2438
    %v2440 = vadd.f32 %v2439, 1.0
    %v2441 = vrcp.pop %v2440
    %v2442 = vmul.f32 1.0, %v2441
    %v2443 = vadd.f32 %v2420, %v1765
    %v2444 = vmul.f32 %v2435, %v2443
    %v2445 = vadd.f32 %v2428, %v2444
    %v2446 = vtanh.pop %v2445
    %v2447 = vsub.f32 1.0, %v2442
    %v2448 = vmul.f32 %v2447, %v2446
    %v2449 = vmul.f32 %v2442, %v2112
    %v2450 = vadd.f32 %v2448, %v2449
    %2451 = vmatprep.subr.mxu0 %v1369
    %2452 = vmatpush1.msra.mxu0 %v1368
    %2453 = vmatprep.subr.mxu0 %v1366
    %2454 = vmatpush1.msra.mxu0 %v1365
    %2455 = vmatprep.subr.mxu0 %v1363
    %2456 = vmatpush1.msra.mxu0 %v1362
    %2457 = vmatprep.subr.mxu0 %v1360
    %2458 = vmatpush1.msra.mxu0 %v1359
    %2459 = vmatprep.subr.mxu0 %v1357
    %2460 = vmatpush1.msra.mxu0 %v1356
    %2461 = vmatprep.subr.mxu0 %v1354
    %2462 = vmatpush1.msra.mxu0 %v1353
    %2463 = vmatprep.subr.mxu0 %v1351
    %2464 = vmatpush1.msra.mxu0 %v1350
    %2465 = vmatprep.subr.mxu0 %v1348
    %2466 = vmatpush1.msra.mxu0 %v1347
    %2467 = vmatprep.subr.mxu0 %v1345
    %2468 = vmatpush1.msra.mxu0 %v1344
    %2469 = vmatprep.subr.mxu0 %v1342
    %2470 = vmatpush1.msra.mxu0 %v1341
    %2471 = vmatprep.subr.mxu0 %v1339
    %2472 = vmatpush1.msra.mxu0 %v1338
    %2473 = vmatprep.subr.mxu0 %v1336
    %2474 = vmatpush1.msra.mxu0 %v1335
    %2475 = vmatprep.subr.mxu0 %v1333
    %2476 = vmatpush1.msra.mxu0 %v1332
    %2477 = vmatprep.subr.mxu0 %v1330
    %2478 = vmatpush1.msra.mxu0 %v1329
    %2479 = vmatprep.subr.mxu0 %v1327
    %2480 = vmatpush1.msra.mxu0 %v1326
    %2481 = vmatprep.subr.mxu0 %v1324
    %2482 = vmatpush1.msra.mxu0 %v1323
    %2483 = vmatprep.subr.mxu0 0.0
    %2484 = vmatpush2.msra.mxu0 0.0
    %2485 = vmatprep.subr.mxu0 0.0
    %2486 = vmatpush2.msra.mxu0 0.0
    %2487 = vmatprep.subr.mxu0 0.0
    %2488 = vmatpush2.msra.mxu0 0.0
    %2489 = vmatprep.subr.mxu0 0.0
    %2490 = vmatpush2.msra.mxu0 0.0
    %2491 = vmatprep.subr.mxu0 0.0
    %2492 = vmatpush2.msra.mxu0 0.0
    %2493 = vmatprep.subr.mxu0 0.0
    %2494 = vmatpush2.msra.mxu0 0.0
    %2495 = vmatprep.subr.mxu0 0.0
    %2496 = vmatpush2.msra.mxu0 0.0
    %2497 = vmatprep.subr.mxu0 0.0
    %2498 = vmatpush2.msra.mxu0 0.0
    %2499 = vmatprep.subr.mxu0 0.0
    %2500 = vmatpush2.msra.mxu0 0.0
    %2501 = vmatprep.subr.mxu0 0.0
    %2502 = vmatpush2.msra.mxu0 0.0
    %2503 = vmatprep.subr.mxu0 0.0
    %2504 = vmatpush2.msra.mxu0 0.0
    %2505 = vmatprep.subr.mxu0 0.0
    %2506 = vmatpush2.msra.mxu0 0.0
    %2507 = vmatprep.subr.mxu0 0.0
    %2508 = vmatpush2.msra.mxu0 0.0
    %2509 = vmatprep.subr.mxu0 0.0
    %2510 = vmatpush2.msra.mxu0 0.0
    %2511 = vmatprep.subr.mxu0 0.0
    %2512 = vmatpush2.msra.mxu0 0.0
    %2513 = vmatprep.subr.mxu0 0.0
    %2514 = vmatpush2.msra.mxu0 0.0
    %2515 = vmatprep.mubr.f32.mxu0 0.0
    %2516 = vmatmul.mubr.f32.gmra.mxu0 %v2281
    %v2517 = vpop.f32.mrf.mxu0
    %v2518 = vadd.f32 0.0, %v2517
    %v2519 = vpop.f32.mrf.mxu0
    %v2520 = vadd.f32 0.0, %v2519
    %2521 = vdwg.mxu0
    %2522 = vmatprep.subr.mxu0 0.0
    %2523 = vmatpush1.msra.mxu0 %v1370
    %2524 = vmatprep.subr.mxu0 0.0
    %2525 = vmatpush1.msra.mxu0 %v1367
    %2526 = vmatprep.subr.mxu0 0.0
    %2527 = vmatpush1.msra.mxu0 %v1364
    %2528 = vmatprep.subr.mxu0 0.0
    %2529 = vmatpush1.msra.mxu0 %v1361
    %2530 = vmatprep.subr.mxu0 0.0
    %2531 = vmatpush1.msra.mxu0 %v1358
    %2532 = vmatprep.subr.mxu0 0.0
    %2533 = vmatpush1.msra.mxu0 %v1355
    %2534 = vmatprep.subr.mxu0 0.0
    %2535 = vmatpush1.msra.mxu0 %v1352
    %2536 = vmatprep.subr.mxu0 0.0
    %2537 = vmatpush1.msra.mxu0 %v1349
    %2538 = vmatprep.subr.mxu0 0.0
    %2539 = vmatpush1.msra.mxu0 %v1346
    %2540 = vmatprep.subr.mxu0 0.0
    %2541 = vmatpush1.msra.mxu0 %v1343
    %2542 = vmatprep.subr.mxu0 0.0
    %2543 = vmatpush1.msra.mxu0 %v1340
    %2544 = vmatprep.subr.mxu0 0.0
    %2545 = vmatpush1.msra.mxu0 %v1337
    %2546 = vmatprep.subr.mxu0 0.0
    %2547 = vmatpush1.msra.mxu0 %v1334
    %2548 = vmatprep.subr.mxu0 0.0
    %2549 = vmatpush1.msra.mxu0 %v1331
    %2550 = vmatprep.subr.mxu0 0.0
    %2551 = vmatpush1.msra.mxu0 %v1328
    %2552 = vmatprep.subr.mxu0 0.0
    %2553 = vmatpush1.msra.mxu0 %v1325
    %2554 = vmatprep.subr.mxu0 0.0
    %2555 = vmatpush2.msra.mxu0 0.0
    %2556 = vmatprep.subr.mxu0 0.0
    %2557 = vmatpush2.msra.mxu0 0.0
    %2558 = vmatprep.subr.mxu0 0.0
    %2559 = vmatpush2.msra.mxu0 0.0
    %2560 = vmatprep.subr.mxu0 0.0
    %2561 = vmatpush2.msra.mxu0 0.0
    %2562 = vmatprep.subr.mxu0 0.0
    %2563 = vmatpush2.msra.mxu0 0.0
    %2564 = vmatprep.subr.mxu0 0.0
    %2565 = vmatpush2.msra.mxu0 0.0
    %2566 = vmatprep.subr.mxu0 0.0
    %2567 = vmatpush2.msra.mxu0 0.0
    %2568 = vmatprep.subr.mxu0 0.0
    %2569 = vmatpush2.msra.mxu0 0.0
    %2570 = vmatprep.subr.mxu0 0.0
    %2571 = vmatpush2.msra.mxu0 0.0
    %2572 = vmatprep.subr.mxu0 0.0
    %2573 = vmatpush2.msra.mxu0 0.0
    %2574 = vmatprep.subr.mxu0 0.0
    %2575 = vmatpush2.msra.mxu0 0.0
    %2576 = vmatprep.subr.mxu0 0.0
    %2577 = vmatpush2.msra.mxu0 0.0
    %2578 = vmatprep.subr.mxu0 0.0
    %2579 = vmatpush2.msra.mxu0 0.0
    %2580 = vmatprep.subr.mxu0 0.0
    %2581 = vmatpush2.msra.mxu0 0.0
    %2582 = vmatprep.subr.mxu0 0.0
    %2583 = vmatpush2.msra.mxu0 0.0
    %2584 = vmatprep.subr.mxu0 0.0
    %2585 = vmatpush2.msra.mxu0 0.0
    %2586 = vmatprep.mubr.f32.mxu0 0.0
    %2587 = vmatmul.mubr.f32.gmra.mxu0 %v2281
    %v2588 = vpop.f32.mrf.mxu0
    %v2589 = vadd.f32 0.0, %v2588
    %v2590 = vpop.f32.mrf.mxu0
    %2591 = vdwg.mxu0
    %s2592 = smul.u32 3, 3
    %s2593 = smul.addr %s2592, 8
    %s2594 = scalar_lea.vmem [#allocation2], %s2593
    %v2595 = vld [vmem:[%s2594] sm:$0xff]
    %v2596 = vld [vmem:[%s2594 + $0x8] sm:$0xff]
    %v2597 = vld [vmem:[%s2594 + $0x10] sm:$0xff]
    %v2598 = vadd.f32 %v2595, %v2518
    %v2599 = vxor.u32 %v2598, 2147483648
    %v2600 = vmul.f32 %v2599, 1.442695
    %v2601 = vpow.pop %v2600
    %v2602 = vadd.f32 %v2601, 1.0
    %v2603 = vrcp.pop %v2602
    %v2604 = vmul.f32 1.0, %v2603
    %v2605 = vadd.f32 %v2596, %v2520
    %v2606 = vxor.u32 %v2605, 2147483648
    %v2607 = vmul.f32 %v2606, 1.442695
    %v2608 = vpow.pop %v2607
    %v2609 = vadd.f32 %v2608, 1.0
    %v2610 = vrcp.pop %v2609
    %v2611 = vmul.f32 1.0, %v2610
    %v2612 = vadd.f32 %v2589, %v1590
    %v2613 = vmul.f32 %v2604, %v2612
    %v2614 = vadd.f32 %v2597, %v2613
    %v2615 = vtanh.pop %v2614
    %v2616 = vsub.f32 1.0, %v2611
    %v2617 = vmul.f32 %v2616, %v2615
    %v2618 = vmul.f32 %v2611, %v2281
    %v2619 = vadd.f32 %v2617, %v2618
    %2620 = vmatprep.subr.mxu0 %v1418
    %2621 = vmatpush1.msra.mxu0 %v1417
    %2622 = vmatprep.subr.mxu0 %v1415
    %2623 = vmatpush1.msra.mxu0 %v1414
    %2624 = vmatprep.subr.mxu0 %v1412
    %2625 = vmatpush1.msra.mxu0 %v1411
    %2626 = vmatprep.subr.mxu0 %v1409
    %2627 = vmatpush1.msra.mxu0 %v1408
    %2628 = vmatprep.subr.mxu0 %v1406
    %2629 = vmatpush1.msra.mxu0 %v1405
    %2630 = vmatprep.subr.mxu0 %v1403
    %2631 = vmatpush1.msra.mxu0 %v1402
    %2632 = vmatprep.subr.mxu0 %v1400
    %2633 = vmatpush1.msra.mxu0 %v1399
    %2634 = vmatprep.subr.mxu0 %v1397
    %2635 = vmatpush1.msra.mxu0 %v1396
    %2636 = vmatprep.subr.mxu0 %v1394
    %2637 = vmatpush1.msra.mxu0 %v1393
    %2638 = vmatprep.subr.mxu0 %v1391
    %2639 = vmatpush1.msra.mxu0 %v1390
    %2640 = vmatprep.subr.mxu0 %v1388
    %2641 = vmatpush1.msra.mxu0 %v1387
    %2642 = vmatprep.subr.mxu0 %v1385
    %2643 = vmatpush1.msra.mxu0 %v1384
    %2644 = vmatprep.subr.mxu0 %v1382
    %2645 = vmatpush1.msra.mxu0 %v1381
    %2646 = vmatprep.subr.mxu0 %v1379
    %2647 = vmatpush1.msra.mxu0 %v1378
    %2648 = vmatprep.subr.mxu0 %v1376
    %2649 = vmatpush1.msra.mxu0 %v1375
    %2650 = vmatprep.subr.mxu0 %v1373
    %2651 = vmatpush1.msra.mxu0 %v1372
    %2652 = vmatprep.subr.mxu0 0.0
    %2653 = vmatpush2.msra.mxu0 0.0
    %2654 = vmatprep.subr.mxu0 0.0
    %2655 = vmatpush2.msra.mxu0 0.0
    %2656 = vmatprep.subr.mxu0 0.0
    %2657 = vmatpush2.msra.mxu0 0.0
    %2658 = vmatprep.subr.mxu0 0.0
    %2659 = vmatpush2.msra.mxu0 0.0
    %2660 = vmatprep.subr.mxu0 0.0
    %2661 = vmatpush2.msra.mxu0 0.0
    %2662 = vmatprep.subr.mxu0 0.0
    %2663 = vmatpush2.msra.mxu0 0.0
    %2664 = vmatprep.subr.mxu0 0.0
    %2665 = vmatpush2.msra.mxu0 0.0
    %2666 = vmatprep.subr.mxu0 0.0
    %2667 = vmatpush2.msra.mxu0 0.0
    %2668 = vmatprep.subr.mxu0 0.0
    %2669 = vmatpush2.msra.mxu0 0.0
    %2670 = vmatprep.subr.mxu0 0.0
    %2671 = vmatpush2.msra.mxu0 0.0
    %2672 = vmatprep.subr.mxu0 0.0
    %2673 = vmatpush2.msra.mxu0 0.0
    %2674 = vmatprep.subr.mxu0 0.0
    %2675 = vmatpush2.msra.mxu0 0.0
    %2676 = vmatprep.subr.mxu0 0.0
    %2677 = vmatpush2.msra.mxu0 0.0
    %2678 = vmatprep.subr.mxu0 0.0
    %2679 = vmatpush2.msra.mxu0 0.0
    %2680 = vmatprep.subr.mxu0 0.0
    %2681 = vmatpush2.msra.mxu0 0.0
    %2682 = vmatprep.subr.mxu0 0.0
    %2683 = vmatpush2.msra.mxu0 0.0
    %2684 = vmatprep.mubr.f32.mxu0 0.0
    %2685 = vmatmul.mubr.f32.gmra.mxu0 %v2450
    %v2686 = vpop.f32.mrf.mxu0
    %v2687 = vadd.f32 0.0, %v2686
    %v2688 = vpop.f32.mrf.mxu0
    %v2689 = vadd.f32 0.0, %v2688
    %2690 = vdwg.mxu0
    %2691 = vmatprep.subr.mxu0 0.0
    %2692 = vmatpush1.msra.mxu0 %v1419
    %2693 = vmatprep.subr.mxu0 0.0
    %2694 = vmatpush1.msra.mxu0 %v1416
    %2695 = vmatprep.subr.mxu0 0.0
    %2696 = vmatpush1.msra.mxu0 %v1413
    %2697 = vmatprep.subr.mxu0 0.0
    %2698 = vmatpush1.msra.mxu0 %v1410
    %2699 = vmatprep.subr.mxu0 0.0
    %2700 = vmatpush1.msra.mxu0 %v1407
    %2701 = vmatprep.subr.mxu0 0.0
    %2702 = vmatpush1.msra.mxu0 %v1404
    %2703 = vmatprep.subr.mxu0 0.0
    %2704 = vmatpush1.msra.mxu0 %v1401
    %2705 = vmatprep.subr.mxu0 0.0
    %2706 = vmatpush1.msra.mxu0 %v1398
    %2707 = vmatprep.subr.mxu0 0.0
    %2708 = vmatpush1.msra.mxu0 %v1395
    %2709 = vmatprep.subr.mxu0 0.0
    %2710 = vmatpush1.msra.mxu0 %v1392
    %2711 = vmatprep.subr.mxu0 0.0
    %2712 = vmatpush1.msra.mxu0 %v1389
    %2713 = vmatprep.subr.mxu0 0.0
    %2714 = vmatpush1.msra.mxu0 %v1386
    %2715 = vmatprep.subr.mxu0 0.0
    %2716 = vmatpush1.msra.mxu0 %v1383
    %2717 = vmatprep.subr.mxu0 0.0
    %2718 = vmatpush1.msra.mxu0 %v1380
    %2719 = vmatprep.subr.mxu0 0.0
    %2720 = vmatpush1.msra.mxu0 %v1377
    %2721 = vmatprep.subr.mxu0 0.0
    %2722 = vmatpush1.msra.mxu0 %v1374
    %2723 = vmatprep.subr.mxu0 0.0
    %2724 = vmatpush2.msra.mxu0 0.0
    %2725 = vmatprep.subr.mxu0 0.0
    %2726 = vmatpush2.msra.mxu0 0.0
    %2727 = vmatprep.subr.mxu0 0.0
    %2728 = vmatpush2.msra.mxu0 0.0
    %2729 = vmatprep.subr.mxu0 0.0
    %2730 = vmatpush2.msra.mxu0 0.0
    %2731 = vmatprep.subr.mxu0 0.0
    %2732 = vmatpush2.msra.mxu0 0.0
    %2733 = vmatprep.subr.mxu0 0.0
    %2734 = vmatpush2.msra.mxu0 0.0
    %2735 = vmatprep.subr.mxu0 0.0
    %2736 = vmatpush2.msra.mxu0 0.0
    %2737 = vmatprep.subr.mxu0 0.0
    %2738 = vmatpush2.msra.mxu0 0.0
    %2739 = vmatprep.subr.mxu0 0.0
    %2740 = vmatpush2.msra.mxu0 0.0
    %2741 = vmatprep.subr.mxu0 0.0
    %2742 = vmatpush2.msra.mxu0 0.0
    %2743 = vmatprep.subr.mxu0 0.0
    %2744 = vmatpush2.msra.mxu0 0.0
    %2745 = vmatprep.subr.mxu0 0.0
    %2746 = vmatpush2.msra.mxu0 0.0
    %2747 = vmatprep.subr.mxu0 0.0
    %2748 = vmatpush2.msra.mxu0 0.0
    %2749 = vmatprep.subr.mxu0 0.0
    %2750 = vmatpush2.msra.mxu0 0.0
    %2751 = vmatprep.subr.mxu0 0.0
    %2752 = vmatpush2.msra.mxu0 0.0
    %2753 = vmatprep.subr.mxu0 0.0
    %2754 = vmatpush2.msra.mxu0 0.0
    %2755 = vmatprep.mubr.f32.mxu0 0.0
    %2756 = vmatmul.mubr.f32.gmra.mxu0 %v2450
    %v2757 = vpop.f32.mrf.mxu0
    %v2758 = vadd.f32 0.0, %v2757
    %v2759 = vpop.f32.mrf.mxu0
    %2760 = vdwg.mxu0
    %s2761 = smul.u32 4, 3
    %s2762 = smul.addr %s2761, 8
    %s2763 = scalar_lea.vmem [#allocation3], %s2762
    %v2764 = vld [vmem:[%s2763] sm:$0xff]
    %v2765 = vld [vmem:[%s2763 + $0x8] sm:$0xff]
    %v2766 = vld [vmem:[%s2763 + $0x10] sm:$0xff]
    %v2767 = vadd.f32 %v2764, %v2687
    %v2768 = vxor.u32 %v2767, 2147483648
    %v2769 = vmul.f32 %v2768, 1.442695
    %v2770 = vpow.pop %v2769
    %v2771 = vadd.f32 %v2770, 1.0
    %v2772 = vrcp.pop %v2771
    %v2773 = vmul.f32 1.0, %v2772
    %v2774 = vadd.f32 %v2765, %v2689
    %v2775 = vxor.u32 %v2774, 2147483648
    %v2776 = vmul.f32 %v2775, 1.442695
    %v2777 = vpow.pop %v2776
    %v2778 = vadd.f32 %v2777, 1.0
    %v2779 = vrcp.pop %v2778
    %v2780 = vmul.f32 1.0, %v2779
    %v2781 = vadd.f32 %v2758, %v1765
    %v2782 = vmul.f32 %v2773, %v2781
    %v2783 = vadd.f32 %v2766, %v2782
    %v2784 = vtanh.pop %v2783
    %v2785 = vsub.f32 1.0, %v2780
    %v2786 = vmul.f32 %v2785, %v2784
    %v2787 = vmul.f32 %v2780, %v2450
    %v2788 = vadd.f32 %v2786, %v2787
    %2789 = vmatprep.subr.mxu0 %v1369
    %2790 = vmatpush1.msra.mxu0 %v1368
    %2791 = vmatprep.subr.mxu0 %v1366
    %2792 = vmatpush1.msra.mxu0 %v1365
    %2793 = vmatprep.subr.mxu0 %v1363
    %2794 = vmatpush1.msra.mxu0 %v1362
    %2795 = vmatprep.subr.mxu0 %v1360
    %2796 = vmatpush1.msra.mxu0 %v1359
    %2797 = vmatprep.subr.mxu0 %v1357
    %2798 = vmatpush1.msra.mxu0 %v1356
    %2799 = vmatprep.subr.mxu0 %v1354
    %2800 = vmatpush1.msra.mxu0 %v1353
    %2801 = vmatprep.subr.mxu0 %v1351
    %2802 = vmatpush1.msra.mxu0 %v1350
    %2803 = vmatprep.subr.mxu0 %v1348
    %2804 = vmatpush1.msra.mxu0 %v1347
    %2805 = vmatprep.subr.mxu0 %v1345
    %2806 = vmatpush1.msra.mxu0 %v1344
    %2807 = vmatprep.subr.mxu0 %v1342
    %2808 = vmatpush1.msra.mxu0 %v1341
    %2809 = vmatprep.subr.mxu0 %v1339
    %2810 = vmatpush1.msra.mxu0 %v1338
    %2811 = vmatprep.subr.mxu0 %v1336
    %2812 = vmatpush1.msra.mxu0 %v1335
    %2813 = vmatprep.subr.mxu0 %v1333
    %2814 = vmatpush1.msra.mxu0 %v1332
    %2815 = vmatprep.subr.mxu0 %v1330
    %2816 = vmatpush1.msra.mxu0 %v1329
    %2817 = vmatprep.subr.mxu0 %v1327
    %2818 = vmatpush1.msra.mxu0 %v1326
    %2819 = vmatprep.subr.mxu0 %v1324
    %2820 = vmatpush1.msra.mxu0 %v1323
    %2821 = vmatprep.subr.mxu0 0.0
    %2822 = vmatpush2.msra.mxu0 0.0
    %2823 = vmatprep.subr.mxu0 0.0
    %2824 = vmatpush2.msra.mxu0 0.0
    %2825 = vmatprep.subr.mxu0 0.0
    %2826 = vmatpush2.msra.mxu0 0.0
    %2827 = vmatprep.subr.mxu0 0.0
    %2828 = vmatpush2.msra.mxu0 0.0
    %2829 = vmatprep.subr.mxu0 0.0
    %2830 = vmatpush2.msra.mxu0 0.0
    %2831 = vmatprep.subr.mxu0 0.0
    %2832 = vmatpush2.msra.mxu0 0.0
    %2833 = vmatprep.subr.mxu0 0.0
    %2834 = vmatpush2.msra.mxu0 0.0
    %2835 = vmatprep.subr.mxu0 0.0
    %2836 = vmatpush2.msra.mxu0 0.0
    %2837 = vmatprep.subr.mxu0 0.0
    %2838 = vmatpush2.msra.mxu0 0.0
    %2839 = vmatprep.subr.mxu0 0.0
    %2840 = vmatpush2.msra.mxu0 0.0
    %2841 = vmatprep.subr.mxu0 0.0
    %2842 = vmatpush2.msra.mxu0 0.0
    %2843 = vmatprep.subr.mxu0 0.0
    %2844 = vmatpush2.msra.mxu0 0.0
    %2845 = vmatprep.subr.mxu0 0.0
    %2846 = vmatpush2.msra.mxu0 0.0
    %2847 = vmatprep.subr.mxu0 0.0
    %2848 = vmatpush2.msra.mxu0 0.0
    %2849 = vmatprep.subr.mxu0 0.0
    %2850 = vmatpush2.msra.mxu0 0.0
    %2851 = vmatprep.subr.mxu0 0.0
    %2852 = vmatpush2.msra.mxu0 0.0
    %2853 = vmatprep.mubr.f32.mxu0 0.0
    %2854 = vmatmul.mubr.f32.gmra.mxu0 %v2619
    %v2855 = vpop.f32.mrf.mxu0
    %v2856 = vadd.f32 0.0, %v2855
    %v2857 = vpop.f32.mrf.mxu0
    %v2858 = vadd.f32 0.0, %v2857
    %2859 = vdwg.mxu0
    %2860 = vmatprep.subr.mxu0 0.0
    %2861 = vmatpush1.msra.mxu0 %v1370
    %2862 = vmatprep.subr.mxu0 0.0
    %2863 = vmatpush1.msra.mxu0 %v1367
    %2864 = vmatprep.subr.mxu0 0.0
    %2865 = vmatpush1.msra.mxu0 %v1364
    %2866 = vmatprep.subr.mxu0 0.0
    %2867 = vmatpush1.msra.mxu0 %v1361
    %2868 = vmatprep.subr.mxu0 0.0
    %2869 = vmatpush1.msra.mxu0 %v1358
    %2870 = vmatprep.subr.mxu0 0.0
    %2871 = vmatpush1.msra.mxu0 %v1355
    %2872 = vmatprep.subr.mxu0 0.0
    %2873 = vmatpush1.msra.mxu0 %v1352
    %2874 = vmatprep.subr.mxu0 0.0
    %2875 = vmatpush1.msra.mxu0 %v1349
    %2876 = vmatprep.subr.mxu0 0.0
    %2877 = vmatpush1.msra.mxu0 %v1346
    %2878 = vmatprep.subr.mxu0 0.0
    %2879 = vmatpush1.msra.mxu0 %v1343
    %2880 = vmatprep.subr.mxu0 0.0
    %2881 = vmatpush1.msra.mxu0 %v1340
    %2882 = vmatprep.subr.mxu0 0.0
    %2883 = vmatpush1.msra.mxu0 %v1337
    %2884 = vmatprep.subr.mxu0 0.0
    %2885 = vmatpush1.msra.mxu0 %v1334
    %2886 = vmatprep.subr.mxu0 0.0
    %2887 = vmatpush1.msra.mxu0 %v1331
    %2888 = vmatprep.subr.mxu0 0.0
    %2889 = vmatpush1.msra.mxu0 %v1328
    %2890 = vmatprep.subr.mxu0 0.0
    %2891 = vmatpush1.msra.mxu0 %v1325
    %2892 = vmatprep.subr.mxu0 0.0
    %2893 = vmatpush2.msra.mxu0 0.0
    %2894 = vmatprep.subr.mxu0 0.0
    %2895 = vmatpush2.msra.mxu0 0.0
    %2896 = vmatprep.subr.mxu0 0.0
    %2897 = vmatpush2.msra.mxu0 0.0
    %2898 = vmatprep.subr.mxu0 0.0
    %2899 = vmatpush2.msra.mxu0 0.0
    %2900 = vmatprep.subr.mxu0 0.0
    %2901 = vmatpush2.msra.mxu0 0.0
    %2902 = vmatprep.subr.mxu0 0.0
    %2903 = vmatpush2.msra.mxu0 0.0
    %2904 = vmatprep.subr.mxu0 0.0
    %2905 = vmatpush2.msra.mxu0 0.0
    %2906 = vmatprep.subr.mxu0 0.0
    %2907 = vmatpush2.msra.mxu0 0.0
    %2908 = vmatprep.subr.mxu0 0.0
    %2909 = vmatpush2.msra.mxu0 0.0
    %2910 = vmatprep.subr.mxu0 0.0
    %2911 = vmatpush2.msra.mxu0 0.0
    %2912 = vmatprep.subr.mxu0 0.0
    %2913 = vmatpush2.msra.mxu0 0.0
    %2914 = vmatprep.subr.mxu0 0.0
    %2915 = vmatpush2.msra.mxu0 0.0
    %2916 = vmatprep.subr.mxu0 0.0
    %2917 = vmatpush2.msra.mxu0 0.0
    %2918 = vmatprep.subr.mxu0 0.0
    %2919 = vmatpush2.msra.mxu0 0.0
    %2920 = vmatprep.subr.mxu0 0.0
    %2921 = vmatpush2.msra.mxu0 0.0
    %2922 = vmatprep.subr.mxu0 0.0
    %2923 = vmatpush2.msra.mxu0 0.0
    %2924 = vmatprep.mubr.f32.mxu0 0.0
    %2925 = vmatmul.mubr.f32.gmra.mxu0 %v2619
    %v2926 = vpop.f32.mrf.mxu0
    %v2927 = vadd.f32 0.0, %v2926
    %v2928 = vpop.f32.mrf.mxu0
    %2929 = vdwg.mxu0
    %s2930 = smul.addr %s2761, 8
    %s2931 = scalar_lea.vmem [#allocation2], %s2930
    %v2932 = vld [vmem:[%s2931] sm:$0xff]
    %v2933 = vld [vmem:[%s2931 + $0x8] sm:$0xff]
    %v2934 = vld [vmem:[%s2931 + $0x10] sm:$0xff]
    %v2935 = vadd.f32 %v2932, %v2856
    %v2936 = vxor.u32 %v2935, 2147483648
    %v2937 = vmul.f32 %v2936, 1.442695
    %v2938 = vpow.pop %v2937
    %v2939 = vadd.f32 %v2938, 1.0
    %v2940 = vrcp.pop %v2939
    %v2941 = vmul.f32 1.0, %v2940
    %v2942 = vadd.f32 %v2933, %v2858
    %v2943 = vxor.u32 %v2942, 2147483648
    %v2944 = vmul.f32 %v2943, 1.442695
    %v2945 = vpow.pop %v2944
    %v2946 = vadd.f32 %v2945, 1.0
    %v2947 = vrcp.pop %v2946
    %v2948 = vmul.f32 1.0, %v2947
    %v2949 = vadd.f32 %v2927, %v1590
    %v2950 = vmul.f32 %v2941, %v2949
    %v2951 = vadd.f32 %v2934, %v2950
    %v2952 = vtanh.pop %v2951
    %v2953 = vsub.f32 1.0, %v2948
    %v2954 = vmul.f32 %v2953, %v2952
    %v2955 = vmul.f32 %v2948, %v2619
    %v2956 = vadd.f32 %v2954, %v2955
    %2957 = vmatprep.subr.mxu0 %v1418
    %2958 = vmatpush1.msra.mxu0 %v1417
    %2959 = vmatprep.subr.mxu0 %v1415
    %2960 = vmatpush1.msra.mxu0 %v1414
    %2961 = vmatprep.subr.mxu0 %v1412
    %2962 = vmatpush1.msra.mxu0 %v1411
    %2963 = vmatprep.subr.mxu0 %v1409
    %2964 = vmatpush1.msra.mxu0 %v1408
    %2965 = vmatprep.subr.mxu0 %v1406
    %2966 = vmatpush1.msra.mxu0 %v1405
    %2967 = vmatprep.subr.mxu0 %v1403
    %2968 = vmatpush1.msra.mxu0 %v1402
    %2969 = vmatprep.subr.mxu0 %v1400
    %2970 = vmatpush1.msra.mxu0 %v1399
    %2971 = vmatprep.subr.mxu0 %v1397
    %2972 = vmatpush1.msra.mxu0 %v1396
    %2973 = vmatprep.subr.mxu0 %v1394
    %2974 = vmatpush1.msra.mxu0 %v1393
    %2975 = vmatprep.subr.mxu0 %v1391
    %2976 = vmatpush1.msra.mxu0 %v1390
    %2977 = vmatprep.subr.mxu0 %v1388
    %2978 = vmatpush1.msra.mxu0 %v1387
    %2979 = vmatprep.subr.mxu0 %v1385
    %2980 = vmatpush1.msra.mxu0 %v1384
    %2981 = vmatprep.subr.mxu0 %v1382
    %2982 = vmatpush1.msra.mxu0 %v1381
    %2983 = vmatprep.subr.mxu0 %v1379
    %2984 = vmatpush1.msra.mxu0 %v1378
    %2985 = vmatprep.subr.mxu0 %v1376
    %2986 = vmatpush1.msra.mxu0 %v1375
    %2987 = vmatprep.subr.mxu0 %v1373
    %2988 = vmatpush1.msra.mxu0 %v1372
    %2989 = vmatprep.subr.mxu0 0.0
    %2990 = vmatpush2.msra.mxu0 0.0
    %2991 = vmatprep.subr.mxu0 0.0
    %2992 = vmatpush2.msra.mxu0 0.0
    %2993 = vmatprep.subr.mxu0 0.0
    %2994 = vmatpush2.msra.mxu0 0.0
    %2995 = vmatprep.subr.mxu0 0.0
    %2996 = vmatpush2.msra.mxu0 0.0
    %2997 = vmatprep.subr.mxu0 0.0
    %2998 = vmatpush2.msra.mxu0 0.0
    %2999 = vmatprep.subr.mxu0 0.0
    %3000 = vmatpush2.msra.mxu0 0.0
    %3001 = vmatprep.subr.mxu0 0.0
    %3002 = vmatpush2.msra.mxu0 0.0
    %3003 = vmatprep.subr.mxu0 0.0
    %3004 = vmatpush2.msra.mxu0 0.0
    %3005 = vmatprep.subr.mxu0 0.0
    %3006 = vmatpush2.msra.mxu0 0.0
    %3007 = vmatprep.subr.mxu0 0.0
    %3008 = vmatpush2.msra.mxu0 0.0
    %3009 = vmatprep.subr.mxu0 0.0
    %3010 = vmatpush2.msra.mxu0 0.0
    %3011 = vmatprep.subr.mxu0 0.0
    %3012 = vmatpush2.msra.mxu0 0.0
    %3013 = vmatprep.subr.mxu0 0.0
    %3014 = vmatpush2.msra.mxu0 0.0
    %3015 = vmatprep.subr.mxu0 0.0
    %3016 = vmatpush2.msra.mxu0 0.0
    %3017 = vmatprep.subr.mxu0 0.0
    %3018 = vmatpush2.msra.mxu0 0.0
    %3019 = vmatprep.subr.mxu0 0.0
    %3020 = vmatpush2.msra.mxu0 0.0
    %3021 = vmatprep.mubr.f32.mxu0 0.0
    %3022 = vmatmul.mubr.f32.gmra.mxu0 %v2788
    %v3023 = vpop.f32.mrf.mxu0
    %v3024 = vadd.f32 0.0, %v3023
    %v3025 = vpop.f32.mrf.mxu0
    %v3026 = vadd.f32 0.0, %v3025
    %3027 = vdwg.mxu0
    %3028 = vmatprep.subr.mxu0 0.0
    %3029 = vmatpush1.msra.mxu0 %v1419
    %3030 = vmatprep.subr.mxu0 0.0
    %3031 = vmatpush1.msra.mxu0 %v1416
    %3032 = vmatprep.subr.mxu0 0.0
    %3033 = vmatpush1.msra.mxu0 %v1413
    %3034 = vmatprep.subr.mxu0 0.0
    %3035 = vmatpush1.msra.mxu0 %v1410
    %3036 = vmatprep.subr.mxu0 0.0
    %3037 = vmatpush1.msra.mxu0 %v1407
    %3038 = vmatprep.subr.mxu0 0.0
    %3039 = vmatpush1.msra.mxu0 %v1404
    %3040 = vmatprep.subr.mxu0 0.0
    %3041 = vmatpush1.msra.mxu0 %v1401
    %3042 = vmatprep.subr.mxu0 0.0
    %3043 = vmatpush1.msra.mxu0 %v1398
    %3044 = vmatprep.subr.mxu0 0.0
    %3045 = vmatpush1.msra.mxu0 %v1395
    %3046 = vmatprep.subr.mxu0 0.0
    %3047 = vmatpush1.msra.mxu0 %v1392
    %3048 = vmatprep.subr.mxu0 0.0
    %3049 = vmatpush1.msra.mxu0 %v1389
    %3050 = vmatprep.subr.mxu0 0.0
    %3051 = vmatpush1.msra.mxu0 %v1386
    %3052 = vmatprep.subr.mxu0 0.0
    %3053 = vmatpush1.msra.mxu0 %v1383
    %3054 = vmatprep.subr.mxu0 0.0
    %3055 = vmatpush1.msra.mxu0 %v1380
    %3056 = vmatprep.subr.mxu0 0.0
    %3057 = vmatpush1.msra.mxu0 %v1377
    %3058 = vmatprep.subr.mxu0 0.0
    %3059 = vmatpush1.msra.mxu0 %v1374
    %3060 = vmatprep.subr.mxu0 0.0
    %3061 = vmatpush2.msra.mxu0 0.0
    %3062 = vmatprep.subr.mxu0 0.0
    %3063 = vmatpush2.msra.mxu0 0.0
    %3064 = vmatprep.subr.mxu0 0.0
    %3065 = vmatpush2.msra.mxu0 0.0
    %3066 = vmatprep.subr.mxu0 0.0
    %3067 = vmatpush2.msra.mxu0 0.0
    %3068 = vmatprep.subr.mxu0 0.0
    %3069 = vmatpush2.msra.mxu0 0.0
    %3070 = vmatprep.subr.mxu0 0.0
    %3071 = vmatpush2.msra.mxu0 0.0
    %3072 = vmatprep.subr.mxu0 0.0
    %3073 = vmatpush2.msra.mxu0 0.0
    %3074 = vmatprep.subr.mxu0 0.0
    %3075 = vmatpush2.msra.mxu0 0.0
    %3076 = vmatprep.subr.mxu0 0.0
    %3077 = vmatpush2.msra.mxu0 0.0
    %3078 = vmatprep.subr.mxu0 0.0
    %3079 = vmatpush2.msra.mxu0 0.0
    %3080 = vmatprep.subr.mxu0 0.0
    %3081 = vmatpush2.msra.mxu0 0.0
    %3082 = vmatprep.subr.mxu0 0.0
    %3083 = vmatpush2.msra.mxu0 0.0
    %3084 = vmatprep.subr.mxu0 0.0
    %3085 = vmatpush2.msra.mxu0 0.0
    %3086 = vmatprep.subr.mxu0 0.0
    %3087 = vmatpush2.msra.mxu0 0.0
    %3088 = vmatprep.subr.mxu0 0.0
    %3089 = vmatpush2.msra.mxu0 0.0
    %3090 = vmatprep.subr.mxu0 0.0
    %3091 = vmatpush2.msra.mxu0 0.0
    %3092 = vmatprep.mubr.f32.mxu0 0.0
    %3093 = vmatmul.mubr.f32.gmra.mxu0 %v2788
    %v3094 = vpop.f32.mrf.mxu0
    %v3095 = vadd.f32 0.0, %v3094
    %v3096 = vpop.f32.mrf.mxu0
    %3097 = vdwg.mxu0
    %s3098 = smul.addr %s2592, 8
    %s3099 = scalar_lea.vmem [#allocation3], %s3098
    %v3100 = vld [vmem:[%s3099] sm:$0xff]
    %v3101 = vld [vmem:[%s3099 + $0x8] sm:$0xff]
    %v3102 = vld [vmem:[%s3099 + $0x10] sm:$0xff]
    %v3103 = vadd.f32 %v3100, %v3024
    %v3104 = vxor.u32 %v3103, 2147483648
    %v3105 = vmul.f32 %v3104, 1.442695
    %v3106 = vpow.pop %v3105
    %v3107 = vadd.f32 %v3106, 1.0
    %v3108 = vrcp.pop %v3107
    %v3109 = vmul.f32 1.0, %v3108
    %v3110 = vadd.f32 %v3101, %v3026
    %v3111 = vxor.u32 %v3110, 2147483648
    %v3112 = vmul.f32 %v3111, 1.442695
    %v3113 = vpow.pop %v3112
    %v3114 = vadd.f32 %v3113, 1.0
    %v3115 = vrcp.pop %v3114
    %v3116 = vmul.f32 1.0, %v3115
    %v3117 = vadd.f32 %v3095, %v1765
    %v3118 = vmul.f32 %v3109, %v3117
    %v3119 = vadd.f32 %v3102, %v3118
    %v3120 = vtanh.pop %v3119
    %v3121 = vsub.f32 1.0, %v3116
    %v3122 = vmul.f32 %v3121, %v3120
    %v3123 = vmul.f32 %v3116, %v2788
    %v3124 = vadd.f32 %v3122, %v3123
    %3125 = vmatprep.subr.mxu0 %v1369
    %3126 = vmatpush1.msra.mxu0 %v1368
    %3127 = vmatprep.subr.mxu0 %v1366
    %3128 = vmatpush1.msra.mxu0 %v1365
    %3129 = vmatprep.subr.mxu0 %v1363
    %3130 = vmatpush1.msra.mxu0 %v1362
    %3131 = vmatprep.subr.mxu0 %v1360
    %3132 = vmatpush1.msra.mxu0 %v1359
    %3133 = vmatprep.subr.mxu0 %v1357
    %3134 = vmatpush1.msra.mxu0 %v1356
    %3135 = vmatprep.subr.mxu0 %v1354
    %3136 = vmatpush1.msra.mxu0 %v1353
    %3137 = vmatprep.subr.mxu0 %v1351
    %3138 = vmatpush1.msra.mxu0 %v1350
    %3139 = vmatprep.subr.mxu0 %v1348
    %3140 = vmatpush1.msra.mxu0 %v1347
    %3141 = vmatprep.subr.mxu0 %v1345
    %3142 = vmatpush1.msra.mxu0 %v1344
    %3143 = vmatprep.subr.mxu0 %v1342
    %3144 = vmatpush1.msra.mxu0 %v1341
    %3145 = vmatprep.subr.mxu0 %v1339
    %3146 = vmatpush1.msra.mxu0 %v1338
    %3147 = vmatprep.subr.mxu0 %v1336
    %3148 = vmatpush1.msra.mxu0 %v1335
    %3149 = vmatprep.subr.mxu0 %v1333
    %3150 = vmatpush1.msra.mxu0 %v1332
    %3151 = vmatprep.subr.mxu0 %v1330
    %3152 = vmatpush1.msra.mxu0 %v1329
    %3153 = vmatprep.subr.mxu0 %v1327
    %3154 = vmatpush1.msra.mxu0 %v1326
    %3155 = vmatprep.subr.mxu0 %v1324
    %3156 = vmatpush1.msra.mxu0 %v1323
    %3157 = vmatprep.subr.mxu0 0.0
    %3158 = vmatpush2.msra.mxu0 0.0
    %3159 = vmatprep.subr.mxu0 0.0
    %3160 = vmatpush2.msra.mxu0 0.0
    %3161 = vmatprep.subr.mxu0 0.0
    %3162 = vmatpush2.msra.mxu0 0.0
    %3163 = vmatprep.subr.mxu0 0.0
    %3164 = vmatpush2.msra.mxu0 0.0
    %3165 = vmatprep.subr.mxu0 0.0
    %3166 = vmatpush2.msra.mxu0 0.0
    %3167 = vmatprep.subr.mxu0 0.0
    %3168 = vmatpush2.msra.mxu0 0.0
    %3169 = vmatprep.subr.mxu0 0.0
    %3170 = vmatpush2.msra.mxu0 0.0
    %3171 = vmatprep.subr.mxu0 0.0
    %3172 = vmatpush2.msra.mxu0 0.0
    %3173 = vmatprep.subr.mxu0 0.0
    %3174 = vmatpush2.msra.mxu0 0.0
    %3175 = vmatprep.subr.mxu0 0.0
    %3176 = vmatpush2.msra.mxu0 0.0
    %3177 = vmatprep.subr.mxu0 0.0
    %3178 = vmatpush2.msra.mxu0 0.0
    %3179 = vmatprep.subr.mxu0 0.0
    %3180 = vmatpush2.msra.mxu0 0.0
    %3181 = vmatprep.subr.mxu0 0.0
    %3182 = vmatpush2.msra.mxu0 0.0
    %3183 = vmatprep.subr.mxu0 0.0
    %3184 = vmatpush2.msra.mxu0 0.0
    %3185 = vmatprep.subr.mxu0 0.0
    %3186 = vmatpush2.msra.mxu0 0.0
    %3187 = vmatprep.subr.mxu0 0.0
    %3188 = vmatpush2.msra.mxu0 0.0
    %3189 = vmatprep.mubr.f32.mxu0 0.0
    %3190 = vmatmul.mubr.f32.gmra.mxu0 %v2956
    %v3191 = vpop.f32.mrf.mxu0
    %v3192 = vadd.f32 0.0, %v3191
    %v3193 = vpop.f32.mrf.mxu0
    %v3194 = vadd.f32 0.0, %v3193
    %3195 = vdwg.mxu0
    %3196 = vmatprep.subr.mxu0 0.0
    %3197 = vmatpush1.msra.mxu0 %v1370
    %3198 = vmatprep.subr.mxu0 0.0
    %3199 = vmatpush1.msra.mxu0 %v1367
    %3200 = vmatprep.subr.mxu0 0.0
    %3201 = vmatpush1.msra.mxu0 %v1364
    %3202 = vmatprep.subr.mxu0 0.0
    %3203 = vmatpush1.msra.mxu0 %v1361
    %3204 = vmatprep.subr.mxu0 0.0
    %3205 = vmatpush1.msra.mxu0 %v1358
    %3206 = vmatprep.subr.mxu0 0.0
    %3207 = vmatpush1.msra.mxu0 %v1355
    %3208 = vmatprep.subr.mxu0 0.0
    %3209 = vmatpush1.msra.mxu0 %v1352
    %3210 = vmatprep.subr.mxu0 0.0
    %3211 = vmatpush1.msra.mxu0 %v1349
    %3212 = vmatprep.subr.mxu0 0.0
    %3213 = vmatpush1.msra.mxu0 %v1346
    %3214 = vmatprep.subr.mxu0 0.0
    %3215 = vmatpush1.msra.mxu0 %v1343
    %3216 = vmatprep.subr.mxu0 0.0
    %3217 = vmatpush1.msra.mxu0 %v1340
    %3218 = vmatprep.subr.mxu0 0.0
    %3219 = vmatpush1.msra.mxu0 %v1337
    %3220 = vmatprep.subr.mxu0 0.0
    %3221 = vmatpush1.msra.mxu0 %v1334
    %3222 = vmatprep.subr.mxu0 0.0
    %3223 = vmatpush1.msra.mxu0 %v1331
    %3224 = vmatprep.subr.mxu0 0.0
    %3225 = vmatpush1.msra.mxu0 %v1328
    %3226 = vmatprep.subr.mxu0 0.0
    %3227 = vmatpush1.msra.mxu0 %v1325
    %3228 = vmatprep.subr.mxu0 0.0
    %3229 = vmatpush2.msra.mxu0 0.0
    %3230 = vmatprep.subr.mxu0 0.0
    %3231 = vmatpush2.msra.mxu0 0.0
    %3232 = vmatprep.subr.mxu0 0.0
    %3233 = vmatpush2.msra.mxu0 0.0
    %3234 = vmatprep.subr.mxu0 0.0
    %3235 = vmatpush2.msra.mxu0 0.0
    %3236 = vmatprep.subr.mxu0 0.0
    %3237 = vmatpush2.msra.mxu0 0.0
    %3238 = vmatprep.subr.mxu0 0.0
    %3239 = vmatpush2.msra.mxu0 0.0
    %3240 = vmatprep.subr.mxu0 0.0
    %3241 = vmatpush2.msra.mxu0 0.0
    %3242 = vmatprep.subr.mxu0 0.0
    %3243 = vmatpush2.msra.mxu0 0.0
    %3244 = vmatprep.subr.mxu0 0.0
    %3245 = vmatpush2.msra.mxu0 0.0
    %3246 = vmatprep.subr.mxu0 0.0
    %3247 = vmatpush2.msra.mxu0 0.0
    %3248 = vmatprep.subr.mxu0 0.0
    %3249 = vmatpush2.msra.mxu0 0.0
    %3250 = vmatprep.subr.mxu0 0.0
    %3251 = vmatpush2.msra.mxu0 0.0
    %3252 = vmatprep.subr.mxu0 0.0
    %3253 = vmatpush2.msra.mxu0 0.0
    %3254 = vmatprep.subr.mxu0 0.0
    %3255 = vmatpush2.msra.mxu0 0.0
    %3256 = vmatprep.subr.mxu0 0.0
    %3257 = vmatpush2.msra.mxu0 0.0
    %3258 = vmatprep.subr.mxu0 0.0
    %3259 = vmatpush2.msra.mxu0 0.0
    %3260 = vmatprep.mubr.f32.mxu0 0.0
    %3261 = vmatmul.mubr.f32.gmra.mxu0 %v2956
    %v3262 = vpop.f32.mrf.mxu0
    %v3263 = vadd.f32 0.0, %v3262
    %v3264 = vpop.f32.mrf.mxu0
    %3265 = vdwg.mxu0
    %s3266 = smul.addr %s2423, 8
    %s3267 = scalar_lea.vmem [#allocation2], %s3266
    %v3268 = vld [vmem:[%s3267] sm:$0xff]
    %v3269 = vld [vmem:[%s3267 + $0x8] sm:$0xff]
    %v3270 = vld [vmem:[%s3267 + $0x10] sm:$0xff]
    %v3271 = vadd.f32 %v3268, %v3192
    %v3272 = vxor.u32 %v3271, 2147483648
    %v3273 = vmul.f32 %v3272, 1.442695
    %v3274 = vpow.pop %v3273
    %v3275 = vadd.f32 %v3274, 1.0
    %v3276 = vrcp.pop %v3275
    %v3277 = vmul.f32 1.0, %v3276
    %v3278 = vadd.f32 %v3269, %v3194
    %v3279 = vxor.u32 %v3278, 2147483648
    %v3280 = vmul.f32 %v3279, 1.442695
    %v3281 = vpow.pop %v3280
    %v3282 = vadd.f32 %v3281, 1.0
    %v3283 = vrcp.pop %v3282
    %v3284 = vmul.f32 1.0, %v3283
    %v3285 = vadd.f32 %v3263, %v1590
    %v3286 = vmul.f32 %v3277, %v3285
    %v3287 = vadd.f32 %v3270, %v3286
    %v3288 = vtanh.pop %v3287
    %v3289 = vsub.f32 1.0, %v3284
    %v3290 = vmul.f32 %v3289, %v3288
    %v3291 = vmul.f32 %v3284, %v2956
    %v3292 = vadd.f32 %v3290, %v3291
    %3293 = vmatprep.subr.mxu0 %v1418
    %3294 = vmatpush1.msra.mxu0 %v1417
    %3295 = vmatprep.subr.mxu0 %v1415
    %3296 = vmatpush1.msra.mxu0 %v1414
    %3297 = vmatprep.subr.mxu0 %v1412
    %3298 = vmatpush1.msra.mxu0 %v1411
    %3299 = vmatprep.subr.mxu0 %v1409
    %3300 = vmatpush1.msra.mxu0 %v1408
    %3301 = vmatprep.subr.mxu0 %v1406
    %3302 = vmatpush1.msra.mxu0 %v1405
    %3303 = vmatprep.subr.mxu0 %v1403
    %3304 = vmatpush1.msra.mxu0 %v1402
    %3305 = vmatprep.subr.mxu0 %v1400
    %3306 = vmatpush1.msra.mxu0 %v1399
    %3307 = vmatprep.subr.mxu0 %v1397
    %3308 = vmatpush1.msra.mxu0 %v1396
    %3309 = vmatprep.subr.mxu0 %v1394
    %3310 = vmatpush1.msra.mxu0 %v1393
    %3311 = vmatprep.subr.mxu0 %v1391
    %3312 = vmatpush1.msra.mxu0 %v1390
    %3313 = vmatprep.subr.mxu0 %v1388
    %3314 = vmatpush1.msra.mxu0 %v1387
    %3315 = vmatprep.subr.mxu0 %v1385
    %3316 = vmatpush1.msra.mxu0 %v1384
    %3317 = vmatprep.subr.mxu0 %v1382
    %3318 = vmatpush1.msra.mxu0 %v1381
    %3319 = vmatprep.subr.mxu0 %v1379
    %3320 = vmatpush1.msra.mxu0 %v1378
    %3321 = vmatprep.subr.mxu0 %v1376
    %3322 = vmatpush1.msra.mxu0 %v1375
    %3323 = vmatprep.subr.mxu0 %v1373
    %3324 = vmatpush1.msra.mxu0 %v1372
    %3325 = vmatprep.subr.mxu0 0.0
    %3326 = vmatpush2.msra.mxu0 0.0
    %3327 = vmatprep.subr.mxu0 0.0
    %3328 = vmatpush2.msra.mxu0 0.0
    %3329 = vmatprep.subr.mxu0 0.0
    %3330 = vmatpush2.msra.mxu0 0.0
    %3331 = vmatprep.subr.mxu0 0.0
    %3332 = vmatpush2.msra.mxu0 0.0
    %3333 = vmatprep.subr.mxu0 0.0
    %3334 = vmatpush2.msra.mxu0 0.0
    %3335 = vmatprep.subr.mxu0 0.0
    %3336 = vmatpush2.msra.mxu0 0.0
    %3337 = vmatprep.subr.mxu0 0.0
    %3338 = vmatpush2.msra.mxu0 0.0
    %3339 = vmatprep.subr.mxu0 0.0
    %3340 = vmatpush2.msra.mxu0 0.0
    %3341 = vmatprep.subr.mxu0 0.0
    %3342 = vmatpush2.msra.mxu0 0.0
    %3343 = vmatprep.subr.mxu0 0.0
    %3344 = vmatpush2.msra.mxu0 0.0
    %3345 = vmatprep.subr.mxu0 0.0
    %3346 = vmatpush2.msra.mxu0 0.0
    %3347 = vmatprep.subr.mxu0 0.0
    %3348 = vmatpush2.msra.mxu0 0.0
    %3349 = vmatprep.subr.mxu0 0.0
    %3350 = vmatpush2.msra.mxu0 0.0
    %3351 = vmatprep.subr.mxu0 0.0
    %3352 = vmatpush2.msra.mxu0 0.0
    %3353 = vmatprep.subr.mxu0 0.0
    %3354 = vmatpush2.msra.mxu0 0.0
    %3355 = vmatprep.subr.mxu0 0.0
    %3356 = vmatpush2.msra.mxu0 0.0
    %3357 = vmatprep.mubr.f32.mxu0 0.0
    %3358 = vmatmul.mubr.f32.gmra.mxu0 %v3124
    %v3359 = vpop.f32.mrf.mxu0
    %v3360 = vadd.f32 0.0, %v3359
    %v3361 = vpop.f32.mrf.mxu0
    %v3362 = vadd.f32 0.0, %v3361
    %3363 = vdwg.mxu0
    %3364 = vmatprep.subr.mxu0 0.0
    %3365 = vmatpush1.msra.mxu0 %v1419
    %3366 = vmatprep.subr.mxu0 0.0
    %3367 = vmatpush1.msra.mxu0 %v1416
    %3368 = vmatprep.subr.mxu0 0.0
    %3369 = vmatpush1.msra.mxu0 %v1413
    %3370 = vmatprep.subr.mxu0 0.0
    %3371 = vmatpush1.msra.mxu0 %v1410
    %3372 = vmatprep.subr.mxu0 0.0
    %3373 = vmatpush1.msra.mxu0 %v1407
    %3374 = vmatprep.subr.mxu0 0.0
    %3375 = vmatpush1.msra.mxu0 %v1404
    %3376 = vmatprep.subr.mxu0 0.0
    %3377 = vmatpush1.msra.mxu0 %v1401
    %3378 = vmatprep.subr.mxu0 0.0
    %3379 = vmatpush1.msra.mxu0 %v1398
    %3380 = vmatprep.subr.mxu0 0.0
    %3381 = vmatpush1.msra.mxu0 %v1395
    %3382 = vmatprep.subr.mxu0 0.0
    %3383 = vmatpush1.msra.mxu0 %v1392
    %3384 = vmatprep.subr.mxu0 0.0
    %3385 = vmatpush1.msra.mxu0 %v1389
    %3386 = vmatprep.subr.mxu0 0.0
    %3387 = vmatpush1.msra.mxu0 %v1386
    %3388 = vmatprep.subr.mxu0 0.0
    %3389 = vmatpush1.msra.mxu0 %v1383
    %3390 = vmatprep.subr.mxu0 0.0
    %3391 = vmatpush1.msra.mxu0 %v1380
    %3392 = vmatprep.subr.mxu0 0.0
    %3393 = vmatpush1.msra.mxu0 %v1377
    %3394 = vmatprep.subr.mxu0 0.0
    %3395 = vmatpush1.msra.mxu0 %v1374
    %3396 = vmatprep.subr.mxu0 0.0
    %3397 = vmatpush2.msra.mxu0 0.0
    %3398 = vmatprep.subr.mxu0 0.0
    %3399 = vmatpush2.msra.mxu0 0.0
    %3400 = vmatprep.subr.mxu0 0.0
    %3401 = vmatpush2.msra.mxu0 0.0
    %3402 = vmatprep.subr.mxu0 0.0
    %3403 = vmatpush2.msra.mxu0 0.0
    %3404 = vmatprep.subr.mxu0 0.0
    %3405 = vmatpush2.msra.mxu0 0.0
    %3406 = vmatprep.subr.mxu0 0.0
    %3407 = vmatpush2.msra.mxu0 0.0
    %3408 = vmatprep.subr.mxu0 0.0
    %3409 = vmatpush2.msra.mxu0 0.0
    %3410 = vmatprep.subr.mxu0 0.0
    %3411 = vmatpush2.msra.mxu0 0.0
    %3412 = vmatprep.subr.mxu0 0.0
    %3413 = vmatpush2.msra.mxu0 0.0
    %3414 = vmatprep.subr.mxu0 0.0
    %3415 = vmatpush2.msra.mxu0 0.0
    %3416 = vmatprep.subr.mxu0 0.0
    %3417 = vmatpush2.msra.mxu0 0.0
    %3418 = vmatprep.subr.mxu0 0.0
    %3419 = vmatpush2.msra.mxu0 0.0
    %3420 = vmatprep.subr.mxu0 0.0
    %3421 = vmatpush2.msra.mxu0 0.0
    %3422 = vmatprep.subr.mxu0 0.0
    %3423 = vmatpush2.msra.mxu0 0.0
    %3424 = vmatprep.subr.mxu0 0.0
    %3425 = vmatpush2.msra.mxu0 0.0
    %3426 = vmatprep.subr.mxu0 0.0
    %3427 = vmatpush2.msra.mxu0 0.0
    %3428 = vmatprep.mubr.f32.mxu0 0.0
    %3429 = vmatmul.mubr.f32.gmra.mxu0 %v3124
    %v3430 = vpop.f32.mrf.mxu0
    %v3431 = vadd.f32 0.0, %v3430
    %v3432 = vpop.f32.mrf.mxu0
    %3433 = vdwg.mxu0
    %s3434 = smul.addr %s2254, 8
    %s3435 = scalar_lea.vmem [#allocation3], %s3434
    %v3436 = vld [vmem:[%s3435] sm:$0xff]
    %v3437 = vld [vmem:[%s3435 + $0x8] sm:$0xff]
    %v3438 = vld [vmem:[%s3435 + $0x10] sm:$0xff]
    %v3439 = vadd.f32 %v3436, %v3360
    %v3440 = vxor.u32 %v3439, 2147483648
    %v3441 = vmul.f32 %v3440, 1.442695
    %v3442 = vpow.pop %v3441
    %v3443 = vadd.f32 %v3442, 1.0
    %v3444 = vrcp.pop %v3443
    %v3445 = vmul.f32 1.0, %v3444
    %v3446 = vadd.f32 %v3437, %v3362
    %v3447 = vxor.u32 %v3446, 2147483648
    %v3448 = vmul.f32 %v3447, 1.442695
    %v3449 = vpow.pop %v3448
    %v3450 = vadd.f32 %v3449, 1.0
    %v3451 = vrcp.pop %v3450
    %v3452 = vmul.f32 1.0, %v3451
    %v3453 = vadd.f32 %v3431, %v1765
    %v3454 = vmul.f32 %v3445, %v3453
    %v3455 = vadd.f32 %v3438, %v3454
    %v3456 = vtanh.pop %v3455
    %v3457 = vsub.f32 1.0, %v3452
    %v3458 = vmul.f32 %v3457, %v3456
    %v3459 = vmul.f32 %v3452, %v3124
    %v3460 = vadd.f32 %v3458, %v3459
    %3461 = vmatprep.subr.mxu0 %v1369
    %3462 = vmatpush1.msra.mxu0 %v1368
    %3463 = vmatprep.subr.mxu0 %v1366
    %3464 = vmatpush1.msra.mxu0 %v1365
    %3465 = vmatprep.subr.mxu0 %v1363
    %3466 = vmatpush1.msra.mxu0 %v1362
    %3467 = vmatprep.subr.mxu0 %v1360
    %3468 = vmatpush1.msra.mxu0 %v1359
    %3469 = vmatprep.subr.mxu0 %v1357
    %3470 = vmatpush1.msra.mxu0 %v1356
    %3471 = vmatprep.subr.mxu0 %v1354
    %3472 = vmatpush1.msra.mxu0 %v1353
    %3473 = vmatprep.subr.mxu0 %v1351
    %3474 = vmatpush1.msra.mxu0 %v1350
    %3475 = vmatprep.subr.mxu0 %v1348
    %3476 = vmatpush1.msra.mxu0 %v1347
    %3477 = vmatprep.subr.mxu0 %v1345
    %3478 = vmatpush1.msra.mxu0 %v1344
    %3479 = vmatprep.subr.mxu0 %v1342
    %3480 = vmatpush1.msra.mxu0 %v1341
    %3481 = vmatprep.subr.mxu0 %v1339
    %3482 = vmatpush1.msra.mxu0 %v1338
    %3483 = vmatprep.subr.mxu0 %v1336
    %3484 = vmatpush1.msra.mxu0 %v1335
    %3485 = vmatprep.subr.mxu0 %v1333
    %3486 = vmatpush1.msra.mxu0 %v1332
    %3487 = vmatprep.subr.mxu0 %v1330
    %3488 = vmatpush1.msra.mxu0 %v1329
    %3489 = vmatprep.subr.mxu0 %v1327
    %3490 = vmatpush1.msra.mxu0 %v1326
    %3491 = vmatprep.subr.mxu0 %v1324
    %3492 = vmatpush1.msra.mxu0 %v1323
    %3493 = vmatprep.subr.mxu0 0.0
    %3494 = vmatpush2.msra.mxu0 0.0
    %3495 = vmatprep.subr.mxu0 0.0
    %3496 = vmatpush2.msra.mxu0 0.0
    %3497 = vmatprep.subr.mxu0 0.0
    %3498 = vmatpush2.msra.mxu0 0.0
    %3499 = vmatprep.subr.mxu0 0.0
    %3500 = vmatpush2.msra.mxu0 0.0
    %3501 = vmatprep.subr.mxu0 0.0
    %3502 = vmatpush2.msra.mxu0 0.0
    %3503 = vmatprep.subr.mxu0 0.0
    %3504 = vmatpush2.msra.mxu0 0.0
    %3505 = vmatprep.subr.mxu0 0.0
    %3506 = vmatpush2.msra.mxu0 0.0
    %3507 = vmatprep.subr.mxu0 0.0
    %3508 = vmatpush2.msra.mxu0 0.0
    %3509 = vmatprep.subr.mxu0 0.0
    %3510 = vmatpush2.msra.mxu0 0.0
    %3511 = vmatprep.subr.mxu0 0.0
    %3512 = vmatpush2.msra.mxu0 0.0
    %3513 = vmatprep.subr.mxu0 0.0
    %3514 = vmatpush2.msra.mxu0 0.0
    %3515 = vmatprep.subr.mxu0 0.0
    %3516 = vmatpush2.msra.mxu0 0.0
    %3517 = vmatprep.subr.mxu0 0.0
    %3518 = vmatpush2.msra.mxu0 0.0
    %3519 = vmatprep.subr.mxu0 0.0
    %3520 = vmatpush2.msra.mxu0 0.0
    %3521 = vmatprep.subr.mxu0 0.0
    %3522 = vmatpush2.msra.mxu0 0.0
    %3523 = vmatprep.subr.mxu0 0.0
    %3524 = vmatpush2.msra.mxu0 0.0
    %3525 = vmatprep.mubr.f32.mxu0 0.0
    %3526 = vmatmul.mubr.f32.gmra.mxu0 %v3292
    %v3527 = vpop.f32.mrf.mxu0
    %v3528 = vadd.f32 0.0, %v3527
    %v3529 = vpop.f32.mrf.mxu0
    %v3530 = vadd.f32 0.0, %v3529
    %3531 = vdwg.mxu0
    %3532 = vmatprep.subr.mxu0 0.0
    %3533 = vmatpush1.msra.mxu0 %v1370
    %3534 = vmatprep.subr.mxu0 0.0
    %3535 = vmatpush1.msra.mxu0 %v1367
    %3536 = vmatprep.subr.mxu0 0.0
    %3537 = vmatpush1.msra.mxu0 %v1364
    %3538 = vmatprep.subr.mxu0 0.0
    %3539 = vmatpush1.msra.mxu0 %v1361
    %3540 = vmatprep.subr.mxu0 0.0
    %3541 = vmatpush1.msra.mxu0 %v1358
    %3542 = vmatprep.subr.mxu0 0.0
    %3543 = vmatpush1.msra.mxu0 %v1355
    %3544 = vmatprep.subr.mxu0 0.0
    %3545 = vmatpush1.msra.mxu0 %v1352
    %3546 = vmatprep.subr.mxu0 0.0
    %3547 = vmatpush1.msra.mxu0 %v1349
    %3548 = vmatprep.subr.mxu0 0.0
    %3549 = vmatpush1.msra.mxu0 %v1346
    %3550 = vmatprep.subr.mxu0 0.0
    %3551 = vmatpush1.msra.mxu0 %v1343
    %3552 = vmatprep.subr.mxu0 0.0
    %3553 = vmatpush1.msra.mxu0 %v1340
    %3554 = vmatprep.subr.mxu0 0.0
    %3555 = vmatpush1.msra.mxu0 %v1337
    %3556 = vmatprep.subr.mxu0 0.0
    %3557 = vmatpush1.msra.mxu0 %v1334
    %3558 = vmatprep.subr.mxu0 0.0
    %3559 = vmatpush1.msra.mxu0 %v1331
    %3560 = vmatprep.subr.mxu0 0.0
    %3561 = vmatpush1.msra.mxu0 %v1328
    %3562 = vmatprep.subr.mxu0 0.0
    %3563 = vmatpush1.msra.mxu0 %v1325
    %3564 = vmatprep.subr.mxu0 0.0
    %3565 = vmatpush2.msra.mxu0 0.0
    %3566 = vmatprep.subr.mxu0 0.0
    %3567 = vmatpush2.msra.mxu0 0.0
    %3568 = vmatprep.subr.mxu0 0.0
    %3569 = vmatpush2.msra.mxu0 0.0
    %3570 = vmatprep.subr.mxu0 0.0
    %3571 = vmatpush2.msra.mxu0 0.0
    %3572 = vmatprep.subr.mxu0 0.0
    %3573 = vmatpush2.msra.mxu0 0.0
    %3574 = vmatprep.subr.mxu0 0.0
    %3575 = vmatpush2.msra.mxu0 0.0
    %3576 = vmatprep.subr.mxu0 0.0
    %3577 = vmatpush2.msra.mxu0 0.0
    %3578 = vmatprep.subr.mxu0 0.0
    %3579 = vmatpush2.msra.mxu0 0.0
    %3580 = vmatprep.subr.mxu0 0.0
    %3581 = vmatpush2.msra.mxu0 0.0
    %3582 = vmatprep.subr.mxu0 0.0
    %3583 = vmatpush2.msra.mxu0 0.0
    %3584 = vmatprep.subr.mxu0 0.0
    %3585 = vmatpush2.msra.mxu0 0.0
    %3586 = vmatprep.subr.mxu0 0.0
    %3587 = vmatpush2.msra.mxu0 0.0
    %3588 = vmatprep.subr.mxu0 0.0
    %3589 = vmatpush2.msra.mxu0 0.0
    %3590 = vmatprep.subr.mxu0 0.0
    %3591 = vmatpush2.msra.mxu0 0.0
    %3592 = vmatprep.subr.mxu0 0.0
    %3593 = vmatpush2.msra.mxu0 0.0
    %3594 = vmatprep.subr.mxu0 0.0
    %3595 = vmatpush2.msra.mxu0 0.0
    %3596 = vmatprep.mubr.f32.mxu0 0.0
    %3597 = vmatmul.mubr.f32.gmra.mxu0 %v3292
    %v3598 = vpop.f32.mrf.mxu0
    %v3599 = vadd.f32 0.0, %v3598
    %v3600 = vpop.f32.mrf.mxu0
    %3601 = vdwg.mxu0
    %s3602 = smul.addr %s2085, 8
    %s3603 = scalar_lea.vmem [#allocation2], %s3602
    %v3604 = vld [vmem:[%s3603] sm:$0xff]
    %v3605 = vld [vmem:[%s3603 + $0x8] sm:$0xff]
    %v3606 = vld [vmem:[%s3603 + $0x10] sm:$0xff]
    %v3607 = vadd.f32 %v3604, %v3528
    %v3608 = vxor.u32 %v3607, 2147483648
    %v3609 = vmul.f32 %v3608, 1.442695
    %v3610 = vpow.pop %v3609
    %v3611 = vadd.f32 %v3610, 1.0
    %v3612 = vrcp.pop %v3611
    %v3613 = vmul.f32 1.0, %v3612
    %v3614 = vadd.f32 %v3605, %v3530
    %v3615 = vxor.u32 %v3614, 2147483648
    %v3616 = vmul.f32 %v3615, 1.442695
    %v3617 = vpow.pop %v3616
    %v3618 = vadd.f32 %v3617, 1.0
    %v3619 = vrcp.pop %v3618
    %v3620 = vmul.f32 1.0, %v3619
    %v3621 = vadd.f32 %v3599, %v1590
    %v3622 = vmul.f32 %v3613, %v3621
    %v3623 = vadd.f32 %v3606, %v3622
    %v3624 = vtanh.pop %v3623
    %v3625 = vsub.f32 1.0, %v3620
    %v3626 = vmul.f32 %v3625, %v3624
    %v3627 = vmul.f32 %v3620, %v3292
    %v3628 = vadd.f32 %v3626, %v3627
    %3629 = vmatprep.subr.mxu0 %v1418
    %3630 = vmatpush1.msra.mxu0 %v1417
    %3631 = vmatprep.subr.mxu0 %v1415
    %3632 = vmatpush1.msra.mxu0 %v1414
    %3633 = vmatprep.subr.mxu0 %v1412
    %3634 = vmatpush1.msra.mxu0 %v1411
    %3635 = vmatprep.subr.mxu0 %v1409
    %3636 = vmatpush1.msra.mxu0 %v1408
    %3637 = vmatprep.subr.mxu0 %v1406
    %3638 = vmatpush1.msra.mxu0 %v1405
    %3639 = vmatprep.subr.mxu0 %v1403
    %3640 = vmatpush1.msra.mxu0 %v1402
    %3641 = vmatprep.subr.mxu0 %v1400
    %3642 = vmatpush1.msra.mxu0 %v1399
    %3643 = vmatprep.subr.mxu0 %v1397
    %3644 = vmatpush1.msra.mxu0 %v1396
    %3645 = vmatprep.subr.mxu0 %v1394
    %3646 = vmatpush1.msra.mxu0 %v1393
    %3647 = vmatprep.subr.mxu0 %v1391
    %3648 = vmatpush1.msra.mxu0 %v1390
    %3649 = vmatprep.subr.mxu0 %v1388
    %3650 = vmatpush1.msra.mxu0 %v1387
    %3651 = vmatprep.subr.mxu0 %v1385
    %3652 = vmatpush1.msra.mxu0 %v1384
    %3653 = vmatprep.subr.mxu0 %v1382
    %3654 = vmatpush1.msra.mxu0 %v1381
    %3655 = vmatprep.subr.mxu0 %v1379
    %3656 = vmatpush1.msra.mxu0 %v1378
    %3657 = vmatprep.subr.mxu0 %v1376
    %3658 = vmatpush1.msra.mxu0 %v1375
    %3659 = vmatprep.subr.mxu0 %v1373
    %3660 = vmatpush1.msra.mxu0 %v1372
    %3661 = vmatprep.subr.mxu0 0.0
    %3662 = vmatpush2.msra.mxu0 0.0
    %3663 = vmatprep.subr.mxu0 0.0
    %3664 = vmatpush2.msra.mxu0 0.0
    %3665 = vmatprep.subr.mxu0 0.0
    %3666 = vmatpush2.msra.mxu0 0.0
    %3667 = vmatprep.subr.mxu0 0.0
    %3668 = vmatpush2.msra.mxu0 0.0
    %3669 = vmatprep.subr.mxu0 0.0
    %3670 = vmatpush2.msra.mxu0 0.0
    %3671 = vmatprep.subr.mxu0 0.0
    %3672 = vmatpush2.msra.mxu0 0.0
    %3673 = vmatprep.subr.mxu0 0.0
    %3674 = vmatpush2.msra.mxu0 0.0
    %3675 = vmatprep.subr.mxu0 0.0
    %3676 = vmatpush2.msra.mxu0 0.0
    %3677 = vmatprep.subr.mxu0 0.0
    %3678 = vmatpush2.msra.mxu0 0.0
    %3679 = vmatprep.subr.mxu0 0.0
    %3680 = vmatpush2.msra.mxu0 0.0
    %3681 = vmatprep.subr.mxu0 0.0
    %3682 = vmatpush2.msra.mxu0 0.0
    %3683 = vmatprep.subr.mxu0 0.0
    %3684 = vmatpush2.msra.mxu0 0.0
    %3685 = vmatprep.subr.mxu0 0.0
    %3686 = vmatpush2.msra.mxu0 0.0
    %3687 = vmatprep.subr.mxu0 0.0
    %3688 = vmatpush2.msra.mxu0 0.0
    %3689 = vmatprep.subr.mxu0 0.0
    %3690 = vmatpush2.msra.mxu0 0.0
    %3691 = vmatprep.subr.mxu0 0.0
    %3692 = vmatpush2.msra.mxu0 0.0
    %3693 = vmatprep.mubr.f32.mxu0 0.0
    %3694 = vmatmul.mubr.f32.gmra.mxu0 %v3460
    %v3695 = vpop.f32.mrf.mxu0
    %v3696 = vadd.f32 0.0, %v3695
    %v3697 = vpop.f32.mrf.mxu0
    %v3698 = vadd.f32 0.0, %v3697
    %3699 = vdwg.mxu0
    %3700 = vmatprep.subr.mxu0 0.0
    %3701 = vmatpush1.msra.mxu0 %v1419
    %3702 = vmatprep.subr.mxu0 0.0
    %3703 = vmatpush1.msra.mxu0 %v1416
    %3704 = vmatprep.subr.mxu0 0.0
    %3705 = vmatpush1.msra.mxu0 %v1413
    %3706 = vmatprep.subr.mxu0 0.0
    %3707 = vmatpush1.msra.mxu0 %v1410
    %3708 = vmatprep.subr.mxu0 0.0
    %3709 = vmatpush1.msra.mxu0 %v1407
    %3710 = vmatprep.subr.mxu0 0.0
    %3711 = vmatpush1.msra.mxu0 %v1404
    %3712 = vmatprep.subr.mxu0 0.0
    %3713 = vmatpush1.msra.mxu0 %v1401
    %3714 = vmatprep.subr.mxu0 0.0
    %3715 = vmatpush1.msra.mxu0 %v1398
    %3716 = vmatprep.subr.mxu0 0.0
    %3717 = vmatpush1.msra.mxu0 %v1395
    %3718 = vmatprep.subr.mxu0 0.0
    %3719 = vmatpush1.msra.mxu0 %v1392
    %3720 = vmatprep.subr.mxu0 0.0
    %3721 = vmatpush1.msra.mxu0 %v1389
    %3722 = vmatprep.subr.mxu0 0.0
    %3723 = vmatpush1.msra.mxu0 %v1386
    %3724 = vmatprep.subr.mxu0 0.0
    %3725 = vmatpush1.msra.mxu0 %v1383
    %3726 = vmatprep.subr.mxu0 0.0
    %3727 = vmatpush1.msra.mxu0 %v1380
    %3728 = vmatprep.subr.mxu0 0.0
    %3729 = vmatpush1.msra.mxu0 %v1377
    %3730 = vmatprep.subr.mxu0 0.0
    %3731 = vmatpush1.msra.mxu0 %v1374
    %3732 = vmatprep.subr.mxu0 0.0
    %3733 = vmatpush2.msra.mxu0 0.0
    %3734 = vmatprep.subr.mxu0 0.0
    %3735 = vmatpush2.msra.mxu0 0.0
    %3736 = vmatprep.subr.mxu0 0.0
    %3737 = vmatpush2.msra.mxu0 0.0
    %3738 = vmatprep.subr.mxu0 0.0
    %3739 = vmatpush2.msra.mxu0 0.0
    %3740 = vmatprep.subr.mxu0 0.0
    %3741 = vmatpush2.msra.mxu0 0.0
    %3742 = vmatprep.subr.mxu0 0.0
    %3743 = vmatpush2.msra.mxu0 0.0
    %3744 = vmatprep.subr.mxu0 0.0
    %3745 = vmatpush2.msra.mxu0 0.0
    %3746 = vmatprep.subr.mxu0 0.0
    %3747 = vmatpush2.msra.mxu0 0.0
    %3748 = vmatprep.subr.mxu0 0.0
    %3749 = vmatpush2.msra.mxu0 0.0
    %3750 = vmatprep.subr.mxu0 0.0
    %3751 = vmatpush2.msra.mxu0 0.0
    %3752 = vmatprep.subr.mxu0 0.0
    %3753 = vmatpush2.msra.mxu0 0.0
    %3754 = vmatprep.subr.mxu0 0.0
    %3755 = vmatpush2.msra.mxu0 0.0
    %3756 = vmatprep.subr.mxu0 0.0
    %3757 = vmatpush2.msra.mxu0 0.0
    %3758 = vmatprep.subr.mxu0 0.0
    %3759 = vmatpush2.msra.mxu0 0.0
    %3760 = vmatprep.subr.mxu0 0.0
    %3761 = vmatpush2.msra.mxu0 0.0
    %3762 = vmatprep.subr.mxu0 0.0
    %3763 = vmatpush2.msra.mxu0 0.0
    %3764 = vmatprep.mubr.f32.mxu0 0.0
    %3765 = vmatmul.mubr.f32.gmra.mxu0 %v3460
    %v3766 = vpop.f32.mrf.mxu0
    %v3767 = vadd.f32 0.0, %v3766
    %v3768 = vpop.f32.mrf.mxu0
    %3769 = vdwg.mxu0
    %s3770 = smul.addr %s1916, 8
    %s3771 = scalar_lea.vmem [#allocation3], %s3770
    %v3772 = vld [vmem:[%s3771] sm:$0xff]
    %v3773 = vld [vmem:[%s3771 + $0x8] sm:$0xff]
    %v3774 = vld [vmem:[%s3771 + $0x10] sm:$0xff]
    %v3775 = vadd.f32 %v3772, %v3696
    %v3776 = vxor.u32 %v3775, 2147483648
    %v3777 = vmul.f32 %v3776, 1.442695
    %v3778 = vpow.pop %v3777
    %v3779 = vadd.f32 %v3778, 1.0
    %v3780 = vrcp.pop %v3779
    %v3781 = vmul.f32 1.0, %v3780
    %v3782 = vadd.f32 %v3773, %v3698
    %v3783 = vxor.u32 %v3782, 2147483648
    %v3784 = vmul.f32 %v3783, 1.442695
    %v3785 = vpow.pop %v3784
    %v3786 = vadd.f32 %v3785, 1.0
    %v3787 = vrcp.pop %v3786
    %v3788 = vmul.f32 1.0, %v3787
    %v3789 = vadd.f32 %v3767, %v1765
    %v3790 = vmul.f32 %v3781, %v3789
    %v3791 = vadd.f32 %v3774, %v3790
    %v3792 = vtanh.pop %v3791
    %v3793 = vsub.f32 1.0, %v3788
    %v3794 = vmul.f32 %v3793, %v3792
    %v3795 = vmul.f32 %v3788, %v3460
    %v3796 = vadd.f32 %v3794, %v3795
    %3797 = vmatprep.subr.mxu0 %v1369
    %3798 = vmatpush1.msra.mxu0 %v1368
    %3799 = vmatprep.subr.mxu0 %v1366
    %3800 = vmatpush1.msra.mxu0 %v1365
    %3801 = vmatprep.subr.mxu0 %v1363
    %3802 = vmatpush1.msra.mxu0 %v1362
    %3803 = vmatprep.subr.mxu0 %v1360
    %3804 = vmatpush1.msra.mxu0 %v1359
    %3805 = vmatprep.subr.mxu0 %v1357
    %3806 = vmatpush1.msra.mxu0 %v1356
    %3807 = vmatprep.subr.mxu0 %v1354
    %3808 = vmatpush1.msra.mxu0 %v1353
    %3809 = vmatprep.subr.mxu0 %v1351
    %3810 = vmatpush1.msra.mxu0 %v1350
    %3811 = vmatprep.subr.mxu0 %v1348
    %3812 = vmatpush1.msra.mxu0 %v1347
    %3813 = vmatprep.subr.mxu0 %v1345
    %3814 = vmatpush1.msra.mxu0 %v1344
    %3815 = vmatprep.subr.mxu0 %v1342
    %3816 = vmatpush1.msra.mxu0 %v1341
    %3817 = vmatprep.subr.mxu0 %v1339
    %3818 = vmatpush1.msra.mxu0 %v1338
    %3819 = vmatprep.subr.mxu0 %v1336
    %3820 = vmatpush1.msra.mxu0 %v1335
    %3821 = vmatprep.subr.mxu0 %v1333
    %3822 = vmatpush1.msra.mxu0 %v1332
    %3823 = vmatprep.subr.mxu0 %v1330
    %3824 = vmatpush1.msra.mxu0 %v1329
    %3825 = vmatprep.subr.mxu0 %v1327
    %3826 = vmatpush1.msra.mxu0 %v1326
    %3827 = vmatprep.subr.mxu0 %v1324
    %3828 = vmatpush1.msra.mxu0 %v1323
    %3829 = vmatprep.subr.mxu0 0.0
    %3830 = vmatpush2.msra.mxu0 0.0
    %3831 = vmatprep.subr.mxu0 0.0
    %3832 = vmatpush2.msra.mxu0 0.0
    %3833 = vmatprep.subr.mxu0 0.0
    %3834 = vmatpush2.msra.mxu0 0.0
    %3835 = vmatprep.subr.mxu0 0.0
    %3836 = vmatpush2.msra.mxu0 0.0
    %3837 = vmatprep.subr.mxu0 0.0
    %3838 = vmatpush2.msra.mxu0 0.0
    %3839 = vmatprep.subr.mxu0 0.0
    %3840 = vmatpush2.msra.mxu0 0.0
    %3841 = vmatprep.subr.mxu0 0.0
    %3842 = vmatpush2.msra.mxu0 0.0
    %3843 = vmatprep.subr.mxu0 0.0
    %3844 = vmatpush2.msra.mxu0 0.0
    %3845 = vmatprep.subr.mxu0 0.0
    %3846 = vmatpush2.msra.mxu0 0.0
    %3847 = vmatprep.subr.mxu0 0.0
    %3848 = vmatpush2.msra.mxu0 0.0
    %3849 = vmatprep.subr.mxu0 0.0
    %3850 = vmatpush2.msra.mxu0 0.0
    %3851 = vmatprep.subr.mxu0 0.0
    %3852 = vmatpush2.msra.mxu0 0.0
    %3853 = vmatprep.subr.mxu0 0.0
    %3854 = vmatpush2.msra.mxu0 0.0
    %3855 = vmatprep.subr.mxu0 0.0
    %3856 = vmatpush2.msra.mxu0 0.0
    %3857 = vmatprep.subr.mxu0 0.0
    %3858 = vmatpush2.msra.mxu0 0.0
    %3859 = vmatprep.subr.mxu0 0.0
    %3860 = vmatpush2.msra.mxu0 0.0
    %3861 = vmatprep.mubr.f32.mxu0 0.0
    %3862 = vmatmul.mubr.f32.gmra.mxu0 %v3628
    %v3863 = vpop.f32.mrf.mxu0
    %v3864 = vadd.f32 0.0, %v3863
    %v3865 = vpop.f32.mrf.mxu0
    %v3866 = vadd.f32 0.0, %v3865
    %3867 = vdwg.mxu0
    %3868 = vmatprep.subr.mxu0 0.0
    %3869 = vmatpush1.msra.mxu0 %v1370
    %3870 = vmatprep.subr.mxu0 0.0
    %3871 = vmatpush1.msra.mxu0 %v1367
    %3872 = vmatprep.subr.mxu0 0.0
    %3873 = vmatpush1.msra.mxu0 %v1364
    %3874 = vmatprep.subr.mxu0 0.0
    %3875 = vmatpush1.msra.mxu0 %v1361
    %3876 = vmatprep.subr.mxu0 0.0
    %3877 = vmatpush1.msra.mxu0 %v1358
    %3878 = vmatprep.subr.mxu0 0.0
    %3879 = vmatpush1.msra.mxu0 %v1355
    %3880 = vmatprep.subr.mxu0 0.0
    %3881 = vmatpush1.msra.mxu0 %v1352
    %3882 = vmatprep.subr.mxu0 0.0
    %3883 = vmatpush1.msra.mxu0 %v1349
    %3884 = vmatprep.subr.mxu0 0.0
    %3885 = vmatpush1.msra.mxu0 %v1346
    %3886 = vmatprep.subr.mxu0 0.0
    %3887 = vmatpush1.msra.mxu0 %v1343
    %3888 = vmatprep.subr.mxu0 0.0
    %3889 = vmatpush1.msra.mxu0 %v1340
    %3890 = vmatprep.subr.mxu0 0.0
    %3891 = vmatpush1.msra.mxu0 %v1337
    %3892 = vmatprep.subr.mxu0 0.0
    %3893 = vmatpush1.msra.mxu0 %v1334
    %3894 = vmatprep.subr.mxu0 0.0
    %3895 = vmatpush1.msra.mxu0 %v1331
    %3896 = vmatprep.subr.mxu0 0.0
    %3897 = vmatpush1.msra.mxu0 %v1328
    %3898 = vmatprep.subr.mxu0 0.0
    %3899 = vmatpush1.msra.mxu0 %v1325
    %3900 = vmatprep.subr.mxu0 0.0
    %3901 = vmatpush2.msra.mxu0 0.0
    %3902 = vmatprep.subr.mxu0 0.0
    %3903 = vmatpush2.msra.mxu0 0.0
    %3904 = vmatprep.subr.mxu0 0.0
    %3905 = vmatpush2.msra.mxu0 0.0
    %3906 = vmatprep.subr.mxu0 0.0
    %3907 = vmatpush2.msra.mxu0 0.0
    %3908 = vmatprep.subr.mxu0 0.0
    %3909 = vmatpush2.msra.mxu0 0.0
    %3910 = vmatprep.subr.mxu0 0.0
    %3911 = vmatpush2.msra.mxu0 0.0
    %3912 = vmatprep.subr.mxu0 0.0
    %3913 = vmatpush2.msra.mxu0 0.0
    %3914 = vmatprep.subr.mxu0 0.0
    %3915 = vmatpush2.msra.mxu0 0.0
    %3916 = vmatprep.subr.mxu0 0.0
    %3917 = vmatpush2.msra.mxu0 0.0
    %3918 = vmatprep.subr.mxu0 0.0
    %3919 = vmatpush2.msra.mxu0 0.0
    %3920 = vmatprep.subr.mxu0 0.0
    %3921 = vmatpush2.msra.mxu0 0.0
    %3922 = vmatprep.subr.mxu0 0.0
    %3923 = vmatpush2.msra.mxu0 0.0
    %3924 = vmatprep.subr.mxu0 0.0
    %3925 = vmatpush2.msra.mxu0 0.0
    %3926 = vmatprep.subr.mxu0 0.0
    %3927 = vmatpush2.msra.mxu0 0.0
    %3928 = vmatprep.subr.mxu0 0.0
    %3929 = vmatpush2.msra.mxu0 0.0
    %3930 = vmatprep.subr.mxu0 0.0
    %3931 = vmatpush2.msra.mxu0 0.0
    %3932 = vmatprep.mubr.f32.mxu0 0.0
    %3933 = vmatmul.mubr.f32.gmra.mxu0 %v3628
    %v3934 = vpop.f32.mrf.mxu0
    %v3935 = vadd.f32 0.0, %v3934
    %v3936 = vpop.f32.mrf.mxu0
    %3937 = vdwg.mxu0
    %s3938 = smul.addr %s1741, 8
    %s3939 = scalar_lea.vmem [#allocation2], %s3938
    %v3940 = vld [vmem:[%s3939] sm:$0xff]
    %v3941 = vld [vmem:[%s3939 + $0x8] sm:$0xff]
    %v3942 = vld [vmem:[%s3939 + $0x10] sm:$0xff]
    %v3943 = vadd.f32 %v3940, %v3864
    %v3944 = vxor.u32 %v3943, 2147483648
    %v3945 = vmul.f32 %v3944, 1.442695
    %v3946 = vpow.pop %v3945
    %v3947 = vadd.f32 %v3946, 1.0
    %v3948 = vrcp.pop %v3947
    %v3949 = vmul.f32 1.0, %v3948
    %v3950 = vadd.f32 %v3941, %v3866
    %v3951 = vxor.u32 %v3950, 2147483648
    %v3952 = vmul.f32 %v3951, 1.442695
    %v3953 = vpow.pop %v3952
    %v3954 = vadd.f32 %v3953, 1.0
    %v3955 = vrcp.pop %v3954
    %v3956 = vmul.f32 1.0, %v3955
    %v3957 = vadd.f32 %v3935, %v1590
    %v3958 = vmul.f32 %v3949, %v3957
    %v3959 = vadd.f32 %v3942, %v3958
    %v3960 = vtanh.pop %v3959
    %v3961 = vsub.f32 1.0, %v3956
    %v3962 = vmul.f32 %v3961, %v3960
    %v3963 = vmul.f32 %v3956, %v3628
    %v3964 = vadd.f32 %v3962, %v3963
    %3965 = vmatprep.subr.mxu0 %v1418
    %3966 = vmatpush1.msra.mxu0 %v1417
    %3967 = vmatprep.subr.mxu0 %v1415
    %3968 = vmatpush1.msra.mxu0 %v1414
    %3969 = vmatprep.subr.mxu0 %v1412
    %3970 = vmatpush1.msra.mxu0 %v1411
    %3971 = vmatprep.subr.mxu0 %v1409
    %3972 = vmatpush1.msra.mxu0 %v1408
    %3973 = vmatprep.subr.mxu0 %v1406
    %3974 = vmatpush1.msra.mxu0 %v1405
    %3975 = vmatprep.subr.mxu0 %v1403
    %3976 = vmatpush1.msra.mxu0 %v1402
    %3977 = vmatprep.subr.mxu0 %v1400
    %3978 = vmatpush1.msra.mxu0 %v1399
    %3979 = vmatprep.subr.mxu0 %v1397
    %3980 = vmatpush1.msra.mxu0 %v1396
    %3981 = vmatprep.subr.mxu0 %v1394
    %3982 = vmatpush1.msra.mxu0 %v1393
    %3983 = vmatprep.subr.mxu0 %v1391
    %3984 = vmatpush1.msra.mxu0 %v1390
    %3985 = vmatprep.subr.mxu0 %v1388
    %3986 = vmatpush1.msra.mxu0 %v1387
    %3987 = vmatprep.subr.mxu0 %v1385
    %3988 = vmatpush1.msra.mxu0 %v1384
    %3989 = vmatprep.subr.mxu0 %v1382
    %3990 = vmatpush1.msra.mxu0 %v1381
    %3991 = vmatprep.subr.mxu0 %v1379
    %3992 = vmatpush1.msra.mxu0 %v1378
    %3993 = vmatprep.subr.mxu0 %v1376
    %3994 = vmatpush1.msra.mxu0 %v1375
    %3995 = vmatprep.subr.mxu0 %v1373
    %3996 = vmatpush1.msra.mxu0 %v1372
    %3997 = vmatprep.subr.mxu0 0.0
    %3998 = vmatpush2.msra.mxu0 0.0
    %3999 = vmatprep.subr.mxu0 0.0
    %4000 = vmatpush2.msra.mxu0 0.0
    %4001 = vmatprep.subr.mxu0 0.0
    %4002 = vmatpush2.msra.mxu0 0.0
    %4003 = vmatprep.subr.mxu0 0.0
    %4004 = vmatpush2.msra.mxu0 0.0
    %4005 = vmatprep.subr.mxu0 0.0
    %4006 = vmatpush2.msra.mxu0 0.0
    %4007 = vmatprep.subr.mxu0 0.0
    %4008 = vmatpush2.msra.mxu0 0.0
    %4009 = vmatprep.subr.mxu0 0.0
    %4010 = vmatpush2.msra.mxu0 0.0
    %4011 = vmatprep.subr.mxu0 0.0
    %4012 = vmatpush2.msra.mxu0 0.0
    %4013 = vmatprep.subr.mxu0 0.0
    %4014 = vmatpush2.msra.mxu0 0.0
    %4015 = vmatprep.subr.mxu0 0.0
    %4016 = vmatpush2.msra.mxu0 0.0
    %4017 = vmatprep.subr.mxu0 0.0
    %4018 = vmatpush2.msra.mxu0 0.0
    %4019 = vmatprep.subr.mxu0 0.0
    %4020 = vmatpush2.msra.mxu0 0.0
    %4021 = vmatprep.subr.mxu0 0.0
    %4022 = vmatpush2.msra.mxu0 0.0
    %4023 = vmatprep.subr.mxu0 0.0
    %4024 = vmatpush2.msra.mxu0 0.0
    %4025 = vmatprep.subr.mxu0 0.0
    %4026 = vmatpush2.msra.mxu0 0.0
    %4027 = vmatprep.subr.mxu0 0.0
    %4028 = vmatpush2.msra.mxu0 0.0
    %4029 = vmatprep.mubr.f32.mxu0 0.0
    %4030 = vmatmul.mubr.f32.gmra.mxu0 %v3796
    %v4031 = vpop.f32.mrf.mxu0
    %v4032 = vadd.f32 0.0, %v4031
    %v4033 = vpop.f32.mrf.mxu0
    %v4034 = vadd.f32 0.0, %v4033
    %4035 = vdwg.mxu0
    %4036 = vmatprep.subr.mxu0 0.0
    %4037 = vmatpush1.msra.mxu0 %v1419
    %4038 = vmatprep.subr.mxu0 0.0
    %4039 = vmatpush1.msra.mxu0 %v1416
    %4040 = vmatprep.subr.mxu0 0.0
    %4041 = vmatpush1.msra.mxu0 %v1413
    %4042 = vmatprep.subr.mxu0 0.0
    %4043 = vmatpush1.msra.mxu0 %v1410
    %4044 = vmatprep.subr.mxu0 0.0
    %4045 = vmatpush1.msra.mxu0 %v1407
    %4046 = vmatprep.subr.mxu0 0.0
    %4047 = vmatpush1.msra.mxu0 %v1404
    %4048 = vmatprep.subr.mxu0 0.0
    %4049 = vmatpush1.msra.mxu0 %v1401
    %4050 = vmatprep.subr.mxu0 0.0
    %4051 = vmatpush1.msra.mxu0 %v1398
    %4052 = vmatprep.subr.mxu0 0.0
    %4053 = vmatpush1.msra.mxu0 %v1395
    %4054 = vmatprep.subr.mxu0 0.0
    %4055 = vmatpush1.msra.mxu0 %v1392
    %4056 = vmatprep.subr.mxu0 0.0
    %4057 = vmatpush1.msra.mxu0 %v1389
    %4058 = vmatprep.subr.mxu0 0.0
    %4059 = vmatpush1.msra.mxu0 %v1386
    %4060 = vmatprep.subr.mxu0 0.0
    %4061 = vmatpush1.msra.mxu0 %v1383
    %4062 = vmatprep.subr.mxu0 0.0
    %4063 = vmatpush1.msra.mxu0 %v1380
    %4064 = vmatprep.subr.mxu0 0.0
    %4065 = vmatpush1.msra.mxu0 %v1377
    %4066 = vmatprep.subr.mxu0 0.0
    %4067 = vmatpush1.msra.mxu0 %v1374
    %4068 = vmatprep.subr.mxu0 0.0
    %4069 = vmatpush2.msra.mxu0 0.0
    %4070 = vmatprep.subr.mxu0 0.0
    %4071 = vmatpush2.msra.mxu0 0.0
    %4072 = vmatprep.subr.mxu0 0.0
    %4073 = vmatpush2.msra.mxu0 0.0
    %4074 = vmatprep.subr.mxu0 0.0
    %4075 = vmatpush2.msra.mxu0 0.0
    %4076 = vmatprep.subr.mxu0 0.0
    %4077 = vmatpush2.msra.mxu0 0.0
    %4078 = vmatprep.subr.mxu0 0.0
    %4079 = vmatpush2.msra.mxu0 0.0
    %4080 = vmatprep.subr.mxu0 0.0
    %4081 = vmatpush2.msra.mxu0 0.0
    %4082 = vmatprep.subr.mxu0 0.0
    %4083 = vmatpush2.msra.mxu0 0.0
    %4084 = vmatprep.subr.mxu0 0.0
    %4085 = vmatpush2.msra.mxu0 0.0
    %4086 = vmatprep.subr.mxu0 0.0
    %4087 = vmatpush2.msra.mxu0 0.0
    %4088 = vmatprep.subr.mxu0 0.0
    %4089 = vmatpush2.msra.mxu0 0.0
    %4090 = vmatprep.subr.mxu0 0.0
    %4091 = vmatpush2.msra.mxu0 0.0
    %4092 = vmatprep.subr.mxu0 0.0
    %4093 = vmatpush2.msra.mxu0 0.0
    %4094 = vmatprep.subr.mxu0 0.0
    %4095 = vmatpush2.msra.mxu0 0.0
    %4096 = vmatprep.subr.mxu0 0.0
    %4097 = vmatpush2.msra.mxu0 0.0
    %4098 = vmatprep.subr.mxu0 0.0
    %4099 = vmatpush2.msra.mxu0 0.0
    %4100 = vmatprep.mubr.f32.mxu0 0.0
    %4101 = vmatmul.mubr.f32.gmra.mxu0 %v3796
    %v4102 = vpop.f32.mrf.mxu0
    %v4103 = vadd.f32 0.0, %v4102
    %v4104 = vpop.f32.mrf.mxu0
    %4105 = vdwg.mxu0
    %s4106 = smul.addr %s1566, 8
    %s4107 = scalar_lea.vmem [#allocation3], %s4106
    %v4108 = vld [vmem:[%s4107] sm:$0xff]
    %v4109 = vld [vmem:[%s4107 + $0x8] sm:$0xff]
    %v4110 = vld [vmem:[%s4107 + $0x10] sm:$0xff]
    %v4111 = vadd.f32 %v4108, %v4032
    %v4112 = vxor.u32 %v4111, 2147483648
    %v4113 = vmul.f32 %v4112, 1.442695
    %v4114 = vpow.pop %v4113
    %v4115 = vadd.f32 %v4114, 1.0
    %v4116 = vrcp.pop %v4115
    %v4117 = vmul.f32 1.0, %v4116
    %v4118 = vadd.f32 %v4109, %v4034
    %v4119 = vxor.u32 %v4118, 2147483648
    %v4120 = vmul.f32 %v4119, 1.442695
    %v4121 = vpow.pop %v4120
    %v4122 = vadd.f32 %v4121, 1.0
    %v4123 = vrcp.pop %v4122
    %v4124 = vmul.f32 1.0, %v4123
    %v4125 = vadd.f32 %v4103, %v1765
    %v4126 = vmul.f32 %v4117, %v4125
    %v4127 = vadd.f32 %v4110, %v4126
    %v4128 = vtanh.pop %v4127
    %v4129 = vsub.f32 1.0, %v4124
    %v4130 = vmul.f32 %v4129, %v4128
    %v4131 = vmul.f32 %v4124, %v3796
    %v4132 = vadd.f32 %v4130, %v4131
    %4133 = vst [vmem:[#allocation4] sm:$0xff] %v3964
    %4134 = vst [vmem:[#allocation5] sm:$0xff] %v4132
    // Predicated region
    $region42: #{video_encoder_forward.4} parent=1 // pred_check
      %p4135 = pneg %p1317
    $region43: #{video_encoder_forward.4} parent=1 // pred_check_branch
      %4137 = sbr.rel (%p4135) target = $region45
    $region44: #{video_encoder_forward.4} parent=1 // pred_region
      %4138 = vst [vmem:[%s8] sm:$0xff] %v3964
      %s4139 = scalar_lea.vmem %s8, 8
      %4140 = vst [vmem:[%s4139] sm:$0xff] %v4132
    $region45: #{video_encoder_forward.4} parent=1 // pred_fallthru
      _
    // Predicated region
    $region46: #{video_encoder_forward.4} parent=1 // pred_check
      _
    $region47: #{video_encoder_forward.4} parent=1 // pred_check_branch
      %4142 = sbr.rel (0) target = $region49
    $region48: #{video_encoder_forward.4} parent=1 // pred_region
      _
    $region49: #{video_encoder_forward.4} parent=1 // pred_fallthru
      _
    // Predicated region
    $region50: #{video_encoder_forward.4} parent=1 // pred_check
      _
    $region51: #{video_encoder_forward.4} parent=1 // pred_check_branch
      %4144 = sbr.rel (0) target = $region53
    $region52: #{video_encoder_forward.4} parent=1 // pred_region
      _
    $region53: #{video_encoder_forward.4} parent=1 // pred_fallthru
      _
    %4145 = vsyncpa [#allocation7], 1

</llo_original>
